<compile_context>
chip_gen: v5e
topology: v5e:2x2
jax: 0.10.0
libtpu: 0.0.40
codegen_flags: <defaults>
</compile_context>

<pallas_src>
import functools
import math

import numpy as np
import jax
import jax.numpy as jnp
from jax.experimental import pallas as pl
from jax.experimental.pallas import tpu as pltpu


# ------------------------------ small helpers --------------------------------

_CONV_CFG = {10: (18, 5, 14), 20: (15, 4, 10), 25: (16, 3, 14), 50: (12, 2, 10)}


def _round_up(n, m):
    return ((n + m - 1) // m) * m


def _pad_rows(x, rows):
    pad = rows - x.shape[0]
    if pad > 0:
        x = jnp.pad(x, ((0, pad), (0, 0)))
    return x


def _swish(x):
    # x * sigmoid(x); the reciprocal runs on the EUP slot (≈ free vs VALU divide)
    return x * pl.reciprocal(1.0 + jnp.exp(-x), approx=True)


# ------------------------------ fused Pallas kernel ---------------------------

def _mpnn_fused_kernel(
        # resident graph / feature inputs
        nodefeat_ref, gv_ref, mask_ref, invdeg_ref, ulast_ref,
        sdst_ref, ssrc_ref, agg_ref, pool_ref,
        # embedding MLP weights (used on first grid step only)
        e1w_ref, e1b_ref, e2w_ref, e2b_ref,
        # per-layer stacked weights (BlockSpec selects layer slice)
        wabf_ref, wabaux_ref, m1b_ref, m2w_ref, m2b_ref,
        u1fa_ref, u1gv_ref, u1b_ref, u2w_ref, u2b_ref,
        # output MLP weights (used on last grid step only)
        t1_ref, b1e_ref, t2_ref, b2_ref,
        # output + scratch
        o_ref, f_scr,
        *, hid, n_vars, eps):
    layer = pl.program_id(0)

    # ---- embedding MLP (step 0): f = swish(swish(x @ W1 + b1) @ W2 + b2) ----
    @pl.when(layer == 0)
    def _embed():
        x = nodefeat_ref[...]                                   # bf16 [NP, IN]
        h = jnp.dot(x, e1w_ref[...], preferred_element_type=jnp.float32) + e1b_ref[...]
        h = _swish(h)
        h = jnp.dot(h.astype(jnp.bfloat16), e2w_ref[...],
                    preferred_element_type=jnp.float32) + e2b_ref[...]
        f_scr[...] = _swish(h)

    f = f_scr[...]                                              # f32 [NP, H]
    fb = f.astype(jnp.bfloat16)

    # ---- message net 1, decomposed into node space:
    #   msg_pre[e] = A[dst[e]] + B[src[e]] + b
    #   [A | B] = f @ [W_xi | W_xj] + aux @ [[W_u|-W_u],[W_pos|-W_pos],[W_gv|0]]
    ab = (jnp.dot(fb, wabf_ref[0], preferred_element_type=jnp.float32)
          + jnp.dot(nodefeat_ref[...], wabaux_ref[0], preferred_element_type=jnp.float32))
    a_part = ab[:, :hid].astype(jnp.bfloat16)
    b_part = ab[:, hid:].astype(jnp.bfloat16)
    msg = (jnp.dot(sdst_ref[...], a_part, preferred_element_type=jnp.float32)
           + jnp.dot(ssrc_ref[...], b_part, preferred_element_type=jnp.float32)
           + m1b_ref[0])
    msg = _swish(msg)
    # ---- message net 2
    msg = _swish(jnp.dot(msg.astype(jnp.bfloat16), m2w_ref[0],
                         preferred_element_type=jnp.float32) + m2b_ref[0])

    # ---- mean aggregation over incoming edges: 0/1 adjacency (bf16 MXU) then
    #      f32 1/deg scaling
    agg = jnp.dot(agg_ref[...], msg.astype(jnp.bfloat16),
                  preferred_element_type=jnp.float32) * invdeg_ref[...]

    # ---- update net: merged [f | agg] matmul, gvars as a broadcast outer product
    u1gv = u1gv_ref[0]
    gv = gv_ref[...]
    gvc = gv[:, 0:1] * u1gv[0:1, :]
    for v in range(1, n_vars):
        gvc = gvc + gv[:, v:v + 1] * u1gv[v:v + 1, :]
    fa = jnp.concatenate([fb, agg.astype(jnp.bfloat16)], axis=1)     # [NP, 2H]
    h = jnp.dot(fa, u1fa_ref[0], preferred_element_type=jnp.float32) + gvc + u1b_ref[0]
    h = _swish(h)
    h = _swish(jnp.dot(h.astype(jnp.bfloat16), u2w_ref[0],
                       preferred_element_type=jnp.float32) + u2b_ref[0])

    fn = f + h                     # residual (in_features == out_features), f32

    # ---- per-graph InstanceNorm (affine=False, biased variance), f32 stats.
    #      pool[i,j] = 1/|graph| when i,j share a graph (0 for padded rows),
    #      so mean/var are broadcast back to nodes via one MXU matmul each.
    mean = jnp.dot(pool_ref[...], fn, preferred_element_type=jnp.float32)
    diff = (fn - mean) * mask_ref[...]
    var = jnp.dot(pool_ref[...], diff * diff, preferred_element_type=jnp.float32)
    f_new = diff * jax.lax.rsqrt(var + eps)
    f_scr[...] = f_new

    # ---- output MLP (last step): Conv1d(1,8,k1,s1) -> Swish -> Conv1d(8,1,k2)
    #      as two Toeplitz matmuls with dt folded in; lane-dense 128-wide store.
    @pl.when(layer == pl.num_programs(0) - 1)
    def _output():
        hb = f_new.astype(jnp.bfloat16)
        h1 = jnp.dot(hb, t1_ref[...], preferred_element_type=jnp.float32) + b1e_ref[...]
        h1 = _swish(h1)
        d = jnp.dot(h1.astype(jnp.bfloat16), t2_ref[...],
                    preferred_element_type=jnp.float32) + b2_ref[...]
        o_ref[...] = ulast_ref[...] + d


# ------------------------------ kernel wrapper --------------------------------

def fused_mpnn_call(prep, nodefeat_bf, gv, u_last, *, eps=1e-5):
    np_rows = nodefeat_bf.shape[0]
    hid = prep["emb1_w"].shape[1]
    layers = prep["wab_f"].shape[0]
    n_vars = gv.shape[1]
    out_lanes = prep["t2dt"].shape[1]
    ep_rows = prep["s_dst"].shape[0]
    in_dim = nodefeat_bf.shape[1]
    l18 = prep["t1"].shape[1]

    const_args = [nodefeat_bf, gv, prep["mask"], prep["inv_deg"], u_last,
                  prep["s_dst"], prep["s_src"], prep["agg01"], prep["pool"],
                  prep["emb1_w"], prep["emb1_b"], prep["emb2_w"], prep["emb2_b"]]
    layer_args = [prep["wab_f"], prep["wab_aux"], prep["m1_b"], prep["m2_w"], prep["m2_b"],
                  prep["u1_fa"], prep["u1_gv"], prep["u1_b"], prep["u2_w"], prep["u2_b"]]
    tail_args = [prep["t1"], prep["b1e"], prep["t2dt"], prep["b2dt"]]
    args = const_args + layer_args + tail_args

    def const_spec(a):
        nd = a.ndim
        return pl.BlockSpec(tuple(a.shape), lambda l, nd=nd: (0,) * nd)

    def layer_spec(a):
        nd = a.ndim
        return pl.BlockSpec((1,) + tuple(a.shape[1:]),
                            lambda l, nd=nd: (l,) + (0,) * (nd - 1))

    in_specs = ([const_spec(a) for a in const_args]
                + [layer_spec(a) for a in layer_args]
                + [const_spec(a) for a in tail_args])

    # Advisory cost estimate (rough matmul flops / exp count / bytes moved once).
    def mm(m, k, n):
        return 2 * m * k * n
    per_layer = (mm(np_rows, hid, 2 * hid) + mm(np_rows, in_dim, 2 * hid)
                 + 2 * mm(ep_rows, np_rows, hid) + mm(ep_rows, hid, hid)
                 + mm(np_rows, ep_rows, hid) + mm(np_rows, 2 * hid, hid)
                 + mm(np_rows, hid, hid) + 2 * mm(np_rows, np_rows, hid))
    flops = (mm(np_rows, in_dim, hid) + mm(np_rows, hid, hid)
             + layers * per_layer
             + mm(np_rows, hid, l18) + mm(np_rows, l18, out_lanes))
    trans = (2 * np_rows * hid + layers * (2 * ep_rows * hid + 2 * np_rows * hid)
             + np_rows * l18)
    bytes_accessed = (sum(int(np.prod(a.shape)) * np.dtype(a.dtype).itemsize for a in args)
                      + np_rows * out_lanes * 4)

    kernel = functools.partial(_mpnn_fused_kernel, hid=hid, n_vars=n_vars, eps=eps)
    return pl.pallas_call(
        kernel,
        out_shape=jax.ShapeDtypeStruct((np_rows, out_lanes), jnp.float32),
        grid_spec=pltpu.PrefetchScalarGridSpec(
            num_scalar_prefetch=0,
            grid=(layers,),
            in_specs=in_specs,
            out_specs=pl.BlockSpec((np_rows, out_lanes), lambda l: (0, 0)),
            scratch_shapes=[pltpu.VMEM((np_rows, hid), jnp.float32)]),
        compiler_params=pltpu.CompilerParams(dimension_semantics=("arbitrary",)),
        cost_estimate=pl.CostEstimate(flops=int(flops), transcendentals=int(trans),
                                      bytes_accessed=int(bytes_accessed)),
    )(*args)


# ------------------------------ parameters --------------------------------

def init_params(key, *, tw, hid, sd, n_eq, layers):
    """Raw parameters equivalent to the PyTorch module's Linear/Conv1d weights."""
    n_vars = n_eq + 1
    keys = iter(jax.random.split(key, 2 + 4 * layers + 2))

    def lin(fi, fo):
        kw, kb = jax.random.split(next(keys))
        bound = 1.0 / math.sqrt(fi)
        w = jax.random.uniform(kw, (fi, fo), jnp.float32, -bound, bound)
        b = jax.random.uniform(kb, (fo,), jnp.float32, -bound, bound)
        return w, b

    p = {}
    p["emb1_w"], p["emb1_b"] = lin(tw + sd + 1 + n_eq, hid)
    p["emb2_w"], p["emb2_b"] = lin(hid, hid)
    p["gnn"] = []
    for _ in range(layers):
        lp = {}
        lp["m1_w"], lp["m1_b"] = lin(2 * hid + tw + sd + n_vars, hid)
        lp["m2_w"], lp["m2_b"] = lin(hid, hid)
        lp["u1_w"], lp["u1_b"] = lin(hid + hid + n_vars, hid)
        lp["u2_w"], lp["u2_b"] = lin(hid, hid)
        p["gnn"].append(lp)
    k1, _, k2 = _CONV_CFG[tw]
    p["c1_w"], p["c1_b"] = lin(1 * k1, 8)     # Conv1d(1, 8, k1) as [k1, 8]
    p["c2_w"], p["c2_b"] = lin(8 * k2, 1)     # Conv1d(8, 1, k2) as [k2*8, 1]
    return p


def prepare_params(params, *, tw, hid, sd, n_eq, pde):
    """One-time (outside jit) repack of raw weights into kernel-ready form:
    node-space message-net decomposition, stacked [L,...] layer weights (bf16),
    Toeplitz matrices for the output convolutions with dt folded in."""
    n_vars = n_eq + 1
    H = hid
    bf = jnp.bfloat16
    prep = {
        "emb1_w": params["emb1_w"].astype(bf),
        "emb1_b": params["emb1_b"].reshape(1, -1),
        "emb2_w": params["emb2_w"].astype(bf),
        "emb2_b": params["emb2_b"].reshape(1, -1),
    }

    wab_f_l, wab_aux_l, m1b_l, m2w_l, m2b_l = [], [], [], [], []
    u1fa_l, u1gv_l, u1b_l, u2w_l, u2b_l = [], [], [], [], []
    for lp in params["gnn"]:
        w = lp["m1_w"]
        w_xi, w_xj = w[0:H], w[H:2 * H]                       # x_i (dst), x_j (src)
        w_u = w[2 * H:2 * H + tw]                             # u_i - u_j
        w_pos = w[2 * H + tw:2 * H + tw + sd]                 # pos_i - pos_j
        w_gv = w[2 * H + tw + sd:2 * H + tw + sd + n_vars]    # variables_i
        wab_f_l.append(jnp.concatenate([w_xi, w_xj], axis=1))                 # [H, 2H]
        wab_aux_l.append(jnp.concatenate([
            jnp.concatenate([w_u, -w_u], axis=1),
            jnp.concatenate([w_pos, -w_pos], axis=1),
            jnp.concatenate([w_gv, jnp.zeros_like(w_gv)], axis=1)], axis=0))  # [tw+sd+nv, 2H]
        m1b_l.append(lp["m1_b"].reshape(1, -1))
        m2w_l.append(lp["m2_w"])
        m2b_l.append(lp["m2_b"].reshape(1, -1))
        u1 = lp["u1_w"]
        u1fa_l.append(jnp.concatenate([u1[0:H], u1[H:2 * H]], axis=0))        # [2H, H]
        u1gv_l.append(u1[2 * H:])
        u1b_l.append(lp["u1_b"].reshape(1, -1))
        u2w_l.append(lp["u2_w"])
        u2b_l.append(lp["u2_b"].reshape(1, -1))

    prep["wab_f"] = jnp.stack(wab_f_l).astype(bf)      # [L, H, 2H]
    prep["wab_aux"] = jnp.stack(wab_aux_l).astype(bf)  # [L, tw+sd+nv, 2H]
    prep["m1_b"] = jnp.stack(m1b_l)                    # [L, 1, H]
    prep["m2_w"] = jnp.stack(m2w_l).astype(bf)
    prep["m2_b"] = jnp.stack(m2b_l)
    prep["u1_fa"] = jnp.stack(u1fa_l).astype(bf)       # [L, 2H, H]
    prep["u1_gv"] = jnp.stack(u1gv_l)                  # [L, nv, H] (f32, elementwise use)
    prep["u1_b"] = jnp.stack(u1b_l)
    prep["u2_w"] = jnp.stack(u2w_l).astype(bf)
    prep["u2_b"] = jnp.stack(u2b_l)

    # Output convs as Toeplitz matmuls, dt cumsum folded into T2 / bias,
    # zero-padded to a lane-dense 128-wide output (sliced to tw outside).
    k1, s1, k2 = _CONV_CFG[tw]
    l1 = (hid - k1) // s1 + 1
    l2 = l1 - k2 + 1
    assert l2 == tw
    out_lanes = _round_up(tw, 128)
    dt_step = (pde["tmax"] - pde["tmin"]) / pde["resolution_t"]
    dt = dt_step * np.arange(1, tw + 1, dtype=np.float32)
    c1w = np.asarray(params["c1_w"], np.float32)              # [k1, 8]
    c1b = np.asarray(params["c1_b"], np.float32)              # [8]
    c2w = np.asarray(params["c2_w"], np.float32).reshape(k2, 8)
    c2b = float(np.asarray(params["c2_b"], np.float32)[0])
    t1 = np.zeros((hid, l1 * 8), np.float32)
    for p_ in range(l1):
        t1[p_ * s1:p_ * s1 + k1, p_ * 8:(p_ + 1) * 8] = c1w   # T1[p*s1+k, p*8+c]=w1[k,c]
    t2 = np.zeros((l1 * 8, out_lanes), np.float32)
    flat2 = c2w.reshape(-1)                                   # index k*8+c
    for t_ in range(tw):
        t2[t_ * 8:(t_ + k2) * 8, t_] = flat2 * dt[t_]         # dt folded into columns
    b2dt = np.zeros((1, out_lanes), np.float32)
    b2dt[0, :tw] = c2b * dt
    prep["t1"] = jnp.asarray(t1).astype(bf)
    prep["b1e"] = jnp.asarray(np.tile(c1b, l1).reshape(1, l1 * 8))
    prep["t2dt"] = jnp.asarray(t2).astype(bf)
    prep["b2dt"] = jnp.asarray(b2dt)
    return prep


def build_graph_matrices(src, dst, batch_ids, nn_, np_rows, ep_rows):
    """One-time (outside jit): one-hot edge-selection matrices, 0/1 adjacency +
    1/deg scale for scatter-mean, valid-node mask, and the per-graph pooling
    matrix used for InstanceNorm statistics."""
    src = np.asarray(src)
    dst = np.asarray(dst)
    batch_ids = np.asarray(batch_ids)
    e = src.shape[0]
    s_dst = np.zeros((ep_rows, np_rows), np.float32)
    s_src = np.zeros((ep_rows, np_rows), np.float32)
    s_dst[np.arange(e), dst] = 1.0
    s_src[np.arange(e), src] = 1.0
    agg01 = np.zeros((np_rows, ep_rows), np.float32)
    agg01[dst, np.arange(e)] = 1.0
    deg = np.zeros((np_rows,), np.float32)
    np.add.at(deg, dst, 1.0)
    inv_deg = (1.0 / np.maximum(deg, 1.0)).reshape(np_rows, 1).astype(np.float32)
    mask = np.zeros((np_rows, 1), np.float32)
    mask[:nn_, 0] = 1.0
    pool = np.zeros((np_rows, np_rows), np.float32)
    for g in range(int(batch_ids.max()) + 1):
        idx = np.nonzero(batch_ids == g)[0]
        pool[np.ix_(idx, idx)] = 1.0 / float(len(idx))
    return {
        "s_dst": jnp.asarray(s_dst).astype(jnp.bfloat16),
        "s_src": jnp.asarray(s_src).astype(jnp.bfloat16),
        "agg01": jnp.asarray(agg01).astype(jnp.bfloat16),
        "inv_deg": jnp.asarray(inv_deg),
        "mask": jnp.asarray(mask),
        "pool": jnp.asarray(pool),
    }


# ------------------------------ forward pass --------------------------------

def mpnn_forward(prep, u, x_pos, t_pos, variables, *, pde, tw, np_rows, nn):
    tmax = pde["tmax"]
    domain = pde["spatial_domain"]

    t_n = (t_pos / tmax)[:, None]
    scale = jnp.array([hi - lo for (lo, hi) in domain], jnp.float32)
    xp = x_pos / scale[None, :]
    gv = jnp.concatenate([t_n, variables], axis=-1)                   # [NN, n_vars]
    # node features [u | x | t | vars] == embedding input == message-aux input
    nodefeat = _pad_rows(jnp.concatenate([u, xp, gv], axis=-1), np_rows)
    gv_p = _pad_rows(gv, np_rows)
    u_last = _pad_rows(u[:, -1:], np_rows)

    out = fused_mpnn_call(prep, nodefeat.astype(jnp.bfloat16), gv_p, u_last)
    return out[:nn, :tw]


# ------------------------------ pure-JAX reference ----------------------------

def mpnn_reference(params, u, x_pos, t_pos, variables, src, dst, batch_ids,
                   *, pde, tw, hid, sd, n_eq, eps=1e-5):
    n_vars = n_eq + 1
    del n_vars, sd
    tmax, tmin, res_t = pde["tmax"], pde["tmin"], pde["resolution_t"]
    scale = jnp.array([hi - lo for (lo, hi) in pde["spatial_domain"]], jnp.float32)
    xp = x_pos / scale[None, :]
    t_n = (t_pos / tmax)[:, None]
    gv = jnp.concatenate([t_n, variables], axis=-1)
    swish = lambda z: z * jax.nn.sigmoid(z)
    nn_ = u.shape[0]
    n_graphs = int(np.max(np.asarray(batch_ids))) + 1

    node_in = jnp.concatenate([u, xp, gv], axis=-1)
    f = swish(node_in @ params["emb1_w"] + params["emb1_b"])
    f = swish(f @ params["emb2_w"] + params["emb2_b"])

    ones_e = jnp.ones((src.shape[0],), jnp.float32)
    deg = jax.ops.segment_sum(ones_e, dst, num_segments=nn_)
    counts = jax.ops.segment_sum(jnp.ones((nn_,), jnp.float32), batch_ids,
                                 num_segments=n_graphs)

    for lp in params["gnn"]:
        m_in = jnp.concatenate([f[dst], f[src], u[dst] - u[src],
                                xp[dst] - xp[src], gv[dst]], axis=-1)
        m = swish(m_in @ lp["m1_w"] + lp["m1_b"])
        m = swish(m @ lp["m2_w"] + lp["m2_b"])
        agg = jax.ops.segment_sum(m, dst, num_segments=nn_) / jnp.maximum(deg, 1.0)[:, None]
        upd_in = jnp.concatenate([f, agg, gv], axis=-1)
        h = swish(upd_in @ lp["u1_w"] + lp["u1_b"])
        h = swish(h @ lp["u2_w"] + lp["u2_b"])
        fn = f + h
        mean = jax.ops.segment_sum(fn, batch_ids, num_segments=n_graphs) / counts[:, None]
        d = fn - mean[batch_ids]
        var = jax.ops.segment_sum(d * d, batch_ids, num_segments=n_graphs) / counts[:, None]
        f = d / jnp.sqrt(var[batch_ids] + eps)

    k1, s1, k2 = _CONV_CFG[tw]
    l1 = (hid - k1) // s1 + 1
    c1_w, c1_b = params["c1_w"], params["c1_b"]
    c2_w = params["c2_w"].reshape(k2, 8)
    c2_b = params["c2_b"]
    h1 = jnp.stack([f[:, p * s1:p * s1 + k1] @ c1_w for p in range(l1)],
                   axis=1) + c1_b[None, None, :]
    h1 = swish(h1)
    diff = jnp.stack([jnp.sum(h1[:, t:t + k2, :] * c2_w[None], axis=(1, 2))
                      for t in range(tw)], axis=1) + c2_b[0]
    dt_step = (tmax - tmin) / res_t
    dt = dt_step * jnp.arange(1, tw + 1, dtype=jnp.float32)[None, :]
    return u[:, -1:] + dt * diff


# ---------------------------------- main -------------------------------------

if __name__ == "__main__":
    TW, HID, SD, N_EQ, LAYERS = 25, 128, 1, 0, 6   # HID=128 fixed by the output conv
    pde = dict(tmax=4.0, tmin=0.0, resolution_t=250.0,
               spatial_domain=[(-1.0, 1.0)])
    N_GRAPHS, NODES_PER = 3, 40                    # batch of 3 small graphs
    NN = N_GRAPHS * NODES_PER                      # 120 nodes total
    NP_ROWS = _round_up(NN, 128)                   # fill the MXU M dimension

    key = jax.random.PRNGKey(0)
    k_par, k_x = jax.random.split(key)
    params = init_params(k_par, tw=TW, hid=HID, sd=SD, n_eq=N_EQ, layers=LAYERS)
    prep = prepare_params(params, tw=TW, hid=HID, sd=SD, n_eq=N_EQ, pde=pde)

    data_x = jax.random.normal(k_x, (NN, TW, 1), jnp.float32)         # data.x
    u = data_x[..., 0]                                                # v = 0
    x_pos = jnp.asarray(
        np.tile(np.linspace(-1.0, 1.0, NODES_PER, dtype=np.float32), N_GRAPHS)[:, None])
    t_pos = jnp.full((NN,), 2.0, jnp.float32)
    variables = jnp.zeros((NN, N_EQ), jnp.float32)
    batch_ids = np.repeat(np.arange(N_GRAPHS, dtype=np.int32), NODES_PER)

    # per-graph 1-D chain: neighbors at distance 1 and 2, both directions
    src_l, dst_l = [], []
    for g in range(N_GRAPHS):
        base = g * NODES_PER
        for off in (1, 2):
            for i in range(NODES_PER - off):
                src_l += [base + i, base + i + off]
                dst_l += [base + i + off, base + i]
    src = np.array(src_l, np.int32)   # edge_index[0] (source j)
    dst = np.array(dst_l, np.int32)   # edge_index[1] (target i)
    E = src.shape[0]
    EP_ROWS = _round_up(E, 128)

    prep.update(build_graph_matrices(src, dst, batch_ids, NN, NP_ROWS, EP_ROWS))

    fwd = jax.jit(functools.partial(mpnn_forward, pde=pde, tw=TW,
                                    np_rows=NP_ROWS, nn=NN))
    out = fwd(prep, u, x_pos, t_pos, variables)
    out = jax.block_until_ready(out)

    assert out.shape == (NN, TW)
    assert bool(jnp.all(jnp.isfinite(out)))

    # pure-JAX f32 reference (bf16 MXU + approx sigmoid => loose tolerance)
    ref = mpnn_reference(params, u, x_pos, t_pos, variables,
                         jnp.asarray(src), jnp.asarray(dst), jnp.asarray(batch_ids),
                         pde=pde, tw=TW, hid=HID, sd=SD, n_eq=N_EQ)
    rel = float(jnp.linalg.norm(out - ref) / jnp.linalg.norm(ref))
    assert rel < 0.08, f"relative error too large: {rel}"

    print("KERNEL_OK")
</pallas_src>

<mosaic_0001>
module attributes {stable_mosaic.version = 11 : i64} {
  func.func @_mpnn_fused_kernel(%arg0: i32, %arg1: memref<128x27xbf16, #tpu.memory_space<vmem>>, %arg2: memref<128x1xf32, #tpu.memory_space<vmem>>, %arg3: memref<128x1xf32, #tpu.memory_space<vmem>>, %arg4: memref<128x1xf32, #tpu.memory_space<vmem>>, %arg5: memref<128x1xf32, #tpu.memory_space<vmem>>, %arg6: memref<512x128xbf16, #tpu.memory_space<vmem>>, %arg7: memref<512x128xbf16, #tpu.memory_space<vmem>>, %arg8: memref<128x512xbf16, #tpu.memory_space<vmem>>, %arg9: memref<128x128xf32, #tpu.memory_space<vmem>>, %arg10: memref<27x128xbf16, #tpu.memory_space<vmem>>, %arg11: memref<1x128xf32, #tpu.memory_space<vmem>>, %arg12: memref<128x128xbf16, #tpu.memory_space<vmem>>, %arg13: memref<1x128xf32, #tpu.memory_space<vmem>>, %arg14: memref<1x128x256xbf16, #tpu.memory_space<vmem>>, %arg15: memref<1x27x256xbf16, #tpu.memory_space<vmem>>, %arg16: memref<1x1x128xf32, #tpu.memory_space<vmem>>, %arg17: memref<1x128x128xbf16, #tpu.memory_space<vmem>>, %arg18: memref<1x1x128xf32, #tpu.memory_space<vmem>>, %arg19: memref<1x256x128xbf16, #tpu.memory_space<vmem>>, %arg20: memref<1x1x128xf32, #tpu.memory_space<vmem>>, %arg21: memref<1x1x128xf32, #tpu.memory_space<vmem>>, %arg22: memref<1x128x128xbf16, #tpu.memory_space<vmem>>, %arg23: memref<1x1x128xf32, #tpu.memory_space<vmem>>, %arg24: memref<128x304xbf16, #tpu.memory_space<vmem>>, %arg25: memref<1x304xf32, #tpu.memory_space<vmem>>, %arg26: memref<304x128xbf16, #tpu.memory_space<vmem>>, %arg27: memref<1x128xf32, #tpu.memory_space<vmem>>, %arg28: memref<128x128xf32, #tpu.memory_space<vmem>>, %arg29: memref<128x128xf32, #tpu.memory_space<vmem>>) attributes {dimension_semantics = [#tpu.dimension_semantics<arbitrary>], iteration_bounds = array<i64: 6>, scalar_prefetch = 0 : i64, scratch_operands = 1 : i64, tpu.core_type = #tpu.core_type<tc>, window_params = [{pipeline_mode = #tpu.pipeline_mode<synchronous>, transform_indices = @transform_0, window_bounds = array<i64: 128, 27>}, {pipeline_mode = #tpu.pipeline_mode<synchronous>, transform_indices = @transform_1, window_bounds = array<i64: 128, 1>}, {pipeline_mode = #tpu.pipeline_mode<synchronous>, transform_indices = @transform_2, window_bounds = array<i64: 128, 1>}, {pipeline_mode = #tpu.pipeline_mode<synchronous>, transform_indices = @transform_3, window_bounds = array<i64: 128, 1>}, {pipeline_mode = #tpu.pipeline_mode<synchronous>, transform_indices = @transform_4, window_bounds = array<i64: 128, 1>}, {pipeline_mode = #tpu.pipeline_mode<synchronous>, transform_indices = @transform_5, window_bounds = array<i64: 512, 128>}, {pipeline_mode = #tpu.pipeline_mode<synchronous>, transform_indices = @transform_6, window_bounds = array<i64: 512, 128>}, {pipeline_mode = #tpu.pipeline_mode<synchronous>, transform_indices = @transform_7, window_bounds = array<i64: 128, 512>}, {pipeline_mode = #tpu.pipeline_mode<synchronous>, transform_indices = @transform_8, window_bounds = array<i64: 128, 128>}, {pipeline_mode = #tpu.pipeline_mode<synchronous>, transform_indices = @transform_9, window_bounds = array<i64: 27, 128>}, {pipeline_mode = #tpu.pipeline_mode<synchronous>, transform_indices = @transform_10, window_bounds = array<i64: 1, 128>}, {pipeline_mode = #tpu.pipeline_mode<synchronous>, transform_indices = @transform_11, window_bounds = array<i64: 128, 128>}, {pipeline_mode = #tpu.pipeline_mode<synchronous>, transform_indices = @transform_12, window_bounds = array<i64: 1, 128>}, {transform_indices = @transform_13, window_bounds = array<i64: 1, 128, 256>}, {transform_indices = @transform_14, window_bounds = array<i64: 1, 27, 256>}, {transform_indices = @transform_15, window_bounds = array<i64: 1, 1, 128>}, {transform_indices = @transform_16, window_bounds = array<i64: 1, 128, 128>}, {transform_indices = @transform_17, window_bounds = array<i64: 1, 1, 128>}, {transform_indices = @transform_18, window_bounds = array<i64: 1, 256, 128>}, {transform_indices = @transform_19, window_bounds = array<i64: 1, 1, 128>}, {transform_indices = @transform_20, window_bounds = array<i64: 1, 1, 128>}, {transform_indices = @transform_21, window_bounds = array<i64: 1, 128, 128>}, {transform_indices = @transform_22, window_bounds = array<i64: 1, 1, 128>}, {pipeline_mode = #tpu.pipeline_mode<synchronous>, transform_indices = @transform_23, window_bounds = array<i64: 128, 304>}, {pipeline_mode = #tpu.pipeline_mode<synchronous>, transform_indices = @transform_24, window_bounds = array<i64: 1, 304>}, {pipeline_mode = #tpu.pipeline_mode<synchronous>, transform_indices = @transform_25, window_bounds = array<i64: 304, 128>}, {pipeline_mode = #tpu.pipeline_mode<synchronous>, transform_indices = @transform_26, window_bounds = array<i64: 1, 128>}, {pipeline_mode = #tpu.pipeline_mode<synchronous>, transform_indices = @transform_27, window_bounds = array<i64: 128, 128>}]} {
    %c0_i32 = arith.constant 0 : i32
    %0 = arith.cmpi eq, %arg0, %c0_i32 : i32
    %1 = arith.extui %0 : i1 to i32
    %c0_i32_0 = arith.constant 0 : i32
    %2 = arith.cmpi ne, %1, %c0_i32_0 : i32
    scf.if %2 {
      %c0_71 = arith.constant 0 : index
      %c0_72 = arith.constant 0 : index
      %110 = vector.load %arg1[%c0_71, %c0_72] : memref<128x27xbf16, #tpu.memory_space<vmem>>, vector<128x27xbf16>
      %c0_73 = arith.constant 0 : index
      %c0_74 = arith.constant 0 : index
      %111 = vector.load %arg10[%c0_73, %c0_74] : memref<27x128xbf16, #tpu.memory_space<vmem>>, vector<27x128xbf16>
      %cst_75 = arith.constant dense<0.000000e+00> : vector<128x128xf32>
      %112 = tpu.matmul %110, %111, %cst_75 {dimension_numbers = #tpu.dot_dimension_numbers<[1], [0], [0], [1], [0, 0, 1, 1], [], []>} : vector<128x27xbf16>, vector<27x128xbf16>, vector<128x128xf32> -> vector<128x128xf32>
      %c0_76 = arith.constant 0 : index
      %c0_77 = arith.constant 0 : index
      %113 = vector.load %arg11[%c0_76, %c0_77] : memref<1x128xf32, #tpu.memory_space<vmem>>, vector<1x128xf32>
      %114 = vector.broadcast %113 : vector<1x128xf32> to vector<128x128xf32>
      %115 = arith.addf %112, %114 : vector<128x128xf32>
      %cst_78 = arith.constant 0.000000e+00 : f32
      %116 = vector.broadcast %cst_78 : f32 to vector<128x128xf32>
      %117 = arith.subf %116, %115 : vector<128x128xf32>
      %118 = math.exp %117 : vector<128x128xf32>
      %cst_79 = arith.constant 1.000000e+00 : f32
      %119 = vector.broadcast %cst_79 : f32 to vector<128x128xf32>
      %120 = arith.addf %119, %118 : vector<128x128xf32>
      %121 = tpu.reciprocal %120 {approx = true} : vector<128x128xf32> -> vector<128x128xf32>
      %122 = arith.mulf %115, %121 : vector<128x128xf32>
      %123 = arith.truncf %122 : vector<128x128xf32> to vector<128x128xbf16>
      %c0_80 = arith.constant 0 : index
      %c0_81 = arith.constant 0 : index
      %124 = vector.load %arg12[%c0_80, %c0_81] : memref<128x128xbf16, #tpu.memory_space<vmem>>, vector<128x128xbf16>
      %cst_82 = arith.constant dense<0.000000e+00> : vector<128x128xf32>
      %125 = tpu.matmul %123, %124, %cst_82 {dimension_numbers = #tpu.dot_dimension_numbers<[1], [0], [0], [1], [0, 0, 1, 1], [], []>} : vector<128x128xbf16>, vector<128x128xbf16>, vector<128x128xf32> -> vector<128x128xf32>
      %c0_83 = arith.constant 0 : index
      %c0_84 = arith.constant 0 : index
      %126 = vector.load %arg13[%c0_83, %c0_84] : memref<1x128xf32, #tpu.memory_space<vmem>>, vector<1x128xf32>
      %127 = vector.broadcast %126 : vector<1x128xf32> to vector<128x128xf32>
      %128 = arith.addf %125, %127 : vector<128x128xf32>
      %cst_85 = arith.constant 0.000000e+00 : f32
      %129 = vector.broadcast %cst_85 : f32 to vector<128x128xf32>
      %130 = arith.subf %129, %128 : vector<128x128xf32>
      %131 = math.exp %130 : vector<128x128xf32>
      %cst_86 = arith.constant 1.000000e+00 : f32
      %132 = vector.broadcast %cst_86 : f32 to vector<128x128xf32>
      %133 = arith.addf %132, %131 : vector<128x128xf32>
      %134 = tpu.reciprocal %133 {approx = true} : vector<128x128xf32> -> vector<128x128xf32>
      %135 = arith.mulf %128, %134 : vector<128x128xf32>
      %c0_87 = arith.constant 0 : index
      %c0_88 = arith.constant 0 : index
      %136 = vector.load %arg29[%c0_87, %c0_88] : memref<128x128xf32, #tpu.memory_space<vmem>>, vector<128x128xf32>
      tpu.vector_store %arg29[%c0_87, %c0_88], %135 {strides = array<i32>} : memref<128x128xf32, #tpu.memory_space<vmem>>, vector<128x128xf32>,
    } else {
    }
    %c0 = arith.constant 0 : index
    %c0_1 = arith.constant 0 : index
    %3 = vector.load %arg29[%c0, %c0_1] : memref<128x128xf32, #tpu.memory_space<vmem>>, vector<128x128xf32>
    %4 = arith.truncf %3 : vector<128x128xf32> to vector<128x128xbf16>
    %c0_2 = arith.constant 0 : index
    %c0_3 = arith.constant 0 : index
    %c0_4 = arith.constant 0 : index
    %5 = vector.load %arg14[%c0_2, %c0_3, %c0_4] : memref<1x128x256xbf16, #tpu.memory_space<vmem>>, vector<1x128x256xbf16>
    %6 = vector.shape_cast %5 : vector<1x128x256xbf16> to vector<128x256xbf16>
    %cst = arith.constant dense<0.000000e+00> : vector<128x256xf32>
    %7 = tpu.matmul %4, %6, %cst {dimension_numbers = #tpu.dot_dimension_numbers<[1], [0], [0], [1], [0, 0, 1, 1], [], []>} : vector<128x128xbf16>, vector<128x256xbf16>, vector<128x256xf32> -> vector<128x256xf32>
    %c0_5 = arith.constant 0 : index
    %c0_6 = arith.constant 0 : index
    %8 = vector.load %arg1[%c0_5, %c0_6] : memref<128x27xbf16, #tpu.memory_space<vmem>>, vector<128x27xbf16>
    %c0_7 = arith.constant 0 : index
    %c0_8 = arith.constant 0 : index
    %c0_9 = arith.constant 0 : index
    %9 = vector.load %arg15[%c0_7, %c0_8, %c0_9] : memref<1x27x256xbf16, #tpu.memory_space<vmem>>, vector<1x27x256xbf16>
    %10 = vector.shape_cast %9 : vector<1x27x256xbf16> to vector<27x256xbf16>
    %cst_10 = arith.constant dense<0.000000e+00> : vector<128x256xf32>
    %11 = tpu.matmul %8, %10, %cst_10 {dimension_numbers = #tpu.dot_dimension_numbers<[1], [0], [0], [1], [0, 0, 1, 1], [], []>} : vector<128x27xbf16>, vector<27x256xbf16>, vector<128x256xf32> -> vector<128x256xf32>
    %12 = arith.addf %7, %11 : vector<128x256xf32>
    %13 = vector.extract_strided_slice %12 {offsets = [0, 0], sizes = [128, 128], strides = [1, 1]} : vector<128x256xf32> to vector<128x128xf32>
    %14 = arith.truncf %13 : vector<128x128xf32> to vector<128x128xbf16>
    %15 = vector.extract_strided_slice %12 {offsets = [0, 128], sizes = [128, 128], strides = [1, 1]} : vector<128x256xf32> to vector<128x128xf32>
    %16 = arith.truncf %15 : vector<128x128xf32> to vector<128x128xbf16>
    %c0_11 = arith.constant 0 : index
    %c0_12 = arith.constant 0 : index
    %17 = vector.load %arg6[%c0_11, %c0_12] : memref<512x128xbf16, #tpu.memory_space<vmem>>, vector<512x128xbf16>
    %cst_13 = arith.constant dense<0.000000e+00> : vector<512x128xf32>
    %18 = tpu.matmul %17, %14, %cst_13 {dimension_numbers = #tpu.dot_dimension_numbers<[1], [0], [0], [1], [0, 0, 1, 1], [], []>} : vector<512x128xbf16>, vector<128x128xbf16>, vector<512x128xf32> -> vector<512x128xf32>
    %c0_14 = arith.constant 0 : index
    %c0_15 = arith.constant 0 : index
    %19 = vector.load %arg7[%c0_14, %c0_15] : memref<512x128xbf16, #tpu.memory_space<vmem>>, vector<512x128xbf16>
    %cst_16 = arith.constant dense<0.000000e+00> : vector<512x128xf32>
    %20 = tpu.matmul %19, %16, %cst_16 {dimension_numbers = #tpu.dot_dimension_numbers<[1], [0], [0], [1], [0, 0, 1, 1], [], []>} : vector<512x128xbf16>, vector<128x128xbf16>, vector<512x128xf32> -> vector<512x128xf32>
    %21 = arith.addf %18, %20 : vector<512x128xf32>
    %c0_17 = arith.constant 0 : index
    %c0_18 = arith.constant 0 : index
    %c0_19 = arith.constant 0 : index
    %22 = vector.load %arg16[%c0_17, %c0_18, %c0_19] : memref<1x1x128xf32, #tpu.memory_space<vmem>>, vector<1x1x128xf32>
    %23 = vector.shape_cast %22 : vector<1x1x128xf32> to vector<1x128xf32>
    %24 = vector.broadcast %23 : vector<1x128xf32> to vector<512x128xf32>
    %25 = arith.addf %21, %24 : vector<512x128xf32>
    %cst_20 = arith.constant 0.000000e+00 : f32
    %26 = vector.broadcast %cst_20 : f32 to vector<512x128xf32>
    %27 = arith.subf %26, %25 : vector<512x128xf32>
    %28 = math.exp %27 : vector<512x128xf32>
    %cst_21 = arith.constant 1.000000e+00 : f32
    %29 = vector.broadcast %cst_21 : f32 to vector<512x128xf32>
    %30 = arith.addf %29, %28 : vector<512x128xf32>
    %31 = tpu.reciprocal %30 {approx = true} : vector<512x128xf32> -> vector<512x128xf32>
    %32 = arith.mulf %25, %31 : vector<512x128xf32>
    %33 = arith.truncf %32 : vector<512x128xf32> to vector<512x128xbf16>
    %c0_22 = arith.constant 0 : index
    %c0_23 = arith.constant 0 : index
    %c0_24 = arith.constant 0 : index
    %34 = vector.load %arg17[%c0_22, %c0_23, %c0_24] : memref<1x128x128xbf16, #tpu.memory_space<vmem>>, vector<1x128x128xbf16>
    %35 = vector.shape_cast %34 : vector<1x128x128xbf16> to vector<128x128xbf16>
    %cst_25 = arith.constant dense<0.000000e+00> : vector<512x128xf32>
    %36 = tpu.matmul %33, %35, %cst_25 {dimension_numbers = #tpu.dot_dimension_numbers<[1], [0], [0], [1], [0, 0, 1, 1], [], []>} : vector<512x128xbf16>, vector<128x128xbf16>, vector<512x128xf32> -> vector<512x128xf32>
    %c0_26 = arith.constant 0 : index
    %c0_27 = arith.constant 0 : index
    %c0_28 = arith.constant 0 : index
    %37 = vector.load %arg18[%c0_26, %c0_27, %c0_28] : memref<1x1x128xf32, #tpu.memory_space<vmem>>, vector<1x1x128xf32>
    %38 = vector.shape_cast %37 : vector<1x1x128xf32> to vector<1x128xf32>
    %39 = vector.broadcast %38 : vector<1x128xf32> to vector<512x128xf32>
    %40 = arith.addf %36, %39 : vector<512x128xf32>
    %cst_29 = arith.constant 0.000000e+00 : f32
    %41 = vector.broadcast %cst_29 : f32 to vector<512x128xf32>
    %42 = arith.subf %41, %40 : vector<512x128xf32>
    %43 = math.exp %42 : vector<512x128xf32>
    %cst_30 = arith.constant 1.000000e+00 : f32
    %44 = vector.broadcast %cst_30 : f32 to vector<512x128xf32>
    %45 = arith.addf %44, %43 : vector<512x128xf32>
    %46 = tpu.reciprocal %45 {approx = true} : vector<512x128xf32> -> vector<512x128xf32>
    %47 = arith.mulf %40, %46 : vector<512x128xf32>
    %c0_31 = arith.constant 0 : index
    %c0_32 = arith.constant 0 : index
    %48 = vector.load %arg8[%c0_31, %c0_32] : memref<128x512xbf16, #tpu.memory_space<vmem>>, vector<128x512xbf16>
    %49 = arith.truncf %47 : vector<512x128xf32> to vector<512x128xbf16>
    %cst_33 = arith.constant dense<0.000000e+00> : vector<128x128xf32>
    %50 = tpu.matmul %48, %49, %cst_33 {dimension_numbers = #tpu.dot_dimension_numbers<[1], [0], [0], [1], [0, 0, 1, 1], [], []>} : vector<128x512xbf16>, vector<512x128xbf16>, vector<128x128xf32> -> vector<128x128xf32>
    %c0_34 = arith.constant 0 : index
    %c0_35 = arith.constant 0 : index
    %51 = vector.load %arg4[%c0_34, %c0_35] : memref<128x1xf32, #tpu.memory_space<vmem>>, vector<128x1xf32>
    %52 = vector.broadcast %51 : vector<128x1xf32> to vector<128x128xf32>
    %53 = arith.mulf %50, %52 : vector<128x128xf32>
    %c0_36 = arith.constant 0 : index
    %c0_37 = arith.constant 0 : index
    %c0_38 = arith.constant 0 : index
    %54 = vector.load %arg20[%c0_36, %c0_37, %c0_38] : memref<1x1x128xf32, #tpu.memory_space<vmem>>, vector<1x1x128xf32>
    %55 = vector.shape_cast %54 : vector<1x1x128xf32> to vector<1x128xf32>
    %c0_39 = arith.constant 0 : index
    %c0_40 = arith.constant 0 : index
    %56 = vector.load %arg2[%c0_39, %c0_40] : memref<128x1xf32, #tpu.memory_space<vmem>>, vector<128x1xf32>
    %57 = vector.broadcast %56 : vector<128x1xf32> to vector<128x128xf32>
    %58 = vector.broadcast %55 : vector<1x128xf32> to vector<128x128xf32>
    %59 = arith.mulf %57, %58 : vector<128x128xf32>
    %60 = arith.truncf %53 : vector<128x128xf32> to vector<128x128xbf16>
    %61 = tpu.concatenate %4, %60 in 1 : vector<128x128xbf16>, vector<128x128xbf16> -> vector<128x256xbf16>
    %c0_41 = arith.constant 0 : index
    %c0_42 = arith.constant 0 : index
    %c0_43 = arith.constant 0 : index
    %62 = vector.load %arg19[%c0_41, %c0_42, %c0_43] : memref<1x256x128xbf16, #tpu.memory_space<vmem>>, vector<1x256x128xbf16>
    %63 = vector.shape_cast %62 : vector<1x256x128xbf16> to vector<256x128xbf16>
    %cst_44 = arith.constant dense<0.000000e+00> : vector<128x128xf32>
    %64 = tpu.matmul %61, %63, %cst_44 {dimension_numbers = #tpu.dot_dimension_numbers<[1], [0], [0], [1], [0, 0, 1, 1], [], []>} : vector<128x256xbf16>, vector<256x128xbf16>, vector<128x128xf32> -> vector<128x128xf32>
    %65 = arith.addf %64, %59 : vector<128x128xf32>
    %c0_45 = arith.constant 0 : index
    %c0_46 = arith.constant 0 : index
    %c0_47 = arith.constant 0 : index
    %66 = vector.load %arg21[%c0_45, %c0_46, %c0_47] : memref<1x1x128xf32, #tpu.memory_space<vmem>>, vector<1x1x128xf32>
    %67 = vector.shape_cast %66 : vector<1x1x128xf32> to vector<1x128xf32>
    %68 = vector.broadcast %67 : vector<1x128xf32> to vector<128x128xf32>
    %69 = arith.addf %65, %68 : vector<128x128xf32>
    %cst_48 = arith.constant 0.000000e+00 : f32
    %70 = vector.broadcast %cst_48 : f32 to vector<128x128xf32>
    %71 = arith.subf %70, %69 : vector<128x128xf32>
    %72 = math.exp %71 : vector<128x128xf32>
    %cst_49 = arith.constant 1.000000e+00 : f32
    %73 = vector.broadcast %cst_49 : f32 to vector<128x128xf32>
    %74 = arith.addf %73, %72 : vector<128x128xf32>
    %75 = tpu.reciprocal %74 {approx = true} : vector<128x128xf32> -> vector<128x128xf32>
    %76 = arith.mulf %69, %75 : vector<128x128xf32>
    %77 = arith.truncf %76 : vector<128x128xf32> to vector<128x128xbf16>
    %c0_50 = arith.constant 0 : index
    %c0_51 = arith.constant 0 : index
    %c0_52 = arith.constant 0 : index
    %78 = vector.load %arg22[%c0_50, %c0_51, %c0_52] : memref<1x128x128xbf16, #tpu.memory_space<vmem>>, vector<1x128x128xbf16>
    %79 = vector.shape_cast %78 : vector<1x128x128xbf16> to vector<128x128xbf16>
    %cst_53 = arith.constant dense<0.000000e+00> : vector<128x128xf32>
    %80 = tpu.matmul %77, %79, %cst_53 {dimension_numbers = #tpu.dot_dimension_numbers<[1], [0], [0], [1], [0, 0, 1, 1], [], []>} : vector<128x128xbf16>, vector<128x128xbf16>, vector<128x128xf32> -> vector<128x128xf32>
    %c0_54 = arith.constant 0 : index
    %c0_55 = arith.constant 0 : index
    %c0_56 = arith.constant 0 : index
    %81 = vector.load %arg23[%c0_54, %c0_55, %c0_56] : memref<1x1x128xf32, #tpu.memory_space<vmem>>, vector<1x1x128xf32>
    %82 = vector.shape_cast %81 : vector<1x1x128xf32> to vector<1x128xf32>
    %83 = vector.broadcast %82 : vector<1x128xf32> to vector<128x128xf32>
    %84 = arith.addf %80, %83 : vector<128x128xf32>
    %cst_57 = arith.constant 0.000000e+00 : f32
    %85 = vector.broadcast %cst_57 : f32 to vector<128x128xf32>
    %86 = arith.subf %85, %84 : vector<128x128xf32>
    %87 = math.exp %86 : vector<128x128xf32>
    %cst_58 = arith.constant 1.000000e+00 : f32
    %88 = vector.broadcast %cst_58 : f32 to vector<128x128xf32>
    %89 = arith.addf %88, %87 : vector<128x128xf32>
    %90 = tpu.reciprocal %89 {approx = true} : vector<128x128xf32> -> vector<128x128xf32>
    %91 = arith.mulf %84, %90 : vector<128x128xf32>
    %92 = arith.addf %3, %91 : vector<128x128xf32>
    %c0_59 = arith.constant 0 : index
    %c0_60 = arith.constant 0 : index
    %93 = vector.load %arg9[%c0_59, %c0_60] : memref<128x128xf32, #tpu.memory_space<vmem>>, vector<128x128xf32>
    %cst_61 = arith.constant dense<0.000000e+00> : vector<128x128xf32>
    %94 = tpu.matmul %93, %92, %cst_61 {dimension_numbers = #tpu.dot_dimension_numbers<[1], [0], [0], [1], [0, 0, 1, 1], [], []>} : vector<128x128xf32>, vector<128x128xf32>, vector<128x128xf32> -> vector<128x128xf32>
    %95 = arith.subf %92, %94 : vector<128x128xf32>
    %c0_62 = arith.constant 0 : index
    %c0_63 = arith.constant 0 : index
    %96 = vector.load %arg3[%c0_62, %c0_63] : memref<128x1xf32, #tpu.memory_space<vmem>>, vector<128x1xf32>
    %97 = vector.broadcast %96 : vector<128x1xf32> to vector<128x128xf32>
    %98 = arith.mulf %95, %97 : vector<128x128xf32>
    %c0_64 = arith.constant 0 : index
    %c0_65 = arith.constant 0 : index
    %99 = vector.load %arg9[%c0_64, %c0_65] : memref<128x128xf32, #tpu.memory_space<vmem>>, vector<128x128xf32>
    %100 = arith.mulf %98, %98 : vector<128x128xf32>
    %cst_66 = arith.constant dense<0.000000e+00> : vector<128x128xf32>
    %101 = tpu.matmul %99, %100, %cst_66 {dimension_numbers = #tpu.dot_dimension_numbers<[1], [0], [0], [1], [0, 0, 1, 1], [], []>} : vector<128x128xf32>, vector<128x128xf32>, vector<128x128xf32> -> vector<128x128xf32>
    %cst_67 = arith.constant 9.99999974E-6 : f32
    %102 = vector.broadcast %cst_67 : f32 to vector<128x128xf32>
    %103 = arith.addf %101, %102 : vector<128x128xf32>
    %104 = math.rsqrt %103 : vector<128x128xf32>
    %105 = arith.mulf %98, %104 : vector<128x128xf32>
    %c0_68 = arith.constant 0 : index
    %c0_69 = arith.constant 0 : index
    %106 = vector.load %arg29[%c0_68, %c0_69] : memref<128x128xf32, #tpu.memory_space<vmem>>, vector<128x128xf32>
    tpu.vector_store %arg29[%c0_68, %c0_69], %105 {strides = array<i32>} : memref<128x128xf32, #tpu.memory_space<vmem>>, vector<128x128xf32>,
    %c5_i32 = arith.constant 5 : i32
    %107 = arith.cmpi eq, %arg0, %c5_i32 : i32
    %108 = arith.extui %107 : i1 to i32
    %c0_i32_70 = arith.constant 0 : i32
    %109 = arith.cmpi ne, %108, %c0_i32_70 : i32
    scf.if %109 {
      %110 = arith.truncf %105 : vector<128x128xf32> to vector<128x128xbf16>
      %c0_71 = arith.constant 0 : index
      %c0_72 = arith.constant 0 : index
      %111 = vector.load %arg24[%c0_71, %c0_72] : memref<128x304xbf16, #tpu.memory_space<vmem>>, vector<128x304xbf16>
      %cst_73 = arith.constant dense<0.000000e+00> : vector<128x304xf32>
      %112 = tpu.matmul %110, %111, %cst_73 {dimension_numbers = #tpu.dot_dimension_numbers<[1], [0], [0], [1], [0, 0, 1, 1], [], []>} : vector<128x128xbf16>, vector<128x304xbf16>, vector<128x304xf32> -> vector<128x304xf32>
      %c0_74 = arith.constant 0 : index
      %c0_75 = arith.constant 0 : index
      %113 = vector.load %arg25[%c0_74, %c0_75] : memref<1x304xf32, #tpu.memory_space<vmem>>, vector<1x304xf32>
      %114 = vector.broadcast %113 : vector<1x304xf32> to vector<128x304xf32>
      %115 = arith.addf %112, %114 : vector<128x304xf32>
      %cst_76 = arith.constant 0.000000e+00 : f32
      %116 = vector.broadcast %cst_76 : f32 to vector<128x304xf32>
      %117 = arith.subf %116, %115 : vector<128x304xf32>
      %118 = math.exp %117 : vector<128x304xf32>
      %cst_77 = arith.constant 1.000000e+00 : f32
      %119 = vector.broadcast %cst_77 : f32 to vector<128x304xf32>
      %120 = arith.addf %119, %118 : vector<128x304xf32>
      %121 = tpu.reciprocal %120 {approx = true} : vector<128x304xf32> -> vector<128x304xf32>
      %122 = arith.mulf %115, %121 : vector<128x304xf32>
      %123 = arith.truncf %122 : vector<128x304xf32> to vector<128x304xbf16>
      %c0_78 = arith.constant 0 : index
      %c0_79 = arith.constant 0 : index
      %124 = vector.load %arg26[%c0_78, %c0_79] : memref<304x128xbf16, #tpu.memory_space<vmem>>, vector<304x128xbf16>
      %cst_80 = arith.constant dense<0.000000e+00> : vector<128x128xf32>
      %125 = tpu.matmul %123, %124, %cst_80 {dimension_numbers = #tpu.dot_dimension_numbers<[1], [0], [0], [1], [0, 0, 1, 1], [], []>} : vector<128x304xbf16>, vector<304x128xbf16>, vector<128x128xf32> -> vector<128x128xf32>
      %c0_81 = arith.constant 0 : index
      %c0_82 = arith.constant 0 : index
      %126 = vector.load %arg27[%c0_81, %c0_82] : memref<1x128xf32, #tpu.memory_space<vmem>>, vector<1x128xf32>
      %127 = vector.broadcast %126 : vector<1x128xf32> to vector<128x128xf32>
      %128 = arith.addf %125, %127 : vector<128x128xf32>
      %c0_83 = arith.constant 0 : index
      %c0_84 = arith.constant 0 : index
      %129 = vector.load %arg5[%c0_83, %c0_84] : memref<128x1xf32, #tpu.memory_space<vmem>>, vector<128x1xf32>
      %130 = vector.broadcast %129 : vector<128x1xf32> to vector<128x128xf32>
      %131 = arith.addf %130, %128 : vector<128x128xf32>
      %c0_85 = arith.constant 0 : index
      %c0_86 = arith.constant 0 : index
      %132 = vector.load %arg28[%c0_85, %c0_86] : memref<128x128xf32, #tpu.memory_space<vmem>>, vector<128x128xf32>
      tpu.vector_store %arg28[%c0_85, %c0_86], %131 {strides = array<i32>} : memref<128x128xf32, #tpu.memory_space<vmem>>, vector<128x128xf32>,
    } else {
    }
    return
  }
  func.func @transform_0(%arg0: i32) -> (i32, i32) {
    %c0_i32 = arith.constant 0 : i32
    %c0_i32_0 = arith.constant 0 : i32
    %c0_i32_1 = arith.constant 0 : i32
    return %c0_i32, %c0_i32_0 : i32, i32
  }
  func.func @transform_1(%arg0: i32) -> (i32, i32) {
    %c0_i32 = arith.constant 0 : i32
    %c0_i32_0 = arith.constant 0 : i32
    %c0_i32_1 = arith.constant 0 : i32
    return %c0_i32, %c0_i32_0 : i32, i32
  }
  func.func @transform_2(%arg0: i32) -> (i32, i32) {
    %c0_i32 = arith.constant 0 : i32
    %c0_i32_0 = arith.constant 0 : i32
    %c0_i32_1 = arith.constant 0 : i32
    return %c0_i32, %c0_i32_0 : i32, i32
  }
  func.func @transform_3(%arg0: i32) -> (i32, i32) {
    %c0_i32 = arith.constant 0 : i32
    %c0_i32_0 = arith.constant 0 : i32
    %c0_i32_1 = arith.constant 0 : i32
    return %c0_i32, %c0_i32_0 : i32, i32
  }
  func.func @transform_4(%arg0: i32) -> (i32, i32) {
    %c0_i32 = arith.constant 0 : i32
    %c0_i32_0 = arith.constant 0 : i32
    %c0_i32_1 = arith.constant 0 : i32
    return %c0_i32, %c0_i32_0 : i32, i32
  }
  func.func @transform_5(%arg0: i32) -> (i32, i32) {
    %c0_i32 = arith.constant 0 : i32
    %c0_i32_0 = arith.constant 0 : i32
    %c0_i32_1 = arith.constant 0 : i32
    return %c0_i32, %c0_i32_0 : i32, i32
  }
  func.func @transform_6(%arg0: i32) -> (i32, i32) {
    %c0_i32 = arith.constant 0 : i32
    %c0_i32_0 = arith.constant 0 : i32
    %c0_i32_1 = arith.constant 0 : i32
    return %c0_i32, %c0_i32_0 : i32, i32
  }
  func.func @transform_7(%arg0: i32) -> (i32, i32) {
    %c0_i32 = arith.constant 0 : i32
    %c0_i32_0 = arith.constant 0 : i32
    %c0_i32_1 = arith.constant 0 : i32
    return %c0_i32, %c0_i32_0 : i32, i32
  }
  func.func @transform_8(%arg0: i32) -> (i32, i32) {
    %c0_i32 = arith.constant 0 : i32
    %c0_i32_0 = arith.constant 0 : i32
    %c0_i32_1 = arith.constant 0 : i32
    return %c0_i32, %c0_i32_0 : i32, i32
  }
  func.func @transform_9(%arg0: i32) -> (i32, i32) {
    %c0_i32 = arith.constant 0 : i32
    %c0_i32_0 = arith.constant 0 : i32
    %c0_i32_1 = arith.constant 0 : i32
    return %c0_i32, %c0_i32_0 : i32, i32
  }
  func.func @transform_10(%arg0: i32) -> (i32, i32) {
    %c0_i32 = arith.constant 0 : i32
    %c0_i32_0 = arith.constant 0 : i32
    %c0_i32_1 = arith.constant 0 : i32
    return %c0_i32, %c0_i32_0 : i32, i32
  }
  func.func @transform_11(%arg0: i32) -> (i32, i32) {
    %c0_i32 = arith.constant 0 : i32
    %c0_i32_0 = arith.constant 0 : i32
    %c0_i32_1 = arith.constant 0 : i32
    return %c0_i32, %c0_i32_0 : i32, i32
  }
  func.func @transform_12(%arg0: i32) -> (i32, i32) {
    %c0_i32 = arith.constant 0 : i32
    %c0_i32_0 = arith.constant 0 : i32
    %c0_i32_1 = arith.constant 0 : i32
    return %c0_i32, %c0_i32_0 : i32, i32
  }
  func.func @transform_13(%arg0: i32) -> (i32, i32, i32) {
    %c0_i32 = arith.constant 0 : i32
    %c0_i32_0 = arith.constant 0 : i32
    %c0_i32_1 = arith.constant 0 : i32
    return %arg0, %c0_i32, %c0_i32_0 : i32, i32, i32
  }
  func.func @transform_14(%arg0: i32) -> (i32, i32, i32) {
    %c0_i32 = arith.constant 0 : i32
    %c0_i32_0 = arith.constant 0 : i32
    %c0_i32_1 = arith.constant 0 : i32
    return %arg0, %c0_i32, %c0_i32_0 : i32, i32, i32
  }
  func.func @transform_15(%arg0: i32) -> (i32, i32, i32) {
    %c0_i32 = arith.constant 0 : i32
    %c0_i32_0 = arith.constant 0 : i32
    %c0_i32_1 = arith.constant 0 : i32
    return %arg0, %c0_i32, %c0_i32_0 : i32, i32, i32
  }
  func.func @transform_16(%arg0: i32) -> (i32, i32, i32) {
    %c0_i32 = arith.constant 0 : i32
    %c0_i32_0 = arith.constant 0 : i32
    %c0_i32_1 = arith.constant 0 : i32
    return %arg0, %c0_i32, %c0_i32_0 : i32, i32, i32
  }
  func.func @transform_17(%arg0: i32) -> (i32, i32, i32) {
    %c0_i32 = arith.constant 0 : i32
    %c0_i32_0 = arith.constant 0 : i32
    %c0_i32_1 = arith.constant 0 : i32
    return %arg0, %c0_i32, %c0_i32_0 : i32, i32, i32
  }
  func.func @transform_18(%arg0: i32) -> (i32, i32, i32) {
    %c0_i32 = arith.constant 0 : i32
    %c0_i32_0 = arith.constant 0 : i32
    %c0_i32_1 = arith.constant 0 : i32
    return %arg0, %c0_i32, %c0_i32_0 : i32, i32, i32
  }
  func.func @transform_19(%arg0: i32) -> (i32, i32, i32) {
    %c0_i32 = arith.constant 0 : i32
    %c0_i32_0 = arith.constant 0 : i32
    %c0_i32_1 = arith.constant 0 : i32
    return %arg0, %c0_i32, %c0_i32_0 : i32, i32, i32
  }
  func.func @transform_20(%arg0: i32) -> (i32, i32, i32) {
    %c0_i32 = arith.constant 0 : i32
    %c0_i32_0 = arith.constant 0 : i32
    %c0_i32_1 = arith.constant 0 : i32
    return %arg0, %c0_i32, %c0_i32_0 : i32, i32, i32
  }
  func.func @transform_21(%arg0: i32) -> (i32, i32, i32) {
    %c0_i32 = arith.constant 0 : i32
    %c0_i32_0 = arith.constant 0 : i32
    %c0_i32_1 = arith.constant 0 : i32
    return %arg0, %c0_i32, %c0_i32_0 : i32, i32, i32
  }
  func.func @transform_22(%arg0: i32) -> (i32, i32, i32) {
    %c0_i32 = arith.constant 0 : i32
    %c0_i32_0 = arith.constant 0 : i32
    %c0_i32_1 = arith.constant 0 : i32
    return %arg0, %c0_i32, %c0_i32_0 : i32, i32, i32
  }
  func.func @transform_23(%arg0: i32) -> (i32, i32) {
    %c0_i32 = arith.constant 0 : i32
    %c0_i32_0 = arith.constant 0 : i32
    %c0_i32_1 = arith.constant 0 : i32
    return %c0_i32, %c0_i32_0 : i32, i32
  }
  func.func @transform_24(%arg0: i32) -> (i32, i32) {
    %c0_i32 = arith.constant 0 : i32
    %c0_i32_0 = arith.constant 0 : i32
    %c0_i32_1 = arith.constant 0 : i32
    return %c0_i32, %c0_i32_0 : i32, i32
  }
  func.func @transform_25(%arg0: i32) -> (i32, i32) {
    %c0_i32 = arith.constant 0 : i32
    %c0_i32_0 = arith.constant 0 : i32
    %c0_i32_1 = arith.constant 0 : i32
    return %c0_i32, %c0_i32_0 : i32, i32
  }
  func.func @transform_26(%arg0: i32) -> (i32, i32) {
    %c0_i32 = arith.constant 0 : i32
    %c0_i32_0 = arith.constant 0 : i32
    %c0_i32_1 = arith.constant 0 : i32
    return %c0_i32, %c0_i32_0 : i32, i32
  }
  func.func @transform_27(%arg0: i32) -> (i32, i32) {
    %c0_i32 = arith.constant 0 : i32
    %c0_i32_0 = arith.constant 0 : i32
    %c0_i32_1 = arith.constant 0 : i32
    return %c0_i32, %c0_i32_0 : i32, i32
  }
}

</mosaic_0001>

<llo_original>
// kernel: mpnn_forward.1
$region0: #{mpnn_forward.1}
  #allocation0 [shape = 'u32[]', space=smem, size = 0x4, offset = 0x4, fixed_abs, tag = 'smem constant byte address 0x4 - core index']
  #allocation1 [shape = 'u32[72,128]{1,0:T(1,128)}', space=vmem, size = 0x9000, scoped, tag = 'internal scratch']
  #allocation2 [shape = 'f32[128,128]{1,0:T(8,128)}', space=vmem, size = 0x10000, scoped, tag = 'scratch operand']
  %s0 = inlined_call_operand.vmem [shape: bf16[128,27], index: 0, kind: input, shape index: {}]
  %s1 = inlined_call_operand.vmem [shape: f32[128,1], index: 1, kind: input, shape index: {}]
  %s2 = inlined_call_operand.vmem [shape: f32[128,1], index: 2, kind: input, shape index: {}]
  %s3 = inlined_call_operand.vmem [shape: f32[128,1], index: 3, kind: input, shape index: {}]
  %s4 = inlined_call_operand.vmem [shape: f32[128,1], index: 4, kind: input, shape index: {}]
  %s5 = inlined_call_operand.vmem [shape: bf16[512,128], index: 5, kind: input, shape index: {}]
  %s6 = inlined_call_operand.vmem [shape: bf16[512,128], index: 6, kind: input, shape index: {}]
  %s7 = inlined_call_operand.hbm [shape: bf16[128,512], index: 7, kind: input, shape index: {}]
  %s8 = inlined_call_operand.hbm [shape: f32[128,128], index: 8, kind: input, shape index: {}]
  %s9 = inlined_call_operand.hbm [shape: bf16[27,128], index: 9, kind: input, shape index: {}]
  %s10 = inlined_call_operand.hbm [shape: f32[1,128], index: 10, kind: input, shape index: {}]
  %s11 = inlined_call_operand.hbm [shape: bf16[128,128], index: 11, kind: input, shape index: {}]
  %s12 = inlined_call_operand.hbm [shape: f32[1,128], index: 12, kind: input, shape index: {}]
  %s13 = inlined_call_operand.hbm [shape: bf16[6,128,256], index: 13, kind: input, shape index: {}]
  %s14 = inlined_call_operand.vmem [shape: bf16[6,27,256], index: 14, kind: input, shape index: {}]
  %s15 = inlined_call_operand.hbm [shape: f32[6,1,128], index: 15, kind: input, shape index: {}]
  %s16 = inlined_call_operand.vmem [shape: bf16[6,128,128], index: 16, kind: input, shape index: {}]
  %s17 = inlined_call_operand.hbm [shape: f32[6,1,128], index: 17, kind: input, shape index: {}]
  %s18 = inlined_call_operand.hbm [shape: bf16[6,256,128], index: 18, kind: input, shape index: {}]
  %s19 = inlined_call_operand.hbm [shape: f32[6,1,128], index: 19, kind: input, shape index: {}]
  %s20 = inlined_call_operand.hbm [shape: f32[6,1,128], index: 20, kind: input, shape index: {}]
  %s21 = inlined_call_operand.vmem [shape: bf16[6,128,128], index: 21, kind: input, shape index: {}]
  %s22 = inlined_call_operand.hbm [shape: f32[6,1,128], index: 22, kind: input, shape index: {}]
  %s23 = inlined_call_operand.vmem [shape: bf16[128,304], index: 23, kind: input, shape index: {}]
  %s24 = inlined_call_operand.hbm [shape: f32[1,304], index: 24, kind: input, shape index: {}]
  %s25 = inlined_call_operand.hbm [shape: bf16[304,128], index: 25, kind: input, shape index: {}]
  %s26 = inlined_call_operand.hbm [shape: f32[1,128], index: 26, kind: input, shape index: {}]
  %s27 = inlined_call_operand.vmem [shape: f32[128,128], index: 27, kind: output, shape index: {}]
  %s28 = sld [smem:[#allocation0]]
  $region213: #{mpnn_forward.1} parent=0
    _
  %s30 = ssub.s32 1, %s28
  %s31 = scalar_select 0, %s30, %s28
  $region1: #{mpnn_forward.1} parent=0
    #allocation3 [shape = 'u8[131072]{0}', space=vmem, size = 0x20000, scoped, tag = 'input window, operand 7, single buffered']
    #allocation4 [shape = 's32[2]{0}', space=sflag, size = 0x8, scoped, tag = 'scoped memory for mpnn_forward.1']
    #allocation5 [shape = 'u8[65536]{0}', space=vmem, size = 0x10000, scoped, tag = 'input window, operand 8, single buffered']
    #allocation6 [shape = 's32[1]{0}', space=sflag, size = 0x4, scoped, tag = 'scoped memory for mpnn_forward.1']
    #allocation7 [shape = 'u8[8192]{0}', space=vmem, size = 0x2000, scoped, tag = 'input window, operand 9, single buffered']
    #allocation8 [shape = 'u8[512]{0}', space=vmem, size = 0x400, scoped, tag = 'input window, operand 10, single buffered']
    #allocation9 [shape = 's32[1]{0}', space=sflag, size = 0x4, scoped, tag = 'scoped memory for mpnn_forward.1']
    #allocation10 [shape = 'u8[32768]{0}', space=vmem, size = 0x8000, scoped, tag = 'input window, operand 11, single buffered']
    #allocation11 [shape = 'u8[512]{0}', space=vmem, size = 0x400, scoped, tag = 'input window, operand 12, single buffered']
    #allocation12 [shape = 's32[1]{0}', space=sflag, size = 0x4, scoped, tag = 'scoped memory for mpnn_forward.1']
    #allocation13 [shape = 'u8[131072]{0}', space=vmem, size = 0x20000, scoped, tag = 'input window, operand 13']
    #allocation14 [shape = 'u8[1024]{0}', space=vmem, size = 0x400, scoped, tag = 'input window, operand 15']
    #allocation15 [shape = 'u8[1024]{0}', space=vmem, size = 0x400, scoped, tag = 'input window, operand 17']
    #allocation16 [shape = 'u8[131072]{0}', space=vmem, size = 0x20000, scoped, tag = 'input window, operand 18']
    #allocation17 [shape = 'u8[1024]{0}', space=vmem, size = 0x400, scoped, tag = 'input window, operand 19']
    #allocation18 [shape = 'u8[1024]{0}', space=vmem, size = 0x400, scoped, tag = 'input window, operand 20']
    #allocation19 [shape = 'u8[1024]{0}', space=vmem, size = 0x400, scoped, tag = 'input window, operand 22']
    #allocation20 [shape = 'u8[1536]{0}', space=vmem, size = 0x800, scoped, tag = 'input window, operand 24, single buffered']
    #allocation21 [shape = 'u8[77824]{0}', space=vmem, size = 0x13000, scoped, tag = 'input window, operand 25, single buffered']
    #allocation22 [shape = 'u8[512]{0}', space=vmem, size = 0x400, scoped, tag = 'input window, operand 26, single buffered']
    %32 = vsyncpa [#allocation4], 0
    %33 = vsyncpa [#allocation6], 0
    %34 = vsyncpa [#allocation9], 0
    %35 = vsyncpa [#allocation12], 0
    loop: start=0, step=1, limit=8
    $region2: #{mpnn_forward.1} parent=1 // loop_pre_header
      _
    $region3: #{mpnn_forward.1} parent=1 // loop_header
      %s37 = sphi 0, %s41
      %p38 = scmp.ge.s32.totalorder %s37, 8
      %s45 = sphi 0, %s45
      %s47 = sphi 0, %s45
      %s48 = sphi 0, %s47
      %s62 = sphi 0, %s48
      %s66 = sphi 0, %s66
      %s68 = sphi 0, %s66
      %s69 = sphi 0, %s68
      %s83 = sphi 0, %s69
      %s87 = sphi 0, %s87
      %s89 = sphi 0, %s87
      %s90 = sphi 0, %s89
      %s104 = sphi 0, %s90
      %s108 = sphi 0, %s108
      %s110 = sphi 0, %s108
      %s111 = sphi 0, %s110
      %s125 = sphi 0, %s111
      %s129 = sphi 0, %s129
      %s131 = sphi 0, %s129
      %s132 = sphi 0, %s131
      %s146 = sphi 0, %s132
      %s150 = sphi 0, %s150
      %s152 = sphi 0, %s150
      %s153 = sphi 0, %s152
      %s167 = sphi 0, %s153
      %s171 = sphi 0, %s171
      %s173 = sphi 0, %s171
      %s174 = sphi 0, %s173
      %s188 = sphi 0, %s174
      %s192 = sphi 0, %s192
      %s194 = sphi 0, %s192
      %s195 = sphi 0, %s194
      %s209 = sphi 0, %s195
      %s213 = sphi 0, %s213
      %s215 = sphi 0, %s213
      %s216 = sphi 0, %s215
      %s230 = sphi 0, %s216
      %s234 = sphi 0, %s234
      %s236 = sphi 0, %s234
      %s237 = sphi 0, %s236
      %s251 = sphi 0, %s237
      %s255 = sphi 0, %s255
      %s257 = sphi 0, %s255
      %s258 = sphi 0, %s257
      %s272 = sphi 0, %s258
      %s276 = sphi 0, %s276
      %s278 = sphi 0, %s276
      %s279 = sphi 0, %s278
      %s293 = sphi 0, %s279
      %s297 = sphi 0, %s297
      %s299 = sphi 0, %s297
      %s300 = sphi 0, %s299
      %s314 = sphi 0, %s300
      %s320 = sphi 0, %s322
      %s323 = sphi 0, %s320
      %s324 = sphi 0, %s323
      %s340 = sphi 0, %s324
      %s346 = sphi 0, %s348
      %s349 = sphi 0, %s346
      %s350 = sphi 0, %s349
      %s366 = sphi 0, %s350
      %s372 = sphi 0, %s374
      %s375 = sphi 0, %s372
      %s376 = sphi 0, %s375
      %s392 = sphi 0, %s376
      %s398 = sphi 0, %s400
      %s401 = sphi 0, %s398
      %s402 = sphi 0, %s401
      %s418 = sphi 0, %s402
      %s424 = sphi 0, %s426
      %s427 = sphi 0, %s424
      %s428 = sphi 0, %s427
      %s444 = sphi 0, %s428
      %s450 = sphi 0, %s452
      %s453 = sphi 0, %s450
      %s454 = sphi 0, %s453
      %s470 = sphi 0, %s454
      %s476 = sphi 0, %s478
      %s479 = sphi 0, %s476
      %s480 = sphi 0, %s479
      %s496 = sphi 0, %s480
      %s502 = sphi 0, %s504
      %s505 = sphi 0, %s502
      %s506 = sphi 0, %s505
      %s522 = sphi 0, %s506
      %s528 = sphi 0, %s530
      %s531 = sphi 0, %s528
      %s532 = sphi 0, %s531
      %s548 = sphi 0, %s532
      %s554 = sphi 0, %s556
      %s557 = sphi 0, %s554
      %s558 = sphi 0, %s557
      %s574 = sphi 0, %s558
      %s578 = sphi 0, %s578
      %s580 = sphi 0, %s578
      %s581 = sphi 0, %s580
      %s595 = sphi 0, %s581
      %s599 = sphi 0, %s599
      %s601 = sphi 0, %s599
      %s602 = sphi 0, %s601
      %s616 = sphi 0, %s602
      %s620 = sphi 0, %s620
      %s622 = sphi 0, %s620
      %s623 = sphi 0, %s622
      %s637 = sphi 0, %s623
      %s641 = sphi 0, %s641
      %s643 = sphi 0, %s641
      %s644 = sphi 0, %s643
      %s658 = sphi 0, %s644
      %s662 = sphi 0, %s662
      %s664 = sphi 0, %s662
      %s665 = sphi 0, %s664
      %s679 = sphi 0, %s665
    $region4: #{mpnn_forward.1} parent=1 // loop_header_branch
      %40 = sbr.rel (%p38) target = $region8
    $region5: #{mpnn_forward.1} parent=1 // loop_body
      %s42 = ssub.s32 %s37, 1
      %s43 = ssub.s32 %s37, 2
      %s44 = sadd.s32 %s37, 1
      %s46 = sadd.s32 %s45, 1
      %p49 = scmp.eq.s32.totalorder %s37, 5
      %p50 = scmp.ne.s32.totalorder %s45, %s47
      %p51 = scmp.eq.s32.totalorder %s37, 0
      %p52 = por %p50, %p51
      %p53 = scmp.ne.s32.totalorder %s45, %s47
      %p54 = scmp.eq.s32.totalorder %s42, 5
      %p55 = por %p53, %p54
      %p56 = scmp.ne.s32.totalorder %s47, %s48
      %p57 = scmp.eq.s32.totalorder %s42, 0
      %p58 = por %p56, %p57
      %p59 = scmp.ne.s32.totalorder %s47, %s48
      %p60 = scmp.eq.s32.totalorder %s43, 5
      %p61 = por %p59, %p60
      %p63 = scmp.ne.s32.totalorder %s48, %s62
      %p64 = scmp.eq.s32.totalorder %s43, 0
      %p65 = por %p63, %p64
      %s67 = sadd.s32 %s66, 1
      %p70 = scmp.eq.s32.totalorder %s37, 5
      %p71 = scmp.ne.s32.totalorder %s66, %s68
      %p72 = scmp.eq.s32.totalorder %s37, 0
      %p73 = por %p71, %p72
      %p74 = scmp.ne.s32.totalorder %s66, %s68
      %p75 = scmp.eq.s32.totalorder %s42, 5
      %p76 = por %p74, %p75
      %p77 = scmp.ne.s32.totalorder %s68, %s69
      %p78 = scmp.eq.s32.totalorder %s42, 0
      %p79 = por %p77, %p78
      %p80 = scmp.ne.s32.totalorder %s68, %s69
      %p81 = scmp.eq.s32.totalorder %s43, 5
      %p82 = por %p80, %p81
      %p84 = scmp.ne.s32.totalorder %s69, %s83
      %p85 = scmp.eq.s32.totalorder %s43, 0
      %p86 = por %p84, %p85
      %s88 = sadd.s32 %s87, 1
      %p91 = scmp.eq.s32.totalorder %s37, 5
      %p92 = scmp.ne.s32.totalorder %s87, %s89
      %p93 = scmp.eq.s32.totalorder %s37, 0
      %p94 = por %p92, %p93
      %p95 = scmp.ne.s32.totalorder %s87, %s89
      %p96 = scmp.eq.s32.totalorder %s42, 5
      %p97 = por %p95, %p96
      %p98 = scmp.ne.s32.totalorder %s89, %s90
      %p99 = scmp.eq.s32.totalorder %s42, 0
      %p100 = por %p98, %p99
      %p101 = scmp.ne.s32.totalorder %s89, %s90
      %p102 = scmp.eq.s32.totalorder %s43, 5
      %p103 = por %p101, %p102
      %p105 = scmp.ne.s32.totalorder %s90, %s104
      %p106 = scmp.eq.s32.totalorder %s43, 0
      %p107 = por %p105, %p106
      %s109 = sadd.s32 %s108, 1
      %p112 = scmp.eq.s32.totalorder %s37, 5
      %p113 = scmp.ne.s32.totalorder %s108, %s110
      %p114 = scmp.eq.s32.totalorder %s37, 0
      %p115 = por %p113, %p114
      %p116 = scmp.ne.s32.totalorder %s108, %s110
      %p117 = scmp.eq.s32.totalorder %s42, 5
      %p118 = por %p116, %p117
      %p119 = scmp.ne.s32.totalorder %s110, %s111
      %p120 = scmp.eq.s32.totalorder %s42, 0
      %p121 = por %p119, %p120
      %p122 = scmp.ne.s32.totalorder %s110, %s111
      %p123 = scmp.eq.s32.totalorder %s43, 5
      %p124 = por %p122, %p123
      %p126 = scmp.ne.s32.totalorder %s111, %s125
      %p127 = scmp.eq.s32.totalorder %s43, 0
      %p128 = por %p126, %p127
      %s130 = sadd.s32 %s129, 1
      %p133 = scmp.eq.s32.totalorder %s37, 5
      %p134 = scmp.ne.s32.totalorder %s129, %s131
      %p135 = scmp.eq.s32.totalorder %s37, 0
      %p136 = por %p134, %p135
      %p137 = scmp.ne.s32.totalorder %s129, %s131
      %p138 = scmp.eq.s32.totalorder %s42, 5
      %p139 = por %p137, %p138
      %p140 = scmp.ne.s32.totalorder %s131, %s132
      %p141 = scmp.eq.s32.totalorder %s42, 0
      %p142 = por %p140, %p141
      %p143 = scmp.ne.s32.totalorder %s131, %s132
      %p144 = scmp.eq.s32.totalorder %s43, 5
      %p145 = por %p143, %p144
      %p147 = scmp.ne.s32.totalorder %s132, %s146
      %p148 = scmp.eq.s32.totalorder %s43, 0
      %p149 = por %p147, %p148
      %s151 = sadd.s32 %s150, 1
      %p154 = scmp.eq.s32.totalorder %s37, 5
      %p155 = scmp.ne.s32.totalorder %s150, %s152
      %p156 = scmp.eq.s32.totalorder %s37, 0
      %p157 = por %p155, %p156
      %p158 = scmp.ne.s32.totalorder %s150, %s152
      %p159 = scmp.eq.s32.totalorder %s42, 5
      %p160 = por %p158, %p159
      %p161 = scmp.ne.s32.totalorder %s152, %s153
      %p162 = scmp.eq.s32.totalorder %s42, 0
      %p163 = por %p161, %p162
      %p164 = scmp.ne.s32.totalorder %s152, %s153
      %p165 = scmp.eq.s32.totalorder %s43, 5
      %p166 = por %p164, %p165
      %p168 = scmp.ne.s32.totalorder %s153, %s167
      %p169 = scmp.eq.s32.totalorder %s43, 0
      %p170 = por %p168, %p169
      %s172 = sadd.s32 %s171, 1
      %p175 = scmp.eq.s32.totalorder %s37, 5
      %p176 = scmp.ne.s32.totalorder %s171, %s173
      %p177 = scmp.eq.s32.totalorder %s37, 0
      %p178 = por %p176, %p177
      %p179 = scmp.ne.s32.totalorder %s171, %s173
      %p180 = scmp.eq.s32.totalorder %s42, 5
      %p181 = por %p179, %p180
      %p182 = scmp.ne.s32.totalorder %s173, %s174
      %p183 = scmp.eq.s32.totalorder %s42, 0
      %p184 = por %p182, %p183
      %p185 = scmp.ne.s32.totalorder %s173, %s174
      %p186 = scmp.eq.s32.totalorder %s43, 5
      %p187 = por %p185, %p186
      %p189 = scmp.ne.s32.totalorder %s174, %s188
      %p190 = scmp.eq.s32.totalorder %s43, 0
      %p191 = por %p189, %p190
      %s193 = sadd.s32 %s192, 1
      %p196 = scmp.eq.s32.totalorder %s37, 5
      %p197 = scmp.ne.s32.totalorder %s192, %s194
      %p198 = scmp.eq.s32.totalorder %s37, 0
      %p199 = por %p197, %p198
      %p200 = scmp.ne.s32.totalorder %s192, %s194
      %p201 = scmp.eq.s32.totalorder %s42, 5
      %p202 = por %p200, %p201
      %p203 = scmp.ne.s32.totalorder %s194, %s195
      %p204 = scmp.eq.s32.totalorder %s42, 0
      %p205 = por %p203, %p204
      %p206 = scmp.ne.s32.totalorder %s194, %s195
      %p207 = scmp.eq.s32.totalorder %s43, 5
      %p208 = por %p206, %p207
      %p210 = scmp.ne.s32.totalorder %s195, %s209
      %p211 = scmp.eq.s32.totalorder %s43, 0
      %p212 = por %p210, %p211
      %s214 = sadd.s32 %s213, 1
      %p217 = scmp.eq.s32.totalorder %s37, 5
      %p218 = scmp.ne.s32.totalorder %s213, %s215
      %p219 = scmp.eq.s32.totalorder %s37, 0
      %p220 = por %p218, %p219
      %p221 = scmp.ne.s32.totalorder %s213, %s215
      %p222 = scmp.eq.s32.totalorder %s42, 5
      %p223 = por %p221, %p222
      %p224 = scmp.ne.s32.totalorder %s215, %s216
      %p225 = scmp.eq.s32.totalorder %s42, 0
      %p226 = por %p224, %p225
      %p227 = scmp.ne.s32.totalorder %s215, %s216
      %p228 = scmp.eq.s32.totalorder %s43, 5
      %p229 = por %p227, %p228
      %p231 = scmp.ne.s32.totalorder %s216, %s230
      %p232 = scmp.eq.s32.totalorder %s43, 0
      %p233 = por %p231, %p232
      %s235 = sadd.s32 %s234, 1
      %p238 = scmp.eq.s32.totalorder %s37, 5
      %p239 = scmp.ne.s32.totalorder %s234, %s236
      %p240 = scmp.eq.s32.totalorder %s37, 0
      %p241 = por %p239, %p240
      %p242 = scmp.ne.s32.totalorder %s234, %s236
      %p243 = scmp.eq.s32.totalorder %s42, 5
      %p244 = por %p242, %p243
      %p245 = scmp.ne.s32.totalorder %s236, %s237
      %p246 = scmp.eq.s32.totalorder %s42, 0
      %p247 = por %p245, %p246
      %p248 = scmp.ne.s32.totalorder %s236, %s237
      %p249 = scmp.eq.s32.totalorder %s43, 5
      %p250 = por %p248, %p249
      %p252 = scmp.ne.s32.totalorder %s237, %s251
      %p253 = scmp.eq.s32.totalorder %s43, 0
      %p254 = por %p252, %p253
      %s256 = sadd.s32 %s255, 1
      %p259 = scmp.eq.s32.totalorder %s37, 5
      %p260 = scmp.ne.s32.totalorder %s255, %s257
      %p261 = scmp.eq.s32.totalorder %s37, 0
      %p262 = por %p260, %p261
      %p263 = scmp.ne.s32.totalorder %s255, %s257
      %p264 = scmp.eq.s32.totalorder %s42, 5
      %p265 = por %p263, %p264
      %p266 = scmp.ne.s32.totalorder %s257, %s258
      %p267 = scmp.eq.s32.totalorder %s42, 0
      %p268 = por %p266, %p267
      %p269 = scmp.ne.s32.totalorder %s257, %s258
      %p270 = scmp.eq.s32.totalorder %s43, 5
      %p271 = por %p269, %p270
      %p273 = scmp.ne.s32.totalorder %s258, %s272
      %p274 = scmp.eq.s32.totalorder %s43, 0
      %p275 = por %p273, %p274
      %s277 = sadd.s32 %s276, 1
      %p280 = scmp.eq.s32.totalorder %s37, 5
      %p281 = scmp.ne.s32.totalorder %s276, %s278
      %p282 = scmp.eq.s32.totalorder %s37, 0
      %p283 = por %p281, %p282
      %p284 = scmp.ne.s32.totalorder %s276, %s278
      %p285 = scmp.eq.s32.totalorder %s42, 5
      %p286 = por %p284, %p285
      %p287 = scmp.ne.s32.totalorder %s278, %s279
      %p288 = scmp.eq.s32.totalorder %s42, 0
      %p289 = por %p287, %p288
      %p290 = scmp.ne.s32.totalorder %s278, %s279
      %p291 = scmp.eq.s32.totalorder %s43, 5
      %p292 = por %p290, %p291
      %p294 = scmp.ne.s32.totalorder %s279, %s293
      %p295 = scmp.eq.s32.totalorder %s43, 0
      %p296 = por %p294, %p295
      %s298 = sadd.s32 %s297, 1
      %p301 = scmp.eq.s32.totalorder %s37, 5
      %p302 = scmp.ne.s32.totalorder %s297, %s299
      %p303 = scmp.eq.s32.totalorder %s37, 0
      %p304 = por %p302, %p303
      %p305 = scmp.ne.s32.totalorder %s297, %s299
      %p306 = scmp.eq.s32.totalorder %s42, 5
      %p307 = por %p305, %p306
      %p308 = scmp.ne.s32.totalorder %s299, %s300
      %p309 = scmp.eq.s32.totalorder %s42, 0
      %p310 = por %p308, %p309
      %p311 = scmp.ne.s32.totalorder %s299, %s300
      %p312 = scmp.eq.s32.totalorder %s43, 5
      %p313 = por %p311, %p312
      %p315 = scmp.ne.s32.totalorder %s300, %s314
      %p316 = scmp.eq.s32.totalorder %s43, 0
      %p317 = por %p315, %p316
      %s318 = ssub.s32 %s37, %s44
      %p319 = scmp.eq.s32.totalorder %s318, 0
      %s321 = sadd.s32 %s320, 1
      %s322 = scalar_select %p319, %s320, %s321
      %p325 = pneg %p319
      %p326 = scmp.eq.s32.totalorder %s37, 5
      %p327 = por %p325, %p326
      %p328 = scmp.ne.s32.totalorder %s320, %s323
      %p329 = scmp.eq.s32.totalorder %s37, 0
      %p330 = por %p328, %p329
      %p331 = scmp.ne.s32.totalorder %s320, %s323
      %p332 = scmp.eq.s32.totalorder %s42, 5
      %p333 = por %p331, %p332
      %p334 = scmp.ne.s32.totalorder %s323, %s324
      %p335 = scmp.eq.s32.totalorder %s42, 0
      %p336 = por %p334, %p335
      %p337 = scmp.ne.s32.totalorder %s323, %s324
      %p338 = scmp.eq.s32.totalorder %s43, 5
      %p339 = por %p337, %p338
      %p341 = scmp.ne.s32.totalorder %s324, %s340
      %p342 = scmp.eq.s32.totalorder %s43, 0
      %p343 = por %p341, %p342
      %s344 = ssub.s32 %s37, %s44
      %p345 = scmp.eq.s32.totalorder %s344, 0
      %s347 = sadd.s32 %s346, 1
      %s348 = scalar_select %p345, %s346, %s347
      %p351 = pneg %p345
      %p352 = scmp.eq.s32.totalorder %s37, 5
      %p353 = por %p351, %p352
      %p354 = scmp.ne.s32.totalorder %s346, %s349
      %p355 = scmp.eq.s32.totalorder %s37, 0
      %p356 = por %p354, %p355
      %p357 = scmp.ne.s32.totalorder %s346, %s349
      %p358 = scmp.eq.s32.totalorder %s42, 5
      %p359 = por %p357, %p358
      %p360 = scmp.ne.s32.totalorder %s349, %s350
      %p361 = scmp.eq.s32.totalorder %s42, 0
      %p362 = por %p360, %p361
      %p363 = scmp.ne.s32.totalorder %s349, %s350
      %p364 = scmp.eq.s32.totalorder %s43, 5
      %p365 = por %p363, %p364
      %p367 = scmp.ne.s32.totalorder %s350, %s366
      %p368 = scmp.eq.s32.totalorder %s43, 0
      %p369 = por %p367, %p368
      %s370 = ssub.s32 %s37, %s44
      %p371 = scmp.eq.s32.totalorder %s370, 0
      %s373 = sadd.s32 %s372, 1
      %s374 = scalar_select %p371, %s372, %s373
      %p377 = pneg %p371
      %p378 = scmp.eq.s32.totalorder %s37, 5
      %p379 = por %p377, %p378
      %p380 = scmp.ne.s32.totalorder %s372, %s375
      %p381 = scmp.eq.s32.totalorder %s37, 0
      %p382 = por %p380, %p381
      %p383 = scmp.ne.s32.totalorder %s372, %s375
      %p384 = scmp.eq.s32.totalorder %s42, 5
      %p385 = por %p383, %p384
      %p386 = scmp.ne.s32.totalorder %s375, %s376
      %p387 = scmp.eq.s32.totalorder %s42, 0
      %p388 = por %p386, %p387
      %p389 = scmp.ne.s32.totalorder %s375, %s376
      %p390 = scmp.eq.s32.totalorder %s43, 5
      %p391 = por %p389, %p390
      %p393 = scmp.ne.s32.totalorder %s376, %s392
      %p394 = scmp.eq.s32.totalorder %s43, 0
      %p395 = por %p393, %p394
      %s396 = ssub.s32 %s37, %s44
      %p397 = scmp.eq.s32.totalorder %s396, 0
      %s399 = sadd.s32 %s398, 1
      %s400 = scalar_select %p397, %s398, %s399
      %p403 = pneg %p397
      %p404 = scmp.eq.s32.totalorder %s37, 5
      %p405 = por %p403, %p404
      %p406 = scmp.ne.s32.totalorder %s398, %s401
      %p407 = scmp.eq.s32.totalorder %s37, 0
      %p408 = por %p406, %p407
      %p409 = scmp.ne.s32.totalorder %s398, %s401
      %p410 = scmp.eq.s32.totalorder %s42, 5
      %p411 = por %p409, %p410
      %p412 = scmp.ne.s32.totalorder %s401, %s402
      %p413 = scmp.eq.s32.totalorder %s42, 0
      %p414 = por %p412, %p413
      %p415 = scmp.ne.s32.totalorder %s401, %s402
      %p416 = scmp.eq.s32.totalorder %s43, 5
      %p417 = por %p415, %p416
      %p419 = scmp.ne.s32.totalorder %s402, %s418
      %p420 = scmp.eq.s32.totalorder %s43, 0
      %p421 = por %p419, %p420
      %s422 = ssub.s32 %s37, %s44
      %p423 = scmp.eq.s32.totalorder %s422, 0
      %s425 = sadd.s32 %s424, 1
      %s426 = scalar_select %p423, %s424, %s425
      %p429 = pneg %p423
      %p430 = scmp.eq.s32.totalorder %s37, 5
      %p431 = por %p429, %p430
      %p432 = scmp.ne.s32.totalorder %s424, %s427
      %p433 = scmp.eq.s32.totalorder %s37, 0
      %p434 = por %p432, %p433
      %p435 = scmp.ne.s32.totalorder %s424, %s427
      %p436 = scmp.eq.s32.totalorder %s42, 5
      %p437 = por %p435, %p436
      %p438 = scmp.ne.s32.totalorder %s427, %s428
      %p439 = scmp.eq.s32.totalorder %s42, 0
      %p440 = por %p438, %p439
      %p441 = scmp.ne.s32.totalorder %s427, %s428
      %p442 = scmp.eq.s32.totalorder %s43, 5
      %p443 = por %p441, %p442
      %p445 = scmp.ne.s32.totalorder %s428, %s444
      %p446 = scmp.eq.s32.totalorder %s43, 0
      %p447 = por %p445, %p446
      %s448 = ssub.s32 %s37, %s44
      %p449 = scmp.eq.s32.totalorder %s448, 0
      %s451 = sadd.s32 %s450, 1
      %s452 = scalar_select %p449, %s450, %s451
      %p455 = pneg %p449
      %p456 = scmp.eq.s32.totalorder %s37, 5
      %p457 = por %p455, %p456
      %p458 = scmp.ne.s32.totalorder %s450, %s453
      %p459 = scmp.eq.s32.totalorder %s37, 0
      %p460 = por %p458, %p459
      %p461 = scmp.ne.s32.totalorder %s450, %s453
      %p462 = scmp.eq.s32.totalorder %s42, 5
      %p463 = por %p461, %p462
      %p464 = scmp.ne.s32.totalorder %s453, %s454
      %p465 = scmp.eq.s32.totalorder %s42, 0
      %p466 = por %p464, %p465
      %p467 = scmp.ne.s32.totalorder %s453, %s454
      %p468 = scmp.eq.s32.totalorder %s43, 5
      %p469 = por %p467, %p468
      %p471 = scmp.ne.s32.totalorder %s454, %s470
      %p472 = scmp.eq.s32.totalorder %s43, 0
      %p473 = por %p471, %p472
      %s474 = ssub.s32 %s37, %s44
      %p475 = scmp.eq.s32.totalorder %s474, 0
      %s477 = sadd.s32 %s476, 1
      %s478 = scalar_select %p475, %s476, %s477
      %p481 = pneg %p475
      %p482 = scmp.eq.s32.totalorder %s37, 5
      %p483 = por %p481, %p482
      %p484 = scmp.ne.s32.totalorder %s476, %s479
      %p485 = scmp.eq.s32.totalorder %s37, 0
      %p486 = por %p484, %p485
      %p487 = scmp.ne.s32.totalorder %s476, %s479
      %p488 = scmp.eq.s32.totalorder %s42, 5
      %p489 = por %p487, %p488
      %p490 = scmp.ne.s32.totalorder %s479, %s480
      %p491 = scmp.eq.s32.totalorder %s42, 0
      %p492 = por %p490, %p491
      %p493 = scmp.ne.s32.totalorder %s479, %s480
      %p494 = scmp.eq.s32.totalorder %s43, 5
      %p495 = por %p493, %p494
      %p497 = scmp.ne.s32.totalorder %s480, %s496
      %p498 = scmp.eq.s32.totalorder %s43, 0
      %p499 = por %p497, %p498
      %s500 = ssub.s32 %s37, %s44
      %p501 = scmp.eq.s32.totalorder %s500, 0
      %s503 = sadd.s32 %s502, 1
      %s504 = scalar_select %p501, %s502, %s503
      %p507 = pneg %p501
      %p508 = scmp.eq.s32.totalorder %s37, 5
      %p509 = por %p507, %p508
      %p510 = scmp.ne.s32.totalorder %s502, %s505
      %p511 = scmp.eq.s32.totalorder %s37, 0
      %p512 = por %p510, %p511
      %p513 = scmp.ne.s32.totalorder %s502, %s505
      %p514 = scmp.eq.s32.totalorder %s42, 5
      %p515 = por %p513, %p514
      %p516 = scmp.ne.s32.totalorder %s505, %s506
      %p517 = scmp.eq.s32.totalorder %s42, 0
      %p518 = por %p516, %p517
      %p519 = scmp.ne.s32.totalorder %s505, %s506
      %p520 = scmp.eq.s32.totalorder %s43, 5
      %p521 = por %p519, %p520
      %p523 = scmp.ne.s32.totalorder %s506, %s522
      %p524 = scmp.eq.s32.totalorder %s43, 0
      %p525 = por %p523, %p524
      %s526 = ssub.s32 %s37, %s44
      %p527 = scmp.eq.s32.totalorder %s526, 0
      %s529 = sadd.s32 %s528, 1
      %s530 = scalar_select %p527, %s528, %s529
      %p533 = pneg %p527
      %p534 = scmp.eq.s32.totalorder %s37, 5
      %p535 = por %p533, %p534
      %p536 = scmp.ne.s32.totalorder %s528, %s531
      %p537 = scmp.eq.s32.totalorder %s37, 0
      %p538 = por %p536, %p537
      %p539 = scmp.ne.s32.totalorder %s528, %s531
      %p540 = scmp.eq.s32.totalorder %s42, 5
      %p541 = por %p539, %p540
      %p542 = scmp.ne.s32.totalorder %s531, %s532
      %p543 = scmp.eq.s32.totalorder %s42, 0
      %p544 = por %p542, %p543
      %p545 = scmp.ne.s32.totalorder %s531, %s532
      %p546 = scmp.eq.s32.totalorder %s43, 5
      %p547 = por %p545, %p546
      %p549 = scmp.ne.s32.totalorder %s532, %s548
      %p550 = scmp.eq.s32.totalorder %s43, 0
      %p551 = por %p549, %p550
      %s552 = ssub.s32 %s37, %s44
      %p553 = scmp.eq.s32.totalorder %s552, 0
      %s555 = sadd.s32 %s554, 1
      %s556 = scalar_select %p553, %s554, %s555
      %p559 = pneg %p553
      %p560 = scmp.eq.s32.totalorder %s37, 5
      %p561 = por %p559, %p560
      %p562 = scmp.ne.s32.totalorder %s554, %s557
      %p563 = scmp.eq.s32.totalorder %s37, 0
      %p564 = por %p562, %p563
      %p565 = scmp.ne.s32.totalorder %s554, %s557
      %p566 = scmp.eq.s32.totalorder %s42, 5
      %p567 = por %p565, %p566
      %p568 = scmp.ne.s32.totalorder %s557, %s558
      %p569 = scmp.eq.s32.totalorder %s42, 0
      %p570 = por %p568, %p569
      %p571 = scmp.ne.s32.totalorder %s557, %s558
      %p572 = scmp.eq.s32.totalorder %s43, 5
      %p573 = por %p571, %p572
      %p575 = scmp.ne.s32.totalorder %s558, %s574
      %p576 = scmp.eq.s32.totalorder %s43, 0
      %p577 = por %p575, %p576
      %s579 = sadd.s32 %s578, 1
      %p582 = scmp.eq.s32.totalorder %s37, 5
      %p583 = scmp.ne.s32.totalorder %s578, %s580
      %p584 = scmp.eq.s32.totalorder %s37, 0
      %p585 = por %p583, %p584
      %p586 = scmp.ne.s32.totalorder %s578, %s580
      %p587 = scmp.eq.s32.totalorder %s42, 5
      %p588 = por %p586, %p587
      %p589 = scmp.ne.s32.totalorder %s580, %s581
      %p590 = scmp.eq.s32.totalorder %s42, 0
      %p591 = por %p589, %p590
      %p592 = scmp.ne.s32.totalorder %s580, %s581
      %p593 = scmp.eq.s32.totalorder %s43, 5
      %p594 = por %p592, %p593
      %p596 = scmp.ne.s32.totalorder %s581, %s595
      %p597 = scmp.eq.s32.totalorder %s43, 0
      %p598 = por %p596, %p597
      %s600 = sadd.s32 %s599, 1
      %p603 = scmp.eq.s32.totalorder %s37, 5
      %p604 = scmp.ne.s32.totalorder %s599, %s601
      %p605 = scmp.eq.s32.totalorder %s37, 0
      %p606 = por %p604, %p605
      %p607 = scmp.ne.s32.totalorder %s599, %s601
      %p608 = scmp.eq.s32.totalorder %s42, 5
      %p609 = por %p607, %p608
      %p610 = scmp.ne.s32.totalorder %s601, %s602
      %p611 = scmp.eq.s32.totalorder %s42, 0
      %p612 = por %p610, %p611
      %p613 = scmp.ne.s32.totalorder %s601, %s602
      %p614 = scmp.eq.s32.totalorder %s43, 5
      %p615 = por %p613, %p614
      %p617 = scmp.ne.s32.totalorder %s602, %s616
      %p618 = scmp.eq.s32.totalorder %s43, 0
      %p619 = por %p617, %p618
      %s621 = sadd.s32 %s620, 1
      %p624 = scmp.eq.s32.totalorder %s37, 5
      %p625 = scmp.ne.s32.totalorder %s620, %s622
      %p626 = scmp.eq.s32.totalorder %s37, 0
      %p627 = por %p625, %p626
      %p628 = scmp.ne.s32.totalorder %s620, %s622
      %p629 = scmp.eq.s32.totalorder %s42, 5
      %p630 = por %p628, %p629
      %p631 = scmp.ne.s32.totalorder %s622, %s623
      %p632 = scmp.eq.s32.totalorder %s42, 0
      %p633 = por %p631, %p632
      %p634 = scmp.ne.s32.totalorder %s622, %s623
      %p635 = scmp.eq.s32.totalorder %s43, 5
      %p636 = por %p634, %p635
      %p638 = scmp.ne.s32.totalorder %s623, %s637
      %p639 = scmp.eq.s32.totalorder %s43, 0
      %p640 = por %p638, %p639
      %s642 = sadd.s32 %s641, 1
      %p645 = scmp.eq.s32.totalorder %s37, 5
      %p646 = scmp.ne.s32.totalorder %s641, %s643
      %p647 = scmp.eq.s32.totalorder %s37, 0
      %p648 = por %p646, %p647
      %p649 = scmp.ne.s32.totalorder %s641, %s643
      %p650 = scmp.eq.s32.totalorder %s42, 5
      %p651 = por %p649, %p650
      %p652 = scmp.ne.s32.totalorder %s643, %s644
      %p653 = scmp.eq.s32.totalorder %s42, 0
      %p654 = por %p652, %p653
      %p655 = scmp.ne.s32.totalorder %s643, %s644
      %p656 = scmp.eq.s32.totalorder %s43, 5
      %p657 = por %p655, %p656
      %p659 = scmp.ne.s32.totalorder %s644, %s658
      %p660 = scmp.eq.s32.totalorder %s43, 0
      %p661 = por %p659, %p660
      %s663 = sadd.s32 %s662, 1
      %p666 = scmp.eq.s32.totalorder %s37, 5
      %p667 = scmp.ne.s32.totalorder %s662, %s664
      %p668 = scmp.eq.s32.totalorder %s37, 0
      %p669 = por %p667, %p668
      %p670 = scmp.ne.s32.totalorder %s662, %s664
      %p671 = scmp.eq.s32.totalorder %s42, 5
      %p672 = por %p670, %p671
      %p673 = scmp.ne.s32.totalorder %s664, %s665
      %p674 = scmp.eq.s32.totalorder %s42, 0
      %p675 = por %p673, %p674
      %p676 = scmp.ne.s32.totalorder %s664, %s665
      %p677 = scmp.eq.s32.totalorder %s43, 5
      %p678 = por %p676, %p677
      %p680 = scmp.ne.s32.totalorder %s665, %s679
      %p681 = scmp.eq.s32.totalorder %s43, 0
      %p682 = por %p680, %p681
      %p683 = scmp.le.s32.totalorder 1, %s37
      %p684 = scmp.lt.s32.totalorder %s37, 7
      %p685 = pnand %p683, %p684
      %p686 = pneg %p685
      // Predicated region
      $region9: #{mpnn_forward.1} parent=5 // pred_check
        _
      $region10: #{mpnn_forward.1} parent=5 // pred_check_branch
        %688 = sbr.rel (%p685) target = $region12
      $region11: #{mpnn_forward.1} parent=5 // pred_region
        %s689 = ssub.s32 %s37, 1
        // Predicated region
        $region13: #{mpnn_forward.1} parent=11 // pred_check
          %p690 = pneg %p58
        $region14: #{mpnn_forward.1} parent=11 // pred_check_branch
          %692 = sbr.rel (%p690) target = $region16
        $region15: #{mpnn_forward.1} parent=11 // pred_region
          _
        $region16: #{mpnn_forward.1} parent=11 // pred_fallthru
          _
        // Predicated region
        $region17: #{mpnn_forward.1} parent=11 // pred_check
          %p693 = pneg %p79
        $region18: #{mpnn_forward.1} parent=11 // pred_check_branch
          %695 = sbr.rel (%p693) target = $region20
        $region19: #{mpnn_forward.1} parent=11 // pred_region
          _
        $region20: #{mpnn_forward.1} parent=11 // pred_fallthru
          _
        // Predicated region
        $region21: #{mpnn_forward.1} parent=11 // pred_check
          %p696 = pneg %p100
        $region22: #{mpnn_forward.1} parent=11 // pred_check_branch
          %698 = sbr.rel (%p696) target = $region24
        $region23: #{mpnn_forward.1} parent=11 // pred_region
          _
        $region24: #{mpnn_forward.1} parent=11 // pred_fallthru
          _
        // Predicated region
        $region25: #{mpnn_forward.1} parent=11 // pred_check
          %p699 = pneg %p121
        $region26: #{mpnn_forward.1} parent=11 // pred_check_branch
          %701 = sbr.rel (%p699) target = $region28
        $region27: #{mpnn_forward.1} parent=11 // pred_region
          _
        $region28: #{mpnn_forward.1} parent=11 // pred_fallthru
          _
        // Predicated region
        $region29: #{mpnn_forward.1} parent=11 // pred_check
          %p702 = pneg %p142
        $region30: #{mpnn_forward.1} parent=11 // pred_check_branch
          %704 = sbr.rel (%p702) target = $region32
        $region31: #{mpnn_forward.1} parent=11 // pred_region
          _
        $region32: #{mpnn_forward.1} parent=11 // pred_fallthru
          _
        // Predicated region
        $region33: #{mpnn_forward.1} parent=11 // pred_check
          %p705 = pneg %p163
        $region34: #{mpnn_forward.1} parent=11 // pred_check_branch
          %707 = sbr.rel (%p705) target = $region36
        $region35: #{mpnn_forward.1} parent=11 // pred_region
          _
        $region36: #{mpnn_forward.1} parent=11 // pred_fallthru
          _
        // Predicated region
        $region37: #{mpnn_forward.1} parent=11 // pred_check
          %p708 = pneg %p184
        $region38: #{mpnn_forward.1} parent=11 // pred_check_branch
          %710 = sbr.rel (%p708) target = $region40
        $region39: #{mpnn_forward.1} parent=11 // pred_region
          _
        $region40: #{mpnn_forward.1} parent=11 // pred_fallthru
          _
        // Predicated region
        $region41: #{mpnn_forward.1} parent=11 // pred_check
          %p711 = pneg %p205
        $region42: #{mpnn_forward.1} parent=11 // pred_check_branch
          %713 = sbr.rel (%p711) target = $region44
        $region43: #{mpnn_forward.1} parent=11 // pred_region
          %715 = vsyncadd [#allocation4], 0
          %s716 = sshll.u32 %s7, 4
          %s717 = int_to_ptr.hbm [resolvable:$true] %s716
          %s718 = sshll.u32 [#allocation3], 4
          %s719 = int_to_ptr.vmem [resolvable:$true] %s718
          %724 = dma.hbm_to_vmem [thread:$0]  %s717, 4096, %s719, [#allocation4], 256, 256, 16
        $region44: #{mpnn_forward.1} parent=11 // pred_fallthru
          _
        // Predicated region
        $region45: #{mpnn_forward.1} parent=11 // pred_check
          %p725 = pneg %p226
        $region46: #{mpnn_forward.1} parent=11 // pred_check_branch
          %727 = sbr.rel (%p725) target = $region48
        $region47: #{mpnn_forward.1} parent=11 // pred_region
          %729 = vsyncadd [#allocation6], 0
          %s730 = sshll.u32 %s8, 4
          %s731 = int_to_ptr.hbm [resolvable:$true] %s730
          %s732 = sshll.u32 [#allocation5], 4
          %s733 = int_to_ptr.vmem [resolvable:$true] %s732
          %738 = dma.hbm_to_vmem [thread:$0]  %s731, 2048, %s733, [#allocation6], 128, 128, 8
        $region48: #{mpnn_forward.1} parent=11 // pred_fallthru
          _
        // Predicated region
        $region49: #{mpnn_forward.1} parent=11 // pred_check
          %p739 = pneg %p247
        $region50: #{mpnn_forward.1} parent=11 // pred_check_branch
          %741 = sbr.rel (%p739) target = $region52
        $region51: #{mpnn_forward.1} parent=11 // pred_region
          %743 = vsyncadd [#allocation6], 0
          %s744 = sshll.u32 %s9, 4
          %s745 = int_to_ptr.hbm [resolvable:$true] %s744
          %s746 = sshll.u32 [#allocation7], 4
          %s747 = int_to_ptr.vmem [resolvable:$true] %s746
          %752 = dma.hbm_to_vmem [thread:$0]  %s745, 256, %s747, [#allocation6], 64, 64, 4
        $region52: #{mpnn_forward.1} parent=11 // pred_fallthru
          _
        // Predicated region
        $region53: #{mpnn_forward.1} parent=11 // pred_check
          %p753 = pneg %p268
        $region54: #{mpnn_forward.1} parent=11 // pred_check_branch
          %755 = sbr.rel (%p753) target = $region56
        $region55: #{mpnn_forward.1} parent=11 // pred_region
          %757 = vsyncadd [#allocation9], 0
          %s759 = sshll.u32 %s10, 4
          %s760 = int_to_ptr.hbm [resolvable:$true] %s759
          %s761 = sshll.u32 [#allocation8], 4
          %s762 = int_to_ptr.vmem [resolvable:$true] %s761
          %764 = dma.hbm_to_vmem [thread:$0]  %s760, 16, %s762, [#allocation9]
        $region56: #{mpnn_forward.1} parent=11 // pred_fallthru
          _
        // Predicated region
        $region57: #{mpnn_forward.1} parent=11 // pred_check
          %p765 = pneg %p289
        $region58: #{mpnn_forward.1} parent=11 // pred_check_branch
          %767 = sbr.rel (%p765) target = $region60
        $region59: #{mpnn_forward.1} parent=11 // pred_region
          %769 = vsyncadd [#allocation9], 0
          %s770 = sshll.u32 %s11, 4
          %s771 = int_to_ptr.hbm [resolvable:$true] %s770
          %s772 = sshll.u32 [#allocation10], 4
          %s773 = int_to_ptr.vmem [resolvable:$true] %s772
          %778 = dma.hbm_to_vmem [thread:$0]  %s771, 1024, %s773, [#allocation9], 64, 64, 4
        $region60: #{mpnn_forward.1} parent=11 // pred_fallthru
          _
        // Predicated region
        $region61: #{mpnn_forward.1} parent=11 // pred_check
          %p779 = pneg %p310
        $region62: #{mpnn_forward.1} parent=11 // pred_check_branch
          %781 = sbr.rel (%p779) target = $region64
        $region63: #{mpnn_forward.1} parent=11 // pred_region
          %783 = vsyncadd [#allocation12], 0
          %s785 = sshll.u32 %s12, 4
          %s786 = int_to_ptr.hbm [resolvable:$true] %s785
          %s787 = sshll.u32 [#allocation11], 4
          %s788 = int_to_ptr.vmem [resolvable:$true] %s787
          %790 = dma.hbm_to_vmem [thread:$0]  %s786, 16, %s788, [#allocation12]
        $region64: #{mpnn_forward.1} parent=11 // pred_fallthru
          _
        // Predicated region
        $region65: #{mpnn_forward.1} parent=11 // pred_check
          %p791 = pneg %p591
        $region66: #{mpnn_forward.1} parent=11 // pred_check_branch
          %793 = sbr.rel (%p791) target = $region68
        $region67: #{mpnn_forward.1} parent=11 // pred_region
          _
        $region68: #{mpnn_forward.1} parent=11 // pred_fallthru
          _
        // Predicated region
        $region69: #{mpnn_forward.1} parent=11 // pred_check
          %p794 = pneg %p612
        $region70: #{mpnn_forward.1} parent=11 // pred_check_branch
          %796 = sbr.rel (%p794) target = $region72
        $region71: #{mpnn_forward.1} parent=11 // pred_region
          %798 = vsyncadd [#allocation6], 0
          %s800 = sshll.u32 %s24, 4
          %s801 = int_to_ptr.hbm [resolvable:$true] %s800
          %s802 = sshll.u32 [#allocation20], 4
          %s803 = int_to_ptr.vmem [resolvable:$true] %s802
          %805 = dma.hbm_to_vmem [thread:$0]  %s801, 48, %s803, [#allocation6]
        $region72: #{mpnn_forward.1} parent=11 // pred_fallthru
          _
        // Predicated region
        $region73: #{mpnn_forward.1} parent=11 // pred_check
          %p806 = pneg %p633
        $region74: #{mpnn_forward.1} parent=11 // pred_check_branch
          %808 = sbr.rel (%p806) target = $region76
        $region75: #{mpnn_forward.1} parent=11 // pred_region
          %810 = vsyncadd [#allocation9], 0
          %s811 = sshll.u32 %s25, 4
          %s812 = int_to_ptr.hbm [resolvable:$true] %s811
          %s813 = sshll.u32 [#allocation21], 4
          %s814 = int_to_ptr.vmem [resolvable:$true] %s813
          %819 = dma.hbm_to_vmem [thread:$0]  %s812, 2432, %s814, [#allocation9], 64, 64, 4
        $region76: #{mpnn_forward.1} parent=11 // pred_fallthru
          _
        // Predicated region
        $region77: #{mpnn_forward.1} parent=11 // pred_check
          %p820 = pneg %p654
        $region78: #{mpnn_forward.1} parent=11 // pred_check_branch
          %822 = sbr.rel (%p820) target = $region80
        $region79: #{mpnn_forward.1} parent=11 // pred_region
          %824 = vsyncadd [#allocation12], 0
          %s826 = sshll.u32 %s26, 4
          %s827 = int_to_ptr.hbm [resolvable:$true] %s826
          %s828 = sshll.u32 [#allocation22], 4
          %s829 = int_to_ptr.vmem [resolvable:$true] %s828
          %831 = dma.hbm_to_vmem [thread:$0]  %s827, 16, %s829, [#allocation12]
        $region80: #{mpnn_forward.1} parent=11 // pred_fallthru
          _
      $region12: #{mpnn_forward.1} parent=5 // pred_fallthru
        _
      %p832 = scmp.lt.s32.totalorder %s37, 6
      // Predicated region
      $region81: #{mpnn_forward.1} parent=5 // pred_check
        %p833 = pneg %p832
      $region82: #{mpnn_forward.1} parent=5 // pred_check_branch
        %835 = sbr.rel (%p833) target = $region84
      $region83: #{mpnn_forward.1} parent=5 // pred_region
        // Predicated region
        $region85: #{mpnn_forward.1} parent=83 // pred_check
          %p836 = pneg %p330
        $region86: #{mpnn_forward.1} parent=83 // pred_check_branch
          %838 = sbr.rel (%p836) target = $region88
        $region87: #{mpnn_forward.1} parent=83 // pred_region
          %s839 = sand.u32 %s37, 1
          %s840 = scalar_lea.sflag [#allocation4], %s839
          %s841 = sand.u32 %s320, 1
          %s842 = smul.addr %s841, 128
          %s843 = scalar_lea.vmem [#allocation13], %s842
          %845 = vsyncadd %s840, 0
          %s846 = smul.addr %s37, 32
          %s847 = smul.addr %s846, 4
          %s848 = scalar_lea.hbm %s13, %s847
          %s849 = sshll.u32 %s848, 4
          %s850 = int_to_ptr.hbm [resolvable:$true] %s849
          %s851 = sshll.u32 %s843, 4
          %s852 = int_to_ptr.vmem [resolvable:$true] %s851
          %857 = dma.hbm_to_vmem [thread:$0]  %s850, 2048, %s852, %s840, 128, 128, 8
        $region88: #{mpnn_forward.1} parent=83 // pred_fallthru
          _
        // Predicated region
        $region89: #{mpnn_forward.1} parent=83 // pred_check
          %p858 = pneg %p356
        $region90: #{mpnn_forward.1} parent=83 // pred_check_branch
          %860 = sbr.rel (%p858) target = $region92
        $region91: #{mpnn_forward.1} parent=83 // pred_region
          %p861 = scmp.lt.s32.totalorder %s37, 5
          %s862 = scalar_select %p861, %s37, 5
          %s863 = smul.addr %s862, 8
          %s864 = smul.addr %s863, 4
          %s865 = scalar_lea.vmem %s14, %s864
        $region92: #{mpnn_forward.1} parent=83 // pred_fallthru
          _
        // Predicated region
        $region93: #{mpnn_forward.1} parent=83 // pred_check
          %p866 = pneg %p382
        $region94: #{mpnn_forward.1} parent=83 // pred_check_branch
          %868 = sbr.rel (%p866) target = $region96
        $region95: #{mpnn_forward.1} parent=83 // pred_region
          %s869 = sand.u32 %s37, 1
          %s870 = scalar_lea.sflag [#allocation4], %s869
          %s871 = sand.u32 %s372, 1
          %s872 = scalar_lea.vmem [#allocation14], %s871
          %874 = vsyncadd %s870, 0
          %s875 = scalar_lea.hbm %s15, %s37
          %s877 = sshll.u32 %s875, 4
          %s878 = int_to_ptr.hbm [resolvable:$true] %s877
          %s879 = sshll.u32 %s872, 4
          %s880 = int_to_ptr.vmem [resolvable:$true] %s879
          %882 = dma.hbm_to_vmem [thread:$0]  %s878, 16, %s880, %s870
        $region96: #{mpnn_forward.1} parent=83 // pred_fallthru
          _
        // Predicated region
        $region97: #{mpnn_forward.1} parent=83 // pred_check
          %p883 = pneg %p408
        $region98: #{mpnn_forward.1} parent=83 // pred_check_branch
          %885 = sbr.rel (%p883) target = $region100
        $region99: #{mpnn_forward.1} parent=83 // pred_region
          %p886 = scmp.lt.s32.totalorder %s37, 5
          %s887 = scalar_select %p886, %s37, 5
          %s888 = smul.addr %s887, 16
          %s889 = smul.addr %s888, 4
          %s890 = scalar_lea.vmem %s16, %s889
        $region100: #{mpnn_forward.1} parent=83 // pred_fallthru
          _
        // Predicated region
        $region101: #{mpnn_forward.1} parent=83 // pred_check
          %p891 = pneg %p434
        $region102: #{mpnn_forward.1} parent=83 // pred_check_branch
          %893 = sbr.rel (%p891) target = $region104
        $region103: #{mpnn_forward.1} parent=83 // pred_region
          %s894 = sand.u32 %s37, 1
          %s895 = scalar_lea.sflag [#allocation4], %s894
          %s896 = sand.u32 %s424, 1
          %s897 = scalar_lea.vmem [#allocation15], %s896
          %899 = vsyncadd %s895, 0
          %s900 = scalar_lea.hbm %s17, %s37
          %s902 = sshll.u32 %s900, 4
          %s903 = int_to_ptr.hbm [resolvable:$true] %s902
          %s904 = sshll.u32 %s897, 4
          %s905 = int_to_ptr.vmem [resolvable:$true] %s904
          %907 = dma.hbm_to_vmem [thread:$0]  %s903, 16, %s905, %s895
        $region104: #{mpnn_forward.1} parent=83 // pred_fallthru
          _
        // Predicated region
        $region105: #{mpnn_forward.1} parent=83 // pred_check
          %p908 = pneg %p460
        $region106: #{mpnn_forward.1} parent=83 // pred_check_branch
          %910 = sbr.rel (%p908) target = $region108
        $region107: #{mpnn_forward.1} parent=83 // pred_region
          %s911 = sand.u32 %s37, 1
          %s912 = scalar_lea.sflag [#allocation4], %s911
          %s913 = sand.u32 %s450, 1
          %s914 = smul.addr %s913, 128
          %s915 = scalar_lea.vmem [#allocation16], %s914
          %917 = vsyncadd %s912, 0
          %s918 = smul.addr %s37, 32
          %s919 = smul.addr %s918, 4
          %s920 = scalar_lea.hbm %s18, %s919
          %s921 = sshll.u32 %s920, 4
          %s922 = int_to_ptr.hbm [resolvable:$true] %s921
          %s923 = sshll.u32 %s915, 4
          %s924 = int_to_ptr.vmem [resolvable:$true] %s923
          %929 = dma.hbm_to_vmem [thread:$0]  %s922, 2048, %s924, %s912, 64, 64, 4
        $region108: #{mpnn_forward.1} parent=83 // pred_fallthru
          _
        // Predicated region
        $region109: #{mpnn_forward.1} parent=83 // pred_check
          %p930 = pneg %p486
        $region110: #{mpnn_forward.1} parent=83 // pred_check_branch
          %932 = sbr.rel (%p930) target = $region112
        $region111: #{mpnn_forward.1} parent=83 // pred_region
          %s933 = sand.u32 %s37, 1
          %s934 = scalar_lea.sflag [#allocation4], %s933
          %s935 = sand.u32 %s476, 1
          %s936 = scalar_lea.vmem [#allocation17], %s935
          %938 = vsyncadd %s934, 0
          %s939 = scalar_lea.hbm %s19, %s37
          %s941 = sshll.u32 %s939, 4
          %s942 = int_to_ptr.hbm [resolvable:$true] %s941
          %s943 = sshll.u32 %s936, 4
          %s944 = int_to_ptr.vmem [resolvable:$true] %s943
          %946 = dma.hbm_to_vmem [thread:$0]  %s942, 16, %s944, %s934
        $region112: #{mpnn_forward.1} parent=83 // pred_fallthru
          _
        // Predicated region
        $region113: #{mpnn_forward.1} parent=83 // pred_check
          %p947 = pneg %p512
        $region114: #{mpnn_forward.1} parent=83 // pred_check_branch
          %949 = sbr.rel (%p947) target = $region116
        $region115: #{mpnn_forward.1} parent=83 // pred_region
          %s950 = sand.u32 %s37, 1
          %s951 = scalar_lea.sflag [#allocation4], %s950
          %s952 = sand.u32 %s502, 1
          %s953 = scalar_lea.vmem [#allocation18], %s952
          %955 = vsyncadd %s951, 0
          %s956 = scalar_lea.hbm %s20, %s37
          %s958 = sshll.u32 %s956, 4
          %s959 = int_to_ptr.hbm [resolvable:$true] %s958
          %s960 = sshll.u32 %s953, 4
          %s961 = int_to_ptr.vmem [resolvable:$true] %s960
          %963 = dma.hbm_to_vmem [thread:$0]  %s959, 16, %s961, %s951
        $region116: #{mpnn_forward.1} parent=83 // pred_fallthru
          _
        // Predicated region
        $region117: #{mpnn_forward.1} parent=83 // pred_check
          %p964 = pneg %p538
        $region118: #{mpnn_forward.1} parent=83 // pred_check_branch
          %966 = sbr.rel (%p964) target = $region120
        $region119: #{mpnn_forward.1} parent=83 // pred_region
          %p967 = scmp.lt.s32.totalorder %s37, 5
          %s968 = scalar_select %p967, %s37, 5
          %s969 = smul.addr %s968, 16
          %s970 = smul.addr %s969, 4
          %s971 = scalar_lea.vmem %s21, %s970
        $region120: #{mpnn_forward.1} parent=83 // pred_fallthru
          _
        // Predicated region
        $region121: #{mpnn_forward.1} parent=83 // pred_check
          %p972 = pneg %p564
        $region122: #{mpnn_forward.1} parent=83 // pred_check_branch
          %974 = sbr.rel (%p972) target = $region124
        $region123: #{mpnn_forward.1} parent=83 // pred_region
          %s975 = sand.u32 %s37, 1
          %s976 = scalar_lea.sflag [#allocation4], %s975
          %s977 = sand.u32 %s554, 1
          %s978 = scalar_lea.vmem [#allocation19], %s977
          %980 = vsyncadd %s976, 0
          %s981 = scalar_lea.hbm %s22, %s37
          %s983 = sshll.u32 %s981, 4
          %s984 = int_to_ptr.hbm [resolvable:$true] %s983
          %s985 = sshll.u32 %s978, 4
          %s986 = int_to_ptr.vmem [resolvable:$true] %s985
          %988 = dma.hbm_to_vmem [thread:$0]  %s984, 16, %s986, %s976
        $region124: #{mpnn_forward.1} parent=83 // pred_fallthru
          _
      $region84: #{mpnn_forward.1} parent=5 // pred_fallthru
        _
      %p989 = scmp.le.s32.totalorder 1, %s37
      %p990 = scmp.lt.s32.totalorder %s37, 7
      %p991 = pnand %p989, %p990
      %p992 = pneg %p991
      // Predicated region
      $region125: #{mpnn_forward.1} parent=5 // pred_check
        _
      $region126: #{mpnn_forward.1} parent=5 // pred_check_branch
        %994 = sbr.rel (%p991) target = $region128
      $region127: #{mpnn_forward.1} parent=5 // pred_region
        %s995 = ssub.s32 %s37, 1
        // Predicated region
        $region129: #{mpnn_forward.1} parent=127 // pred_check
          %p996 = pneg %p205
        $region130: #{mpnn_forward.1} parent=127 // pred_check_branch
          %998 = sbr.rel (%p996) target = $region132
        $region131: #{mpnn_forward.1} parent=127 // pred_region
          %1000 = dma.done [#allocation4], 4096
        $region132: #{mpnn_forward.1} parent=127 // pred_fallthru
          _
        // Predicated region
        $region133: #{mpnn_forward.1} parent=127 // pred_check
          %p1001 = pneg %p226
        $region134: #{mpnn_forward.1} parent=127 // pred_check_branch
          %1003 = sbr.rel (%p1001) target = $region136
        $region135: #{mpnn_forward.1} parent=127 // pred_region
          %1005 = dma.done [#allocation6], 2048
        $region136: #{mpnn_forward.1} parent=127 // pred_fallthru
          _
        // Predicated region
        $region137: #{mpnn_forward.1} parent=127 // pred_check
          %p1006 = pneg %p247
        $region138: #{mpnn_forward.1} parent=127 // pred_check_branch
          %1008 = sbr.rel (%p1006) target = $region140
        $region139: #{mpnn_forward.1} parent=127 // pred_region
          %1010 = dma.done [#allocation6], 256
        $region140: #{mpnn_forward.1} parent=127 // pred_fallthru
          _
        // Predicated region
        $region141: #{mpnn_forward.1} parent=127 // pred_check
          %p1011 = pneg %p268
        $region142: #{mpnn_forward.1} parent=127 // pred_check_branch
          %1013 = sbr.rel (%p1011) target = $region144
        $region143: #{mpnn_forward.1} parent=127 // pred_region
          %1015 = dma.done [#allocation9], 16
        $region144: #{mpnn_forward.1} parent=127 // pred_fallthru
          _
        // Predicated region
        $region145: #{mpnn_forward.1} parent=127 // pred_check
          %p1016 = pneg %p289
        $region146: #{mpnn_forward.1} parent=127 // pred_check_branch
          %1018 = sbr.rel (%p1016) target = $region148
        $region147: #{mpnn_forward.1} parent=127 // pred_region
          %1020 = dma.done [#allocation9], 1024
        $region148: #{mpnn_forward.1} parent=127 // pred_fallthru
          _
        // Predicated region
        $region149: #{mpnn_forward.1} parent=127 // pred_check
          %p1021 = pneg %p310
        $region150: #{mpnn_forward.1} parent=127 // pred_check_branch
          %1023 = sbr.rel (%p1021) target = $region152
        $region151: #{mpnn_forward.1} parent=127 // pred_region
          %1025 = dma.done [#allocation12], 16
        $region152: #{mpnn_forward.1} parent=127 // pred_fallthru
          _
        %s1026 = sand.u32 %s42, 1
        %s1027 = scalar_lea.sflag [#allocation4], %s1026
        %s1028 = sand.u32 %s323, 1
        %s1029 = smul.addr %s1028, 128
        %s1030 = scalar_lea.vmem [#allocation13], %s1029
        // Predicated region
        $region153: #{mpnn_forward.1} parent=127 // pred_check
          %p1031 = pneg %p336
        $region154: #{mpnn_forward.1} parent=127 // pred_check_branch
          %1033 = sbr.rel (%p1031) target = $region156
        $region155: #{mpnn_forward.1} parent=127 // pred_region
          %1035 = dma.done %s1027, 2048
        $region156: #{mpnn_forward.1} parent=127 // pred_fallthru
          _
        %s1036 = sand.u32 %s42, 1
        %s1037 = scalar_lea.sflag [#allocation4], %s1036
        %s1038 = sand.u32 %s375, 1
        %s1039 = scalar_lea.vmem [#allocation14], %s1038
        // Predicated region
        $region157: #{mpnn_forward.1} parent=127 // pred_check
          %p1040 = pneg %p388
        $region158: #{mpnn_forward.1} parent=127 // pred_check_branch
          %1042 = sbr.rel (%p1040) target = $region160
        $region159: #{mpnn_forward.1} parent=127 // pred_region
          %1044 = dma.done %s1037, 16
        $region160: #{mpnn_forward.1} parent=127 // pred_fallthru
          _
        %s1045 = sand.u32 %s42, 1
        %s1046 = scalar_lea.sflag [#allocation4], %s1045
        %s1047 = sand.u32 %s427, 1
        %s1048 = scalar_lea.vmem [#allocation15], %s1047
        // Predicated region
        $region161: #{mpnn_forward.1} parent=127 // pred_check
          %p1049 = pneg %p440
        $region162: #{mpnn_forward.1} parent=127 // pred_check_branch
          %1051 = sbr.rel (%p1049) target = $region164
        $region163: #{mpnn_forward.1} parent=127 // pred_region
          %1053 = dma.done %s1046, 16
        $region164: #{mpnn_forward.1} parent=127 // pred_fallthru
          _
        %s1054 = sand.u32 %s42, 1
        %s1055 = scalar_lea.sflag [#allocation4], %s1054
        %s1056 = sand.u32 %s453, 1
        %s1057 = smul.addr %s1056, 128
        %s1058 = scalar_lea.vmem [#allocation16], %s1057
        // Predicated region
        $region165: #{mpnn_forward.1} parent=127 // pred_check
          %p1059 = pneg %p466
        $region166: #{mpnn_forward.1} parent=127 // pred_check_branch
          %1061 = sbr.rel (%p1059) target = $region168
        $region167: #{mpnn_forward.1} parent=127 // pred_region
          %1063 = dma.done %s1055, 2048
        $region168: #{mpnn_forward.1} parent=127 // pred_fallthru
          _
        %s1064 = sand.u32 %s42, 1
        %s1065 = scalar_lea.sflag [#allocation4], %s1064
        %s1066 = sand.u32 %s479, 1
        %s1067 = scalar_lea.vmem [#allocation17], %s1066
        // Predicated region
        $region169: #{mpnn_forward.1} parent=127 // pred_check
          %p1068 = pneg %p492
        $region170: #{mpnn_forward.1} parent=127 // pred_check_branch
          %1070 = sbr.rel (%p1068) target = $region172
        $region171: #{mpnn_forward.1} parent=127 // pred_region
          %1072 = dma.done %s1065, 16
        $region172: #{mpnn_forward.1} parent=127 // pred_fallthru
          _
        %s1073 = sand.u32 %s42, 1
        %s1074 = scalar_lea.sflag [#allocation4], %s1073
        %s1075 = sand.u32 %s505, 1
        %s1076 = scalar_lea.vmem [#allocation18], %s1075
        // Predicated region
        $region173: #{mpnn_forward.1} parent=127 // pred_check
          %p1077 = pneg %p518
        $region174: #{mpnn_forward.1} parent=127 // pred_check_branch
          %1079 = sbr.rel (%p1077) target = $region176
        $region175: #{mpnn_forward.1} parent=127 // pred_region
          %1081 = dma.done %s1074, 16
        $region176: #{mpnn_forward.1} parent=127 // pred_fallthru
          _
        %s1082 = sand.u32 %s42, 1
        %s1083 = scalar_lea.sflag [#allocation4], %s1082
        %s1084 = sand.u32 %s557, 1
        %s1085 = scalar_lea.vmem [#allocation19], %s1084
        // Predicated region
        $region177: #{mpnn_forward.1} parent=127 // pred_check
          %p1086 = pneg %p570
        $region178: #{mpnn_forward.1} parent=127 // pred_check_branch
          %1088 = sbr.rel (%p1086) target = $region180
        $region179: #{mpnn_forward.1} parent=127 // pred_region
          %1090 = dma.done %s1083, 16
        $region180: #{mpnn_forward.1} parent=127 // pred_fallthru
          _
        // Predicated region
        $region181: #{mpnn_forward.1} parent=127 // pred_check
          %p1091 = pneg %p612
        $region182: #{mpnn_forward.1} parent=127 // pred_check_branch
          %1093 = sbr.rel (%p1091) target = $region184
        $region183: #{mpnn_forward.1} parent=127 // pred_region
          %1095 = dma.done [#allocation6], 48
        $region184: #{mpnn_forward.1} parent=127 // pred_fallthru
          _
        // Predicated region
        $region185: #{mpnn_forward.1} parent=127 // pred_check
          %p1096 = pneg %p633
        $region186: #{mpnn_forward.1} parent=127 // pred_check_branch
          %1098 = sbr.rel (%p1096) target = $region188
        $region187: #{mpnn_forward.1} parent=127 // pred_region
          %1100 = dma.done [#allocation9], 2432
        $region188: #{mpnn_forward.1} parent=127 // pred_fallthru
          _
        // Predicated region
        $region189: #{mpnn_forward.1} parent=127 // pred_check
          %p1101 = pneg %p654
        $region190: #{mpnn_forward.1} parent=127 // pred_check_branch
          %1103 = sbr.rel (%p1101) target = $region192
        $region191: #{mpnn_forward.1} parent=127 // pred_region
          %1105 = dma.done [#allocation12], 16
        $region192: #{mpnn_forward.1} parent=127 // pred_fallthru
          _
        %p1106 = pneg %p58
        %p1107 = pneg %p55
        %p1108 = pneg %p79
        %p1109 = pneg %p76
        %p1110 = pneg %p100
        %p1111 = pneg %p97
        %p1112 = pneg %p121
        %p1113 = pneg %p118
        %p1114 = pneg %p142
        %p1115 = pneg %p139
        %p1116 = pneg %p163
        %p1117 = pneg %p160
        %p1118 = pneg %p184
        %p1119 = pneg %p181
        %p1120 = pneg %p205
        %p1121 = pneg %p202
        %p1122 = pneg %p226
        %p1123 = pneg %p223
        %p1124 = pneg %p247
        %p1125 = pneg %p244
        %p1126 = pneg %p268
        %p1127 = pneg %p265
        %p1128 = pneg %p289
        %p1129 = pneg %p286
        %p1130 = pneg %p310
        %p1131 = pneg %p307
        %s1132 = sand.u32 %s42, 1
        %s1133 = scalar_lea.sflag [#allocation4], %s1132
        %s1134 = sand.u32 %s323, 1
        %s1135 = smul.addr %s1134, 128
        %s1136 = scalar_lea.vmem [#allocation13], %s1135
        %p1137 = pneg %p336
        %p1138 = pneg %p333
        %p1139 = scmp.lt.s32.totalorder %s42, 5
        %s1140 = scalar_select %p1139, %s42, 5
        %s1141 = smul.addr %s1140, 8
        %s1142 = smul.addr %s1141, 4
        %s1143 = scalar_lea.vmem %s14, %s1142
        %p1144 = pneg %p362
        %p1145 = pneg %p359
        %s1146 = sand.u32 %s42, 1
        %s1147 = scalar_lea.sflag [#allocation4], %s1146
        %s1148 = sand.u32 %s375, 1
        %s1149 = scalar_lea.vmem [#allocation14], %s1148
        %p1150 = pneg %p388
        %p1151 = pneg %p385
        %p1152 = scmp.lt.s32.totalorder %s42, 5
        %s1153 = scalar_select %p1152, %s42, 5
        %s1154 = smul.addr %s1153, 16
        %s1155 = smul.addr %s1154, 4
        %s1156 = scalar_lea.vmem %s16, %s1155
        %p1157 = pneg %p414
        %p1158 = pneg %p411
        %s1159 = sand.u32 %s42, 1
        %s1160 = scalar_lea.sflag [#allocation4], %s1159
        %s1161 = sand.u32 %s427, 1
        %s1162 = scalar_lea.vmem [#allocation15], %s1161
        %p1163 = pneg %p440
        %p1164 = pneg %p437
        %s1165 = sand.u32 %s42, 1
        %s1166 = scalar_lea.sflag [#allocation4], %s1165
        %s1167 = sand.u32 %s453, 1
        %s1168 = smul.addr %s1167, 128
        %s1169 = scalar_lea.vmem [#allocation16], %s1168
        %p1170 = pneg %p466
        %p1171 = pneg %p463
        %s1172 = sand.u32 %s42, 1
        %s1173 = scalar_lea.sflag [#allocation4], %s1172
        %s1174 = sand.u32 %s479, 1
        %s1175 = scalar_lea.vmem [#allocation17], %s1174
        %p1176 = pneg %p492
        %p1177 = pneg %p489
        %s1178 = sand.u32 %s42, 1
        %s1179 = scalar_lea.sflag [#allocation4], %s1178
        %s1180 = sand.u32 %s505, 1
        %s1181 = scalar_lea.vmem [#allocation18], %s1180
        %p1182 = pneg %p518
        %p1183 = pneg %p515
        %p1184 = scmp.lt.s32.totalorder %s42, 5
        %s1185 = scalar_select %p1184, %s42, 5
        %s1186 = smul.addr %s1185, 16
        %s1187 = smul.addr %s1186, 4
        %s1188 = scalar_lea.vmem %s21, %s1187
        %p1189 = pneg %p544
        %p1190 = pneg %p541
        %s1191 = sand.u32 %s42, 1
        %s1192 = scalar_lea.sflag [#allocation4], %s1191
        %s1193 = sand.u32 %s557, 1
        %s1194 = scalar_lea.vmem [#allocation19], %s1193
        %p1195 = pneg %p570
        %p1196 = pneg %p567
        %p1197 = pneg %p591
        %p1198 = pneg %p588
        %p1199 = pneg %p612
        %p1200 = pneg %p609
        %p1201 = pneg %p633
        %p1202 = pneg %p630
        %p1203 = pneg %p654
        %p1204 = pneg %p651
        %p1205 = pneg %p675
        %p1206 = pneg %p672
        %p1207 = scmp.lt.s32.totalorder %s42, 5
        %s1208 = scalar_select %p1207, %s42, 5
        %s1209 = smul.addr %s1208, 8
        %s1210 = smul.addr %s1209, 4
        %s1211 = scalar_lea.vmem %s14, %s1210
        %p1212 = scmp.lt.s32.totalorder %s42, 5
        %s1213 = scalar_select %p1212, %s42, 5
        %s1214 = smul.addr %s1213, 16
        %s1215 = smul.addr %s1214, 4
        %s1216 = scalar_lea.vmem %s16, %s1215
        %p1217 = scmp.lt.s32.totalorder %s42, 5
        %s1218 = scalar_select %p1217, %s42, 5
        %s1219 = smul.addr %s1218, 16
        %s1220 = smul.addr %s1219, 4
        %s1221 = scalar_lea.vmem %s21, %s1220
        %p1223 = scmp.eq.s32.totalorder %s42, 0
        // Predicated region
        $region193: #{mpnn_forward.1} parent=127 // pred_check
          %p1224 = pneg %p1223
        $region194: #{mpnn_forward.1} parent=127 // pred_check_branch
          %1226 = sbr.rel (%p1224) target = $region196
        $region195: #{mpnn_forward.1} parent=127 // pred_region
          %v1227 = vld [vmem:[%s0] sm:$0xf]
          %v1228 = vld [vmem:[%s0 + $0x4] sm:$0xf]
          %v1229 = vld [vmem:[%s0 + $0x8] sm:$0xf]
          %v1230 = vld [vmem:[%s0 + $0xc] sm:$0xf]
          %v1231 = vld [vmem:[%s0 + $0x10] sm:$0xf]
          %v1232 = vld [vmem:[%s0 + $0x14] sm:$0xf]
          %v1233 = vld [vmem:[%s0 + $0x18] sm:$0xf]
          %v1234 = vld [vmem:[%s0 + $0x1c] sm:$0xf]
          %v1235 = vld [vmem:[%s0 + $0x20] sm:$0xf]
          %v1236 = vld [vmem:[%s0 + $0x24] sm:$0xf]
          %v1237 = vld [vmem:[%s0 + $0x28] sm:$0xf]
          %v1238 = vld [vmem:[%s0 + $0x2c] sm:$0xf]
          %v1239 = vld [vmem:[%s0 + $0x30] sm:$0xf]
          %v1240 = vld [vmem:[%s0 + $0x34] sm:$0xf]
          %v1241 = vld [vmem:[%s0 + $0x38] sm:$0xf]
          %v1242 = vld [vmem:[%s0 + $0x3c] sm:$0xf]
          %v1243 = vld [vmem:[#allocation7] sm:$0xf]
          %v1244 = vld [vmem:[#allocation7 + $0x4] sm:$0xf]
          %v1245 = vld [vmem:[#allocation7 + $0x8] sm:$0xf]
          %v1246 = vld [vmem:[#allocation7 + $0xc] sm:$0x3]
          %v1247 = vld [vmem:[#allocation8] sm:$0x1]
          %v1249 = vperm.slane %v1247, 0
          %v1267 = vunpack.c.l.b16 %v1227
          %v1268 = vunpack.c.l.b16 %v1228
          %v1269 = vunpack.c.l.b16 %v1229
          %v1270 = vunpack.c.l.b16 %v1230
          %v1271 = vunpack.c.l.b16 %v1231
          %v1272 = vunpack.c.l.b16 %v1232
          %v1273 = vunpack.c.l.b16 %v1233
          %v1274 = vunpack.c.l.b16 %v1234
          %v1275 = vunpack.c.l.b16 %v1235
          %v1276 = vunpack.c.l.b16 %v1236
          %v1277 = vunpack.c.l.b16 %v1237
          %v1278 = vunpack.c.l.b16 %v1238
          %v1279 = vunpack.c.l.b16 %v1239
          %v1280 = vunpack.c.l.b16 %v1240
          %v1281 = vunpack.c.l.b16 %v1241
          %v1282 = vunpack.c.l.b16 %v1242
          %v1283 = vpack.c.b16 %v1268, %v1267
          %v1284 = vpack.c.b16 %v1270, %v1269
          %v1285 = vpack.c.b16 %v1272, %v1271
          %v1286 = vpack.c.b16 %v1274, %v1273
          %v1287 = vpack.c.b16 %v1276, %v1275
          %v1288 = vpack.c.b16 %v1278, %v1277
          %v1289 = vpack.c.b16 %v1280, %v1279
          %v1290 = vpack.c.b16 %v1282, %v1281
          %v1295 = vunpack.c.l.b16 %v1243
          %v1296 = vunpack.c.l.b16 %v1244
          %v1297 = vunpack.c.l.b16 %v1245
          %v1298 = vunpack.c.l.b16 %v1246
          %v1299 = vpack.c.b16 %v1296, %v1295
          %v1300 = vpack.c.b16 %v1298, %v1297
          %vm1302 = vcmask 220160
          %v1304 = vsel %vm1302, %v1283, 0
          %v1307 = vsel %vm1302, %v1284, 0
          %v1310 = vsel %vm1302, %v1285, 0
          %v1313 = vsel %vm1302, %v1286, 0
          %v1316 = vsel %vm1302, %v1287, 0
          %v1319 = vsel %vm1302, %v1288, 0
          %v1322 = vsel %vm1302, %v1289, 0
          %v1325 = vsel %vm1302, %v1290, 0
          %vm1327 = vcmask 1044480
          %vm1328 = vcmask 1045504
          %v1329 = vsel %vm1327, 4294967295, 65535
          %v1330 = vsel %vm1328, %v1329, 0
          %v1332 = vand.u32 %v1300, %v1330
          %1334 = vmatpush.bf16.msra.mxu0 0
          %1335 = vmatpush.bf16.msra.mxu0 0
          %1336 = vmatpush.bf16.msra.mxu0 0
          %1337 = vmatpush.bf16.msra.mxu0 0
          %1338 = vmatpush.bf16.msra.mxu0 0
          %1339 = vmatpush.bf16.msra.mxu0 0
          %1340 = vmatpush.bf16.msra.mxu0 %v1332
          %1341 = vmatpush.bf16.msra.mxu0 %v1299
          %1342 = vmatmul.bf16.gmra.mxu0 %v1304
          %v1343 = vpop.f32.mrf.mxu0
          %v1344 = vadd.f32 %v1249, %v1343
          %v1345 = vpop.f32.mrf.mxu0
          %v1346 = vadd.f32 %v1249, %v1345
          %1347 = vmatmul.bf16.gmra.mxu0 %v1307
          %v1348 = vpop.f32.mrf.mxu0
          %v1349 = vadd.f32 %v1249, %v1348
          %v1350 = vpop.f32.mrf.mxu0
          %v1351 = vadd.f32 %v1249, %v1350
          %1352 = vmatmul.bf16.gmra.mxu0 %v1310
          %v1353 = vpop.f32.mrf.mxu0
          %v1354 = vadd.f32 %v1249, %v1353
          %v1355 = vpop.f32.mrf.mxu0
          %v1356 = vadd.f32 %v1249, %v1355
          %1357 = vmatmul.bf16.gmra.mxu0 %v1313
          %v1358 = vpop.f32.mrf.mxu0
          %v1359 = vadd.f32 %v1249, %v1358
          %v1360 = vpop.f32.mrf.mxu0
          %v1361 = vadd.f32 %v1249, %v1360
          %1362 = vmatmul.bf16.gmra.mxu0 %v1316
          %v1363 = vpop.f32.mrf.mxu0
          %v1364 = vadd.f32 %v1249, %v1363
          %v1365 = vpop.f32.mrf.mxu0
          %v1366 = vadd.f32 %v1249, %v1365
          %1367 = vmatmul.bf16.gmra.mxu0 %v1319
          %v1368 = vpop.f32.mrf.mxu0
          %v1369 = vadd.f32 %v1249, %v1368
          %v1370 = vpop.f32.mrf.mxu0
          %v1371 = vadd.f32 %v1249, %v1370
          %1372 = vmatmul.bf16.gmra.mxu0 %v1322
          %v1373 = vpop.f32.mrf.mxu0
          %v1374 = vadd.f32 %v1249, %v1373
          %v1375 = vpop.f32.mrf.mxu0
          %v1376 = vadd.f32 %v1249, %v1375
          %1377 = vmatmul.bf16.gmra.mxu0 %v1325
          %v1378 = vpop.f32.mrf.mxu0
          %v1379 = vadd.f32 %v1249, %v1378
          %v1380 = vpop.f32.mrf.mxu0
          %v1381 = vadd.f32 %v1249, %v1380
          %1382 = vdwg.mxu0
          %v1383 = vsub.f32 0.0, %v1344
          %v1384 = vsub.f32 0.0, %v1346
          %v1385 = vsub.f32 0.0, %v1349
          %v1386 = vsub.f32 0.0, %v1351
          %v1387 = vsub.f32 0.0, %v1354
          %v1388 = vsub.f32 0.0, %v1356
          %v1389 = vsub.f32 0.0, %v1359
          %v1390 = vsub.f32 0.0, %v1361
          %v1391 = vsub.f32 0.0, %v1364
          %v1392 = vsub.f32 0.0, %v1366
          %v1393 = vsub.f32 0.0, %v1369
          %v1394 = vsub.f32 0.0, %v1371
          %v1395 = vsub.f32 0.0, %v1374
          %v1396 = vsub.f32 0.0, %v1376
          %v1397 = vsub.f32 0.0, %v1379
          %v1398 = vsub.f32 0.0, %v1381
          %v1399 = vmul.f32 %v1383, 1.442695
          %v1400 = vpow.pop %v1399
          %v1401 = vmul.f32 %v1384, 1.442695
          %v1402 = vpow.pop %v1401
          %v1403 = vmul.f32 %v1385, 1.442695
          %v1404 = vpow.pop %v1403
          %v1405 = vmul.f32 %v1386, 1.442695
          %v1406 = vpow.pop %v1405
          %v1407 = vmul.f32 %v1387, 1.442695
          %v1408 = vpow.pop %v1407
          %v1409 = vmul.f32 %v1388, 1.442695
          %v1410 = vpow.pop %v1409
          %v1411 = vmul.f32 %v1389, 1.442695
          %v1412 = vpow.pop %v1411
          %v1413 = vmul.f32 %v1390, 1.442695
          %v1414 = vpow.pop %v1413
          %v1415 = vmul.f32 %v1391, 1.442695
          %v1416 = vpow.pop %v1415
          %v1417 = vmul.f32 %v1392, 1.442695
          %v1418 = vpow.pop %v1417
          %v1419 = vmul.f32 %v1393, 1.442695
          %v1420 = vpow.pop %v1419
          %v1421 = vmul.f32 %v1394, 1.442695
          %v1422 = vpow.pop %v1421
          %v1423 = vmul.f32 %v1395, 1.442695
          %v1424 = vpow.pop %v1423
          %v1425 = vmul.f32 %v1396, 1.442695
          %v1426 = vpow.pop %v1425
          %v1427 = vmul.f32 %v1397, 1.442695
          %v1428 = vpow.pop %v1427
          %v1429 = vmul.f32 %v1398, 1.442695
          %v1430 = vpow.pop %v1429
          %v1431 = vadd.f32 %v1400, 1.0
          %v1432 = vadd.f32 %v1402, 1.0
          %v1433 = vadd.f32 %v1404, 1.0
          %v1434 = vadd.f32 %v1406, 1.0
          %v1435 = vadd.f32 %v1408, 1.0
          %v1436 = vadd.f32 %v1410, 1.0
          %v1437 = vadd.f32 %v1412, 1.0
          %v1438 = vadd.f32 %v1414, 1.0
          %v1439 = vadd.f32 %v1416, 1.0
          %v1440 = vadd.f32 %v1418, 1.0
          %v1441 = vadd.f32 %v1420, 1.0
          %v1442 = vadd.f32 %v1422, 1.0
          %v1443 = vadd.f32 %v1424, 1.0
          %v1444 = vadd.f32 %v1426, 1.0
          %v1445 = vadd.f32 %v1428, 1.0
          %v1446 = vadd.f32 %v1430, 1.0
          %v1447 = vrcp.pop %v1431
          %v1448 = vrcp.pop %v1432
          %v1449 = vrcp.pop %v1433
          %v1450 = vrcp.pop %v1434
          %v1451 = vrcp.pop %v1435
          %v1452 = vrcp.pop %v1436
          %v1453 = vrcp.pop %v1437
          %v1454 = vrcp.pop %v1438
          %v1455 = vrcp.pop %v1439
          %v1456 = vrcp.pop %v1440
          %v1457 = vrcp.pop %v1441
          %v1458 = vrcp.pop %v1442
          %v1459 = vrcp.pop %v1443
          %v1460 = vrcp.pop %v1444
          %v1461 = vrcp.pop %v1445
          %v1462 = vrcp.pop %v1446
          %v1463 = vmul.f32 %v1344, %v1447
          %v1464 = vmul.f32 %v1346, %v1448
          %v1465 = vmul.f32 %v1349, %v1449
          %v1466 = vmul.f32 %v1351, %v1450
          %v1467 = vmul.f32 %v1354, %v1451
          %v1468 = vmul.f32 %v1356, %v1452
          %v1469 = vmul.f32 %v1359, %v1453
          %v1470 = vmul.f32 %v1361, %v1454
          %v1471 = vmul.f32 %v1364, %v1455
          %v1472 = vmul.f32 %v1366, %v1456
          %v1473 = vmul.f32 %v1369, %v1457
          %v1474 = vmul.f32 %v1371, %v1458
          %v1475 = vmul.f32 %v1374, %v1459
          %v1476 = vmul.f32 %v1376, %v1460
          %v1477 = vmul.f32 %v1379, %v1461
          %v1478 = vmul.f32 %v1381, %v1462
          %v1479 = vpack.c.bf16 %v1464, %v1463
          %v1480 = vpack.c.bf16 %v1466, %v1465
          %v1481 = vpack.c.bf16 %v1468, %v1467
          %v1482 = vpack.c.bf16 %v1470, %v1469
          %v1483 = vpack.c.bf16 %v1472, %v1471
          %v1484 = vpack.c.bf16 %v1474, %v1473
          %v1485 = vpack.c.bf16 %v1476, %v1475
          %v1486 = vpack.c.bf16 %v1478, %v1477
          %v1487 = vld [vmem:[#allocation10] sm:$0xf]
          %v1488 = vld [vmem:[#allocation10 + $0x4] sm:$0xf]
          %v1489 = vld [vmem:[#allocation10 + $0x8] sm:$0xf]
          %v1490 = vld [vmem:[#allocation10 + $0xc] sm:$0xf]
          %v1491 = vld [vmem:[#allocation10 + $0x10] sm:$0xf]
          %v1492 = vld [vmem:[#allocation10 + $0x14] sm:$0xf]
          %v1493 = vld [vmem:[#allocation10 + $0x18] sm:$0xf]
          %v1494 = vld [vmem:[#allocation10 + $0x1c] sm:$0xf]
          %v1495 = vld [vmem:[#allocation10 + $0x20] sm:$0xf]
          %v1496 = vld [vmem:[#allocation10 + $0x24] sm:$0xf]
          %v1497 = vld [vmem:[#allocation10 + $0x28] sm:$0xf]
          %v1498 = vld [vmem:[#allocation10 + $0x2c] sm:$0xf]
          %v1499 = vld [vmem:[#allocation10 + $0x30] sm:$0xf]
          %v1500 = vld [vmem:[#allocation10 + $0x34] sm:$0xf]
          %v1501 = vld [vmem:[#allocation10 + $0x38] sm:$0xf]
          %v1502 = vld [vmem:[#allocation10 + $0x3c] sm:$0xf]
          %v1503 = vld [vmem:[#allocation11] sm:$0x1]
          %v1505 = vperm.slane %v1503, 0
          %v1523 = vunpack.c.l.b16 %v1487
          %v1524 = vunpack.c.l.b16 %v1488
          %v1525 = vunpack.c.l.b16 %v1489
          %v1526 = vunpack.c.l.b16 %v1490
          %v1527 = vunpack.c.l.b16 %v1491
          %v1528 = vunpack.c.l.b16 %v1492
          %v1529 = vunpack.c.l.b16 %v1493
          %v1530 = vunpack.c.l.b16 %v1494
          %v1531 = vunpack.c.l.b16 %v1495
          %v1532 = vunpack.c.l.b16 %v1496
          %v1533 = vunpack.c.l.b16 %v1497
          %v1534 = vunpack.c.l.b16 %v1498
          %v1535 = vunpack.c.l.b16 %v1499
          %v1536 = vunpack.c.l.b16 %v1500
          %v1537 = vunpack.c.l.b16 %v1501
          %v1538 = vunpack.c.l.b16 %v1502
          %v1539 = vpack.c.b16 %v1524, %v1523
          %v1540 = vpack.c.b16 %v1526, %v1525
          %v1541 = vpack.c.b16 %v1528, %v1527
          %v1542 = vpack.c.b16 %v1530, %v1529
          %v1543 = vpack.c.b16 %v1532, %v1531
          %v1544 = vpack.c.b16 %v1534, %v1533
          %v1545 = vpack.c.b16 %v1536, %v1535
          %v1546 = vpack.c.b16 %v1538, %v1537
          %1555 = vmatpush.bf16.msra.mxu0 %v1546
          %1556 = vmatpush.bf16.msra.mxu0 %v1545
          %1557 = vmatpush.bf16.msra.mxu0 %v1544
          %1558 = vmatpush.bf16.msra.mxu0 %v1543
          %1559 = vmatpush.bf16.msra.mxu0 %v1542
          %1560 = vmatpush.bf16.msra.mxu0 %v1541
          %1561 = vmatpush.bf16.msra.mxu0 %v1540
          %1562 = vmatpush.bf16.msra.mxu0 %v1539
          %1563 = vmatmul.bf16.gmra.mxu0 %v1479
          %v1564 = vpop.f32.mrf.mxu0
          %v1565 = vadd.f32 %v1505, %v1564
          %v1566 = vpop.f32.mrf.mxu0
          %v1567 = vadd.f32 %v1505, %v1566
          %1568 = vmatmul.bf16.gmra.mxu0 %v1480
          %v1569 = vpop.f32.mrf.mxu0
          %v1570 = vadd.f32 %v1505, %v1569
          %v1571 = vpop.f32.mrf.mxu0
          %v1572 = vadd.f32 %v1505, %v1571
          %1573 = vmatmul.bf16.gmra.mxu0 %v1481
          %v1574 = vpop.f32.mrf.mxu0
          %v1575 = vadd.f32 %v1505, %v1574
          %v1576 = vpop.f32.mrf.mxu0
          %v1577 = vadd.f32 %v1505, %v1576
          %1578 = vmatmul.bf16.gmra.mxu0 %v1482
          %v1579 = vpop.f32.mrf.mxu0
          %v1580 = vadd.f32 %v1505, %v1579
          %v1581 = vpop.f32.mrf.mxu0
          %v1582 = vadd.f32 %v1505, %v1581
          %1583 = vmatmul.bf16.gmra.mxu0 %v1483
          %v1584 = vpop.f32.mrf.mxu0
          %v1585 = vadd.f32 %v1505, %v1584
          %v1586 = vpop.f32.mrf.mxu0
          %v1587 = vadd.f32 %v1505, %v1586
          %1588 = vmatmul.bf16.gmra.mxu0 %v1484
          %v1589 = vpop.f32.mrf.mxu0
          %v1590 = vadd.f32 %v1505, %v1589
          %v1591 = vpop.f32.mrf.mxu0
          %v1592 = vadd.f32 %v1505, %v1591
          %1593 = vmatmul.bf16.gmra.mxu0 %v1485
          %v1594 = vpop.f32.mrf.mxu0
          %v1595 = vadd.f32 %v1505, %v1594
          %v1596 = vpop.f32.mrf.mxu0
          %v1597 = vadd.f32 %v1505, %v1596
          %1598 = vmatmul.bf16.gmra.mxu0 %v1486
          %v1599 = vpop.f32.mrf.mxu0
          %v1600 = vadd.f32 %v1505, %v1599
          %v1601 = vpop.f32.mrf.mxu0
          %v1602 = vadd.f32 %v1505, %v1601
          %1603 = vdwg.mxu0
          %v1604 = vsub.f32 0.0, %v1565
          %v1605 = vsub.f32 0.0, %v1567
          %v1606 = vsub.f32 0.0, %v1570
          %v1607 = vsub.f32 0.0, %v1572
          %v1608 = vsub.f32 0.0, %v1575
          %v1609 = vsub.f32 0.0, %v1577
          %v1610 = vsub.f32 0.0, %v1580
          %v1611 = vsub.f32 0.0, %v1582
          %v1612 = vsub.f32 0.0, %v1585
          %v1613 = vsub.f32 0.0, %v1587
          %v1614 = vsub.f32 0.0, %v1590
          %v1615 = vsub.f32 0.0, %v1592
          %v1616 = vsub.f32 0.0, %v1595
          %v1617 = vsub.f32 0.0, %v1597
          %v1618 = vsub.f32 0.0, %v1600
          %v1619 = vsub.f32 0.0, %v1602
          %v1620 = vmul.f32 %v1604, 1.442695
          %v1621 = vpow.pop %v1620
          %v1622 = vmul.f32 %v1605, 1.442695
          %v1623 = vpow.pop %v1622
          %v1624 = vmul.f32 %v1606, 1.442695
          %v1625 = vpow.pop %v1624
          %v1626 = vmul.f32 %v1607, 1.442695
          %v1627 = vpow.pop %v1626
          %v1628 = vmul.f32 %v1608, 1.442695
          %v1629 = vpow.pop %v1628
          %v1630 = vmul.f32 %v1609, 1.442695
          %v1631 = vpow.pop %v1630
          %v1632 = vmul.f32 %v1610, 1.442695
          %v1633 = vpow.pop %v1632
          %v1634 = vmul.f32 %v1611, 1.442695
          %v1635 = vpow.pop %v1634
          %v1636 = vmul.f32 %v1612, 1.442695
          %v1637 = vpow.pop %v1636
          %v1638 = vmul.f32 %v1613, 1.442695
          %v1639 = vpow.pop %v1638
          %v1640 = vmul.f32 %v1614, 1.442695
          %v1641 = vpow.pop %v1640
          %v1642 = vmul.f32 %v1615, 1.442695
          %v1643 = vpow.pop %v1642
          %v1644 = vmul.f32 %v1616, 1.442695
          %v1645 = vpow.pop %v1644
          %v1646 = vmul.f32 %v1617, 1.442695
          %v1647 = vpow.pop %v1646
          %v1648 = vmul.f32 %v1618, 1.442695
          %v1649 = vpow.pop %v1648
          %v1650 = vmul.f32 %v1619, 1.442695
          %v1651 = vpow.pop %v1650
          %v1652 = vadd.f32 %v1621, 1.0
          %v1653 = vadd.f32 %v1623, 1.0
          %v1654 = vadd.f32 %v1625, 1.0
          %v1655 = vadd.f32 %v1627, 1.0
          %v1656 = vadd.f32 %v1629, 1.0
          %v1657 = vadd.f32 %v1631, 1.0
          %v1658 = vadd.f32 %v1633, 1.0
          %v1659 = vadd.f32 %v1635, 1.0
          %v1660 = vadd.f32 %v1637, 1.0
          %v1661 = vadd.f32 %v1639, 1.0
          %v1662 = vadd.f32 %v1641, 1.0
          %v1663 = vadd.f32 %v1643, 1.0
          %v1664 = vadd.f32 %v1645, 1.0
          %v1665 = vadd.f32 %v1647, 1.0
          %v1666 = vadd.f32 %v1649, 1.0
          %v1667 = vadd.f32 %v1651, 1.0
          %v1668 = vrcp.pop %v1652
          %v1669 = vrcp.pop %v1653
          %v1670 = vrcp.pop %v1654
          %v1671 = vrcp.pop %v1655
          %v1672 = vrcp.pop %v1656
          %v1673 = vrcp.pop %v1657
          %v1674 = vrcp.pop %v1658
          %v1675 = vrcp.pop %v1659
          %v1676 = vrcp.pop %v1660
          %v1677 = vrcp.pop %v1661
          %v1678 = vrcp.pop %v1662
          %v1679 = vrcp.pop %v1663
          %v1680 = vrcp.pop %v1664
          %v1681 = vrcp.pop %v1665
          %v1682 = vrcp.pop %v1666
          %v1683 = vrcp.pop %v1667
          %v1684 = vmul.f32 %v1565, %v1668
          %v1685 = vmul.f32 %v1567, %v1669
          %v1686 = vmul.f32 %v1570, %v1670
          %v1687 = vmul.f32 %v1572, %v1671
          %v1688 = vmul.f32 %v1575, %v1672
          %v1689 = vmul.f32 %v1577, %v1673
          %v1690 = vmul.f32 %v1580, %v1674
          %v1691 = vmul.f32 %v1582, %v1675
          %v1692 = vmul.f32 %v1585, %v1676
          %v1693 = vmul.f32 %v1587, %v1677
          %v1694 = vmul.f32 %v1590, %v1678
          %v1695 = vmul.f32 %v1592, %v1679
          %v1696 = vmul.f32 %v1595, %v1680
          %v1697 = vmul.f32 %v1597, %v1681
          %v1698 = vmul.f32 %v1600, %v1682
          %v1699 = vmul.f32 %v1602, %v1683
          %1700 = vst [vmem:[#allocation2] sm:$0xff] %v1684
          %1701 = vst [vmem:[#allocation2 + $0x8] sm:$0xff] %v1685
          %1702 = vst [vmem:[#allocation2 + $0x10] sm:$0xff] %v1686
          %1703 = vst [vmem:[#allocation2 + $0x18] sm:$0xff] %v1687
          %1704 = vst [vmem:[#allocation2 + $0x20] sm:$0xff] %v1688
          %1705 = vst [vmem:[#allocation2 + $0x28] sm:$0xff] %v1689
          %1706 = vst [vmem:[#allocation2 + $0x30] sm:$0xff] %v1690
          %1707 = vst [vmem:[#allocation2 + $0x38] sm:$0xff] %v1691
          %1708 = vst [vmem:[#allocation2 + $0x40] sm:$0xff] %v1692
          %1709 = vst [vmem:[#allocation2 + $0x48] sm:$0xff] %v1693
          %1710 = vst [vmem:[#allocation2 + $0x50] sm:$0xff] %v1694
          %1711 = vst [vmem:[#allocation2 + $0x58] sm:$0xff] %v1695
          %1712 = vst [vmem:[#allocation2 + $0x60] sm:$0xff] %v1696
          %1713 = vst [vmem:[#allocation2 + $0x68] sm:$0xff] %v1697
          %1714 = vst [vmem:[#allocation2 + $0x70] sm:$0xff] %v1698
          %1715 = vst [vmem:[#allocation2 + $0x78] sm:$0xff] %v1699
        $region196: #{mpnn_forward.1} parent=127 // pred_fallthru
          _
        %v1716 = vld [vmem:[#allocation2] sm:$0xff]
        %v1717 = vld [vmem:[#allocation2 + $0x8] sm:$0xff]
        %v1718 = vld [vmem:[#allocation2 + $0x10] sm:$0xff]
        %v1719 = vld [vmem:[#allocation2 + $0x18] sm:$0xff]
        %v1720 = vld [vmem:[#allocation2 + $0x20] sm:$0xff]
        %v1721 = vld [vmem:[#allocation2 + $0x28] sm:$0xff]
        %v1722 = vld [vmem:[#allocation2 + $0x30] sm:$0xff]
        %v1723 = vld [vmem:[#allocation2 + $0x38] sm:$0xff]
        %v1724 = vld [vmem:[#allocation2 + $0x40] sm:$0xff]
        %v1725 = vld [vmem:[#allocation2 + $0x48] sm:$0xff]
        %v1726 = vld [vmem:[#allocation2 + $0x50] sm:$0xff]
        %v1727 = vld [vmem:[#allocation2 + $0x58] sm:$0xff]
        %v1728 = vld [vmem:[#allocation2 + $0x60] sm:$0xff]
        %v1729 = vld [vmem:[#allocation2 + $0x68] sm:$0xff]
        %v1730 = vld [vmem:[#allocation2 + $0x70] sm:$0xff]
        %v1731 = vld [vmem:[#allocation2 + $0x78] sm:$0xff]
        %v1732 = vpack.c.bf16 %v1716, %v1716
        %v1733 = vpack.c.bf16 %v1717, %v1717
        %v1734 = vpack.c.bf16 %v1718, %v1718
        %v1735 = vpack.c.bf16 %v1719, %v1719
        %v1736 = vpack.c.bf16 %v1720, %v1720
        %v1737 = vpack.c.bf16 %v1721, %v1721
        %v1738 = vpack.c.bf16 %v1722, %v1722
        %v1739 = vpack.c.bf16 %v1723, %v1723
        %v1740 = vpack.c.bf16 %v1724, %v1724
        %v1741 = vpack.c.bf16 %v1725, %v1725
        %v1742 = vpack.c.bf16 %v1726, %v1726
        %v1743 = vpack.c.bf16 %v1727, %v1727
        %v1744 = vpack.c.bf16 %v1728, %v1728
        %v1745 = vpack.c.bf16 %v1729, %v1729
        %v1746 = vpack.c.bf16 %v1730, %v1730
        %v1747 = vpack.c.bf16 %v1731, %v1731
        %v1748 = vld [vmem:[%s1030] sm:$0xff]
        %v1749 = vld [vmem:[%s1030 + $0x8] sm:$0xff]
        %v1750 = vld [vmem:[%s1030 + $0x10] sm:$0xff]
        %v1751 = vld [vmem:[%s1030 + $0x18] sm:$0xff]
        %v1752 = vld [vmem:[%s1030 + $0x20] sm:$0xff]
        %v1753 = vld [vmem:[%s1030 + $0x28] sm:$0xff]
        %v1754 = vld [vmem:[%s1030 + $0x30] sm:$0xff]
        %v1755 = vld [vmem:[%s1030 + $0x38] sm:$0xff]
        %v1756 = vld [vmem:[%s1030 + $0x40] sm:$0xff]
        %v1757 = vld [vmem:[%s1030 + $0x48] sm:$0xff]
        %v1758 = vld [vmem:[%s1030 + $0x50] sm:$0xff]
        %v1759 = vld [vmem:[%s1030 + $0x58] sm:$0xff]
        %v1760 = vld [vmem:[%s1030 + $0x60] sm:$0xff]
        %v1761 = vld [vmem:[%s1030 + $0x68] sm:$0xff]
        %v1762 = vld [vmem:[%s1030 + $0x70] sm:$0xff]
        %v1763 = vld [vmem:[%s1030 + $0x78] sm:$0xff]
        %v1764 = vld [vmem:[%s0] sm:$0xf]
        %v1765 = vld [vmem:[%s0 + $0x4] sm:$0xf]
        %v1766 = vld [vmem:[%s0 + $0x8] sm:$0xf]
        %v1767 = vld [vmem:[%s0 + $0xc] sm:$0xf]
        %v1768 = vld [vmem:[%s0 + $0x10] sm:$0xf]
        %v1769 = vld [vmem:[%s0 + $0x14] sm:$0xf]
        %v1770 = vld [vmem:[%s0 + $0x18] sm:$0xf]
        %v1771 = vld [vmem:[%s0 + $0x1c] sm:$0xf]
        %v1772 = vld [vmem:[%s0 + $0x20] sm:$0xf]
        %v1773 = vld [vmem:[%s0 + $0x24] sm:$0xf]
        %v1774 = vld [vmem:[%s0 + $0x28] sm:$0xf]
        %v1775 = vld [vmem:[%s0 + $0x2c] sm:$0xf]
        %v1776 = vld [vmem:[%s0 + $0x30] sm:$0xf]
        %v1777 = vld [vmem:[%s0 + $0x34] sm:$0xf]
        %v1778 = vld [vmem:[%s0 + $0x38] sm:$0xf]
        %v1779 = vld [vmem:[%s0 + $0x3c] sm:$0xf]
        %v1780 = vld [vmem:[%s1211] sm:$0xff]
        %v1781 = vld [vmem:[%s1211 + $0x8] sm:$0xff]
        %v1782 = vld [vmem:[%s1211 + $0x10] sm:$0xff]
        %v1783 = vld [vmem:[%s1211 + $0x18] sm:$0x33]
        %v1800 = vunpack.c.l.b16 %v1764
        %v1801 = vunpack.c.l.b16 %v1765
        %v1802 = vunpack.c.l.b16 %v1766
        %v1803 = vunpack.c.l.b16 %v1767
        %v1804 = vunpack.c.l.b16 %v1768
        %v1805 = vunpack.c.l.b16 %v1769
        %v1806 = vunpack.c.l.b16 %v1770
        %v1807 = vunpack.c.l.b16 %v1771
        %v1808 = vunpack.c.l.b16 %v1772
        %v1809 = vunpack.c.l.b16 %v1773
        %v1810 = vunpack.c.l.b16 %v1774
        %v1811 = vunpack.c.l.b16 %v1775
        %v1812 = vunpack.c.l.b16 %v1776
        %v1813 = vunpack.c.l.b16 %v1777
        %v1814 = vunpack.c.l.b16 %v1778
        %v1815 = vunpack.c.l.b16 %v1779
        %v1816 = vpack.c.b16 %v1801, %v1800
        %v1817 = vpack.c.b16 %v1803, %v1802
        %v1818 = vpack.c.b16 %v1805, %v1804
        %v1819 = vpack.c.b16 %v1807, %v1806
        %v1820 = vpack.c.b16 %v1809, %v1808
        %v1821 = vpack.c.b16 %v1811, %v1810
        %v1822 = vpack.c.b16 %v1813, %v1812
        %v1823 = vpack.c.b16 %v1815, %v1814
        %v1828 = vunpack.c.l.b16 %v1780
        %v1829 = vunpack.c.h.b16 %v1780
        %v1830 = vunpack.c.l.b16 %v1781
        %v1831 = vunpack.c.h.b16 %v1781
        %v1832 = vunpack.c.l.b16 %v1782
        %v1833 = vunpack.c.h.b16 %v1782
        %v1834 = vunpack.c.l.b16 %v1783
        %v1835 = vunpack.c.h.b16 %v1783
        %v1836 = vpack.c.b16 %v1830, %v1828
        %v1837 = vpack.c.b16 %v1831, %v1829
        %v1838 = vpack.c.b16 %v1834, %v1832
        %v1839 = vpack.c.b16 %v1835, %v1833
        %vm1842 = vcmask 220160
        %v1844 = vsel %vm1842, %v1816, 0
        %v1847 = vsel %vm1842, %v1817, 0
        %v1850 = vsel %vm1842, %v1818, 0
        %v1853 = vsel %vm1842, %v1819, 0
        %v1856 = vsel %vm1842, %v1820, 0
        %v1859 = vsel %vm1842, %v1821, 0
        %v1862 = vsel %vm1842, %v1822, 0
        %v1865 = vsel %vm1842, %v1823, 0
        %vm1867 = vcmask 1044480
        %vm1868 = vcmask 1045504
        %v1869 = vsel %vm1867, 4294967295, 65535
        %v1870 = vsel %vm1868, %v1869, 0
        %v1872 = vand.u32 %v1838, %v1870
        %v1875 = vand.u32 %v1839, %v1870
        %1877 = vmatpush.bf16.msra.mxu0 0
        %1878 = vmatpush.bf16.msra.mxu0 0
        %1879 = vmatpush.bf16.msra.mxu0 0
        %1880 = vmatpush.bf16.msra.mxu0 0
        %1881 = vmatpush.bf16.msra.mxu0 0
        %1882 = vmatpush.bf16.msra.mxu0 0
        %1883 = vmatpush.bf16.msra.mxu0 %v1872
        %1884 = vmatpush.bf16.msra.mxu0 %v1836
        %1885 = vmatmul.bf16.gmra.mxu0 %v1844
        %v1886 = vpop.f32.mrf.mxu0
        %v1887 = vadd.f32 0.0, %v1886
        %v1888 = vpop.f32.mrf.mxu0
        %v1889 = vadd.f32 0.0, %v1888
        %1890 = vmatmul.bf16.gmra.mxu0 %v1847
        %v1891 = vpop.f32.mrf.mxu0
        %v1892 = vadd.f32 0.0, %v1891
        %v1893 = vpop.f32.mrf.mxu0
        %v1894 = vadd.f32 0.0, %v1893
        %1895 = vmatmul.bf16.gmra.mxu0 %v1850
        %v1896 = vpop.f32.mrf.mxu0
        %v1897 = vadd.f32 0.0, %v1896
        %v1898 = vpop.f32.mrf.mxu0
        %v1899 = vadd.f32 0.0, %v1898
        %1900 = vmatmul.bf16.gmra.mxu0 %v1853
        %v1901 = vpop.f32.mrf.mxu0
        %v1902 = vadd.f32 0.0, %v1901
        %v1903 = vpop.f32.mrf.mxu0
        %v1904 = vadd.f32 0.0, %v1903
        %1905 = vmatmul.bf16.gmra.mxu0 %v1856
        %v1906 = vpop.f32.mrf.mxu0
        %v1907 = vadd.f32 0.0, %v1906
        %v1908 = vpop.f32.mrf.mxu0
        %v1909 = vadd.f32 0.0, %v1908
        %1910 = vmatmul.bf16.gmra.mxu0 %v1859
        %v1911 = vpop.f32.mrf.mxu0
        %v1912 = vadd.f32 0.0, %v1911
        %v1913 = vpop.f32.mrf.mxu0
        %v1914 = vadd.f32 0.0, %v1913
        %1915 = vmatmul.bf16.gmra.mxu0 %v1862
        %v1916 = vpop.f32.mrf.mxu0
        %v1917 = vadd.f32 0.0, %v1916
        %v1918 = vpop.f32.mrf.mxu0
        %v1919 = vadd.f32 0.0, %v1918
        %1920 = vmatmul.bf16.gmra.mxu0 %v1865
        %v1921 = vpop.f32.mrf.mxu0
        %v1922 = vadd.f32 0.0, %v1921
        %v1923 = vpop.f32.mrf.mxu0
        %v1924 = vadd.f32 0.0, %v1923
        %1925 = vdwg.mxu0
        %1926 = vmatpush.bf16.msra.mxu0 0
        %1927 = vmatpush.bf16.msra.mxu0 0
        %1928 = vmatpush.bf16.msra.mxu0 0
        %1929 = vmatpush.bf16.msra.mxu0 0
        %1930 = vmatpush.bf16.msra.mxu0 0
        %1931 = vmatpush.bf16.msra.mxu0 0
        %1932 = vmatpush.bf16.msra.mxu0 %v1875
        %1933 = vmatpush.bf16.msra.mxu0 %v1837
        %1934 = vmatmul.bf16.gmra.mxu0 %v1844
        %v1935 = vpop.f32.mrf.mxu0
        %v1936 = vadd.f32 0.0, %v1935
        %v1937 = vpop.f32.mrf.mxu0
        %v1938 = vadd.f32 0.0, %v1937
        %1939 = vmatmul.bf16.gmra.mxu0 %v1847
        %v1940 = vpop.f32.mrf.mxu0
        %v1941 = vadd.f32 0.0, %v1940
        %v1942 = vpop.f32.mrf.mxu0
        %v1943 = vadd.f32 0.0, %v1942
        %1944 = vmatmul.bf16.gmra.mxu0 %v1850
        %v1945 = vpop.f32.mrf.mxu0
        %v1946 = vadd.f32 0.0, %v1945
        %v1947 = vpop.f32.mrf.mxu0
        %v1948 = vadd.f32 0.0, %v1947
        %1949 = vmatmul.bf16.gmra.mxu0 %v1853
        %v1950 = vpop.f32.mrf.mxu0
        %v1951 = vadd.f32 0.0, %v1950
        %v1952 = vpop.f32.mrf.mxu0
        %v1953 = vadd.f32 0.0, %v1952
        %1954 = vmatmul.bf16.gmra.mxu0 %v1856
        %v1955 = vpop.f32.mrf.mxu0
        %v1956 = vadd.f32 0.0, %v1955
        %v1957 = vpop.f32.mrf.mxu0
        %v1958 = vadd.f32 0.0, %v1957
        %1959 = vmatmul.bf16.gmra.mxu0 %v1859
        %v1960 = vpop.f32.mrf.mxu0
        %v1961 = vadd.f32 0.0, %v1960
        %v1962 = vpop.f32.mrf.mxu0
        %v1963 = vadd.f32 0.0, %v1962
        %1964 = vmatmul.bf16.gmra.mxu0 %v1862
        %v1965 = vpop.f32.mrf.mxu0
        %v1966 = vadd.f32 0.0, %v1965
        %v1967 = vpop.f32.mrf.mxu0
        %v1968 = vadd.f32 0.0, %v1967
        %1969 = vmatmul.bf16.gmra.mxu0 %v1865
        %v1970 = vpop.f32.mrf.mxu0
        %v1971 = vadd.f32 0.0, %v1970
        %v1972 = vpop.f32.mrf.mxu0
        %v1973 = vadd.f32 0.0, %v1972
        %1974 = vdwg.mxu0
        %v1991 = vunpack.c.l.b16 %v1732
        %v1992 = vunpack.c.l.b16 %v1733
        %v1993 = vunpack.c.l.b16 %v1734
        %v1994 = vunpack.c.l.b16 %v1735
        %v1995 = vunpack.c.l.b16 %v1736
        %v1996 = vunpack.c.l.b16 %v1737
        %v1997 = vunpack.c.l.b16 %v1738
        %v1998 = vunpack.c.l.b16 %v1739
        %v1999 = vunpack.c.l.b16 %v1740
        %v2000 = vunpack.c.l.b16 %v1741
        %v2001 = vunpack.c.l.b16 %v1742
        %v2002 = vunpack.c.l.b16 %v1743
        %v2003 = vunpack.c.l.b16 %v1744
        %v2004 = vunpack.c.l.b16 %v1745
        %v2005 = vunpack.c.l.b16 %v1746
        %v2006 = vunpack.c.l.b16 %v1747
        %v2007 = vpack.c.b16 %v1992, %v1991
        %v2008 = vpack.c.b16 %v1994, %v1993
        %v2009 = vpack.c.b16 %v1996, %v1995
        %v2010 = vpack.c.b16 %v1998, %v1997
        %v2011 = vpack.c.b16 %v2000, %v1999
        %v2012 = vpack.c.b16 %v2002, %v2001
        %v2013 = vpack.c.b16 %v2004, %v2003
        %v2014 = vpack.c.b16 %v2006, %v2005
        %v2039 = vunpack.c.l.b16 %v1748
        %v2040 = vunpack.c.h.b16 %v1748
        %v2041 = vunpack.c.l.b16 %v1749
        %v2042 = vunpack.c.h.b16 %v1749
        %v2043 = vunpack.c.l.b16 %v1750
        %v2044 = vunpack.c.h.b16 %v1750
        %v2045 = vunpack.c.l.b16 %v1751
        %v2046 = vunpack.c.h.b16 %v1751
        %v2047 = vunpack.c.l.b16 %v1752
        %v2048 = vunpack.c.h.b16 %v1752
        %v2049 = vunpack.c.l.b16 %v1753
        %v2050 = vunpack.c.h.b16 %v1753
        %v2051 = vunpack.c.l.b16 %v1754
        %v2052 = vunpack.c.h.b16 %v1754
        %v2053 = vunpack.c.l.b16 %v1755
        %v2054 = vunpack.c.h.b16 %v1755
        %v2055 = vunpack.c.l.b16 %v1756
        %v2056 = vunpack.c.h.b16 %v1756
        %v2057 = vunpack.c.l.b16 %v1757
        %v2058 = vunpack.c.h.b16 %v1757
        %v2059 = vunpack.c.l.b16 %v1758
        %v2060 = vunpack.c.h.b16 %v1758
        %v2061 = vunpack.c.l.b16 %v1759
        %v2062 = vunpack.c.h.b16 %v1759
        %v2063 = vunpack.c.l.b16 %v1760
        %v2064 = vunpack.c.h.b16 %v1760
        %v2065 = vunpack.c.l.b16 %v1761
        %v2066 = vunpack.c.h.b16 %v1761
        %v2067 = vunpack.c.l.b16 %v1762
        %v2068 = vunpack.c.h.b16 %v1762
        %v2069 = vunpack.c.l.b16 %v1763
        %v2070 = vunpack.c.h.b16 %v1763
        %v2071 = vpack.c.b16 %v2041, %v2039
        %v2072 = vpack.c.b16 %v2042, %v2040
        %v2073 = vpack.c.b16 %v2045, %v2043
        %v2074 = vpack.c.b16 %v2046, %v2044
        %v2075 = vpack.c.b16 %v2049, %v2047
        %v2076 = vpack.c.b16 %v2050, %v2048
        %v2077 = vpack.c.b16 %v2053, %v2051
        %v2078 = vpack.c.b16 %v2054, %v2052
        %v2079 = vpack.c.b16 %v2057, %v2055
        %v2080 = vpack.c.b16 %v2058, %v2056
        %v2081 = vpack.c.b16 %v2061, %v2059
        %v2082 = vpack.c.b16 %v2062, %v2060
        %v2083 = vpack.c.b16 %v2065, %v2063
        %v2084 = vpack.c.b16 %v2066, %v2064
        %v2085 = vpack.c.b16 %v2069, %v2067
        %v2086 = vpack.c.b16 %v2070, %v2068
        %2103 = vmatpush.bf16.msra.mxu0 %v2085
        %2104 = vmatpush.bf16.msra.mxu0 %v2083
        %2105 = vmatpush.bf16.msra.mxu0 %v2081
        %2106 = vmatpush.bf16.msra.mxu0 %v2079
        %2107 = vmatpush.bf16.msra.mxu0 %v2077
        %2108 = vmatpush.bf16.msra.mxu0 %v2075
        %2109 = vmatpush.bf16.msra.mxu0 %v2073
        %2110 = vmatpush.bf16.msra.mxu0 %v2071
        %2111 = vmatmul.bf16.gmra.mxu0 %v2007
        %v2112 = vpop.f32.mrf.mxu0
        %v2113 = vadd.f32 %v1887, %v2112
        %v2114 = vpop.f32.mrf.mxu0
        %v2115 = vadd.f32 %v1889, %v2114
        %2116 = vmatmul.bf16.gmra.mxu0 %v2008
        %v2117 = vpop.f32.mrf.mxu0
        %v2118 = vadd.f32 %v1892, %v2117
        %v2119 = vpop.f32.mrf.mxu0
        %v2120 = vadd.f32 %v1894, %v2119
        %2121 = vmatmul.bf16.gmra.mxu0 %v2009
        %v2122 = vpop.f32.mrf.mxu0
        %v2123 = vadd.f32 %v1897, %v2122
        %v2124 = vpop.f32.mrf.mxu0
        %v2125 = vadd.f32 %v1899, %v2124
        %2126 = vmatmul.bf16.gmra.mxu0 %v2010
        %v2127 = vpop.f32.mrf.mxu0
        %v2128 = vadd.f32 %v1902, %v2127
        %v2129 = vpop.f32.mrf.mxu0
        %v2130 = vadd.f32 %v1904, %v2129
        %2131 = vmatmul.bf16.gmra.mxu0 %v2011
        %v2132 = vpop.f32.mrf.mxu0
        %v2133 = vadd.f32 %v1907, %v2132
        %v2134 = vpop.f32.mrf.mxu0
        %v2135 = vadd.f32 %v1909, %v2134
        %2136 = vmatmul.bf16.gmra.mxu0 %v2012
        %v2137 = vpop.f32.mrf.mxu0
        %v2138 = vadd.f32 %v1912, %v2137
        %v2139 = vpop.f32.mrf.mxu0
        %v2140 = vadd.f32 %v1914, %v2139
        %2141 = vmatmul.bf16.gmra.mxu0 %v2013
        %v2142 = vpop.f32.mrf.mxu0
        %v2143 = vadd.f32 %v1917, %v2142
        %v2144 = vpop.f32.mrf.mxu0
        %v2145 = vadd.f32 %v1919, %v2144
        %2146 = vmatmul.bf16.gmra.mxu0 %v2014
        %v2147 = vpop.f32.mrf.mxu0
        %v2148 = vadd.f32 %v1922, %v2147
        %v2149 = vpop.f32.mrf.mxu0
        %v2150 = vadd.f32 %v1924, %v2149
        %2151 = vdwg.mxu0
        %2152 = vmatpush.bf16.msra.mxu0 %v2086
        %2153 = vmatpush.bf16.msra.mxu0 %v2084
        %2154 = vmatpush.bf16.msra.mxu0 %v2082
        %2155 = vmatpush.bf16.msra.mxu0 %v2080
        %2156 = vmatpush.bf16.msra.mxu0 %v2078
        %2157 = vmatpush.bf16.msra.mxu0 %v2076
        %2158 = vmatpush.bf16.msra.mxu0 %v2074
        %2159 = vmatpush.bf16.msra.mxu0 %v2072
        %2160 = vmatmul.bf16.gmra.mxu0 %v2007
        %v2161 = vpop.f32.mrf.mxu0
        %v2162 = vadd.f32 %v1936, %v2161
        %v2163 = vpop.f32.mrf.mxu0
        %v2164 = vadd.f32 %v1938, %v2163
        %2165 = vmatmul.bf16.gmra.mxu0 %v2008
        %v2166 = vpop.f32.mrf.mxu0
        %v2167 = vadd.f32 %v1941, %v2166
        %v2168 = vpop.f32.mrf.mxu0
        %v2169 = vadd.f32 %v1943, %v2168
        %2170 = vmatmul.bf16.gmra.mxu0 %v2009
        %v2171 = vpop.f32.mrf.mxu0
        %v2172 = vadd.f32 %v1946, %v2171
        %v2173 = vpop.f32.mrf.mxu0
        %v2174 = vadd.f32 %v1948, %v2173
        %2175 = vmatmul.bf16.gmra.mxu0 %v2010
        %v2176 = vpop.f32.mrf.mxu0
        %v2177 = vadd.f32 %v1951, %v2176
        %v2178 = vpop.f32.mrf.mxu0
        %v2179 = vadd.f32 %v1953, %v2178
        %2180 = vmatmul.bf16.gmra.mxu0 %v2011
        %v2181 = vpop.f32.mrf.mxu0
        %v2182 = vadd.f32 %v1956, %v2181
        %v2183 = vpop.f32.mrf.mxu0
        %v2184 = vadd.f32 %v1958, %v2183
        %2185 = vmatmul.bf16.gmra.mxu0 %v2012
        %v2186 = vpop.f32.mrf.mxu0
        %v2187 = vadd.f32 %v1961, %v2186
        %v2188 = vpop.f32.mrf.mxu0
        %v2189 = vadd.f32 %v1963, %v2188
        %2190 = vmatmul.bf16.gmra.mxu0 %v2013
        %v2191 = vpop.f32.mrf.mxu0
        %v2192 = vadd.f32 %v1966, %v2191
        %v2193 = vpop.f32.mrf.mxu0
        %v2194 = vadd.f32 %v1968, %v2193
        %2195 = vmatmul.bf16.gmra.mxu0 %v2014
        %v2196 = vpop.f32.mrf.mxu0
        %v2197 = vadd.f32 %v1971, %v2196
        %v2198 = vpop.f32.mrf.mxu0
        %v2199 = vadd.f32 %v1973, %v2198
        %2200 = vdwg.mxu0
        %v2201 = vpack.c.bf16 %v2115, %v2113
        %v2202 = vpack.c.bf16 %v2120, %v2118
        %v2203 = vpack.c.bf16 %v2125, %v2123
        %v2204 = vpack.c.bf16 %v2130, %v2128
        %v2205 = vpack.c.bf16 %v2135, %v2133
        %v2206 = vpack.c.bf16 %v2140, %v2138
        %v2207 = vpack.c.bf16 %v2145, %v2143
        %v2208 = vpack.c.bf16 %v2150, %v2148
        %v2209 = vpack.c.bf16 %v2164, %v2162
        %v2210 = vpack.c.bf16 %v2169, %v2167
        %v2211 = vpack.c.bf16 %v2174, %v2172
        %v2212 = vpack.c.bf16 %v2179, %v2177
        %v2213 = vpack.c.bf16 %v2184, %v2182
        %v2214 = vpack.c.bf16 %v2189, %v2187
        %v2215 = vpack.c.bf16 %v2194, %v2192
        %v2216 = vpack.c.bf16 %v2199, %v2197
        %v2217 = vld [vmem:[%s5] sm:$0xf]
        %v2218 = vld [vmem:[%s5 + $0x4] sm:$0xf]
        %v2219 = vld [vmem:[%s5 + $0x8] sm:$0xf]
        %v2220 = vld [vmem:[%s5 + $0xc] sm:$0xf]
        %v2221 = vld [vmem:[%s5 + $0x10] sm:$0xf]
        %v2222 = vld [vmem:[%s5 + $0x14] sm:$0xf]
        %v2223 = vld [vmem:[%s5 + $0x18] sm:$0xf]
        %v2224 = vld [vmem:[%s5 + $0x1c] sm:$0xf]
        %v2225 = vld [vmem:[%s5 + $0x20] sm:$0xf]
        %v2226 = vld [vmem:[%s5 + $0x24] sm:$0xf]
        %v2227 = vld [vmem:[%s5 + $0x28] sm:$0xf]
        %v2228 = vld [vmem:[%s5 + $0x2c] sm:$0xf]
        %v2229 = vld [vmem:[%s5 + $0x30] sm:$0xf]
        %v2230 = vld [vmem:[%s5 + $0x34] sm:$0xf]
        %v2231 = vld [vmem:[%s5 + $0x38] sm:$0xf]
        %v2232 = vld [vmem:[%s5 + $0x3c] sm:$0xf]
        %v2233 = vld [vmem:[%s5 + $0x40] sm:$0xf]
        %v2234 = vld [vmem:[%s5 + $0x44] sm:$0xf]
        %v2235 = vld [vmem:[%s5 + $0x48] sm:$0xf]
        %v2236 = vld [vmem:[%s5 + $0x4c] sm:$0xf]
        %v2237 = vld [vmem:[%s5 + $0x50] sm:$0xf]
        %v2238 = vld [vmem:[%s5 + $0x54] sm:$0xf]
        %v2239 = vld [vmem:[%s5 + $0x58] sm:$0xf]
        %v2240 = vld [vmem:[%s5 + $0x5c] sm:$0xf]
        %v2241 = vld [vmem:[%s5 + $0x60] sm:$0xf]
        %v2242 = vld [vmem:[%s5 + $0x64] sm:$0xf]
        %v2243 = vld [vmem:[%s5 + $0x68] sm:$0xf]
        %v2244 = vld [vmem:[%s5 + $0x6c] sm:$0xf]
        %v2245 = vld [vmem:[%s5 + $0x70] sm:$0xf]
        %v2246 = vld [vmem:[%s5 + $0x74] sm:$0xf]
        %v2247 = vld [vmem:[%s5 + $0x78] sm:$0xf]
        %v2248 = vld [vmem:[%s5 + $0x7c] sm:$0xf]
        %v2249 = vld [vmem:[%s5 + $0x80] sm:$0xf]
        %v2250 = vld [vmem:[%s5 + $0x84] sm:$0xf]
        %v2251 = vld [vmem:[%s5 + $0x88] sm:$0xf]
        %v2252 = vld [vmem:[%s5 + $0x8c] sm:$0xf]
        %v2253 = vld [vmem:[%s5 + $0x90] sm:$0xf]
        %v2254 = vld [vmem:[%s5 + $0x94] sm:$0xf]
        %v2255 = vld [vmem:[%s5 + $0x98] sm:$0xf]
        %v2256 = vld [vmem:[%s5 + $0x9c] sm:$0xf]
        %v2257 = vld [vmem:[%s5 + $0xa0] sm:$0xf]
        %v2258 = vld [vmem:[%s5 + $0xa4] sm:$0xf]
        %v2259 = vld [vmem:[%s5 + $0xa8] sm:$0xf]
        %v2260 = vld [vmem:[%s5 + $0xac] sm:$0xf]
        %v2261 = vld [vmem:[%s5 + $0xb0] sm:$0xf]
        %v2262 = vld [vmem:[%s5 + $0xb4] sm:$0xf]
        %v2263 = vld [vmem:[%s5 + $0xb8] sm:$0xf]
        %v2264 = vld [vmem:[%s5 + $0xbc] sm:$0xf]
        %v2265 = vld [vmem:[%s5 + $0xc0] sm:$0xf]
        %v2266 = vld [vmem:[%s5 + $0xc4] sm:$0xf]
        %v2267 = vld [vmem:[%s5 + $0xc8] sm:$0xf]
        %v2268 = vld [vmem:[%s5 + $0xcc] sm:$0xf]
        %v2269 = vld [vmem:[%s5 + $0xd0] sm:$0xf]
        %v2270 = vld [vmem:[%s5 + $0xd4] sm:$0xf]
        %v2271 = vld [vmem:[%s5 + $0xd8] sm:$0xf]
        %v2272 = vld [vmem:[%s5 + $0xdc] sm:$0xf]
        %v2273 = vld [vmem:[%s5 + $0xe0] sm:$0xf]
        %v2274 = vld [vmem:[%s5 + $0xe4] sm:$0xf]
        %v2275 = vld [vmem:[%s5 + $0xe8] sm:$0xf]
        %v2276 = vld [vmem:[%s5 + $0xec] sm:$0xf]
        %v2277 = vld [vmem:[%s5 + $0xf0] sm:$0xf]
        %v2278 = vld [vmem:[%s5 + $0xf4] sm:$0xf]
        %v2279 = vld [vmem:[%s5 + $0xf8] sm:$0xf]
        %v2280 = vld [vmem:[%s5 + $0xfc] sm:$0xf]
        %v2281 = vld [vmem:[%s6] sm:$0xf]
        %v2282 = vld [vmem:[%s6 + $0x4] sm:$0xf]
        %v2283 = vld [vmem:[%s6 + $0x8] sm:$0xf]
        %v2284 = vld [vmem:[%s6 + $0xc] sm:$0xf]
        %v2285 = vld [vmem:[%s6 + $0x10] sm:$0xf]
        %v2286 = vld [vmem:[%s6 + $0x14] sm:$0xf]
        %v2287 = vld [vmem:[%s6 + $0x18] sm:$0xf]
        %v2288 = vld [vmem:[%s6 + $0x1c] sm:$0xf]
        %v2289 = vld [vmem:[%s6 + $0x20] sm:$0xf]
        %v2290 = vld [vmem:[%s6 + $0x24] sm:$0xf]
        %v2291 = vld [vmem:[%s6 + $0x28] sm:$0xf]
        %v2292 = vld [vmem:[%s6 + $0x2c] sm:$0xf]
        %v2293 = vld [vmem:[%s6 + $0x30] sm:$0xf]
        %v2294 = vld [vmem:[%s6 + $0x34] sm:$0xf]
        %v2295 = vld [vmem:[%s6 + $0x38] sm:$0xf]
        %v2296 = vld [vmem:[%s6 + $0x3c] sm:$0xf]
        %v2297 = vld [vmem:[%s6 + $0x40] sm:$0xf]
        %v2298 = vld [vmem:[%s6 + $0x44] sm:$0xf]
        %v2299 = vld [vmem:[%s6 + $0x48] sm:$0xf]
        %v2300 = vld [vmem:[%s6 + $0x4c] sm:$0xf]
        %v2301 = vld [vmem:[%s6 + $0x50] sm:$0xf]
        %v2302 = vld [vmem:[%s6 + $0x54] sm:$0xf]
        %v2303 = vld [vmem:[%s6 + $0x58] sm:$0xf]
        %v2304 = vld [vmem:[%s6 + $0x5c] sm:$0xf]
        %v2305 = vld [vmem:[%s6 + $0x60] sm:$0xf]
        %v2306 = vld [vmem:[%s6 + $0x64] sm:$0xf]
        %v2307 = vld [vmem:[%s6 + $0x68] sm:$0xf]
        %v2308 = vld [vmem:[%s6 + $0x6c] sm:$0xf]
        %v2309 = vld [vmem:[%s6 + $0x70] sm:$0xf]
        %v2310 = vld [vmem:[%s6 + $0x74] sm:$0xf]
        %v2311 = vld [vmem:[%s6 + $0x78] sm:$0xf]
        %v2312 = vld [vmem:[%s6 + $0x7c] sm:$0xf]
        %v2313 = vld [vmem:[%s6 + $0x80] sm:$0xf]
        %v2314 = vld [vmem:[%s6 + $0x84] sm:$0xf]
        %v2315 = vld [vmem:[%s6 + $0x88] sm:$0xf]
        %v2316 = vld [vmem:[%s6 + $0x8c] sm:$0xf]
        %v2317 = vld [vmem:[%s6 + $0x90] sm:$0xf]
        %v2318 = vld [vmem:[%s6 + $0x94] sm:$0xf]
        %v2319 = vld [vmem:[%s6 + $0x98] sm:$0xf]
        %v2320 = vld [vmem:[%s6 + $0x9c] sm:$0xf]
        %v2321 = vld [vmem:[%s6 + $0xa0] sm:$0xf]
        %v2322 = vld [vmem:[%s6 + $0xa4] sm:$0xf]
        %v2323 = vld [vmem:[%s6 + $0xa8] sm:$0xf]
        %v2324 = vld [vmem:[%s6 + $0xac] sm:$0xf]
        %v2325 = vld [vmem:[%s6 + $0xb0] sm:$0xf]
        %v2326 = vld [vmem:[%s6 + $0xb4] sm:$0xf]
        %v2327 = vld [vmem:[%s6 + $0xb8] sm:$0xf]
        %v2328 = vld [vmem:[%s6 + $0xbc] sm:$0xf]
        %v2329 = vld [vmem:[%s6 + $0xc0] sm:$0xf]
        %v2330 = vld [vmem:[%s6 + $0xc4] sm:$0xf]
        %v2331 = vld [vmem:[%s6 + $0xc8] sm:$0xf]
        %v2332 = vld [vmem:[%s6 + $0xcc] sm:$0xf]
        %v2333 = vld [vmem:[%s6 + $0xd0] sm:$0xf]
        %v2334 = vld [vmem:[%s6 + $0xd4] sm:$0xf]
        %v2335 = vld [vmem:[%s6 + $0xd8] sm:$0xf]
        %v2336 = vld [vmem:[%s6 + $0xdc] sm:$0xf]
        %v2337 = vld [vmem:[%s6 + $0xe0] sm:$0xf]
        %v2338 = vld [vmem:[%s6 + $0xe4] sm:$0xf]
        %v2339 = vld [vmem:[%s6 + $0xe8] sm:$0xf]
        %v2340 = vld [vmem:[%s6 + $0xec] sm:$0xf]
        %v2341 = vld [vmem:[%s6 + $0xf0] sm:$0xf]
        %v2342 = vld [vmem:[%s6 + $0xf4] sm:$0xf]
        %v2343 = vld [vmem:[%s6 + $0xf8] sm:$0xf]
        %v2344 = vld [vmem:[%s6 + $0xfc] sm:$0xf]
        %v2409 = vunpack.c.l.b16 %v2281
        %v2410 = vunpack.c.l.b16 %v2282
        %v2411 = vunpack.c.l.b16 %v2283
        %v2412 = vunpack.c.l.b16 %v2284
        %v2413 = vunpack.c.l.b16 %v2285
        %v2414 = vunpack.c.l.b16 %v2286
        %v2415 = vunpack.c.l.b16 %v2287
        %v2416 = vunpack.c.l.b16 %v2288
        %v2417 = vunpack.c.l.b16 %v2289
        %v2418 = vunpack.c.l.b16 %v2290
        %v2419 = vunpack.c.l.b16 %v2291
        %v2420 = vunpack.c.l.b16 %v2292
        %v2421 = vunpack.c.l.b16 %v2293
        %v2422 = vunpack.c.l.b16 %v2294
        %v2423 = vunpack.c.l.b16 %v2295
        %v2424 = vunpack.c.l.b16 %v2296
        %v2425 = vunpack.c.l.b16 %v2297
        %v2426 = vunpack.c.l.b16 %v2298
        %v2427 = vunpack.c.l.b16 %v2299
        %v2428 = vunpack.c.l.b16 %v2300
        %v2429 = vunpack.c.l.b16 %v2301
        %v2430 = vunpack.c.l.b16 %v2302
        %v2431 = vunpack.c.l.b16 %v2303
        %v2432 = vunpack.c.l.b16 %v2304
        %v2433 = vunpack.c.l.b16 %v2305
        %v2434 = vunpack.c.l.b16 %v2306
        %v2435 = vunpack.c.l.b16 %v2307
        %v2436 = vunpack.c.l.b16 %v2308
        %v2437 = vunpack.c.l.b16 %v2309
        %v2438 = vunpack.c.l.b16 %v2310
        %v2439 = vunpack.c.l.b16 %v2311
        %v2440 = vunpack.c.l.b16 %v2312
        %v2441 = vunpack.c.l.b16 %v2313
        %v2442 = vunpack.c.l.b16 %v2314
        %v2443 = vunpack.c.l.b16 %v2315
        %v2444 = vunpack.c.l.b16 %v2316
        %v2445 = vunpack.c.l.b16 %v2317
        %v2446 = vunpack.c.l.b16 %v2318
        %v2447 = vunpack.c.l.b16 %v2319
        %v2448 = vunpack.c.l.b16 %v2320
        %v2449 = vunpack.c.l.b16 %v2321
        %v2450 = vunpack.c.l.b16 %v2322
        %v2451 = vunpack.c.l.b16 %v2323
        %v2452 = vunpack.c.l.b16 %v2324
        %v2453 = vunpack.c.l.b16 %v2325
        %v2454 = vunpack.c.l.b16 %v2326
        %v2455 = vunpack.c.l.b16 %v2327
        %v2456 = vunpack.c.l.b16 %v2328
        %v2457 = vunpack.c.l.b16 %v2329
        %v2458 = vunpack.c.l.b16 %v2330
        %v2459 = vunpack.c.l.b16 %v2331
        %v2460 = vunpack.c.l.b16 %v2332
        %v2461 = vunpack.c.l.b16 %v2333
        %v2462 = vunpack.c.l.b16 %v2334
        %v2463 = vunpack.c.l.b16 %v2335
        %v2464 = vunpack.c.l.b16 %v2336
        %v2465 = vunpack.c.l.b16 %v2337
        %v2466 = vunpack.c.l.b16 %v2338
        %v2467 = vunpack.c.l.b16 %v2339
        %v2468 = vunpack.c.l.b16 %v2340
        %v2469 = vunpack.c.l.b16 %v2341
        %v2470 = vunpack.c.l.b16 %v2342
        %v2471 = vunpack.c.l.b16 %v2343
        %v2472 = vunpack.c.l.b16 %v2344
        %v2473 = vpack.c.b16 %v2410, %v2409
        %v2474 = vpack.c.b16 %v2412, %v2411
        %v2475 = vpack.c.b16 %v2414, %v2413
        %v2476 = vpack.c.b16 %v2416, %v2415
        %v2477 = vpack.c.b16 %v2418, %v2417
        %v2478 = vpack.c.b16 %v2420, %v2419
        %v2479 = vpack.c.b16 %v2422, %v2421
        %v2480 = vpack.c.b16 %v2424, %v2423
        %v2481 = vpack.c.b16 %v2426, %v2425
        %v2482 = vpack.c.b16 %v2428, %v2427
        %v2483 = vpack.c.b16 %v2430, %v2429
        %v2484 = vpack.c.b16 %v2432, %v2431
        %v2485 = vpack.c.b16 %v2434, %v2433
        %v2486 = vpack.c.b16 %v2436, %v2435
        %v2487 = vpack.c.b16 %v2438, %v2437
        %v2488 = vpack.c.b16 %v2440, %v2439
        %v2489 = vpack.c.b16 %v2442, %v2441
        %v2490 = vpack.c.b16 %v2444, %v2443
        %v2491 = vpack.c.b16 %v2446, %v2445
        %v2492 = vpack.c.b16 %v2448, %v2447
        %v2493 = vpack.c.b16 %v2450, %v2449
        %v2494 = vpack.c.b16 %v2452, %v2451
        %v2495 = vpack.c.b16 %v2454, %v2453
        %v2496 = vpack.c.b16 %v2456, %v2455
        %v2497 = vpack.c.b16 %v2458, %v2457
        %v2498 = vpack.c.b16 %v2460, %v2459
        %v2499 = vpack.c.b16 %v2462, %v2461
        %v2500 = vpack.c.b16 %v2464, %v2463
        %v2501 = vpack.c.b16 %v2466, %v2465
        %v2502 = vpack.c.b16 %v2468, %v2467
        %v2503 = vpack.c.b16 %v2470, %v2469
        %v2504 = vpack.c.b16 %v2472, %v2471
        %2537 = vmatpush.bf16.msra.mxu0 %v2216
        %2538 = vmatpush.bf16.msra.mxu0 %v2215
        %2539 = vmatpush.bf16.msra.mxu0 %v2214
        %2540 = vmatpush.bf16.msra.mxu0 %v2213
        %2541 = vmatpush.bf16.msra.mxu0 %v2212
        %2542 = vmatpush.bf16.msra.mxu0 %v2211
        %2543 = vmatpush.bf16.msra.mxu0 %v2210
        %2544 = vmatpush.bf16.msra.mxu0 %v2209
        %2545 = vmatmul.bf16.gmra.mxu0 %v2473
        %v2546 = vpop.f32.mrf.mxu0
        %v2547 = vadd.f32 0.0, %v2546
        %v2548 = vpop.f32.mrf.mxu0
        %v2549 = vadd.f32 0.0, %v2548
        %2550 = vmatmul.bf16.gmra.mxu0 %v2474
        %v2551 = vpop.f32.mrf.mxu0
        %v2552 = vadd.f32 0.0, %v2551
        %v2553 = vpop.f32.mrf.mxu0
        %v2554 = vadd.f32 0.0, %v2553
        %2555 = vmatmul.bf16.gmra.mxu0 %v2475
        %v2556 = vpop.f32.mrf.mxu0
        %v2557 = vadd.f32 0.0, %v2556
        %v2558 = vpop.f32.mrf.mxu0
        %v2559 = vadd.f32 0.0, %v2558
        %2560 = vmatmul.bf16.gmra.mxu0 %v2476
        %v2561 = vpop.f32.mrf.mxu0
        %v2562 = vadd.f32 0.0, %v2561
        %v2563 = vpop.f32.mrf.mxu0
        %v2564 = vadd.f32 0.0, %v2563
        %2565 = vmatmul.bf16.gmra.mxu0 %v2477
        %v2566 = vpop.f32.mrf.mxu0
        %v2567 = vadd.f32 0.0, %v2566
        %v2568 = vpop.f32.mrf.mxu0
        %v2569 = vadd.f32 0.0, %v2568
        %2570 = vmatmul.bf16.gmra.mxu0 %v2478
        %v2571 = vpop.f32.mrf.mxu0
        %v2572 = vadd.f32 0.0, %v2571
        %v2573 = vpop.f32.mrf.mxu0
        %v2574 = vadd.f32 0.0, %v2573
        %2575 = vmatmul.bf16.gmra.mxu0 %v2479
        %v2576 = vpop.f32.mrf.mxu0
        %v2577 = vadd.f32 0.0, %v2576
        %v2578 = vpop.f32.mrf.mxu0
        %v2579 = vadd.f32 0.0, %v2578
        %2580 = vmatmul.bf16.gmra.mxu0 %v2480
        %v2581 = vpop.f32.mrf.mxu0
        %v2582 = vadd.f32 0.0, %v2581
        %v2583 = vpop.f32.mrf.mxu0
        %v2584 = vadd.f32 0.0, %v2583
        %2585 = vmatmul.bf16.gmra.mxu0 %v2481
        %v2586 = vpop.f32.mrf.mxu0
        %v2587 = vadd.f32 0.0, %v2586
        %v2588 = vpop.f32.mrf.mxu0
        %v2589 = vadd.f32 0.0, %v2588
        %2590 = vmatmul.bf16.gmra.mxu0 %v2482
        %v2591 = vpop.f32.mrf.mxu0
        %v2592 = vadd.f32 0.0, %v2591
        %v2593 = vpop.f32.mrf.mxu0
        %v2594 = vadd.f32 0.0, %v2593
        %2595 = vmatmul.bf16.gmra.mxu0 %v2483
        %v2596 = vpop.f32.mrf.mxu0
        %v2597 = vadd.f32 0.0, %v2596
        %v2598 = vpop.f32.mrf.mxu0
        %v2599 = vadd.f32 0.0, %v2598
        %2600 = vmatmul.bf16.gmra.mxu0 %v2484
        %v2601 = vpop.f32.mrf.mxu0
        %v2602 = vadd.f32 0.0, %v2601
        %v2603 = vpop.f32.mrf.mxu0
        %v2604 = vadd.f32 0.0, %v2603
        %2605 = vmatmul.bf16.gmra.mxu0 %v2485
        %v2606 = vpop.f32.mrf.mxu0
        %v2607 = vadd.f32 0.0, %v2606
        %v2608 = vpop.f32.mrf.mxu0
        %v2609 = vadd.f32 0.0, %v2608
        %2610 = vmatmul.bf16.gmra.mxu0 %v2486
        %v2611 = vpop.f32.mrf.mxu0
        %v2612 = vadd.f32 0.0, %v2611
        %v2613 = vpop.f32.mrf.mxu0
        %v2614 = vadd.f32 0.0, %v2613
        %2615 = vmatmul.bf16.gmra.mxu0 %v2487
        %v2616 = vpop.f32.mrf.mxu0
        %v2617 = vadd.f32 0.0, %v2616
        %v2618 = vpop.f32.mrf.mxu0
        %v2619 = vadd.f32 0.0, %v2618
        %2620 = vmatmul.bf16.gmra.mxu0 %v2488
        %v2621 = vpop.f32.mrf.mxu0
        %v2622 = vadd.f32 0.0, %v2621
        %v2623 = vpop.f32.mrf.mxu0
        %v2624 = vadd.f32 0.0, %v2623
        %2625 = vmatmul.bf16.gmra.mxu0 %v2489
        %v2626 = vpop.f32.mrf.mxu0
        %v2627 = vadd.f32 0.0, %v2626
        %v2628 = vpop.f32.mrf.mxu0
        %v2629 = vadd.f32 0.0, %v2628
        %2630 = vmatmul.bf16.gmra.mxu0 %v2490
        %v2631 = vpop.f32.mrf.mxu0
        %v2632 = vadd.f32 0.0, %v2631
        %v2633 = vpop.f32.mrf.mxu0
        %v2634 = vadd.f32 0.0, %v2633
        %2635 = vmatmul.bf16.gmra.mxu0 %v2491
        %v2636 = vpop.f32.mrf.mxu0
        %v2637 = vadd.f32 0.0, %v2636
        %v2638 = vpop.f32.mrf.mxu0
        %v2639 = vadd.f32 0.0, %v2638
        %2640 = vmatmul.bf16.gmra.mxu0 %v2492
        %v2641 = vpop.f32.mrf.mxu0
        %v2642 = vadd.f32 0.0, %v2641
        %v2643 = vpop.f32.mrf.mxu0
        %v2644 = vadd.f32 0.0, %v2643
        %2645 = vmatmul.bf16.gmra.mxu0 %v2493
        %v2646 = vpop.f32.mrf.mxu0
        %v2647 = vadd.f32 0.0, %v2646
        %v2648 = vpop.f32.mrf.mxu0
        %v2649 = vadd.f32 0.0, %v2648
        %2650 = vmatmul.bf16.gmra.mxu0 %v2494
        %v2651 = vpop.f32.mrf.mxu0
        %v2652 = vadd.f32 0.0, %v2651
        %v2653 = vpop.f32.mrf.mxu0
        %v2654 = vadd.f32 0.0, %v2653
        %2655 = vmatmul.bf16.gmra.mxu0 %v2495
        %v2656 = vpop.f32.mrf.mxu0
        %v2657 = vadd.f32 0.0, %v2656
        %v2658 = vpop.f32.mrf.mxu0
        %v2659 = vadd.f32 0.0, %v2658
        %2660 = vmatmul.bf16.gmra.mxu0 %v2496
        %v2661 = vpop.f32.mrf.mxu0
        %v2662 = vadd.f32 0.0, %v2661
        %v2663 = vpop.f32.mrf.mxu0
        %v2664 = vadd.f32 0.0, %v2663
        %2665 = vmatmul.bf16.gmra.mxu0 %v2497
        %v2666 = vpop.f32.mrf.mxu0
        %v2667 = vadd.f32 0.0, %v2666
        %v2668 = vpop.f32.mrf.mxu0
        %v2669 = vadd.f32 0.0, %v2668
        %2670 = vmatmul.bf16.gmra.mxu0 %v2498
        %v2671 = vpop.f32.mrf.mxu0
        %v2672 = vadd.f32 0.0, %v2671
        %v2673 = vpop.f32.mrf.mxu0
        %v2674 = vadd.f32 0.0, %v2673
        %2675 = vmatmul.bf16.gmra.mxu0 %v2499
        %v2676 = vpop.f32.mrf.mxu0
        %v2677 = vadd.f32 0.0, %v2676
        %v2678 = vpop.f32.mrf.mxu0
        %v2679 = vadd.f32 0.0, %v2678
        %2680 = vmatmul.bf16.gmra.mxu0 %v2500
        %v2681 = vpop.f32.mrf.mxu0
        %v2682 = vadd.f32 0.0, %v2681
        %v2683 = vpop.f32.mrf.mxu0
        %v2684 = vadd.f32 0.0, %v2683
        %2685 = vmatmul.bf16.gmra.mxu0 %v2501
        %v2686 = vpop.f32.mrf.mxu0
        %v2687 = vadd.f32 0.0, %v2686
        %v2688 = vpop.f32.mrf.mxu0
        %v2689 = vadd.f32 0.0, %v2688
        %2690 = vmatmul.bf16.gmra.mxu0 %v2502
        %v2691 = vpop.f32.mrf.mxu0
        %v2692 = vadd.f32 0.0, %v2691
        %v2693 = vpop.f32.mrf.mxu0
        %v2694 = vadd.f32 0.0, %v2693
        %2695 = vmatmul.bf16.gmra.mxu0 %v2503
        %v2696 = vpop.f32.mrf.mxu0
        %v2697 = vadd.f32 0.0, %v2696
        %v2698 = vpop.f32.mrf.mxu0
        %v2699 = vadd.f32 0.0, %v2698
        %2700 = vmatmul.bf16.gmra.mxu0 %v2504
        %v2701 = vpop.f32.mrf.mxu0
        %v2702 = vadd.f32 0.0, %v2701
        %v2703 = vpop.f32.mrf.mxu0
        %v2704 = vadd.f32 0.0, %v2703
        %2705 = vdwg.mxu0
        %v2770 = vunpack.c.l.b16 %v2217
        %v2771 = vunpack.c.l.b16 %v2218
        %v2772 = vunpack.c.l.b16 %v2219
        %v2773 = vunpack.c.l.b16 %v2220
        %v2774 = vunpack.c.l.b16 %v2221
        %v2775 = vunpack.c.l.b16 %v2222
        %v2776 = vunpack.c.l.b16 %v2223
        %v2777 = vunpack.c.l.b16 %v2224
        %v2778 = vunpack.c.l.b16 %v2225
        %v2779 = vunpack.c.l.b16 %v2226
        %v2780 = vunpack.c.l.b16 %v2227
        %v2781 = vunpack.c.l.b16 %v2228
        %v2782 = vunpack.c.l.b16 %v2229
        %v2783 = vunpack.c.l.b16 %v2230
        %v2784 = vunpack.c.l.b16 %v2231
        %v2785 = vunpack.c.l.b16 %v2232
        %v2786 = vunpack.c.l.b16 %v2233
        %v2787 = vunpack.c.l.b16 %v2234
        %v2788 = vunpack.c.l.b16 %v2235
        %v2789 = vunpack.c.l.b16 %v2236
        %v2790 = vunpack.c.l.b16 %v2237
        %v2791 = vunpack.c.l.b16 %v2238
        %v2792 = vunpack.c.l.b16 %v2239
        %v2793 = vunpack.c.l.b16 %v2240
        %v2794 = vunpack.c.l.b16 %v2241
        %v2795 = vunpack.c.l.b16 %v2242
        %v2796 = vunpack.c.l.b16 %v2243
        %v2797 = vunpack.c.l.b16 %v2244
        %v2798 = vunpack.c.l.b16 %v2245
        %v2799 = vunpack.c.l.b16 %v2246
        %v2800 = vunpack.c.l.b16 %v2247
        %v2801 = vunpack.c.l.b16 %v2248
        %v2802 = vunpack.c.l.b16 %v2249
        %v2803 = vunpack.c.l.b16 %v2250
        %v2804 = vunpack.c.l.b16 %v2251
        %v2805 = vunpack.c.l.b16 %v2252
        %v2806 = vunpack.c.l.b16 %v2253
        %v2807 = vunpack.c.l.b16 %v2254
        %v2808 = vunpack.c.l.b16 %v2255
        %v2809 = vunpack.c.l.b16 %v2256
        %v2810 = vunpack.c.l.b16 %v2257
        %v2811 = vunpack.c.l.b16 %v2258
        %v2812 = vunpack.c.l.b16 %v2259
        %v2813 = vunpack.c.l.b16 %v2260
        %v2814 = vunpack.c.l.b16 %v2261
        %v2815 = vunpack.c.l.b16 %v2262
        %v2816 = vunpack.c.l.b16 %v2263
        %v2817 = vunpack.c.l.b16 %v2264
        %v2818 = vunpack.c.l.b16 %v2265
        %v2819 = vunpack.c.l.b16 %v2266
        %v2820 = vunpack.c.l.b16 %v2267
        %v2821 = vunpack.c.l.b16 %v2268
        %v2822 = vunpack.c.l.b16 %v2269
        %v2823 = vunpack.c.l.b16 %v2270
        %v2824 = vunpack.c.l.b16 %v2271
        %v2825 = vunpack.c.l.b16 %v2272
        %v2826 = vunpack.c.l.b16 %v2273
        %v2827 = vunpack.c.l.b16 %v2274
        %v2828 = vunpack.c.l.b16 %v2275
        %v2829 = vunpack.c.l.b16 %v2276
        %v2830 = vunpack.c.l.b16 %v2277
        %v2831 = vunpack.c.l.b16 %v2278
        %v2832 = vunpack.c.l.b16 %v2279
        %v2833 = vunpack.c.l.b16 %v2280
        %v2834 = vpack.c.b16 %v2771, %v2770
        %v2835 = vpack.c.b16 %v2773, %v2772
        %v2836 = vpack.c.b16 %v2775, %v2774
        %v2837 = vpack.c.b16 %v2777, %v2776
        %v2838 = vpack.c.b16 %v2779, %v2778
        %v2839 = vpack.c.b16 %v2781, %v2780
        %v2840 = vpack.c.b16 %v2783, %v2782
        %v2841 = vpack.c.b16 %v2785, %v2784
        %v2842 = vpack.c.b16 %v2787, %v2786
        %v2843 = vpack.c.b16 %v2789, %v2788
        %v2844 = vpack.c.b16 %v2791, %v2790
        %v2845 = vpack.c.b16 %v2793, %v2792
        %v2846 = vpack.c.b16 %v2795, %v2794
        %v2847 = vpack.c.b16 %v2797, %v2796
        %v2848 = vpack.c.b16 %v2799, %v2798
        %v2849 = vpack.c.b16 %v2801, %v2800
        %v2850 = vpack.c.b16 %v2803, %v2802
        %v2851 = vpack.c.b16 %v2805, %v2804
        %v2852 = vpack.c.b16 %v2807, %v2806
        %v2853 = vpack.c.b16 %v2809, %v2808
        %v2854 = vpack.c.b16 %v2811, %v2810
        %v2855 = vpack.c.b16 %v2813, %v2812
        %v2856 = vpack.c.b16 %v2815, %v2814
        %v2857 = vpack.c.b16 %v2817, %v2816
        %v2858 = vpack.c.b16 %v2819, %v2818
        %v2859 = vpack.c.b16 %v2821, %v2820
        %v2860 = vpack.c.b16 %v2823, %v2822
        %v2861 = vpack.c.b16 %v2825, %v2824
        %v2862 = vpack.c.b16 %v2827, %v2826
        %v2863 = vpack.c.b16 %v2829, %v2828
        %v2864 = vpack.c.b16 %v2831, %v2830
        %v2865 = vpack.c.b16 %v2833, %v2832
        %2898 = vmatpush.bf16.msra.mxu0 %v2208
        %2899 = vmatpush.bf16.msra.mxu0 %v2207
        %2900 = vmatpush.bf16.msra.mxu0 %v2206
        %2901 = vmatpush.bf16.msra.mxu0 %v2205
        %2902 = vmatpush.bf16.msra.mxu0 %v2204
        %2903 = vmatpush.bf16.msra.mxu0 %v2203
        %2904 = vmatpush.bf16.msra.mxu0 %v2202
        %2905 = vmatpush.bf16.msra.mxu0 %v2201
        %2906 = vmatmul.bf16.gmra.mxu0 %v2834
        %v2907 = vpop.f32.mrf.mxu0
        %v2908 = vadd.f32 %v2547, %v2907
        %v2909 = vpop.f32.mrf.mxu0
        %v2910 = vadd.f32 %v2549, %v2909
        %2911 = vmatmul.bf16.gmra.mxu0 %v2835
        %v2912 = vpop.f32.mrf.mxu0
        %v2913 = vadd.f32 %v2552, %v2912
        %v2914 = vpop.f32.mrf.mxu0
        %v2915 = vadd.f32 %v2554, %v2914
        %2916 = vmatmul.bf16.gmra.mxu0 %v2836
        %v2917 = vpop.f32.mrf.mxu0
        %v2918 = vadd.f32 %v2557, %v2917
        %v2919 = vpop.f32.mrf.mxu0
        %v2920 = vadd.f32 %v2559, %v2919
        %2921 = vmatmul.bf16.gmra.mxu0 %v2837
        %v2922 = vpop.f32.mrf.mxu0
        %v2923 = vadd.f32 %v2562, %v2922
        %v2924 = vpop.f32.mrf.mxu0
        %v2925 = vadd.f32 %v2564, %v2924
        %2926 = vmatmul.bf16.gmra.mxu0 %v2838
        %v2927 = vpop.f32.mrf.mxu0
        %v2928 = vadd.f32 %v2567, %v2927
        %v2929 = vpop.f32.mrf.mxu0
        %v2930 = vadd.f32 %v2569, %v2929
        %2931 = vmatmul.bf16.gmra.mxu0 %v2839
        %v2932 = vpop.f32.mrf.mxu0
        %v2933 = vadd.f32 %v2572, %v2932
        %v2934 = vpop.f32.mrf.mxu0
        %v2935 = vadd.f32 %v2574, %v2934
        %2936 = vmatmul.bf16.gmra.mxu0 %v2840
        %v2937 = vpop.f32.mrf.mxu0
        %v2938 = vadd.f32 %v2577, %v2937
        %v2939 = vpop.f32.mrf.mxu0
        %v2940 = vadd.f32 %v2579, %v2939
        %2941 = vmatmul.bf16.gmra.mxu0 %v2841
        %v2942 = vpop.f32.mrf.mxu0
        %v2943 = vadd.f32 %v2582, %v2942
        %v2944 = vpop.f32.mrf.mxu0
        %v2945 = vadd.f32 %v2584, %v2944
        %2946 = vmatmul.bf16.gmra.mxu0 %v2842
        %v2947 = vpop.f32.mrf.mxu0
        %v2948 = vadd.f32 %v2587, %v2947
        %v2949 = vpop.f32.mrf.mxu0
        %v2950 = vadd.f32 %v2589, %v2949
        %2951 = vmatmul.bf16.gmra.mxu0 %v2843
        %v2952 = vpop.f32.mrf.mxu0
        %v2953 = vadd.f32 %v2592, %v2952
        %v2954 = vpop.f32.mrf.mxu0
        %v2955 = vadd.f32 %v2594, %v2954
        %2956 = vmatmul.bf16.gmra.mxu0 %v2844
        %v2957 = vpop.f32.mrf.mxu0
        %v2958 = vadd.f32 %v2597, %v2957
        %v2959 = vpop.f32.mrf.mxu0
        %v2960 = vadd.f32 %v2599, %v2959
        %2961 = vmatmul.bf16.gmra.mxu0 %v2845
        %v2962 = vpop.f32.mrf.mxu0
        %v2963 = vadd.f32 %v2602, %v2962
        %v2964 = vpop.f32.mrf.mxu0
        %v2965 = vadd.f32 %v2604, %v2964
        %2966 = vmatmul.bf16.gmra.mxu0 %v2846
        %v2967 = vpop.f32.mrf.mxu0
        %v2968 = vadd.f32 %v2607, %v2967
        %v2969 = vpop.f32.mrf.mxu0
        %v2970 = vadd.f32 %v2609, %v2969
        %2971 = vmatmul.bf16.gmra.mxu0 %v2847
        %v2972 = vpop.f32.mrf.mxu0
        %v2973 = vadd.f32 %v2612, %v2972
        %v2974 = vpop.f32.mrf.mxu0
        %v2975 = vadd.f32 %v2614, %v2974
        %2976 = vmatmul.bf16.gmra.mxu0 %v2848
        %v2977 = vpop.f32.mrf.mxu0
        %v2978 = vadd.f32 %v2617, %v2977
        %v2979 = vpop.f32.mrf.mxu0
        %v2980 = vadd.f32 %v2619, %v2979
        %2981 = vmatmul.bf16.gmra.mxu0 %v2849
        %v2982 = vpop.f32.mrf.mxu0
        %v2983 = vadd.f32 %v2622, %v2982
        %v2984 = vpop.f32.mrf.mxu0
        %v2985 = vadd.f32 %v2624, %v2984
        %2986 = vmatmul.bf16.gmra.mxu0 %v2850
        %v2987 = vpop.f32.mrf.mxu0
        %v2988 = vadd.f32 %v2627, %v2987
        %v2989 = vpop.f32.mrf.mxu0
        %v2990 = vadd.f32 %v2629, %v2989
        %2991 = vmatmul.bf16.gmra.mxu0 %v2851
        %v2992 = vpop.f32.mrf.mxu0
        %v2993 = vadd.f32 %v2632, %v2992
        %v2994 = vpop.f32.mrf.mxu0
        %v2995 = vadd.f32 %v2634, %v2994
        %2996 = vmatmul.bf16.gmra.mxu0 %v2852
        %v2997 = vpop.f32.mrf.mxu0
        %v2998 = vadd.f32 %v2637, %v2997
        %v2999 = vpop.f32.mrf.mxu0
        %v3000 = vadd.f32 %v2639, %v2999
        %3001 = vmatmul.bf16.gmra.mxu0 %v2853
        %v3002 = vpop.f32.mrf.mxu0
        %v3003 = vadd.f32 %v2642, %v3002
        %v3004 = vpop.f32.mrf.mxu0
        %v3005 = vadd.f32 %v2644, %v3004
        %3006 = vmatmul.bf16.gmra.mxu0 %v2854
        %v3007 = vpop.f32.mrf.mxu0
        %v3008 = vadd.f32 %v2647, %v3007
        %v3009 = vpop.f32.mrf.mxu0
        %v3010 = vadd.f32 %v2649, %v3009
        %3011 = vmatmul.bf16.gmra.mxu0 %v2855
        %v3012 = vpop.f32.mrf.mxu0
        %v3013 = vadd.f32 %v2652, %v3012
        %v3014 = vpop.f32.mrf.mxu0
        %v3015 = vadd.f32 %v2654, %v3014
        %3016 = vmatmul.bf16.gmra.mxu0 %v2856
        %v3017 = vpop.f32.mrf.mxu0
        %v3018 = vadd.f32 %v2657, %v3017
        %v3019 = vpop.f32.mrf.mxu0
        %v3020 = vadd.f32 %v2659, %v3019
        %3021 = vmatmul.bf16.gmra.mxu0 %v2857
        %v3022 = vpop.f32.mrf.mxu0
        %v3023 = vadd.f32 %v2662, %v3022
        %v3024 = vpop.f32.mrf.mxu0
        %v3025 = vadd.f32 %v2664, %v3024
        %3026 = vmatmul.bf16.gmra.mxu0 %v2858
        %v3027 = vpop.f32.mrf.mxu0
        %v3028 = vadd.f32 %v2667, %v3027
        %v3029 = vpop.f32.mrf.mxu0
        %v3030 = vadd.f32 %v2669, %v3029
        %3031 = vmatmul.bf16.gmra.mxu0 %v2859
        %v3032 = vpop.f32.mrf.mxu0
        %v3033 = vadd.f32 %v2672, %v3032
        %v3034 = vpop.f32.mrf.mxu0
        %v3035 = vadd.f32 %v2674, %v3034
        %3036 = vmatmul.bf16.gmra.mxu0 %v2860
        %v3037 = vpop.f32.mrf.mxu0
        %v3038 = vadd.f32 %v2677, %v3037
        %v3039 = vpop.f32.mrf.mxu0
        %v3040 = vadd.f32 %v2679, %v3039
        %3041 = vmatmul.bf16.gmra.mxu0 %v2861
        %v3042 = vpop.f32.mrf.mxu0
        %v3043 = vadd.f32 %v2682, %v3042
        %v3044 = vpop.f32.mrf.mxu0
        %v3045 = vadd.f32 %v2684, %v3044
        %3046 = vmatmul.bf16.gmra.mxu0 %v2862
        %v3047 = vpop.f32.mrf.mxu0
        %v3048 = vadd.f32 %v2687, %v3047
        %v3049 = vpop.f32.mrf.mxu0
        %v3050 = vadd.f32 %v2689, %v3049
        %3051 = vmatmul.bf16.gmra.mxu0 %v2863
        %v3052 = vpop.f32.mrf.mxu0
        %v3053 = vadd.f32 %v2692, %v3052
        %v3054 = vpop.f32.mrf.mxu0
        %v3055 = vadd.f32 %v2694, %v3054
        %3056 = vmatmul.bf16.gmra.mxu0 %v2864
        %v3057 = vpop.f32.mrf.mxu0
        %v3058 = vadd.f32 %v2697, %v3057
        %v3059 = vpop.f32.mrf.mxu0
        %v3060 = vadd.f32 %v2699, %v3059
        %3061 = vmatmul.bf16.gmra.mxu0 %v2865
        %v3062 = vpop.f32.mrf.mxu0
        %v3063 = vadd.f32 %v2702, %v3062
        %v3064 = vpop.f32.mrf.mxu0
        %v3065 = vadd.f32 %v2704, %v3064
        %3066 = vdwg.mxu0
        %v3067 = vld [vmem:[%s1039] sm:$0x1]
        %v3069 = vperm.slane %v3067, 0
        %v3071 = vadd.f32 %v2908, %v3069
        %v3072 = vadd.f32 %v2910, %v3069
        %v3073 = vadd.f32 %v2913, %v3069
        %v3074 = vadd.f32 %v2915, %v3069
        %v3075 = vadd.f32 %v2918, %v3069
        %v3076 = vadd.f32 %v2920, %v3069
        %v3077 = vadd.f32 %v2923, %v3069
        %v3078 = vadd.f32 %v2925, %v3069
        %v3079 = vadd.f32 %v2928, %v3069
        %v3080 = vadd.f32 %v2930, %v3069
        %v3081 = vadd.f32 %v2933, %v3069
        %v3082 = vadd.f32 %v2935, %v3069
        %v3083 = vadd.f32 %v2938, %v3069
        %v3084 = vadd.f32 %v2940, %v3069
        %v3085 = vadd.f32 %v2943, %v3069
        %v3086 = vadd.f32 %v2945, %v3069
        %v3087 = vadd.f32 %v2948, %v3069
        %v3088 = vadd.f32 %v2950, %v3069
        %v3089 = vadd.f32 %v2953, %v3069
        %v3090 = vadd.f32 %v2955, %v3069
        %v3091 = vadd.f32 %v2958, %v3069
        %v3092 = vadd.f32 %v2960, %v3069
        %v3093 = vadd.f32 %v2963, %v3069
        %v3094 = vadd.f32 %v2965, %v3069
        %v3095 = vadd.f32 %v2968, %v3069
        %v3096 = vadd.f32 %v2970, %v3069
        %v3097 = vadd.f32 %v2973, %v3069
        %v3098 = vadd.f32 %v2975, %v3069
        %v3099 = vadd.f32 %v2978, %v3069
        %v3100 = vadd.f32 %v2980, %v3069
        %v3101 = vadd.f32 %v2983, %v3069
        %v3102 = vadd.f32 %v2985, %v3069
        %v3103 = vadd.f32 %v2988, %v3069
        %v3104 = vadd.f32 %v2990, %v3069
        %v3105 = vadd.f32 %v2993, %v3069
        %v3106 = vadd.f32 %v2995, %v3069
        %v3107 = vadd.f32 %v2998, %v3069
        %v3108 = vadd.f32 %v3000, %v3069
        %v3109 = vadd.f32 %v3003, %v3069
        %v3110 = vadd.f32 %v3005, %v3069
        %v3111 = vadd.f32 %v3008, %v3069
        %v3112 = vadd.f32 %v3010, %v3069
        %v3113 = vadd.f32 %v3013, %v3069
        %v3114 = vadd.f32 %v3015, %v3069
        %v3115 = vadd.f32 %v3018, %v3069
        %v3116 = vadd.f32 %v3020, %v3069
        %v3117 = vadd.f32 %v3023, %v3069
        %v3118 = vadd.f32 %v3025, %v3069
        %v3119 = vadd.f32 %v3028, %v3069
        %v3120 = vadd.f32 %v3030, %v3069
        %v3121 = vadd.f32 %v3033, %v3069
        %v3122 = vadd.f32 %v3035, %v3069
        %v3123 = vadd.f32 %v3038, %v3069
        %v3124 = vadd.f32 %v3040, %v3069
        %v3125 = vadd.f32 %v3043, %v3069
        %v3126 = vadd.f32 %v3045, %v3069
        %v3127 = vadd.f32 %v3048, %v3069
        %v3128 = vadd.f32 %v3050, %v3069
        %v3129 = vadd.f32 %v3053, %v3069
        %v3130 = vadd.f32 %v3055, %v3069
        %v3131 = vadd.f32 %v3058, %v3069
        %v3132 = vadd.f32 %v3060, %v3069
        %v3133 = vadd.f32 %v3063, %v3069
        %v3134 = vadd.f32 %v3065, %v3069
        %v3135 = vsub.f32 0.0, %v3071
        %v3136 = vsub.f32 0.0, %v3072
        %v3137 = vsub.f32 0.0, %v3073
        %v3138 = vsub.f32 0.0, %v3074
        %v3139 = vsub.f32 0.0, %v3075
        %v3140 = vsub.f32 0.0, %v3076
        %v3141 = vsub.f32 0.0, %v3077
        %v3142 = vsub.f32 0.0, %v3078
        %v3143 = vsub.f32 0.0, %v3079
        %v3144 = vsub.f32 0.0, %v3080
        %v3145 = vsub.f32 0.0, %v3081
        %v3146 = vsub.f32 0.0, %v3082
        %v3147 = vsub.f32 0.0, %v3083
        %v3148 = vsub.f32 0.0, %v3084
        %v3149 = vsub.f32 0.0, %v3085
        %v3150 = vsub.f32 0.0, %v3086
        %v3151 = vsub.f32 0.0, %v3087
        %v3152 = vsub.f32 0.0, %v3088
        %v3153 = vsub.f32 0.0, %v3089
        %v3154 = vsub.f32 0.0, %v3090
        %v3155 = vsub.f32 0.0, %v3091
        %v3156 = vsub.f32 0.0, %v3092
        %v3157 = vsub.f32 0.0, %v3093
        %v3158 = vsub.f32 0.0, %v3094
        %v3159 = vsub.f32 0.0, %v3095
        %v3160 = vsub.f32 0.0, %v3096
        %v3161 = vsub.f32 0.0, %v3097
        %v3162 = vsub.f32 0.0, %v3098
        %v3163 = vsub.f32 0.0, %v3099
        %v3164 = vsub.f32 0.0, %v3100
        %v3165 = vsub.f32 0.0, %v3101
        %v3166 = vsub.f32 0.0, %v3102
        %v3167 = vsub.f32 0.0, %v3103
        %v3168 = vsub.f32 0.0, %v3104
        %v3169 = vsub.f32 0.0, %v3105
        %v3170 = vsub.f32 0.0, %v3106
        %v3171 = vsub.f32 0.0, %v3107
        %v3172 = vsub.f32 0.0, %v3108
        %v3173 = vsub.f32 0.0, %v3109
        %v3174 = vsub.f32 0.0, %v3110
        %v3175 = vsub.f32 0.0, %v3111
        %v3176 = vsub.f32 0.0, %v3112
        %v3177 = vsub.f32 0.0, %v3113
        %v3178 = vsub.f32 0.0, %v3114
        %v3179 = vsub.f32 0.0, %v3115
        %v3180 = vsub.f32 0.0, %v3116
        %v3181 = vsub.f32 0.0, %v3117
        %v3182 = vsub.f32 0.0, %v3118
        %v3183 = vsub.f32 0.0, %v3119
        %v3184 = vsub.f32 0.0, %v3120
        %v3185 = vsub.f32 0.0, %v3121
        %v3186 = vsub.f32 0.0, %v3122
        %v3187 = vsub.f32 0.0, %v3123
        %v3188 = vsub.f32 0.0, %v3124
        %v3189 = vsub.f32 0.0, %v3125
        %v3190 = vsub.f32 0.0, %v3126
        %v3191 = vsub.f32 0.0, %v3127
        %v3192 = vsub.f32 0.0, %v3128
        %v3193 = vsub.f32 0.0, %v3129
        %v3194 = vsub.f32 0.0, %v3130
        %v3195 = vsub.f32 0.0, %v3131
        %v3196 = vsub.f32 0.0, %v3132
        %v3197 = vsub.f32 0.0, %v3133
        %v3198 = vsub.f32 0.0, %v3134
        %v3199 = vmul.f32 %v3135, 1.442695
        %v3200 = vpow.pop %v3199
        %v3201 = vmul.f32 %v3136, 1.442695
        %v3202 = vpow.pop %v3201
        %v3203 = vmul.f32 %v3137, 1.442695
        %v3204 = vpow.pop %v3203
        %v3205 = vmul.f32 %v3138, 1.442695
        %v3206 = vpow.pop %v3205
        %v3207 = vmul.f32 %v3139, 1.442695
        %v3208 = vpow.pop %v3207
        %v3209 = vmul.f32 %v3140, 1.442695
        %v3210 = vpow.pop %v3209
        %v3211 = vmul.f32 %v3141, 1.442695
        %v3212 = vpow.pop %v3211
        %v3213 = vmul.f32 %v3142, 1.442695
        %v3214 = vpow.pop %v3213
        %v3215 = vmul.f32 %v3143, 1.442695
        %v3216 = vpow.pop %v3215
        %v3217 = vmul.f32 %v3144, 1.442695
        %v3218 = vpow.pop %v3217
        %v3219 = vmul.f32 %v3145, 1.442695
        %v3220 = vpow.pop %v3219
        %v3221 = vmul.f32 %v3146, 1.442695
        %v3222 = vpow.pop %v3221
        %v3223 = vmul.f32 %v3147, 1.442695
        %v3224 = vpow.pop %v3223
        %v3225 = vmul.f32 %v3148, 1.442695
        %v3226 = vpow.pop %v3225
        %v3227 = vmul.f32 %v3149, 1.442695
        %v3228 = vpow.pop %v3227
        %v3229 = vmul.f32 %v3150, 1.442695
        %v3230 = vpow.pop %v3229
        %v3231 = vmul.f32 %v3151, 1.442695
        %v3232 = vpow.pop %v3231
        %v3233 = vmul.f32 %v3152, 1.442695
        %v3234 = vpow.pop %v3233
        %v3235 = vmul.f32 %v3153, 1.442695
        %v3236 = vpow.pop %v3235
        %v3237 = vmul.f32 %v3154, 1.442695
        %v3238 = vpow.pop %v3237
        %v3239 = vmul.f32 %v3155, 1.442695
        %v3240 = vpow.pop %v3239
        %v3241 = vmul.f32 %v3156, 1.442695
        %v3242 = vpow.pop %v3241
        %v3243 = vmul.f32 %v3157, 1.442695
        %v3244 = vpow.pop %v3243
        %v3245 = vmul.f32 %v3158, 1.442695
        %v3246 = vpow.pop %v3245
        %v3247 = vmul.f32 %v3159, 1.442695
        %v3248 = vpow.pop %v3247
        %v3249 = vmul.f32 %v3160, 1.442695
        %v3250 = vpow.pop %v3249
        %v3251 = vmul.f32 %v3161, 1.442695
        %v3252 = vpow.pop %v3251
        %v3253 = vmul.f32 %v3162, 1.442695
        %v3254 = vpow.pop %v3253
        %v3255 = vmul.f32 %v3163, 1.442695
        %v3256 = vpow.pop %v3255
        %v3257 = vmul.f32 %v3164, 1.442695
        %v3258 = vpow.pop %v3257
        %v3259 = vmul.f32 %v3165, 1.442695
        %v3260 = vpow.pop %v3259
        %v3261 = vmul.f32 %v3166, 1.442695
        %v3262 = vpow.pop %v3261
        %v3263 = vmul.f32 %v3167, 1.442695
        %v3264 = vpow.pop %v3263
        %v3265 = vmul.f32 %v3168, 1.442695
        %v3266 = vpow.pop %v3265
        %v3267 = vmul.f32 %v3169, 1.442695
        %v3268 = vpow.pop %v3267
        %v3269 = vmul.f32 %v3170, 1.442695
        %v3270 = vpow.pop %v3269
        %v3271 = vmul.f32 %v3171, 1.442695
        %v3272 = vpow.pop %v3271
        %v3273 = vmul.f32 %v3172, 1.442695
        %v3274 = vpow.pop %v3273
        %v3275 = vmul.f32 %v3173, 1.442695
        %v3276 = vpow.pop %v3275
        %v3277 = vmul.f32 %v3174, 1.442695
        %v3278 = vpow.pop %v3277
        %v3279 = vmul.f32 %v3175, 1.442695
        %v3280 = vpow.pop %v3279
        %v3281 = vmul.f32 %v3176, 1.442695
        %v3282 = vpow.pop %v3281
        %v3283 = vmul.f32 %v3177, 1.442695
        %v3284 = vpow.pop %v3283
        %v3285 = vmul.f32 %v3178, 1.442695
        %v3286 = vpow.pop %v3285
        %v3287 = vmul.f32 %v3179, 1.442695
        %v3288 = vpow.pop %v3287
        %v3289 = vmul.f32 %v3180, 1.442695
        %v3290 = vpow.pop %v3289
        %v3291 = vmul.f32 %v3181, 1.442695
        %v3292 = vpow.pop %v3291
        %v3293 = vmul.f32 %v3182, 1.442695
        %v3294 = vpow.pop %v3293
        %v3295 = vmul.f32 %v3183, 1.442695
        %v3296 = vpow.pop %v3295
        %v3297 = vmul.f32 %v3184, 1.442695
        %v3298 = vpow.pop %v3297
        %v3299 = vmul.f32 %v3185, 1.442695
        %v3300 = vpow.pop %v3299
        %v3301 = vmul.f32 %v3186, 1.442695
        %v3302 = vpow.pop %v3301
        %v3303 = vmul.f32 %v3187, 1.442695
        %v3304 = vpow.pop %v3303
        %v3305 = vmul.f32 %v3188, 1.442695
        %v3306 = vpow.pop %v3305
        %v3307 = vmul.f32 %v3189, 1.442695
        %v3308 = vpow.pop %v3307
        %v3309 = vmul.f32 %v3190, 1.442695
        %v3310 = vpow.pop %v3309
        %v3311 = vmul.f32 %v3191, 1.442695
        %v3312 = vpow.pop %v3311
        %v3313 = vmul.f32 %v3192, 1.442695
        %v3314 = vpow.pop %v3313
        %v3315 = vmul.f32 %v3193, 1.442695
        %v3316 = vpow.pop %v3315
        %v3317 = vmul.f32 %v3194, 1.442695
        %v3318 = vpow.pop %v3317
        %v3319 = vmul.f32 %v3195, 1.442695
        %v3320 = vpow.pop %v3319
        %v3321 = vmul.f32 %v3196, 1.442695
        %v3322 = vpow.pop %v3321
        %v3323 = vmul.f32 %v3197, 1.442695
        %v3324 = vpow.pop %v3323
        %v3325 = vmul.f32 %v3198, 1.442695
        %v3326 = vpow.pop %v3325
        %v3327 = vadd.f32 %v3200, 1.0
        %v3328 = vadd.f32 %v3202, 1.0
        %v3329 = vadd.f32 %v3204, 1.0
        %v3330 = vadd.f32 %v3206, 1.0
        %v3331 = vadd.f32 %v3208, 1.0
        %v3332 = vadd.f32 %v3210, 1.0
        %v3333 = vadd.f32 %v3212, 1.0
        %v3334 = vadd.f32 %v3214, 1.0
        %v3335 = vadd.f32 %v3216, 1.0
        %v3336 = vadd.f32 %v3218, 1.0
        %v3337 = vadd.f32 %v3220, 1.0
        %v3338 = vadd.f32 %v3222, 1.0
        %v3339 = vadd.f32 %v3224, 1.0
        %v3340 = vadd.f32 %v3226, 1.0
        %v3341 = vadd.f32 %v3228, 1.0
        %v3342 = vadd.f32 %v3230, 1.0
        %v3343 = vadd.f32 %v3232, 1.0
        %v3344 = vadd.f32 %v3234, 1.0
        %v3345 = vadd.f32 %v3236, 1.0
        %v3346 = vadd.f32 %v3238, 1.0
        %v3347 = vadd.f32 %v3240, 1.0
        %v3348 = vadd.f32 %v3242, 1.0
        %v3349 = vadd.f32 %v3244, 1.0
        %v3350 = vadd.f32 %v3246, 1.0
        %v3351 = vadd.f32 %v3248, 1.0
        %v3352 = vadd.f32 %v3250, 1.0
        %v3353 = vadd.f32 %v3252, 1.0
        %v3354 = vadd.f32 %v3254, 1.0
        %v3355 = vadd.f32 %v3256, 1.0
        %v3356 = vadd.f32 %v3258, 1.0
        %v3357 = vadd.f32 %v3260, 1.0
        %v3358 = vadd.f32 %v3262, 1.0
        %v3359 = vadd.f32 %v3264, 1.0
        %v3360 = vadd.f32 %v3266, 1.0
        %v3361 = vadd.f32 %v3268, 1.0
        %v3362 = vadd.f32 %v3270, 1.0
        %v3363 = vadd.f32 %v3272, 1.0
        %v3364 = vadd.f32 %v3274, 1.0
        %v3365 = vadd.f32 %v3276, 1.0
        %v3366 = vadd.f32 %v3278, 1.0
        %v3367 = vadd.f32 %v3280, 1.0
        %v3368 = vadd.f32 %v3282, 1.0
        %v3369 = vadd.f32 %v3284, 1.0
        %v3370 = vadd.f32 %v3286, 1.0
        %v3371 = vadd.f32 %v3288, 1.0
        %v3372 = vadd.f32 %v3290, 1.0
        %v3373 = vadd.f32 %v3292, 1.0
        %v3374 = vadd.f32 %v3294, 1.0
        %v3375 = vadd.f32 %v3296, 1.0
        %v3376 = vadd.f32 %v3298, 1.0
        %v3377 = vadd.f32 %v3300, 1.0
        %v3378 = vadd.f32 %v3302, 1.0
        %v3379 = vadd.f32 %v3304, 1.0
        %v3380 = vadd.f32 %v3306, 1.0
        %v3381 = vadd.f32 %v3308, 1.0
        %v3382 = vadd.f32 %v3310, 1.0
        %v3383 = vadd.f32 %v3312, 1.0
        %v3384 = vadd.f32 %v3314, 1.0
        %v3385 = vadd.f32 %v3316, 1.0
        %v3386 = vadd.f32 %v3318, 1.0
        %v3387 = vadd.f32 %v3320, 1.0
        %v3388 = vadd.f32 %v3322, 1.0
        %v3389 = vadd.f32 %v3324, 1.0
        %v3390 = vadd.f32 %v3326, 1.0
        %v3391 = vrcp.pop %v3327
        %v3392 = vrcp.pop %v3328
        %v3393 = vrcp.pop %v3329
        %v3394 = vrcp.pop %v3330
        %v3395 = vrcp.pop %v3331
        %v3396 = vrcp.pop %v3332
        %v3397 = vrcp.pop %v3333
        %v3398 = vrcp.pop %v3334
        %v3399 = vrcp.pop %v3335
        %v3400 = vrcp.pop %v3336
        %v3401 = vrcp.pop %v3337
        %v3402 = vrcp.pop %v3338
        %v3403 = vrcp.pop %v3339
        %v3404 = vrcp.pop %v3340
        %v3405 = vrcp.pop %v3341
        %v3406 = vrcp.pop %v3342
        %v3407 = vrcp.pop %v3343
        %v3408 = vrcp.pop %v3344
        %v3409 = vrcp.pop %v3345
        %v3410 = vrcp.pop %v3346
        %v3411 = vrcp.pop %v3347
        %v3412 = vrcp.pop %v3348
        %v3413 = vrcp.pop %v3349
        %v3414 = vrcp.pop %v3350
        %v3415 = vrcp.pop %v3351
        %v3416 = vrcp.pop %v3352
        %v3417 = vrcp.pop %v3353
        %v3418 = vrcp.pop %v3354
        %v3419 = vrcp.pop %v3355
        %v3420 = vrcp.pop %v3356
        %v3421 = vrcp.pop %v3357
        %v3422 = vrcp.pop %v3358
        %v3423 = vrcp.pop %v3359
        %v3424 = vrcp.pop %v3360
        %v3425 = vrcp.pop %v3361
        %v3426 = vrcp.pop %v3362
        %v3427 = vrcp.pop %v3363
        %v3428 = vrcp.pop %v3364
        %v3429 = vrcp.pop %v3365
        %v3430 = vrcp.pop %v3366
        %v3431 = vrcp.pop %v3367
        %v3432 = vrcp.pop %v3368
        %v3433 = vrcp.pop %v3369
        %v3434 = vrcp.pop %v3370
        %v3435 = vrcp.pop %v3371
        %v3436 = vrcp.pop %v3372
        %v3437 = vrcp.pop %v3373
        %v3438 = vrcp.pop %v3374
        %v3439 = vrcp.pop %v3375
        %v3440 = vrcp.pop %v3376
        %v3441 = vrcp.pop %v3377
        %v3442 = vrcp.pop %v3378
        %v3443 = vrcp.pop %v3379
        %v3444 = vrcp.pop %v3380
        %v3445 = vrcp.pop %v3381
        %v3446 = vrcp.pop %v3382
        %v3447 = vrcp.pop %v3383
        %v3448 = vrcp.pop %v3384
        %v3449 = vrcp.pop %v3385
        %v3450 = vrcp.pop %v3386
        %v3451 = vrcp.pop %v3387
        %v3452 = vrcp.pop %v3388
        %v3453 = vrcp.pop %v3389
        %v3454 = vrcp.pop %v3390
        %v3455 = vmul.f32 %v3071, %v3391
        %v3456 = vmul.f32 %v3072, %v3392
        %v3457 = vmul.f32 %v3073, %v3393
        %v3458 = vmul.f32 %v3074, %v3394
        %v3459 = vmul.f32 %v3075, %v3395
        %v3460 = vmul.f32 %v3076, %v3396
        %v3461 = vmul.f32 %v3077, %v3397
        %v3462 = vmul.f32 %v3078, %v3398
        %v3463 = vmul.f32 %v3079, %v3399
        %v3464 = vmul.f32 %v3080, %v3400
        %v3465 = vmul.f32 %v3081, %v3401
        %v3466 = vmul.f32 %v3082, %v3402
        %v3467 = vmul.f32 %v3083, %v3403
        %v3468 = vmul.f32 %v3084, %v3404
        %v3469 = vmul.f32 %v3085, %v3405
        %v3470 = vmul.f32 %v3086, %v3406
        %v3471 = vmul.f32 %v3087, %v3407
        %v3472 = vmul.f32 %v3088, %v3408
        %v3473 = vmul.f32 %v3089, %v3409
        %v3474 = vmul.f32 %v3090, %v3410
        %v3475 = vmul.f32 %v3091, %v3411
        %v3476 = vmul.f32 %v3092, %v3412
        %v3477 = vmul.f32 %v3093, %v3413
        %v3478 = vmul.f32 %v3094, %v3414
        %v3479 = vmul.f32 %v3095, %v3415
        %v3480 = vmul.f32 %v3096, %v3416
        %v3481 = vmul.f32 %v3097, %v3417
        %v3482 = vmul.f32 %v3098, %v3418
        %v3483 = vmul.f32 %v3099, %v3419
        %v3484 = vmul.f32 %v3100, %v3420
        %v3485 = vmul.f32 %v3101, %v3421
        %v3486 = vmul.f32 %v3102, %v3422
        %v3487 = vmul.f32 %v3103, %v3423
        %v3488 = vmul.f32 %v3104, %v3424
        %v3489 = vmul.f32 %v3105, %v3425
        %v3490 = vmul.f32 %v3106, %v3426
        %v3491 = vmul.f32 %v3107, %v3427
        %v3492 = vmul.f32 %v3108, %v3428
        %v3493 = vmul.f32 %v3109, %v3429
        %v3494 = vmul.f32 %v3110, %v3430
        %v3495 = vmul.f32 %v3111, %v3431
        %v3496 = vmul.f32 %v3112, %v3432
        %v3497 = vmul.f32 %v3113, %v3433
        %v3498 = vmul.f32 %v3114, %v3434
        %v3499 = vmul.f32 %v3115, %v3435
        %v3500 = vmul.f32 %v3116, %v3436
        %v3501 = vmul.f32 %v3117, %v3437
        %v3502 = vmul.f32 %v3118, %v3438
        %v3503 = vmul.f32 %v3119, %v3439
        %v3504 = vmul.f32 %v3120, %v3440
        %v3505 = vmul.f32 %v3121, %v3441
        %v3506 = vmul.f32 %v3122, %v3442
        %v3507 = vmul.f32 %v3123, %v3443
        %v3508 = vmul.f32 %v3124, %v3444
        %v3509 = vmul.f32 %v3125, %v3445
        %v3510 = vmul.f32 %v3126, %v3446
        %v3511 = vmul.f32 %v3127, %v3447
        %v3512 = vmul.f32 %v3128, %v3448
        %v3513 = vmul.f32 %v3129, %v3449
        %v3514 = vmul.f32 %v3130, %v3450
        %v3515 = vmul.f32 %v3131, %v3451
        %v3516 = vmul.f32 %v3132, %v3452
        %v3517 = vmul.f32 %v3133, %v3453
        %v3518 = vmul.f32 %v3134, %v3454
        %v3519 = vpack.c.bf16 %v3456, %v3455
        %v3520 = vpack.c.bf16 %v3458, %v3457
        %v3521 = vpack.c.bf16 %v3460, %v3459
        %v3522 = vpack.c.bf16 %v3462, %v3461
        %v3523 = vpack.c.bf16 %v3464, %v3463
        %v3524 = vpack.c.bf16 %v3466, %v3465
        %v3525 = vpack.c.bf16 %v3468, %v3467
        %v3526 = vpack.c.bf16 %v3470, %v3469
        %v3527 = vpack.c.bf16 %v3472, %v3471
        %v3528 = vpack.c.bf16 %v3474, %v3473
        %v3529 = vpack.c.bf16 %v3476, %v3475
        %v3530 = vpack.c.bf16 %v3478, %v3477
        %v3531 = vpack.c.bf16 %v3480, %v3479
        %v3532 = vpack.c.bf16 %v3482, %v3481
        %v3533 = vpack.c.bf16 %v3484, %v3483
        %v3534 = vpack.c.bf16 %v3486, %v3485
        %v3535 = vpack.c.bf16 %v3488, %v3487
        %v3536 = vpack.c.bf16 %v3490, %v3489
        %v3537 = vpack.c.bf16 %v3492, %v3491
        %v3538 = vpack.c.bf16 %v3494, %v3493
        %v3539 = vpack.c.bf16 %v3496, %v3495
        %v3540 = vpack.c.bf16 %v3498, %v3497
        %v3541 = vpack.c.bf16 %v3500, %v3499
        %v3542 = vpack.c.bf16 %v3502, %v3501
        %v3543 = vpack.c.bf16 %v3504, %v3503
        %v3544 = vpack.c.bf16 %v3506, %v3505
        %v3545 = vpack.c.bf16 %v3508, %v3507
        %v3546 = vpack.c.bf16 %v3510, %v3509
        %v3547 = vpack.c.bf16 %v3512, %v3511
        %v3548 = vpack.c.bf16 %v3514, %v3513
        %v3549 = vpack.c.bf16 %v3516, %v3515
        %v3550 = vpack.c.bf16 %v3518, %v3517
        %v3551 = vld [vmem:[%s1216] sm:$0xf]
        %v3552 = vld [vmem:[%s1216 + $0x4] sm:$0xf]
        %v3553 = vld [vmem:[%s1216 + $0x8] sm:$0xf]
        %v3554 = vld [vmem:[%s1216 + $0xc] sm:$0xf]
        %v3555 = vld [vmem:[%s1216 + $0x10] sm:$0xf]
        %v3556 = vld [vmem:[%s1216 + $0x14] sm:$0xf]
        %v3557 = vld [vmem:[%s1216 + $0x18] sm:$0xf]
        %v3558 = vld [vmem:[%s1216 + $0x1c] sm:$0xf]
        %v3559 = vld [vmem:[%s1216 + $0x20] sm:$0xf]
        %v3560 = vld [vmem:[%s1216 + $0x24] sm:$0xf]
        %v3561 = vld [vmem:[%s1216 + $0x28] sm:$0xf]
        %v3562 = vld [vmem:[%s1216 + $0x2c] sm:$0xf]
        %v3563 = vld [vmem:[%s1216 + $0x30] sm:$0xf]
        %v3564 = vld [vmem:[%s1216 + $0x34] sm:$0xf]
        %v3565 = vld [vmem:[%s1216 + $0x38] sm:$0xf]
        %v3566 = vld [vmem:[%s1216 + $0x3c] sm:$0xf]
        %v3567 = vld [vmem:[%s1048] sm:$0x1]
        %v3569 = vperm.slane %v3567, 0
        %v3587 = vunpack.c.l.b16 %v3551
        %v3588 = vunpack.c.l.b16 %v3552
        %v3589 = vunpack.c.l.b16 %v3553
        %v3590 = vunpack.c.l.b16 %v3554
        %v3591 = vunpack.c.l.b16 %v3555
        %v3592 = vunpack.c.l.b16 %v3556
        %v3593 = vunpack.c.l.b16 %v3557
        %v3594 = vunpack.c.l.b16 %v3558
        %v3595 = vunpack.c.l.b16 %v3559
        %v3596 = vunpack.c.l.b16 %v3560
        %v3597 = vunpack.c.l.b16 %v3561
        %v3598 = vunpack.c.l.b16 %v3562
        %v3599 = vunpack.c.l.b16 %v3563
        %v3600 = vunpack.c.l.b16 %v3564
        %v3601 = vunpack.c.l.b16 %v3565
        %v3602 = vunpack.c.l.b16 %v3566
        %v3603 = vpack.c.b16 %v3588, %v3587
        %v3604 = vpack.c.b16 %v3590, %v3589
        %v3605 = vpack.c.b16 %v3592, %v3591
        %v3606 = vpack.c.b16 %v3594, %v3593
        %v3607 = vpack.c.b16 %v3596, %v3595
        %v3608 = vpack.c.b16 %v3598, %v3597
        %v3609 = vpack.c.b16 %v3600, %v3599
        %v3610 = vpack.c.b16 %v3602, %v3601
        %3619 = vmatpush.bf16.msra.mxu0 %v3610
        %3620 = vmatpush.bf16.msra.mxu0 %v3609
        %3621 = vmatpush.bf16.msra.mxu0 %v3608
        %3622 = vmatpush.bf16.msra.mxu0 %v3607
        %3623 = vmatpush.bf16.msra.mxu0 %v3606
        %3624 = vmatpush.bf16.msra.mxu0 %v3605
        %3625 = vmatpush.bf16.msra.mxu0 %v3604
        %3626 = vmatpush.bf16.msra.mxu0 %v3603
        %3627 = vmatmul.bf16.gmra.mxu0 %v3519
        %v3628 = vpop.f32.mrf.mxu0
        %v3629 = vadd.f32 %v3569, %v3628
        %v3630 = vpop.f32.mrf.mxu0
        %v3631 = vadd.f32 %v3569, %v3630
        %3632 = vmatmul.bf16.gmra.mxu0 %v3520
        %v3633 = vpop.f32.mrf.mxu0
        %v3634 = vadd.f32 %v3569, %v3633
        %v3635 = vpop.f32.mrf.mxu0
        %v3636 = vadd.f32 %v3569, %v3635
        %3637 = vmatmul.bf16.gmra.mxu0 %v3521
        %v3638 = vpop.f32.mrf.mxu0
        %v3639 = vadd.f32 %v3569, %v3638
        %v3640 = vpop.f32.mrf.mxu0
        %v3641 = vadd.f32 %v3569, %v3640
        %3642 = vmatmul.bf16.gmra.mxu0 %v3522
        %v3643 = vpop.f32.mrf.mxu0
        %v3644 = vadd.f32 %v3569, %v3643
        %v3645 = vpop.f32.mrf.mxu0
        %v3646 = vadd.f32 %v3569, %v3645
        %3647 = vmatmul.bf16.gmra.mxu0 %v3523
        %v3648 = vpop.f32.mrf.mxu0
        %v3649 = vadd.f32 %v3569, %v3648
        %v3650 = vpop.f32.mrf.mxu0
        %v3651 = vadd.f32 %v3569, %v3650
        %3652 = vmatmul.bf16.gmra.mxu0 %v3524
        %v3653 = vpop.f32.mrf.mxu0
        %v3654 = vadd.f32 %v3569, %v3653
        %v3655 = vpop.f32.mrf.mxu0
        %v3656 = vadd.f32 %v3569, %v3655
        %3657 = vmatmul.bf16.gmra.mxu0 %v3525
        %v3658 = vpop.f32.mrf.mxu0
        %v3659 = vadd.f32 %v3569, %v3658
        %v3660 = vpop.f32.mrf.mxu0
        %v3661 = vadd.f32 %v3569, %v3660
        %3662 = vmatmul.bf16.gmra.mxu0 %v3526
        %v3663 = vpop.f32.mrf.mxu0
        %v3664 = vadd.f32 %v3569, %v3663
        %v3665 = vpop.f32.mrf.mxu0
        %v3666 = vadd.f32 %v3569, %v3665
        %3667 = vmatmul.bf16.gmra.mxu0 %v3527
        %v3668 = vpop.f32.mrf.mxu0
        %v3669 = vadd.f32 %v3569, %v3668
        %v3670 = vpop.f32.mrf.mxu0
        %v3671 = vadd.f32 %v3569, %v3670
        %3672 = vmatmul.bf16.gmra.mxu0 %v3528
        %v3673 = vpop.f32.mrf.mxu0
        %v3674 = vadd.f32 %v3569, %v3673
        %v3675 = vpop.f32.mrf.mxu0
        %v3676 = vadd.f32 %v3569, %v3675
        %3677 = vmatmul.bf16.gmra.mxu0 %v3529
        %v3678 = vpop.f32.mrf.mxu0
        %v3679 = vadd.f32 %v3569, %v3678
        %v3680 = vpop.f32.mrf.mxu0
        %v3681 = vadd.f32 %v3569, %v3680
        %3682 = vmatmul.bf16.gmra.mxu0 %v3530
        %v3683 = vpop.f32.mrf.mxu0
        %v3684 = vadd.f32 %v3569, %v3683
        %v3685 = vpop.f32.mrf.mxu0
        %v3686 = vadd.f32 %v3569, %v3685
        %3687 = vmatmul.bf16.gmra.mxu0 %v3531
        %v3688 = vpop.f32.mrf.mxu0
        %v3689 = vadd.f32 %v3569, %v3688
        %v3690 = vpop.f32.mrf.mxu0
        %v3691 = vadd.f32 %v3569, %v3690
        %3692 = vmatmul.bf16.gmra.mxu0 %v3532
        %v3693 = vpop.f32.mrf.mxu0
        %v3694 = vadd.f32 %v3569, %v3693
        %v3695 = vpop.f32.mrf.mxu0
        %v3696 = vadd.f32 %v3569, %v3695
        %3697 = vmatmul.bf16.gmra.mxu0 %v3533
        %v3698 = vpop.f32.mrf.mxu0
        %v3699 = vadd.f32 %v3569, %v3698
        %v3700 = vpop.f32.mrf.mxu0
        %v3701 = vadd.f32 %v3569, %v3700
        %3702 = vmatmul.bf16.gmra.mxu0 %v3534
        %v3703 = vpop.f32.mrf.mxu0
        %v3704 = vadd.f32 %v3569, %v3703
        %v3705 = vpop.f32.mrf.mxu0
        %v3706 = vadd.f32 %v3569, %v3705
        %3707 = vmatmul.bf16.gmra.mxu0 %v3535
        %v3708 = vpop.f32.mrf.mxu0
        %v3709 = vadd.f32 %v3569, %v3708
        %v3710 = vpop.f32.mrf.mxu0
        %v3711 = vadd.f32 %v3569, %v3710
        %3712 = vmatmul.bf16.gmra.mxu0 %v3536
        %v3713 = vpop.f32.mrf.mxu0
        %v3714 = vadd.f32 %v3569, %v3713
        %v3715 = vpop.f32.mrf.mxu0
        %v3716 = vadd.f32 %v3569, %v3715
        %3717 = vmatmul.bf16.gmra.mxu0 %v3537
        %v3718 = vpop.f32.mrf.mxu0
        %v3719 = vadd.f32 %v3569, %v3718
        %v3720 = vpop.f32.mrf.mxu0
        %v3721 = vadd.f32 %v3569, %v3720
        %3722 = vmatmul.bf16.gmra.mxu0 %v3538
        %v3723 = vpop.f32.mrf.mxu0
        %v3724 = vadd.f32 %v3569, %v3723
        %v3725 = vpop.f32.mrf.mxu0
        %v3726 = vadd.f32 %v3569, %v3725
        %3727 = vmatmul.bf16.gmra.mxu0 %v3539
        %v3728 = vpop.f32.mrf.mxu0
        %v3729 = vadd.f32 %v3569, %v3728
        %v3730 = vpop.f32.mrf.mxu0
        %v3731 = vadd.f32 %v3569, %v3730
        %3732 = vmatmul.bf16.gmra.mxu0 %v3540
        %v3733 = vpop.f32.mrf.mxu0
        %v3734 = vadd.f32 %v3569, %v3733
        %v3735 = vpop.f32.mrf.mxu0
        %v3736 = vadd.f32 %v3569, %v3735
        %3737 = vmatmul.bf16.gmra.mxu0 %v3541
        %v3738 = vpop.f32.mrf.mxu0
        %v3739 = vadd.f32 %v3569, %v3738
        %v3740 = vpop.f32.mrf.mxu0
        %v3741 = vadd.f32 %v3569, %v3740
        %3742 = vmatmul.bf16.gmra.mxu0 %v3542
        %v3743 = vpop.f32.mrf.mxu0
        %v3744 = vadd.f32 %v3569, %v3743
        %v3745 = vpop.f32.mrf.mxu0
        %v3746 = vadd.f32 %v3569, %v3745
        %3747 = vmatmul.bf16.gmra.mxu0 %v3543
        %v3748 = vpop.f32.mrf.mxu0
        %v3749 = vadd.f32 %v3569, %v3748
        %v3750 = vpop.f32.mrf.mxu0
        %v3751 = vadd.f32 %v3569, %v3750
        %3752 = vmatmul.bf16.gmra.mxu0 %v3544
        %v3753 = vpop.f32.mrf.mxu0
        %v3754 = vadd.f32 %v3569, %v3753
        %v3755 = vpop.f32.mrf.mxu0
        %v3756 = vadd.f32 %v3569, %v3755
        %3757 = vmatmul.bf16.gmra.mxu0 %v3545
        %v3758 = vpop.f32.mrf.mxu0
        %v3759 = vadd.f32 %v3569, %v3758
        %v3760 = vpop.f32.mrf.mxu0
        %v3761 = vadd.f32 %v3569, %v3760
        %3762 = vmatmul.bf16.gmra.mxu0 %v3546
        %v3763 = vpop.f32.mrf.mxu0
        %v3764 = vadd.f32 %v3569, %v3763
        %v3765 = vpop.f32.mrf.mxu0
        %v3766 = vadd.f32 %v3569, %v3765
        %3767 = vmatmul.bf16.gmra.mxu0 %v3547
        %v3768 = vpop.f32.mrf.mxu0
        %v3769 = vadd.f32 %v3569, %v3768
        %v3770 = vpop.f32.mrf.mxu0
        %v3771 = vadd.f32 %v3569, %v3770
        %3772 = vmatmul.bf16.gmra.mxu0 %v3548
        %v3773 = vpop.f32.mrf.mxu0
        %v3774 = vadd.f32 %v3569, %v3773
        %v3775 = vpop.f32.mrf.mxu0
        %v3776 = vadd.f32 %v3569, %v3775
        %3777 = vmatmul.bf16.gmra.mxu0 %v3549
        %v3778 = vpop.f32.mrf.mxu0
        %v3779 = vadd.f32 %v3569, %v3778
        %v3780 = vpop.f32.mrf.mxu0
        %v3781 = vadd.f32 %v3569, %v3780
        %3782 = vmatmul.bf16.gmra.mxu0 %v3550
        %v3783 = vpop.f32.mrf.mxu0
        %v3784 = vadd.f32 %v3569, %v3783
        %v3785 = vpop.f32.mrf.mxu0
        %v3786 = vadd.f32 %v3569, %v3785
        %3787 = vdwg.mxu0
        %v3788 = vsub.f32 0.0, %v3629
        %v3789 = vsub.f32 0.0, %v3631
        %v3790 = vsub.f32 0.0, %v3634
        %v3791 = vsub.f32 0.0, %v3636
        %v3792 = vsub.f32 0.0, %v3639
        %v3793 = vsub.f32 0.0, %v3641
        %v3794 = vsub.f32 0.0, %v3644
        %v3795 = vsub.f32 0.0, %v3646
        %v3796 = vsub.f32 0.0, %v3649
        %v3797 = vsub.f32 0.0, %v3651
        %v3798 = vsub.f32 0.0, %v3654
        %v3799 = vsub.f32 0.0, %v3656
        %v3800 = vsub.f32 0.0, %v3659
        %v3801 = vsub.f32 0.0, %v3661
        %v3802 = vsub.f32 0.0, %v3664
        %v3803 = vsub.f32 0.0, %v3666
        %v3804 = vsub.f32 0.0, %v3669
        %v3805 = vsub.f32 0.0, %v3671
        %v3806 = vsub.f32 0.0, %v3674
        %v3807 = vsub.f32 0.0, %v3676
        %v3808 = vsub.f32 0.0, %v3679
        %v3809 = vsub.f32 0.0, %v3681
        %v3810 = vsub.f32 0.0, %v3684
        %v3811 = vsub.f32 0.0, %v3686
        %v3812 = vsub.f32 0.0, %v3689
        %v3813 = vsub.f32 0.0, %v3691
        %v3814 = vsub.f32 0.0, %v3694
        %v3815 = vsub.f32 0.0, %v3696
        %v3816 = vsub.f32 0.0, %v3699
        %v3817 = vsub.f32 0.0, %v3701
        %v3818 = vsub.f32 0.0, %v3704
        %v3819 = vsub.f32 0.0, %v3706
        %v3820 = vsub.f32 0.0, %v3709
        %v3821 = vsub.f32 0.0, %v3711
        %v3822 = vsub.f32 0.0, %v3714
        %v3823 = vsub.f32 0.0, %v3716
        %v3824 = vsub.f32 0.0, %v3719
        %v3825 = vsub.f32 0.0, %v3721
        %v3826 = vsub.f32 0.0, %v3724
        %v3827 = vsub.f32 0.0, %v3726
        %v3828 = vsub.f32 0.0, %v3729
        %v3829 = vsub.f32 0.0, %v3731
        %v3830 = vsub.f32 0.0, %v3734
        %v3831 = vsub.f32 0.0, %v3736
        %v3832 = vsub.f32 0.0, %v3739
        %v3833 = vsub.f32 0.0, %v3741
        %v3834 = vsub.f32 0.0, %v3744
        %v3835 = vsub.f32 0.0, %v3746
        %v3836 = vsub.f32 0.0, %v3749
        %v3837 = vsub.f32 0.0, %v3751
        %v3838 = vsub.f32 0.0, %v3754
        %v3839 = vsub.f32 0.0, %v3756
        %v3840 = vsub.f32 0.0, %v3759
        %v3841 = vsub.f32 0.0, %v3761
        %v3842 = vsub.f32 0.0, %v3764
        %v3843 = vsub.f32 0.0, %v3766
        %v3844 = vsub.f32 0.0, %v3769
        %v3845 = vsub.f32 0.0, %v3771
        %v3846 = vsub.f32 0.0, %v3774
        %v3847 = vsub.f32 0.0, %v3776
        %v3848 = vsub.f32 0.0, %v3779
        %v3849 = vsub.f32 0.0, %v3781
        %v3850 = vsub.f32 0.0, %v3784
        %v3851 = vsub.f32 0.0, %v3786
        %v3852 = vmul.f32 %v3788, 1.442695
        %v3853 = vpow.pop %v3852
        %v3854 = vmul.f32 %v3789, 1.442695
        %v3855 = vpow.pop %v3854
        %v3856 = vmul.f32 %v3790, 1.442695
        %v3857 = vpow.pop %v3856
        %v3858 = vmul.f32 %v3791, 1.442695
        %v3859 = vpow.pop %v3858
        %v3860 = vmul.f32 %v3792, 1.442695
        %v3861 = vpow.pop %v3860
        %v3862 = vmul.f32 %v3793, 1.442695
        %v3863 = vpow.pop %v3862
        %v3864 = vmul.f32 %v3794, 1.442695
        %v3865 = vpow.pop %v3864
        %v3866 = vmul.f32 %v3795, 1.442695
        %v3867 = vpow.pop %v3866
        %v3868 = vmul.f32 %v3796, 1.442695
        %v3869 = vpow.pop %v3868
        %v3870 = vmul.f32 %v3797, 1.442695
        %v3871 = vpow.pop %v3870
        %v3872 = vmul.f32 %v3798, 1.442695
        %v3873 = vpow.pop %v3872
        %v3874 = vmul.f32 %v3799, 1.442695
        %v3875 = vpow.pop %v3874
        %v3876 = vmul.f32 %v3800, 1.442695
        %v3877 = vpow.pop %v3876
        %v3878 = vmul.f32 %v3801, 1.442695
        %v3879 = vpow.pop %v3878
        %v3880 = vmul.f32 %v3802, 1.442695
        %v3881 = vpow.pop %v3880
        %v3882 = vmul.f32 %v3803, 1.442695
        %v3883 = vpow.pop %v3882
        %v3884 = vmul.f32 %v3804, 1.442695
        %v3885 = vpow.pop %v3884
        %v3886 = vmul.f32 %v3805, 1.442695
        %v3887 = vpow.pop %v3886
        %v3888 = vmul.f32 %v3806, 1.442695
        %v3889 = vpow.pop %v3888
        %v3890 = vmul.f32 %v3807, 1.442695
        %v3891 = vpow.pop %v3890
        %v3892 = vmul.f32 %v3808, 1.442695
        %v3893 = vpow.pop %v3892
        %v3894 = vmul.f32 %v3809, 1.442695
        %v3895 = vpow.pop %v3894
        %v3896 = vmul.f32 %v3810, 1.442695
        %v3897 = vpow.pop %v3896
        %v3898 = vmul.f32 %v3811, 1.442695
        %v3899 = vpow.pop %v3898
        %v3900 = vmul.f32 %v3812, 1.442695
        %v3901 = vpow.pop %v3900
        %v3902 = vmul.f32 %v3813, 1.442695
        %v3903 = vpow.pop %v3902
        %v3904 = vmul.f32 %v3814, 1.442695
        %v3905 = vpow.pop %v3904
        %v3906 = vmul.f32 %v3815, 1.442695
        %v3907 = vpow.pop %v3906
        %v3908 = vmul.f32 %v3816, 1.442695
        %v3909 = vpow.pop %v3908
        %v3910 = vmul.f32 %v3817, 1.442695
        %v3911 = vpow.pop %v3910
        %v3912 = vmul.f32 %v3818, 1.442695
        %v3913 = vpow.pop %v3912
        %v3914 = vmul.f32 %v3819, 1.442695
        %v3915 = vpow.pop %v3914
        %v3916 = vmul.f32 %v3820, 1.442695
        %v3917 = vpow.pop %v3916
        %v3918 = vmul.f32 %v3821, 1.442695
        %v3919 = vpow.pop %v3918
        %v3920 = vmul.f32 %v3822, 1.442695
        %v3921 = vpow.pop %v3920
        %v3922 = vmul.f32 %v3823, 1.442695
        %v3923 = vpow.pop %v3922
        %v3924 = vmul.f32 %v3824, 1.442695
        %v3925 = vpow.pop %v3924
        %v3926 = vmul.f32 %v3825, 1.442695
        %v3927 = vpow.pop %v3926
        %v3928 = vmul.f32 %v3826, 1.442695
        %v3929 = vpow.pop %v3928
        %v3930 = vmul.f32 %v3827, 1.442695
        %v3931 = vpow.pop %v3930
        %v3932 = vmul.f32 %v3828, 1.442695
        %v3933 = vpow.pop %v3932
        %v3934 = vmul.f32 %v3829, 1.442695
        %v3935 = vpow.pop %v3934
        %v3936 = vmul.f32 %v3830, 1.442695
        %v3937 = vpow.pop %v3936
        %v3938 = vmul.f32 %v3831, 1.442695
        %v3939 = vpow.pop %v3938
        %v3940 = vmul.f32 %v3832, 1.442695
        %v3941 = vpow.pop %v3940
        %v3942 = vmul.f32 %v3833, 1.442695
        %v3943 = vpow.pop %v3942
        %v3944 = vmul.f32 %v3834, 1.442695
        %v3945 = vpow.pop %v3944
        %v3946 = vmul.f32 %v3835, 1.442695
        %v3947 = vpow.pop %v3946
        %v3948 = vmul.f32 %v3836, 1.442695
        %v3949 = vpow.pop %v3948
        %v3950 = vmul.f32 %v3837, 1.442695
        %v3951 = vpow.pop %v3950
        %v3952 = vmul.f32 %v3838, 1.442695
        %v3953 = vpow.pop %v3952
        %v3954 = vmul.f32 %v3839, 1.442695
        %v3955 = vpow.pop %v3954
        %v3956 = vmul.f32 %v3840, 1.442695
        %v3957 = vpow.pop %v3956
        %v3958 = vmul.f32 %v3841, 1.442695
        %v3959 = vpow.pop %v3958
        %v3960 = vmul.f32 %v3842, 1.442695
        %v3961 = vpow.pop %v3960
        %v3962 = vmul.f32 %v3843, 1.442695
        %v3963 = vpow.pop %v3962
        %v3964 = vmul.f32 %v3844, 1.442695
        %v3965 = vpow.pop %v3964
        %v3966 = vmul.f32 %v3845, 1.442695
        %v3967 = vpow.pop %v3966
        %v3968 = vmul.f32 %v3846, 1.442695
        %v3969 = vpow.pop %v3968
        %v3970 = vmul.f32 %v3847, 1.442695
        %v3971 = vpow.pop %v3970
        %v3972 = vmul.f32 %v3848, 1.442695
        %v3973 = vpow.pop %v3972
        %v3974 = vmul.f32 %v3849, 1.442695
        %v3975 = vpow.pop %v3974
        %v3976 = vmul.f32 %v3850, 1.442695
        %v3977 = vpow.pop %v3976
        %v3978 = vmul.f32 %v3851, 1.442695
        %v3979 = vpow.pop %v3978
        %v3980 = vadd.f32 %v3853, 1.0
        %v3981 = vadd.f32 %v3855, 1.0
        %v3982 = vadd.f32 %v3857, 1.0
        %v3983 = vadd.f32 %v3859, 1.0
        %v3984 = vadd.f32 %v3861, 1.0
        %v3985 = vadd.f32 %v3863, 1.0
        %v3986 = vadd.f32 %v3865, 1.0
        %v3987 = vadd.f32 %v3867, 1.0
        %v3988 = vadd.f32 %v3869, 1.0
        %v3989 = vadd.f32 %v3871, 1.0
        %v3990 = vadd.f32 %v3873, 1.0
        %v3991 = vadd.f32 %v3875, 1.0
        %v3992 = vadd.f32 %v3877, 1.0
        %v3993 = vadd.f32 %v3879, 1.0
        %v3994 = vadd.f32 %v3881, 1.0
        %v3995 = vadd.f32 %v3883, 1.0
        %v3996 = vadd.f32 %v3885, 1.0
        %v3997 = vadd.f32 %v3887, 1.0
        %v3998 = vadd.f32 %v3889, 1.0
        %v3999 = vadd.f32 %v3891, 1.0
        %v4000 = vadd.f32 %v3893, 1.0
        %v4001 = vadd.f32 %v3895, 1.0
        %v4002 = vadd.f32 %v3897, 1.0
        %v4003 = vadd.f32 %v3899, 1.0
        %v4004 = vadd.f32 %v3901, 1.0
        %v4005 = vadd.f32 %v3903, 1.0
        %v4006 = vadd.f32 %v3905, 1.0
        %v4007 = vadd.f32 %v3907, 1.0
        %v4008 = vadd.f32 %v3909, 1.0
        %v4009 = vadd.f32 %v3911, 1.0
        %v4010 = vadd.f32 %v3913, 1.0
        %v4011 = vadd.f32 %v3915, 1.0
        %v4012 = vadd.f32 %v3917, 1.0
        %v4013 = vadd.f32 %v3919, 1.0
        %v4014 = vadd.f32 %v3921, 1.0
        %v4015 = vadd.f32 %v3923, 1.0
        %v4016 = vadd.f32 %v3925, 1.0
        %v4017 = vadd.f32 %v3927, 1.0
        %v4018 = vadd.f32 %v3929, 1.0
        %v4019 = vadd.f32 %v3931, 1.0
        %v4020 = vadd.f32 %v3933, 1.0
        %v4021 = vadd.f32 %v3935, 1.0
        %v4022 = vadd.f32 %v3937, 1.0
        %v4023 = vadd.f32 %v3939, 1.0
        %v4024 = vadd.f32 %v3941, 1.0
        %v4025 = vadd.f32 %v3943, 1.0
        %v4026 = vadd.f32 %v3945, 1.0
        %v4027 = vadd.f32 %v3947, 1.0
        %v4028 = vadd.f32 %v3949, 1.0
        %v4029 = vadd.f32 %v3951, 1.0
        %v4030 = vadd.f32 %v3953, 1.0
        %v4031 = vadd.f32 %v3955, 1.0
        %v4032 = vadd.f32 %v3957, 1.0
        %v4033 = vadd.f32 %v3959, 1.0
        %v4034 = vadd.f32 %v3961, 1.0
        %v4035 = vadd.f32 %v3963, 1.0
        %v4036 = vadd.f32 %v3965, 1.0
        %v4037 = vadd.f32 %v3967, 1.0
        %v4038 = vadd.f32 %v3969, 1.0
        %v4039 = vadd.f32 %v3971, 1.0
        %v4040 = vadd.f32 %v3973, 1.0
        %v4041 = vadd.f32 %v3975, 1.0
        %v4042 = vadd.f32 %v3977, 1.0
        %v4043 = vadd.f32 %v3979, 1.0
        %v4044 = vrcp.pop %v3980
        %v4045 = vrcp.pop %v3981
        %v4046 = vrcp.pop %v3982
        %v4047 = vrcp.pop %v3983
        %v4048 = vrcp.pop %v3984
        %v4049 = vrcp.pop %v3985
        %v4050 = vrcp.pop %v3986
        %v4051 = vrcp.pop %v3987
        %v4052 = vrcp.pop %v3988
        %v4053 = vrcp.pop %v3989
        %v4054 = vrcp.pop %v3990
        %v4055 = vrcp.pop %v3991
        %v4056 = vrcp.pop %v3992
        %v4057 = vrcp.pop %v3993
        %v4058 = vrcp.pop %v3994
        %v4059 = vrcp.pop %v3995
        %v4060 = vrcp.pop %v3996
        %v4061 = vrcp.pop %v3997
        %v4062 = vrcp.pop %v3998
        %v4063 = vrcp.pop %v3999
        %v4064 = vrcp.pop %v4000
        %v4065 = vrcp.pop %v4001
        %v4066 = vrcp.pop %v4002
        %v4067 = vrcp.pop %v4003
        %v4068 = vrcp.pop %v4004
        %v4069 = vrcp.pop %v4005
        %v4070 = vrcp.pop %v4006
        %v4071 = vrcp.pop %v4007
        %v4072 = vrcp.pop %v4008
        %v4073 = vrcp.pop %v4009
        %v4074 = vrcp.pop %v4010
        %v4075 = vrcp.pop %v4011
        %v4076 = vrcp.pop %v4012
        %v4077 = vrcp.pop %v4013
        %v4078 = vrcp.pop %v4014
        %v4079 = vrcp.pop %v4015
        %v4080 = vrcp.pop %v4016
        %v4081 = vrcp.pop %v4017
        %v4082 = vrcp.pop %v4018
        %v4083 = vrcp.pop %v4019
        %v4084 = vrcp.pop %v4020
        %v4085 = vrcp.pop %v4021
        %v4086 = vrcp.pop %v4022
        %v4087 = vrcp.pop %v4023
        %v4088 = vrcp.pop %v4024
        %v4089 = vrcp.pop %v4025
        %v4090 = vrcp.pop %v4026
        %v4091 = vrcp.pop %v4027
        %v4092 = vrcp.pop %v4028
        %v4093 = vrcp.pop %v4029
        %v4094 = vrcp.pop %v4030
        %v4095 = vrcp.pop %v4031
        %v4096 = vrcp.pop %v4032
        %v4097 = vrcp.pop %v4033
        %v4098 = vrcp.pop %v4034
        %v4099 = vrcp.pop %v4035
        %v4100 = vrcp.pop %v4036
        %v4101 = vrcp.pop %v4037
        %v4102 = vrcp.pop %v4038
        %v4103 = vrcp.pop %v4039
        %v4104 = vrcp.pop %v4040
        %v4105 = vrcp.pop %v4041
        %v4106 = vrcp.pop %v4042
        %v4107 = vrcp.pop %v4043
        %v4108 = vmul.f32 %v3629, %v4044
        %v4109 = vmul.f32 %v3631, %v4045
        %v4110 = vmul.f32 %v3634, %v4046
        %v4111 = vmul.f32 %v3636, %v4047
        %v4112 = vmul.f32 %v3639, %v4048
        %v4113 = vmul.f32 %v3641, %v4049
        %v4114 = vmul.f32 %v3644, %v4050
        %v4115 = vmul.f32 %v3646, %v4051
        %v4116 = vmul.f32 %v3649, %v4052
        %v4117 = vmul.f32 %v3651, %v4053
        %v4118 = vmul.f32 %v3654, %v4054
        %v4119 = vmul.f32 %v3656, %v4055
        %v4120 = vmul.f32 %v3659, %v4056
        %v4121 = vmul.f32 %v3661, %v4057
        %v4122 = vmul.f32 %v3664, %v4058
        %v4123 = vmul.f32 %v3666, %v4059
        %v4124 = vmul.f32 %v3669, %v4060
        %v4125 = vmul.f32 %v3671, %v4061
        %v4126 = vmul.f32 %v3674, %v4062
        %v4127 = vmul.f32 %v3676, %v4063
        %v4128 = vmul.f32 %v3679, %v4064
        %v4129 = vmul.f32 %v3681, %v4065
        %v4130 = vmul.f32 %v3684, %v4066
        %v4131 = vmul.f32 %v3686, %v4067
        %v4132 = vmul.f32 %v3689, %v4068
        %v4133 = vmul.f32 %v3691, %v4069
        %v4134 = vmul.f32 %v3694, %v4070
        %v4135 = vmul.f32 %v3696, %v4071
        %v4136 = vmul.f32 %v3699, %v4072
        %v4137 = vmul.f32 %v3701, %v4073
        %v4138 = vmul.f32 %v3704, %v4074
        %v4139 = vmul.f32 %v3706, %v4075
        %v4140 = vmul.f32 %v3709, %v4076
        %v4141 = vmul.f32 %v3711, %v4077
        %v4142 = vmul.f32 %v3714, %v4078
        %v4143 = vmul.f32 %v3716, %v4079
        %v4144 = vmul.f32 %v3719, %v4080
        %v4145 = vmul.f32 %v3721, %v4081
        %v4146 = vmul.f32 %v3724, %v4082
        %v4147 = vmul.f32 %v3726, %v4083
        %v4148 = vmul.f32 %v3729, %v4084
        %v4149 = vmul.f32 %v3731, %v4085
        %v4150 = vmul.f32 %v3734, %v4086
        %v4151 = vmul.f32 %v3736, %v4087
        %v4152 = vmul.f32 %v3739, %v4088
        %v4153 = vmul.f32 %v3741, %v4089
        %v4154 = vmul.f32 %v3744, %v4090
        %v4155 = vmul.f32 %v3746, %v4091
        %v4156 = vmul.f32 %v3749, %v4092
        %v4157 = vmul.f32 %v3751, %v4093
        %v4158 = vmul.f32 %v3754, %v4094
        %v4159 = vmul.f32 %v3756, %v4095
        %v4160 = vmul.f32 %v3759, %v4096
        %v4161 = vmul.f32 %v3761, %v4097
        %v4162 = vmul.f32 %v3764, %v4098
        %v4163 = vmul.f32 %v3766, %v4099
        %v4164 = vmul.f32 %v3769, %v4100
        %v4165 = vmul.f32 %v3771, %v4101
        %v4166 = vmul.f32 %v3774, %v4102
        %v4167 = vmul.f32 %v3776, %v4103
        %v4168 = vmul.f32 %v3779, %v4104
        %v4169 = vmul.f32 %v3781, %v4105
        %v4170 = vmul.f32 %v3784, %v4106
        %v4171 = vmul.f32 %v3786, %v4107
        %v4172 = vld [vmem:[#allocation3] sm:$0xff]
        %v4173 = vld [vmem:[#allocation3 + $0x8] sm:$0xff]
        %v4174 = vld [vmem:[#allocation3 + $0x10] sm:$0xff]
        %v4175 = vld [vmem:[#allocation3 + $0x18] sm:$0xff]
        %v4176 = vld [vmem:[#allocation3 + $0x20] sm:$0xff]
        %v4177 = vld [vmem:[#allocation3 + $0x28] sm:$0xff]
        %v4178 = vld [vmem:[#allocation3 + $0x30] sm:$0xff]
        %v4179 = vld [vmem:[#allocation3 + $0x38] sm:$0xff]
        %v4180 = vld [vmem:[#allocation3 + $0x40] sm:$0xff]
        %v4181 = vld [vmem:[#allocation3 + $0x48] sm:$0xff]
        %v4182 = vld [vmem:[#allocation3 + $0x50] sm:$0xff]
        %v4183 = vld [vmem:[#allocation3 + $0x58] sm:$0xff]
        %v4184 = vld [vmem:[#allocation3 + $0x60] sm:$0xff]
        %v4185 = vld [vmem:[#allocation3 + $0x68] sm:$0xff]
        %v4186 = vld [vmem:[#allocation3 + $0x70] sm:$0xff]
        %v4187 = vld [vmem:[#allocation3 + $0x78] sm:$0xff]
        %v4188 = vld [vmem:[#allocation3 + $0x80] sm:$0xff]
        %v4189 = vld [vmem:[#allocation3 + $0x88] sm:$0xff]
        %v4190 = vld [vmem:[#allocation3 + $0x90] sm:$0xff]
        %v4191 = vld [vmem:[#allocation3 + $0x98] sm:$0xff]
        %v4192 = vld [vmem:[#allocation3 + $0xa0] sm:$0xff]
        %v4193 = vld [vmem:[#allocation3 + $0xa8] sm:$0xff]
        %v4194 = vld [vmem:[#allocation3 + $0xb0] sm:$0xff]
        %v4195 = vld [vmem:[#allocation3 + $0xb8] sm:$0xff]
        %v4196 = vld [vmem:[#allocation3 + $0xc0] sm:$0xff]
        %v4197 = vld [vmem:[#allocation3 + $0xc8] sm:$0xff]
        %v4198 = vld [vmem:[#allocation3 + $0xd0] sm:$0xff]
        %v4199 = vld [vmem:[#allocation3 + $0xd8] sm:$0xff]
        %v4200 = vld [vmem:[#allocation3 + $0xe0] sm:$0xff]
        %v4201 = vld [vmem:[#allocation3 + $0xe8] sm:$0xff]
        %v4202 = vld [vmem:[#allocation3 + $0xf0] sm:$0xff]
        %v4203 = vld [vmem:[#allocation3 + $0xf8] sm:$0xff]
        %v4204 = vpack.c.bf16 %v4109, %v4108
        %v4205 = vpack.c.bf16 %v4111, %v4110
        %v4206 = vpack.c.bf16 %v4113, %v4112
        %v4207 = vpack.c.bf16 %v4115, %v4114
        %v4208 = vpack.c.bf16 %v4117, %v4116
        %v4209 = vpack.c.bf16 %v4119, %v4118
        %v4210 = vpack.c.bf16 %v4121, %v4120
        %v4211 = vpack.c.bf16 %v4123, %v4122
        %v4212 = vpack.c.bf16 %v4125, %v4124
        %v4213 = vpack.c.bf16 %v4127, %v4126
        %v4214 = vpack.c.bf16 %v4129, %v4128
        %v4215 = vpack.c.bf16 %v4131, %v4130
        %v4216 = vpack.c.bf16 %v4133, %v4132
        %v4217 = vpack.c.bf16 %v4135, %v4134
        %v4218 = vpack.c.bf16 %v4137, %v4136
        %v4219 = vpack.c.bf16 %v4139, %v4138
        %v4220 = vpack.c.bf16 %v4141, %v4140
        %v4221 = vpack.c.bf16 %v4143, %v4142
        %v4222 = vpack.c.bf16 %v4145, %v4144
        %v4223 = vpack.c.bf16 %v4147, %v4146
        %v4224 = vpack.c.bf16 %v4149, %v4148
        %v4225 = vpack.c.bf16 %v4151, %v4150
        %v4226 = vpack.c.bf16 %v4153, %v4152
        %v4227 = vpack.c.bf16 %v4155, %v4154
        %v4228 = vpack.c.bf16 %v4157, %v4156
        %v4229 = vpack.c.bf16 %v4159, %v4158
        %v4230 = vpack.c.bf16 %v4161, %v4160
        %v4231 = vpack.c.bf16 %v4163, %v4162
        %v4232 = vpack.c.bf16 %v4165, %v4164
        %v4233 = vpack.c.bf16 %v4167, %v4166
        %v4234 = vpack.c.bf16 %v4169, %v4168
        %v4235 = vpack.c.bf16 %v4171, %v4170
        %v4268 = vunpack.c.l.b16 %v4172
        %v4269 = vunpack.c.h.b16 %v4172
        %v4270 = vunpack.c.l.b16 %v4173
        %v4271 = vunpack.c.h.b16 %v4173
        %v4272 = vunpack.c.l.b16 %v4174
        %v4273 = vunpack.c.h.b16 %v4174
        %v4274 = vunpack.c.l.b16 %v4175
        %v4275 = vunpack.c.h.b16 %v4175
        %v4276 = vunpack.c.l.b16 %v4176
        %v4277 = vunpack.c.h.b16 %v4176
        %v4278 = vunpack.c.l.b16 %v4177
        %v4279 = vunpack.c.h.b16 %v4177
        %v4280 = vunpack.c.l.b16 %v4178
        %v4281 = vunpack.c.h.b16 %v4178
        %v4282 = vunpack.c.l.b16 %v4179
        %v4283 = vunpack.c.h.b16 %v4179
        %v4284 = vunpack.c.l.b16 %v4180
        %v4285 = vunpack.c.h.b16 %v4180
        %v4286 = vunpack.c.l.b16 %v4181
        %v4287 = vunpack.c.h.b16 %v4181
        %v4288 = vunpack.c.l.b16 %v4182
        %v4289 = vunpack.c.h.b16 %v4182
        %v4290 = vunpack.c.l.b16 %v4183
        %v4291 = vunpack.c.h.b16 %v4183
        %v4292 = vunpack.c.l.b16 %v4184
        %v4293 = vunpack.c.h.b16 %v4184
        %v4294 = vunpack.c.l.b16 %v4185
        %v4295 = vunpack.c.h.b16 %v4185
        %v4296 = vunpack.c.l.b16 %v4186
        %v4297 = vunpack.c.h.b16 %v4186
        %v4298 = vunpack.c.l.b16 %v4187
        %v4299 = vunpack.c.h.b16 %v4187
        %v4300 = vunpack.c.l.b16 %v4188
        %v4301 = vunpack.c.h.b16 %v4188
        %v4302 = vunpack.c.l.b16 %v4189
        %v4303 = vunpack.c.h.b16 %v4189
        %v4304 = vunpack.c.l.b16 %v4190
        %v4305 = vunpack.c.h.b16 %v4190
        %v4306 = vunpack.c.l.b16 %v4191
        %v4307 = vunpack.c.h.b16 %v4191
        %v4308 = vunpack.c.l.b16 %v4192
        %v4309 = vunpack.c.h.b16 %v4192
        %v4310 = vunpack.c.l.b16 %v4193
        %v4311 = vunpack.c.h.b16 %v4193
        %v4312 = vunpack.c.l.b16 %v4194
        %v4313 = vunpack.c.h.b16 %v4194
        %v4314 = vunpack.c.l.b16 %v4195
        %v4315 = vunpack.c.h.b16 %v4195
        %v4316 = vunpack.c.l.b16 %v4196
        %v4317 = vunpack.c.h.b16 %v4196
        %v4318 = vunpack.c.l.b16 %v4197
        %v4319 = vunpack.c.h.b16 %v4197
        %v4320 = vunpack.c.l.b16 %v4198
        %v4321 = vunpack.c.h.b16 %v4198
        %v4322 = vunpack.c.l.b16 %v4199
        %v4323 = vunpack.c.h.b16 %v4199
        %v4324 = vunpack.c.l.b16 %v4200
        %v4325 = vunpack.c.h.b16 %v4200
        %v4326 = vunpack.c.l.b16 %v4201
        %v4327 = vunpack.c.h.b16 %v4201
        %v4328 = vunpack.c.l.b16 %v4202
        %v4329 = vunpack.c.h.b16 %v4202
        %v4330 = vunpack.c.l.b16 %v4203
        %v4331 = vunpack.c.h.b16 %v4203
        %v4332 = vpack.c.b16 %v4272, %v4268
        %v4333 = vpack.c.b16 %v4273, %v4269
        %v4334 = vpack.c.b16 %v4274, %v4270
        %v4335 = vpack.c.b16 %v4275, %v4271
        %v4336 = vpack.c.b16 %v4280, %v4276
        %v4337 = vpack.c.b16 %v4281, %v4277
        %v4338 = vpack.c.b16 %v4282, %v4278
        %v4339 = vpack.c.b16 %v4283, %v4279
        %v4340 = vpack.c.b16 %v4288, %v4284
        %v4341 = vpack.c.b16 %v4289, %v4285
        %v4342 = vpack.c.b16 %v4290, %v4286
        %v4343 = vpack.c.b16 %v4291, %v4287
        %v4344 = vpack.c.b16 %v4296, %v4292
        %v4345 = vpack.c.b16 %v4297, %v4293
        %v4346 = vpack.c.b16 %v4298, %v4294
        %v4347 = vpack.c.b16 %v4299, %v4295
        %v4348 = vpack.c.b16 %v4304, %v4300
        %v4349 = vpack.c.b16 %v4305, %v4301
        %v4350 = vpack.c.b16 %v4306, %v4302
        %v4351 = vpack.c.b16 %v4307, %v4303
        %v4352 = vpack.c.b16 %v4312, %v4308
        %v4353 = vpack.c.b16 %v4313, %v4309
        %v4354 = vpack.c.b16 %v4314, %v4310
        %v4355 = vpack.c.b16 %v4315, %v4311
        %v4356 = vpack.c.b16 %v4320, %v4316
        %v4357 = vpack.c.b16 %v4321, %v4317
        %v4358 = vpack.c.b16 %v4322, %v4318
        %v4359 = vpack.c.b16 %v4323, %v4319
        %v4360 = vpack.c.b16 %v4328, %v4324
        %v4361 = vpack.c.b16 %v4329, %v4325
        %v4362 = vpack.c.b16 %v4330, %v4326
        %v4363 = vpack.c.b16 %v4331, %v4327
        %4396 = vmatpush.bf16.msra.mxu0 %v4211
        %4397 = vmatpush.bf16.msra.mxu0 %v4210
        %4398 = vmatpush.bf16.msra.mxu0 %v4209
        %4399 = vmatpush.bf16.msra.mxu0 %v4208
        %4400 = vmatpush.bf16.msra.mxu0 %v4207
        %4401 = vmatpush.bf16.msra.mxu0 %v4206
        %4402 = vmatpush.bf16.msra.mxu0 %v4205
        %4403 = vmatpush.bf16.msra.mxu0 %v4204
        %4404 = vmatmul.bf16.gmra.mxu0 %v4332
        %v4405 = vpop.f32.mrf.mxu0
        %v4406 = vadd.f32 0.0, %v4405
        %v4407 = vpop.f32.mrf.mxu0
        %v4408 = vadd.f32 0.0, %v4407
        %4409 = vmatmul.bf16.gmra.mxu0 %v4336
        %v4410 = vpop.f32.mrf.mxu0
        %v4411 = vadd.f32 0.0, %v4410
        %v4412 = vpop.f32.mrf.mxu0
        %v4413 = vadd.f32 0.0, %v4412
        %4414 = vmatmul.bf16.gmra.mxu0 %v4340
        %v4415 = vpop.f32.mrf.mxu0
        %v4416 = vadd.f32 0.0, %v4415
        %v4417 = vpop.f32.mrf.mxu0
        %v4418 = vadd.f32 0.0, %v4417
        %4419 = vmatmul.bf16.gmra.mxu0 %v4344
        %v4420 = vpop.f32.mrf.mxu0
        %v4421 = vadd.f32 0.0, %v4420
        %v4422 = vpop.f32.mrf.mxu0
        %v4423 = vadd.f32 0.0, %v4422
        %4424 = vmatmul.bf16.gmra.mxu0 %v4348
        %v4425 = vpop.f32.mrf.mxu0
        %v4426 = vadd.f32 0.0, %v4425
        %v4427 = vpop.f32.mrf.mxu0
        %v4428 = vadd.f32 0.0, %v4427
        %4429 = vmatmul.bf16.gmra.mxu0 %v4352
        %v4430 = vpop.f32.mrf.mxu0
        %v4431 = vadd.f32 0.0, %v4430
        %v4432 = vpop.f32.mrf.mxu0
        %v4433 = vadd.f32 0.0, %v4432
        %4434 = vmatmul.bf16.gmra.mxu0 %v4356
        %v4435 = vpop.f32.mrf.mxu0
        %v4436 = vadd.f32 0.0, %v4435
        %v4437 = vpop.f32.mrf.mxu0
        %v4438 = vadd.f32 0.0, %v4437
        %4439 = vmatmul.bf16.gmra.mxu0 %v4360
        %v4440 = vpop.f32.mrf.mxu0
        %v4441 = vadd.f32 0.0, %v4440
        %v4442 = vpop.f32.mrf.mxu0
        %v4443 = vadd.f32 0.0, %v4442
        %4444 = vdwg.mxu0
        %4445 = vmatpush.bf16.msra.mxu0 %v4219
        %4446 = vmatpush.bf16.msra.mxu0 %v4218
        %4447 = vmatpush.bf16.msra.mxu0 %v4217
        %4448 = vmatpush.bf16.msra.mxu0 %v4216
        %4449 = vmatpush.bf16.msra.mxu0 %v4215
        %4450 = vmatpush.bf16.msra.mxu0 %v4214
        %4451 = vmatpush.bf16.msra.mxu0 %v4213
        %4452 = vmatpush.bf16.msra.mxu0 %v4212
        %4453 = vmatmul.bf16.gmra.mxu0 %v4333
        %v4454 = vpop.f32.mrf.mxu0
        %v4455 = vadd.f32 %v4406, %v4454
        %v4456 = vpop.f32.mrf.mxu0
        %v4457 = vadd.f32 %v4408, %v4456
        %4458 = vmatmul.bf16.gmra.mxu0 %v4337
        %v4459 = vpop.f32.mrf.mxu0
        %v4460 = vadd.f32 %v4411, %v4459
        %v4461 = vpop.f32.mrf.mxu0
        %v4462 = vadd.f32 %v4413, %v4461
        %4463 = vmatmul.bf16.gmra.mxu0 %v4341
        %v4464 = vpop.f32.mrf.mxu0
        %v4465 = vadd.f32 %v4416, %v4464
        %v4466 = vpop.f32.mrf.mxu0
        %v4467 = vadd.f32 %v4418, %v4466
        %4468 = vmatmul.bf16.gmra.mxu0 %v4345
        %v4469 = vpop.f32.mrf.mxu0
        %v4470 = vadd.f32 %v4421, %v4469
        %v4471 = vpop.f32.mrf.mxu0
        %v4472 = vadd.f32 %v4423, %v4471
        %4473 = vmatmul.bf16.gmra.mxu0 %v4349
        %v4474 = vpop.f32.mrf.mxu0
        %v4475 = vadd.f32 %v4426, %v4474
        %v4476 = vpop.f32.mrf.mxu0
        %v4477 = vadd.f32 %v4428, %v4476
        %4478 = vmatmul.bf16.gmra.mxu0 %v4353
        %v4479 = vpop.f32.mrf.mxu0
        %v4480 = vadd.f32 %v4431, %v4479
        %v4481 = vpop.f32.mrf.mxu0
        %v4482 = vadd.f32 %v4433, %v4481
        %4483 = vmatmul.bf16.gmra.mxu0 %v4357
        %v4484 = vpop.f32.mrf.mxu0
        %v4485 = vadd.f32 %v4436, %v4484
        %v4486 = vpop.f32.mrf.mxu0
        %v4487 = vadd.f32 %v4438, %v4486
        %4488 = vmatmul.bf16.gmra.mxu0 %v4361
        %v4489 = vpop.f32.mrf.mxu0
        %v4490 = vadd.f32 %v4441, %v4489
        %v4491 = vpop.f32.mrf.mxu0
        %v4492 = vadd.f32 %v4443, %v4491
        %4493 = vdwg.mxu0
        %4494 = vmatpush.bf16.msra.mxu0 %v4227
        %4495 = vmatpush.bf16.msra.mxu0 %v4226
        %4496 = vmatpush.bf16.msra.mxu0 %v4225
        %4497 = vmatpush.bf16.msra.mxu0 %v4224
        %4498 = vmatpush.bf16.msra.mxu0 %v4223
        %4499 = vmatpush.bf16.msra.mxu0 %v4222
        %4500 = vmatpush.bf16.msra.mxu0 %v4221
        %4501 = vmatpush.bf16.msra.mxu0 %v4220
        %4502 = vmatmul.bf16.gmra.mxu0 %v4334
        %v4503 = vpop.f32.mrf.mxu0
        %v4504 = vadd.f32 %v4455, %v4503
        %v4505 = vpop.f32.mrf.mxu0
        %v4506 = vadd.f32 %v4457, %v4505
        %4507 = vmatmul.bf16.gmra.mxu0 %v4338
        %v4508 = vpop.f32.mrf.mxu0
        %v4509 = vadd.f32 %v4460, %v4508
        %v4510 = vpop.f32.mrf.mxu0
        %v4511 = vadd.f32 %v4462, %v4510
        %4512 = vmatmul.bf16.gmra.mxu0 %v4342
        %v4513 = vpop.f32.mrf.mxu0
        %v4514 = vadd.f32 %v4465, %v4513
        %v4515 = vpop.f32.mrf.mxu0
        %v4516 = vadd.f32 %v4467, %v4515
        %4517 = vmatmul.bf16.gmra.mxu0 %v4346
        %v4518 = vpop.f32.mrf.mxu0
        %v4519 = vadd.f32 %v4470, %v4518
        %v4520 = vpop.f32.mrf.mxu0
        %v4521 = vadd.f32 %v4472, %v4520
        %4522 = vmatmul.bf16.gmra.mxu0 %v4350
        %v4523 = vpop.f32.mrf.mxu0
        %v4524 = vadd.f32 %v4475, %v4523
        %v4525 = vpop.f32.mrf.mxu0
        %v4526 = vadd.f32 %v4477, %v4525
        %4527 = vmatmul.bf16.gmra.mxu0 %v4354
        %v4528 = vpop.f32.mrf.mxu0
        %v4529 = vadd.f32 %v4480, %v4528
        %v4530 = vpop.f32.mrf.mxu0
        %v4531 = vadd.f32 %v4482, %v4530
        %4532 = vmatmul.bf16.gmra.mxu0 %v4358
        %v4533 = vpop.f32.mrf.mxu0
        %v4534 = vadd.f32 %v4485, %v4533
        %v4535 = vpop.f32.mrf.mxu0
        %v4536 = vadd.f32 %v4487, %v4535
        %4537 = vmatmul.bf16.gmra.mxu0 %v4362
        %v4538 = vpop.f32.mrf.mxu0
        %v4539 = vadd.f32 %v4490, %v4538
        %v4540 = vpop.f32.mrf.mxu0
        %v4541 = vadd.f32 %v4492, %v4540
        %4542 = vdwg.mxu0
        %4543 = vmatpush.bf16.msra.mxu0 %v4235
        %4544 = vmatpush.bf16.msra.mxu0 %v4234
        %4545 = vmatpush.bf16.msra.mxu0 %v4233
        %4546 = vmatpush.bf16.msra.mxu0 %v4232
        %4547 = vmatpush.bf16.msra.mxu0 %v4231
        %4548 = vmatpush.bf16.msra.mxu0 %v4230
        %4549 = vmatpush.bf16.msra.mxu0 %v4229
        %4550 = vmatpush.bf16.msra.mxu0 %v4228
        %4551 = vmatmul.bf16.gmra.mxu0 %v4335
        %v4552 = vpop.f32.mrf.mxu0
        %v4553 = vadd.f32 %v4504, %v4552
        %v4554 = vpop.f32.mrf.mxu0
        %v4555 = vadd.f32 %v4506, %v4554
        %4556 = vmatmul.bf16.gmra.mxu0 %v4339
        %v4557 = vpop.f32.mrf.mxu0
        %v4558 = vadd.f32 %v4509, %v4557
        %v4559 = vpop.f32.mrf.mxu0
        %v4560 = vadd.f32 %v4511, %v4559
        %4561 = vmatmul.bf16.gmra.mxu0 %v4343
        %v4562 = vpop.f32.mrf.mxu0
        %v4563 = vadd.f32 %v4514, %v4562
        %v4564 = vpop.f32.mrf.mxu0
        %v4565 = vadd.f32 %v4516, %v4564
        %4566 = vmatmul.bf16.gmra.mxu0 %v4347
        %v4567 = vpop.f32.mrf.mxu0
        %v4568 = vadd.f32 %v4519, %v4567
        %v4569 = vpop.f32.mrf.mxu0
        %v4570 = vadd.f32 %v4521, %v4569
        %4571 = vmatmul.bf16.gmra.mxu0 %v4351
        %v4572 = vpop.f32.mrf.mxu0
        %v4573 = vadd.f32 %v4524, %v4572
        %v4574 = vpop.f32.mrf.mxu0
        %v4575 = vadd.f32 %v4526, %v4574
        %4576 = vmatmul.bf16.gmra.mxu0 %v4355
        %v4577 = vpop.f32.mrf.mxu0
        %v4578 = vadd.f32 %v4529, %v4577
        %v4579 = vpop.f32.mrf.mxu0
        %v4580 = vadd.f32 %v4531, %v4579
        %4581 = vmatmul.bf16.gmra.mxu0 %v4359
        %v4582 = vpop.f32.mrf.mxu0
        %v4583 = vadd.f32 %v4534, %v4582
        %v4584 = vpop.f32.mrf.mxu0
        %v4585 = vadd.f32 %v4536, %v4584
        %4586 = vmatmul.bf16.gmra.mxu0 %v4363
        %v4587 = vpop.f32.mrf.mxu0
        %v4588 = vadd.f32 %v4539, %v4587
        %v4589 = vpop.f32.mrf.mxu0
        %v4590 = vadd.f32 %v4541, %v4589
        %4591 = vdwg.mxu0
        %v4592 = vld [vmem:[%s3] sm:$0xff]
        %v4593 = vld [vmem:[%s3 + $0x8] sm:$0xff]
        %v4594 = vld [vmem:[%s3 + $0x10] sm:$0xff]
        %v4595 = vld [vmem:[%s3 + $0x18] sm:$0xff]
        %v4596 = vld [vmem:[%s3 + $0x20] sm:$0xff]
        %v4597 = vld [vmem:[%s3 + $0x28] sm:$0xff]
        %v4598 = vld [vmem:[%s3 + $0x30] sm:$0xff]
        %v4599 = vld [vmem:[%s3 + $0x38] sm:$0xff]
        %v4600 = vld [vmem:[%s3 + $0x40] sm:$0xff]
        %v4601 = vld [vmem:[%s3 + $0x48] sm:$0xff]
        %v4602 = vld [vmem:[%s3 + $0x50] sm:$0xff]
        %v4603 = vld [vmem:[%s3 + $0x58] sm:$0xff]
        %v4604 = vld [vmem:[%s3 + $0x60] sm:$0xff]
        %v4605 = vld [vmem:[%s3 + $0x68] sm:$0xff]
        %v4606 = vld [vmem:[%s3 + $0x70] sm:$0xff]
        %v4607 = vld [vmem:[%s3 + $0x78] sm:$0xff]
        %4609 = vset.pattern.permute.xlu0 0
        %4610 = vperm.xlu0 %4609, %v4592
        %v4611 = vpop.permute.xlu0 %4610
        %4614 = vset.pattern.permute.xlu0 0
        %4615 = vperm.xlu0 %4614, %v4593
        %v4616 = vpop.permute.xlu0 %4615
        %4619 = vset.pattern.permute.xlu0 0
        %4620 = vperm.xlu0 %4619, %v4594
        %v4621 = vpop.permute.xlu0 %4620
        %4624 = vset.pattern.permute.xlu0 0
        %4625 = vperm.xlu0 %4624, %v4595
        %v4626 = vpop.permute.xlu0 %4625
        %4629 = vset.pattern.permute.xlu0 0
        %4630 = vperm.xlu0 %4629, %v4596
        %v4631 = vpop.permute.xlu0 %4630
        %4634 = vset.pattern.permute.xlu0 0
        %4635 = vperm.xlu0 %4634, %v4597
        %v4636 = vpop.permute.xlu0 %4635
        %4639 = vset.pattern.permute.xlu0 0
        %4640 = vperm.xlu0 %4639, %v4598
        %v4641 = vpop.permute.xlu0 %4640
        %4644 = vset.pattern.permute.xlu0 0
        %4645 = vperm.xlu0 %4644, %v4599
        %v4646 = vpop.permute.xlu0 %4645
        %4649 = vset.pattern.permute.xlu0 0
        %4650 = vperm.xlu0 %4649, %v4600
        %v4651 = vpop.permute.xlu0 %4650
        %4654 = vset.pattern.permute.xlu0 0
        %4655 = vperm.xlu0 %4654, %v4601
        %v4656 = vpop.permute.xlu0 %4655
        %4659 = vset.pattern.permute.xlu0 0
        %4660 = vperm.xlu0 %4659, %v4602
        %v4661 = vpop.permute.xlu0 %4660
        %4664 = vset.pattern.permute.xlu0 0
        %4665 = vperm.xlu0 %4664, %v4603
        %v4666 = vpop.permute.xlu0 %4665
        %4669 = vset.pattern.permute.xlu0 0
        %4670 = vperm.xlu0 %4669, %v4604
        %v4671 = vpop.permute.xlu0 %4670
        %4674 = vset.pattern.permute.xlu0 0
        %4675 = vperm.xlu0 %4674, %v4605
        %v4676 = vpop.permute.xlu0 %4675
        %4679 = vset.pattern.permute.xlu0 0
        %4680 = vperm.xlu0 %4679, %v4606
        %v4681 = vpop.permute.xlu0 %4680
        %4684 = vset.pattern.permute.xlu0 0
        %4685 = vperm.xlu0 %4684, %v4607
        %v4686 = vpop.permute.xlu0 %4685
        %v4688 = vmul.f32 %v4553, %v4611
        %v4689 = vmul.f32 %v4555, %v4616
        %v4690 = vmul.f32 %v4558, %v4621
        %v4691 = vmul.f32 %v4560, %v4626
        %v4692 = vmul.f32 %v4563, %v4631
        %v4693 = vmul.f32 %v4565, %v4636
        %v4694 = vmul.f32 %v4568, %v4641
        %v4695 = vmul.f32 %v4570, %v4646
        %v4696 = vmul.f32 %v4573, %v4651
        %v4697 = vmul.f32 %v4575, %v4656
        %v4698 = vmul.f32 %v4578, %v4661
        %v4699 = vmul.f32 %v4580, %v4666
        %v4700 = vmul.f32 %v4583, %v4671
        %v4701 = vmul.f32 %v4585, %v4676
        %v4702 = vmul.f32 %v4588, %v4681
        %v4703 = vmul.f32 %v4590, %v4686
        %v4704 = vld [vmem:[%s1067] sm:$0x1]
        %v4705 = vld [vmem:[%s1] sm:$0xff]
        %v4706 = vld [vmem:[%s1 + $0x8] sm:$0xff]
        %v4707 = vld [vmem:[%s1 + $0x10] sm:$0xff]
        %v4708 = vld [vmem:[%s1 + $0x18] sm:$0xff]
        %v4709 = vld [vmem:[%s1 + $0x20] sm:$0xff]
        %v4710 = vld [vmem:[%s1 + $0x28] sm:$0xff]
        %v4711 = vld [vmem:[%s1 + $0x30] sm:$0xff]
        %v4712 = vld [vmem:[%s1 + $0x38] sm:$0xff]
        %v4713 = vld [vmem:[%s1 + $0x40] sm:$0xff]
        %v4714 = vld [vmem:[%s1 + $0x48] sm:$0xff]
        %v4715 = vld [vmem:[%s1 + $0x50] sm:$0xff]
        %v4716 = vld [vmem:[%s1 + $0x58] sm:$0xff]
        %v4717 = vld [vmem:[%s1 + $0x60] sm:$0xff]
        %v4718 = vld [vmem:[%s1 + $0x68] sm:$0xff]
        %v4719 = vld [vmem:[%s1 + $0x70] sm:$0xff]
        %v4720 = vld [vmem:[%s1 + $0x78] sm:$0xff]
        %4722 = vset.pattern.permute.xlu0 0
        %4723 = vperm.xlu0 %4722, %v4705
        %v4724 = vpop.permute.xlu0 %4723
        %4727 = vset.pattern.permute.xlu0 0
        %4728 = vperm.xlu0 %4727, %v4706
        %v4729 = vpop.permute.xlu0 %4728
        %4732 = vset.pattern.permute.xlu0 0
        %4733 = vperm.xlu0 %4732, %v4707
        %v4734 = vpop.permute.xlu0 %4733
        %4737 = vset.pattern.permute.xlu0 0
        %4738 = vperm.xlu0 %4737, %v4708
        %v4739 = vpop.permute.xlu0 %4738
        %4742 = vset.pattern.permute.xlu0 0
        %4743 = vperm.xlu0 %4742, %v4709
        %v4744 = vpop.permute.xlu0 %4743
        %4747 = vset.pattern.permute.xlu0 0
        %4748 = vperm.xlu0 %4747, %v4710
        %v4749 = vpop.permute.xlu0 %4748
        %4752 = vset.pattern.permute.xlu0 0
        %4753 = vperm.xlu0 %4752, %v4711
        %v4754 = vpop.permute.xlu0 %4753
        %4757 = vset.pattern.permute.xlu0 0
        %4758 = vperm.xlu0 %4757, %v4712
        %v4759 = vpop.permute.xlu0 %4758
        %4762 = vset.pattern.permute.xlu0 0
        %4763 = vperm.xlu0 %4762, %v4713
        %v4764 = vpop.permute.xlu0 %4763
        %4767 = vset.pattern.permute.xlu0 0
        %4768 = vperm.xlu0 %4767, %v4714
        %v4769 = vpop.permute.xlu0 %4768
        %4772 = vset.pattern.permute.xlu0 0
        %4773 = vperm.xlu0 %4772, %v4715
        %v4774 = vpop.permute.xlu0 %4773
        %4777 = vset.pattern.permute.xlu0 0
        %4778 = vperm.xlu0 %4777, %v4716
        %v4779 = vpop.permute.xlu0 %4778
        %4782 = vset.pattern.permute.xlu0 0
        %4783 = vperm.xlu0 %4782, %v4717
        %v4784 = vpop.permute.xlu0 %4783
        %4787 = vset.pattern.permute.xlu0 0
        %4788 = vperm.xlu0 %4787, %v4718
        %v4789 = vpop.permute.xlu0 %4788
        %4792 = vset.pattern.permute.xlu0 0
        %4793 = vperm.xlu0 %4792, %v4719
        %v4794 = vpop.permute.xlu0 %4793
        %4797 = vset.pattern.permute.xlu0 0
        %4798 = vperm.xlu0 %4797, %v4720
        %v4799 = vpop.permute.xlu0 %4798
        %v4802 = vperm.slane %v4704, 0
        %v4804 = vmul.f32 %v4724, %v4802
        %v4805 = vmul.f32 %v4729, %v4802
        %v4806 = vmul.f32 %v4734, %v4802
        %v4807 = vmul.f32 %v4739, %v4802
        %v4808 = vmul.f32 %v4744, %v4802
        %v4809 = vmul.f32 %v4749, %v4802
        %v4810 = vmul.f32 %v4754, %v4802
        %v4811 = vmul.f32 %v4759, %v4802
        %v4812 = vmul.f32 %v4764, %v4802
        %v4813 = vmul.f32 %v4769, %v4802
        %v4814 = vmul.f32 %v4774, %v4802
        %v4815 = vmul.f32 %v4779, %v4802
        %v4816 = vmul.f32 %v4784, %v4802
        %v4817 = vmul.f32 %v4789, %v4802
        %v4818 = vmul.f32 %v4794, %v4802
        %v4819 = vmul.f32 %v4799, %v4802
        %v4820 = vpack.c.bf16 %v4688, %v4688
        %v4821 = vpack.c.bf16 %v4689, %v4689
        %v4822 = vpack.c.bf16 %v4690, %v4690
        %v4823 = vpack.c.bf16 %v4691, %v4691
        %v4824 = vpack.c.bf16 %v4692, %v4692
        %v4825 = vpack.c.bf16 %v4693, %v4693
        %v4826 = vpack.c.bf16 %v4694, %v4694
        %v4827 = vpack.c.bf16 %v4695, %v4695
        %v4828 = vpack.c.bf16 %v4696, %v4696
        %v4829 = vpack.c.bf16 %v4697, %v4697
        %v4830 = vpack.c.bf16 %v4698, %v4698
        %v4831 = vpack.c.bf16 %v4699, %v4699
        %v4832 = vpack.c.bf16 %v4700, %v4700
        %v4833 = vpack.c.bf16 %v4701, %v4701
        %v4834 = vpack.c.bf16 %v4702, %v4702
        %v4835 = vpack.c.bf16 %v4703, %v4703
        %v4852 = vunpack.c.l.b16 %v4820
        %v4853 = vunpack.c.l.b16 %v4821
        %v4854 = vunpack.c.l.b16 %v4822
        %v4855 = vunpack.c.l.b16 %v4823
        %v4856 = vunpack.c.l.b16 %v4824
        %v4857 = vunpack.c.l.b16 %v4825
        %v4858 = vunpack.c.l.b16 %v4826
        %v4859 = vunpack.c.l.b16 %v4827
        %v4860 = vunpack.c.l.b16 %v4828
        %v4861 = vunpack.c.l.b16 %v4829
        %v4862 = vunpack.c.l.b16 %v4830
        %v4863 = vunpack.c.l.b16 %v4831
        %v4864 = vunpack.c.l.b16 %v4832
        %v4865 = vunpack.c.l.b16 %v4833
        %v4866 = vunpack.c.l.b16 %v4834
        %v4867 = vunpack.c.l.b16 %v4835
        %v4868 = vpack.c.b16 %v4853, %v4852
        %v4869 = vpack.c.b16 %v4855, %v4854
        %v4870 = vpack.c.b16 %v4857, %v4856
        %v4871 = vpack.c.b16 %v4859, %v4858
        %v4872 = vpack.c.b16 %v4861, %v4860
        %v4873 = vpack.c.b16 %v4863, %v4862
        %v4874 = vpack.c.b16 %v4865, %v4864
        %v4875 = vpack.c.b16 %v4867, %v4866
        %v4884 = vld [vmem:[%s1058] sm:$0xf]
        %v4885 = vld [vmem:[%s1058 + $0x4] sm:$0xf]
        %v4886 = vld [vmem:[%s1058 + $0x8] sm:$0xf]
        %v4887 = vld [vmem:[%s1058 + $0xc] sm:$0xf]
        %v4888 = vld [vmem:[%s1058 + $0x10] sm:$0xf]
        %v4889 = vld [vmem:[%s1058 + $0x14] sm:$0xf]
        %v4890 = vld [vmem:[%s1058 + $0x18] sm:$0xf]
        %v4891 = vld [vmem:[%s1058 + $0x1c] sm:$0xf]
        %v4892 = vld [vmem:[%s1058 + $0x20] sm:$0xf]
        %v4893 = vld [vmem:[%s1058 + $0x24] sm:$0xf]
        %v4894 = vld [vmem:[%s1058 + $0x28] sm:$0xf]
        %v4895 = vld [vmem:[%s1058 + $0x2c] sm:$0xf]
        %v4896 = vld [vmem:[%s1058 + $0x30] sm:$0xf]
        %v4897 = vld [vmem:[%s1058 + $0x34] sm:$0xf]
        %v4898 = vld [vmem:[%s1058 + $0x38] sm:$0xf]
        %v4899 = vld [vmem:[%s1058 + $0x3c] sm:$0xf]
        %v4900 = vld [vmem:[%s1058 + $0x40] sm:$0xf]
        %v4901 = vld [vmem:[%s1058 + $0x44] sm:$0xf]
        %v4902 = vld [vmem:[%s1058 + $0x48] sm:$0xf]
        %v4903 = vld [vmem:[%s1058 + $0x4c] sm:$0xf]
        %v4904 = vld [vmem:[%s1058 + $0x50] sm:$0xf]
        %v4905 = vld [vmem:[%s1058 + $0x54] sm:$0xf]
        %v4906 = vld [vmem:[%s1058 + $0x58] sm:$0xf]
        %v4907 = vld [vmem:[%s1058 + $0x5c] sm:$0xf]
        %v4908 = vld [vmem:[%s1058 + $0x60] sm:$0xf]
        %v4909 = vld [vmem:[%s1058 + $0x64] sm:$0xf]
        %v4910 = vld [vmem:[%s1058 + $0x68] sm:$0xf]
        %v4911 = vld [vmem:[%s1058 + $0x6c] sm:$0xf]
        %v4912 = vld [vmem:[%s1058 + $0x70] sm:$0xf]
        %v4913 = vld [vmem:[%s1058 + $0x74] sm:$0xf]
        %v4914 = vld [vmem:[%s1058 + $0x78] sm:$0xf]
        %v4915 = vld [vmem:[%s1058 + $0x7c] sm:$0xf]
        %v4948 = vunpack.c.l.b16 %v4884
        %v4949 = vunpack.c.l.b16 %v4885
        %v4950 = vunpack.c.l.b16 %v4886
        %v4951 = vunpack.c.l.b16 %v4887
        %v4952 = vunpack.c.l.b16 %v4888
        %v4953 = vunpack.c.l.b16 %v4889
        %v4954 = vunpack.c.l.b16 %v4890
        %v4955 = vunpack.c.l.b16 %v4891
        %v4956 = vunpack.c.l.b16 %v4892
        %v4957 = vunpack.c.l.b16 %v4893
        %v4958 = vunpack.c.l.b16 %v4894
        %v4959 = vunpack.c.l.b16 %v4895
        %v4960 = vunpack.c.l.b16 %v4896
        %v4961 = vunpack.c.l.b16 %v4897
        %v4962 = vunpack.c.l.b16 %v4898
        %v4963 = vunpack.c.l.b16 %v4899
        %v4964 = vunpack.c.l.b16 %v4900
        %v4965 = vunpack.c.l.b16 %v4901
        %v4966 = vunpack.c.l.b16 %v4902
        %v4967 = vunpack.c.l.b16 %v4903
        %v4968 = vunpack.c.l.b16 %v4904
        %v4969 = vunpack.c.l.b16 %v4905
        %v4970 = vunpack.c.l.b16 %v4906
        %v4971 = vunpack.c.l.b16 %v4907
        %v4972 = vunpack.c.l.b16 %v4908
        %v4973 = vunpack.c.l.b16 %v4909
        %v4974 = vunpack.c.l.b16 %v4910
        %v4975 = vunpack.c.l.b16 %v4911
        %v4976 = vunpack.c.l.b16 %v4912
        %v4977 = vunpack.c.l.b16 %v4913
        %v4978 = vunpack.c.l.b16 %v4914
        %v4979 = vunpack.c.l.b16 %v4915
        %v4980 = vpack.c.b16 %v4949, %v4948
        %v4981 = vpack.c.b16 %v4951, %v4950
        %v4982 = vpack.c.b16 %v4953, %v4952
        %v4983 = vpack.c.b16 %v4955, %v4954
        %v4984 = vpack.c.b16 %v4957, %v4956
        %v4985 = vpack.c.b16 %v4959, %v4958
        %v4986 = vpack.c.b16 %v4961, %v4960
        %v4987 = vpack.c.b16 %v4963, %v4962
        %v4988 = vpack.c.b16 %v4965, %v4964
        %v4989 = vpack.c.b16 %v4967, %v4966
        %v4990 = vpack.c.b16 %v4969, %v4968
        %v4991 = vpack.c.b16 %v4971, %v4970
        %v4992 = vpack.c.b16 %v4973, %v4972
        %v4993 = vpack.c.b16 %v4975, %v4974
        %v4994 = vpack.c.b16 %v4977, %v4976
        %v4995 = vpack.c.b16 %v4979, %v4978
        %5012 = vmatpush.bf16.msra.mxu0 %v4987
        %5013 = vmatpush.bf16.msra.mxu0 %v4986
        %5014 = vmatpush.bf16.msra.mxu0 %v4985
        %5015 = vmatpush.bf16.msra.mxu0 %v4984
        %5016 = vmatpush.bf16.msra.mxu0 %v4983
        %5017 = vmatpush.bf16.msra.mxu0 %v4982
        %5018 = vmatpush.bf16.msra.mxu0 %v4981
        %5019 = vmatpush.bf16.msra.mxu0 %v4980
        %5020 = vmatmul.bf16.gmra.mxu0 %v2007
        %v5021 = vpop.f32.mrf.mxu0
        %v5022 = vadd.f32 %v4804, %v5021
        %v5023 = vpop.f32.mrf.mxu0
        %v5024 = vadd.f32 %v4805, %v5023
        %5025 = vmatmul.bf16.gmra.mxu0 %v2008
        %v5026 = vpop.f32.mrf.mxu0
        %v5027 = vadd.f32 %v4806, %v5026
        %v5028 = vpop.f32.mrf.mxu0
        %v5029 = vadd.f32 %v4807, %v5028
        %5030 = vmatmul.bf16.gmra.mxu0 %v2009
        %v5031 = vpop.f32.mrf.mxu0
        %v5032 = vadd.f32 %v4808, %v5031
        %v5033 = vpop.f32.mrf.mxu0
        %v5034 = vadd.f32 %v4809, %v5033
        %5035 = vmatmul.bf16.gmra.mxu0 %v2010
        %v5036 = vpop.f32.mrf.mxu0
        %v5037 = vadd.f32 %v4810, %v5036
        %v5038 = vpop.f32.mrf.mxu0
        %v5039 = vadd.f32 %v4811, %v5038
        %5040 = vmatmul.bf16.gmra.mxu0 %v2011
        %v5041 = vpop.f32.mrf.mxu0
        %v5042 = vadd.f32 %v4812, %v5041
        %v5043 = vpop.f32.mrf.mxu0
        %v5044 = vadd.f32 %v4813, %v5043
        %5045 = vmatmul.bf16.gmra.mxu0 %v2012
        %v5046 = vpop.f32.mrf.mxu0
        %v5047 = vadd.f32 %v4814, %v5046
        %v5048 = vpop.f32.mrf.mxu0
        %v5049 = vadd.f32 %v4815, %v5048
        %5050 = vmatmul.bf16.gmra.mxu0 %v2013
        %v5051 = vpop.f32.mrf.mxu0
        %v5052 = vadd.f32 %v4816, %v5051
        %v5053 = vpop.f32.mrf.mxu0
        %v5054 = vadd.f32 %v4817, %v5053
        %5055 = vmatmul.bf16.gmra.mxu0 %v2014
        %v5056 = vpop.f32.mrf.mxu0
        %v5057 = vadd.f32 %v4818, %v5056
        %v5058 = vpop.f32.mrf.mxu0
        %v5059 = vadd.f32 %v4819, %v5058
        %5060 = vdwg.mxu0
        %5061 = vmatpush.bf16.msra.mxu0 %v4995
        %5062 = vmatpush.bf16.msra.mxu0 %v4994
        %5063 = vmatpush.bf16.msra.mxu0 %v4993
        %5064 = vmatpush.bf16.msra.mxu0 %v4992
        %5065 = vmatpush.bf16.msra.mxu0 %v4991
        %5066 = vmatpush.bf16.msra.mxu0 %v4990
        %5067 = vmatpush.bf16.msra.mxu0 %v4989
        %5068 = vmatpush.bf16.msra.mxu0 %v4988
        %5069 = vmatmul.bf16.gmra.mxu0 %v4868
        %v5070 = vpop.f32.mrf.mxu0
        %v5071 = vadd.f32 %v5022, %v5070
        %v5072 = vpop.f32.mrf.mxu0
        %v5073 = vadd.f32 %v5024, %v5072
        %5074 = vmatmul.bf16.gmra.mxu0 %v4869
        %v5075 = vpop.f32.mrf.mxu0
        %v5076 = vadd.f32 %v5027, %v5075
        %v5077 = vpop.f32.mrf.mxu0
        %v5078 = vadd.f32 %v5029, %v5077
        %5079 = vmatmul.bf16.gmra.mxu0 %v4870
        %v5080 = vpop.f32.mrf.mxu0
        %v5081 = vadd.f32 %v5032, %v5080
        %v5082 = vpop.f32.mrf.mxu0
        %v5083 = vadd.f32 %v5034, %v5082
        %5084 = vmatmul.bf16.gmra.mxu0 %v4871
        %v5085 = vpop.f32.mrf.mxu0
        %v5086 = vadd.f32 %v5037, %v5085
        %v5087 = vpop.f32.mrf.mxu0
        %v5088 = vadd.f32 %v5039, %v5087
        %5089 = vmatmul.bf16.gmra.mxu0 %v4872
        %v5090 = vpop.f32.mrf.mxu0
        %v5091 = vadd.f32 %v5042, %v5090
        %v5092 = vpop.f32.mrf.mxu0
        %v5093 = vadd.f32 %v5044, %v5092
        %5094 = vmatmul.bf16.gmra.mxu0 %v4873
        %v5095 = vpop.f32.mrf.mxu0
        %v5096 = vadd.f32 %v5047, %v5095
        %v5097 = vpop.f32.mrf.mxu0
        %v5098 = vadd.f32 %v5049, %v5097
        %5099 = vmatmul.bf16.gmra.mxu0 %v4874
        %v5100 = vpop.f32.mrf.mxu0
        %v5101 = vadd.f32 %v5052, %v5100
        %v5102 = vpop.f32.mrf.mxu0
        %v5103 = vadd.f32 %v5054, %v5102
        %5104 = vmatmul.bf16.gmra.mxu0 %v4875
        %v5105 = vpop.f32.mrf.mxu0
        %v5106 = vadd.f32 %v5057, %v5105
        %v5107 = vpop.f32.mrf.mxu0
        %v5108 = vadd.f32 %v5059, %v5107
        %5109 = vdwg.mxu0
        %v5110 = vld [vmem:[%s1076] sm:$0x1]
        %v5112 = vperm.slane %v5110, 0
        %v5114 = vadd.f32 %v5071, %v5112
        %v5115 = vadd.f32 %v5073, %v5112
        %v5116 = vadd.f32 %v5076, %v5112
        %v5117 = vadd.f32 %v5078, %v5112
        %v5118 = vadd.f32 %v5081, %v5112
        %v5119 = vadd.f32 %v5083, %v5112
        %v5120 = vadd.f32 %v5086, %v5112
        %v5121 = vadd.f32 %v5088, %v5112
        %v5122 = vadd.f32 %v5091, %v5112
        %v5123 = vadd.f32 %v5093, %v5112
        %v5124 = vadd.f32 %v5096, %v5112
        %v5125 = vadd.f32 %v5098, %v5112
        %v5126 = vadd.f32 %v5101, %v5112
        %v5127 = vadd.f32 %v5103, %v5112
        %v5128 = vadd.f32 %v5106, %v5112
        %v5129 = vadd.f32 %v5108, %v5112
        %v5130 = vsub.f32 0.0, %v5114
        %v5131 = vsub.f32 0.0, %v5115
        %v5132 = vsub.f32 0.0, %v5116
        %v5133 = vsub.f32 0.0, %v5117
        %v5134 = vsub.f32 0.0, %v5118
        %v5135 = vsub.f32 0.0, %v5119
        %v5136 = vsub.f32 0.0, %v5120
        %v5137 = vsub.f32 0.0, %v5121
        %v5138 = vsub.f32 0.0, %v5122
        %v5139 = vsub.f32 0.0, %v5123
        %v5140 = vsub.f32 0.0, %v5124
        %v5141 = vsub.f32 0.0, %v5125
        %v5142 = vsub.f32 0.0, %v5126
        %v5143 = vsub.f32 0.0, %v5127
        %v5144 = vsub.f32 0.0, %v5128
        %v5145 = vsub.f32 0.0, %v5129
        %v5146 = vmul.f32 %v5130, 1.442695
        %v5147 = vpow.pop %v5146
        %v5148 = vmul.f32 %v5131, 1.442695
        %v5149 = vpow.pop %v5148
        %v5150 = vmul.f32 %v5132, 1.442695
        %v5151 = vpow.pop %v5150
        %v5152 = vmul.f32 %v5133, 1.442695
        %v5153 = vpow.pop %v5152
        %v5154 = vmul.f32 %v5134, 1.442695
        %v5155 = vpow.pop %v5154
        %v5156 = vmul.f32 %v5135, 1.442695
        %v5157 = vpow.pop %v5156
        %v5158 = vmul.f32 %v5136, 1.442695
        %v5159 = vpow.pop %v5158
        %v5160 = vmul.f32 %v5137, 1.442695
        %v5161 = vpow.pop %v5160
        %v5162 = vmul.f32 %v5138, 1.442695
        %v5163 = vpow.pop %v5162
        %v5164 = vmul.f32 %v5139, 1.442695
        %v5165 = vpow.pop %v5164
        %v5166 = vmul.f32 %v5140, 1.442695
        %v5167 = vpow.pop %v5166
        %v5168 = vmul.f32 %v5141, 1.442695
        %v5169 = vpow.pop %v5168
        %v5170 = vmul.f32 %v5142, 1.442695
        %v5171 = vpow.pop %v5170
        %v5172 = vmul.f32 %v5143, 1.442695
        %v5173 = vpow.pop %v5172
        %v5174 = vmul.f32 %v5144, 1.442695
        %v5175 = vpow.pop %v5174
        %v5176 = vmul.f32 %v5145, 1.442695
        %v5177 = vpow.pop %v5176
        %v5178 = vadd.f32 %v5147, 1.0
        %v5179 = vadd.f32 %v5149, 1.0
        %v5180 = vadd.f32 %v5151, 1.0
        %v5181 = vadd.f32 %v5153, 1.0
        %v5182 = vadd.f32 %v5155, 1.0
        %v5183 = vadd.f32 %v5157, 1.0
        %v5184 = vadd.f32 %v5159, 1.0
        %v5185 = vadd.f32 %v5161, 1.0
        %v5186 = vadd.f32 %v5163, 1.0
        %v5187 = vadd.f32 %v5165, 1.0
        %v5188 = vadd.f32 %v5167, 1.0
        %v5189 = vadd.f32 %v5169, 1.0
        %v5190 = vadd.f32 %v5171, 1.0
        %v5191 = vadd.f32 %v5173, 1.0
        %v5192 = vadd.f32 %v5175, 1.0
        %v5193 = vadd.f32 %v5177, 1.0
        %v5194 = vrcp.pop %v5178
        %v5195 = vrcp.pop %v5179
        %v5196 = vrcp.pop %v5180
        %v5197 = vrcp.pop %v5181
        %v5198 = vrcp.pop %v5182
        %v5199 = vrcp.pop %v5183
        %v5200 = vrcp.pop %v5184
        %v5201 = vrcp.pop %v5185
        %v5202 = vrcp.pop %v5186
        %v5203 = vrcp.pop %v5187
        %v5204 = vrcp.pop %v5188
        %v5205 = vrcp.pop %v5189
        %v5206 = vrcp.pop %v5190
        %v5207 = vrcp.pop %v5191
        %v5208 = vrcp.pop %v5192
        %v5209 = vrcp.pop %v5193
        %v5210 = vmul.f32 %v5114, %v5194
        %v5211 = vmul.f32 %v5115, %v5195
        %v5212 = vmul.f32 %v5116, %v5196
        %v5213 = vmul.f32 %v5117, %v5197
        %v5214 = vmul.f32 %v5118, %v5198
        %v5215 = vmul.f32 %v5119, %v5199
        %v5216 = vmul.f32 %v5120, %v5200
        %v5217 = vmul.f32 %v5121, %v5201
        %v5218 = vmul.f32 %v5122, %v5202
        %v5219 = vmul.f32 %v5123, %v5203
        %v5220 = vmul.f32 %v5124, %v5204
        %v5221 = vmul.f32 %v5125, %v5205
        %v5222 = vmul.f32 %v5126, %v5206
        %v5223 = vmul.f32 %v5127, %v5207
        %v5224 = vmul.f32 %v5128, %v5208
        %v5225 = vmul.f32 %v5129, %v5209
        %v5226 = vpack.c.bf16 %v5211, %v5210
        %v5227 = vpack.c.bf16 %v5213, %v5212
        %v5228 = vpack.c.bf16 %v5215, %v5214
        %v5229 = vpack.c.bf16 %v5217, %v5216
        %v5230 = vpack.c.bf16 %v5219, %v5218
        %v5231 = vpack.c.bf16 %v5221, %v5220
        %v5232 = vpack.c.bf16 %v5223, %v5222
        %v5233 = vpack.c.bf16 %v5225, %v5224
        %v5234 = vld [vmem:[%s1221] sm:$0xf]
        %v5235 = vld [vmem:[%s1221 + $0x4] sm:$0xf]
        %v5236 = vld [vmem:[%s1221 + $0x8] sm:$0xf]
        %v5237 = vld [vmem:[%s1221 + $0xc] sm:$0xf]
        %v5238 = vld [vmem:[%s1221 + $0x10] sm:$0xf]
        %v5239 = vld [vmem:[%s1221 + $0x14] sm:$0xf]
        %v5240 = vld [vmem:[%s1221 + $0x18] sm:$0xf]
        %v5241 = vld [vmem:[%s1221 + $0x1c] sm:$0xf]
        %v5242 = vld [vmem:[%s1221 + $0x20] sm:$0xf]
        %v5243 = vld [vmem:[%s1221 + $0x24] sm:$0xf]
        %v5244 = vld [vmem:[%s1221 + $0x28] sm:$0xf]
        %v5245 = vld [vmem:[%s1221 + $0x2c] sm:$0xf]
        %v5246 = vld [vmem:[%s1221 + $0x30] sm:$0xf]
        %v5247 = vld [vmem:[%s1221 + $0x34] sm:$0xf]
        %v5248 = vld [vmem:[%s1221 + $0x38] sm:$0xf]
        %v5249 = vld [vmem:[%s1221 + $0x3c] sm:$0xf]
        %v5250 = vld [vmem:[%s1085] sm:$0x1]
        %v5252 = vperm.slane %v5250, 0
        %v5270 = vunpack.c.l.b16 %v5234
        %v5271 = vunpack.c.l.b16 %v5235
        %v5272 = vunpack.c.l.b16 %v5236
        %v5273 = vunpack.c.l.b16 %v5237
        %v5274 = vunpack.c.l.b16 %v5238
        %v5275 = vunpack.c.l.b16 %v5239
        %v5276 = vunpack.c.l.b16 %v5240
        %v5277 = vunpack.c.l.b16 %v5241
        %v5278 = vunpack.c.l.b16 %v5242
        %v5279 = vunpack.c.l.b16 %v5243
        %v5280 = vunpack.c.l.b16 %v5244
        %v5281 = vunpack.c.l.b16 %v5245
        %v5282 = vunpack.c.l.b16 %v5246
        %v5283 = vunpack.c.l.b16 %v5247
        %v5284 = vunpack.c.l.b16 %v5248
        %v5285 = vunpack.c.l.b16 %v5249
        %v5286 = vpack.c.b16 %v5271, %v5270
        %v5287 = vpack.c.b16 %v5273, %v5272
        %v5288 = vpack.c.b16 %v5275, %v5274
        %v5289 = vpack.c.b16 %v5277, %v5276
        %v5290 = vpack.c.b16 %v5279, %v5278
        %v5291 = vpack.c.b16 %v5281, %v5280
        %v5292 = vpack.c.b16 %v5283, %v5282
        %v5293 = vpack.c.b16 %v5285, %v5284
        %5302 = vmatpush.bf16.msra.mxu0 %v5293
        %5303 = vmatpush.bf16.msra.mxu0 %v5292
        %5304 = vmatpush.bf16.msra.mxu0 %v5291
        %5305 = vmatpush.bf16.msra.mxu0 %v5290
        %5306 = vmatpush.bf16.msra.mxu0 %v5289
        %5307 = vmatpush.bf16.msra.mxu0 %v5288
        %5308 = vmatpush.bf16.msra.mxu0 %v5287
        %5309 = vmatpush.bf16.msra.mxu0 %v5286
        %5310 = vmatmul.bf16.gmra.mxu0 %v5226
        %v5311 = vpop.f32.mrf.mxu0
        %v5312 = vadd.f32 %v5252, %v5311
        %v5313 = vpop.f32.mrf.mxu0
        %v5314 = vadd.f32 %v5252, %v5313
        %5315 = vmatmul.bf16.gmra.mxu0 %v5227
        %v5316 = vpop.f32.mrf.mxu0
        %v5317 = vadd.f32 %v5252, %v5316
        %v5318 = vpop.f32.mrf.mxu0
        %v5319 = vadd.f32 %v5252, %v5318
        %5320 = vmatmul.bf16.gmra.mxu0 %v5228
        %v5321 = vpop.f32.mrf.mxu0
        %v5322 = vadd.f32 %v5252, %v5321
        %v5323 = vpop.f32.mrf.mxu0
        %v5324 = vadd.f32 %v5252, %v5323
        %5325 = vmatmul.bf16.gmra.mxu0 %v5229
        %v5326 = vpop.f32.mrf.mxu0
        %v5327 = vadd.f32 %v5252, %v5326
        %v5328 = vpop.f32.mrf.mxu0
        %v5329 = vadd.f32 %v5252, %v5328
        %5330 = vmatmul.bf16.gmra.mxu0 %v5230
        %v5331 = vpop.f32.mrf.mxu0
        %v5332 = vadd.f32 %v5252, %v5331
        %v5333 = vpop.f32.mrf.mxu0
        %v5334 = vadd.f32 %v5252, %v5333
        %5335 = vmatmul.bf16.gmra.mxu0 %v5231
        %v5336 = vpop.f32.mrf.mxu0
        %v5337 = vadd.f32 %v5252, %v5336
        %v5338 = vpop.f32.mrf.mxu0
        %v5339 = vadd.f32 %v5252, %v5338
        %5340 = vmatmul.bf16.gmra.mxu0 %v5232
        %v5341 = vpop.f32.mrf.mxu0
        %v5342 = vadd.f32 %v5252, %v5341
        %v5343 = vpop.f32.mrf.mxu0
        %v5344 = vadd.f32 %v5252, %v5343
        %5345 = vmatmul.bf16.gmra.mxu0 %v5233
        %v5346 = vpop.f32.mrf.mxu0
        %v5347 = vadd.f32 %v5252, %v5346
        %v5348 = vpop.f32.mrf.mxu0
        %v5349 = vadd.f32 %v5252, %v5348
        %5350 = vdwg.mxu0
        %v5351 = vsub.f32 0.0, %v5312
        %v5352 = vsub.f32 0.0, %v5314
        %v5353 = vsub.f32 0.0, %v5317
        %v5354 = vsub.f32 0.0, %v5319
        %v5355 = vsub.f32 0.0, %v5322
        %v5356 = vsub.f32 0.0, %v5324
        %v5357 = vsub.f32 0.0, %v5327
        %v5358 = vsub.f32 0.0, %v5329
        %v5359 = vsub.f32 0.0, %v5332
        %v5360 = vsub.f32 0.0, %v5334
        %v5361 = vsub.f32 0.0, %v5337
        %v5362 = vsub.f32 0.0, %v5339
        %v5363 = vsub.f32 0.0, %v5342
        %v5364 = vsub.f32 0.0, %v5344
        %v5365 = vsub.f32 0.0, %v5347
        %v5366 = vsub.f32 0.0, %v5349
        %v5367 = vmul.f32 %v5351, 1.442695
        %v5368 = vpow.pop %v5367
        %v5369 = vmul.f32 %v5352, 1.442695
        %v5370 = vpow.pop %v5369
        %v5371 = vmul.f32 %v5353, 1.442695
        %v5372 = vpow.pop %v5371
        %v5373 = vmul.f32 %v5354, 1.442695
        %v5374 = vpow.pop %v5373
        %v5375 = vmul.f32 %v5355, 1.442695
        %v5376 = vpow.pop %v5375
        %v5377 = vmul.f32 %v5356, 1.442695
        %v5378 = vpow.pop %v5377
        %v5379 = vmul.f32 %v5357, 1.442695
        %v5380 = vpow.pop %v5379
        %v5381 = vmul.f32 %v5358, 1.442695
        %v5382 = vpow.pop %v5381
        %v5383 = vmul.f32 %v5359, 1.442695
        %v5384 = vpow.pop %v5383
        %v5385 = vmul.f32 %v5360, 1.442695
        %v5386 = vpow.pop %v5385
        %v5387 = vmul.f32 %v5361, 1.442695
        %v5388 = vpow.pop %v5387
        %v5389 = vmul.f32 %v5362, 1.442695
        %v5390 = vpow.pop %v5389
        %v5391 = vmul.f32 %v5363, 1.442695
        %v5392 = vpow.pop %v5391
        %v5393 = vmul.f32 %v5364, 1.442695
        %v5394 = vpow.pop %v5393
        %v5395 = vmul.f32 %v5365, 1.442695
        %v5396 = vpow.pop %v5395
        %v5397 = vmul.f32 %v5366, 1.442695
        %v5398 = vpow.pop %v5397
        %v5399 = vadd.f32 %v5368, 1.0
        %v5400 = vadd.f32 %v5370, 1.0
        %v5401 = vadd.f32 %v5372, 1.0
        %v5402 = vadd.f32 %v5374, 1.0
        %v5403 = vadd.f32 %v5376, 1.0
        %v5404 = vadd.f32 %v5378, 1.0
        %v5405 = vadd.f32 %v5380, 1.0
        %v5406 = vadd.f32 %v5382, 1.0
        %v5407 = vadd.f32 %v5384, 1.0
        %v5408 = vadd.f32 %v5386, 1.0
        %v5409 = vadd.f32 %v5388, 1.0
        %v5410 = vadd.f32 %v5390, 1.0
        %v5411 = vadd.f32 %v5392, 1.0
        %v5412 = vadd.f32 %v5394, 1.0
        %v5413 = vadd.f32 %v5396, 1.0
        %v5414 = vadd.f32 %v5398, 1.0
        %v5415 = vrcp.pop %v5399
        %v5416 = vrcp.pop %v5400
        %v5417 = vrcp.pop %v5401
        %v5418 = vrcp.pop %v5402
        %v5419 = vrcp.pop %v5403
        %v5420 = vrcp.pop %v5404
        %v5421 = vrcp.pop %v5405
        %v5422 = vrcp.pop %v5406
        %v5423 = vrcp.pop %v5407
        %v5424 = vrcp.pop %v5408
        %v5425 = vrcp.pop %v5409
        %v5426 = vrcp.pop %v5410
        %v5427 = vrcp.pop %v5411
        %v5428 = vrcp.pop %v5412
        %v5429 = vrcp.pop %v5413
        %v5430 = vrcp.pop %v5414
        %v5431 = vmul.f32 %v5312, %v5415
        %v5432 = vmul.f32 %v5314, %v5416
        %v5433 = vmul.f32 %v5317, %v5417
        %v5434 = vmul.f32 %v5319, %v5418
        %v5435 = vmul.f32 %v5322, %v5419
        %v5436 = vmul.f32 %v5324, %v5420
        %v5437 = vmul.f32 %v5327, %v5421
        %v5438 = vmul.f32 %v5329, %v5422
        %v5439 = vmul.f32 %v5332, %v5423
        %v5440 = vmul.f32 %v5334, %v5424
        %v5441 = vmul.f32 %v5337, %v5425
        %v5442 = vmul.f32 %v5339, %v5426
        %v5443 = vmul.f32 %v5342, %v5427
        %v5444 = vmul.f32 %v5344, %v5428
        %v5445 = vmul.f32 %v5347, %v5429
        %v5446 = vmul.f32 %v5349, %v5430
        %v5447 = vadd.f32 %v1716, %v5431
        %v5448 = vadd.f32 %v1717, %v5432
        %v5449 = vadd.f32 %v1718, %v5433
        %v5450 = vadd.f32 %v1719, %v5434
        %v5451 = vadd.f32 %v1720, %v5435
        %v5452 = vadd.f32 %v1721, %v5436
        %v5453 = vadd.f32 %v1722, %v5437
        %v5454 = vadd.f32 %v1723, %v5438
        %v5455 = vadd.f32 %v1724, %v5439
        %v5456 = vadd.f32 %v1725, %v5440
        %v5457 = vadd.f32 %v1726, %v5441
        %v5458 = vadd.f32 %v1727, %v5442
        %v5459 = vadd.f32 %v1728, %v5443
        %v5460 = vadd.f32 %v1729, %v5444
        %v5461 = vadd.f32 %v1730, %v5445
        %v5462 = vadd.f32 %v1731, %v5446
        %v5463 = vld [vmem:[#allocation5] sm:$0xff]
        %v5464 = vld [vmem:[#allocation5 + $0x8] sm:$0xff]
        %v5465 = vld [vmem:[#allocation5 + $0x10] sm:$0xff]
        %v5466 = vld [vmem:[#allocation5 + $0x18] sm:$0xff]
        %v5467 = vld [vmem:[#allocation5 + $0x20] sm:$0xff]
        %v5468 = vld [vmem:[#allocation5 + $0x28] sm:$0xff]
        %v5469 = vld [vmem:[#allocation5 + $0x30] sm:$0xff]
        %v5470 = vld [vmem:[#allocation5 + $0x38] sm:$0xff]
        %v5471 = vld [vmem:[#allocation5 + $0x40] sm:$0xff]
        %v5472 = vld [vmem:[#allocation5 + $0x48] sm:$0xff]
        %v5473 = vld [vmem:[#allocation5 + $0x50] sm:$0xff]
        %v5474 = vld [vmem:[#allocation5 + $0x58] sm:$0xff]
        %v5475 = vld [vmem:[#allocation5 + $0x60] sm:$0xff]
        %v5476 = vld [vmem:[#allocation5 + $0x68] sm:$0xff]
        %v5477 = vld [vmem:[#allocation5 + $0x70] sm:$0xff]
        %v5478 = vld [vmem:[#allocation5 + $0x78] sm:$0xff]
        %5479 = vmatpush.msra.mxu0 %v5462
        %5480 = vmatpush.msra.mxu0 %v5461
        %5481 = vmatpush.msra.mxu0 %v5460
        %5482 = vmatpush.msra.mxu0 %v5459
        %5483 = vmatpush.msra.mxu0 %v5458
        %5484 = vmatpush.msra.mxu0 %v5457
        %5485 = vmatpush.msra.mxu0 %v5456
        %5486 = vmatpush.msra.mxu0 %v5455
        %5487 = vmatpush.msra.mxu0 %v5454
        %5488 = vmatpush.msra.mxu0 %v5453
        %5489 = vmatpush.msra.mxu0 %v5452
        %5490 = vmatpush.msra.mxu0 %v5451
        %5491 = vmatpush.msra.mxu0 %v5450
        %5492 = vmatpush.msra.mxu0 %v5449
        %5493 = vmatpush.msra.mxu0 %v5448
        %5494 = vmatpush.msra.mxu0 %v5447
        %5495 = vmatmul.f32.gmra.mxu0 %v5463
        %v5496 = vpop.f32.mrf.mxu0
        %v5497 = vadd.f32 0.0, %v5496
        %5498 = vmatmul.f32.gmra.mxu0 %v5464
        %v5499 = vpop.f32.mrf.mxu0
        %v5500 = vadd.f32 0.0, %v5499
        %5501 = vmatmul.f32.gmra.mxu0 %v5465
        %v5502 = vpop.f32.mrf.mxu0
        %v5503 = vadd.f32 0.0, %v5502
        %5504 = vmatmul.f32.gmra.mxu0 %v5466
        %v5505 = vpop.f32.mrf.mxu0
        %v5506 = vadd.f32 0.0, %v5505
        %5507 = vmatmul.f32.gmra.mxu0 %v5467
        %v5508 = vpop.f32.mrf.mxu0
        %v5509 = vadd.f32 0.0, %v5508
        %5510 = vmatmul.f32.gmra.mxu0 %v5468
        %v5511 = vpop.f32.mrf.mxu0
        %v5512 = vadd.f32 0.0, %v5511
        %5513 = vmatmul.f32.gmra.mxu0 %v5469
        %v5514 = vpop.f32.mrf.mxu0
        %v5515 = vadd.f32 0.0, %v5514
        %5516 = vmatmul.f32.gmra.mxu0 %v5470
        %v5517 = vpop.f32.mrf.mxu0
        %v5518 = vadd.f32 0.0, %v5517
        %5519 = vmatmul.f32.gmra.mxu0 %v5471
        %v5520 = vpop.f32.mrf.mxu0
        %v5521 = vadd.f32 0.0, %v5520
        %5522 = vmatmul.f32.gmra.mxu0 %v5472
        %v5523 = vpop.f32.mrf.mxu0
        %v5524 = vadd.f32 0.0, %v5523
        %5525 = vmatmul.f32.gmra.mxu0 %v5473
        %v5526 = vpop.f32.mrf.mxu0
        %v5527 = vadd.f32 0.0, %v5526
        %5528 = vmatmul.f32.gmra.mxu0 %v5474
        %v5529 = vpop.f32.mrf.mxu0
        %v5530 = vadd.f32 0.0, %v5529
        %5531 = vmatmul.f32.gmra.mxu0 %v5475
        %v5532 = vpop.f32.mrf.mxu0
        %v5533 = vadd.f32 0.0, %v5532
        %5534 = vmatmul.f32.gmra.mxu0 %v5476
        %v5535 = vpop.f32.mrf.mxu0
        %v5536 = vadd.f32 0.0, %v5535
        %5537 = vmatmul.f32.gmra.mxu0 %v5477
        %v5538 = vpop.f32.mrf.mxu0
        %v5539 = vadd.f32 0.0, %v5538
        %5540 = vmatmul.f32.gmra.mxu0 %v5478
        %v5541 = vpop.f32.mrf.mxu0
        %v5542 = vadd.f32 0.0, %v5541
        %5543 = vdwg.mxu0
        %v5544 = vsub.f32 %v5447, %v5497
        %v5545 = vsub.f32 %v5448, %v5500
        %v5546 = vsub.f32 %v5449, %v5503
        %v5547 = vsub.f32 %v5450, %v5506
        %v5548 = vsub.f32 %v5451, %v5509
        %v5549 = vsub.f32 %v5452, %v5512
        %v5550 = vsub.f32 %v5453, %v5515
        %v5551 = vsub.f32 %v5454, %v5518
        %v5552 = vsub.f32 %v5455, %v5521
        %v5553 = vsub.f32 %v5456, %v5524
        %v5554 = vsub.f32 %v5457, %v5527
        %v5555 = vsub.f32 %v5458, %v5530
        %v5556 = vsub.f32 %v5459, %v5533
        %v5557 = vsub.f32 %v5460, %v5536
        %v5558 = vsub.f32 %v5461, %v5539
        %v5559 = vsub.f32 %v5462, %v5542
        %v5560 = vld [vmem:[%s2] sm:$0xff]
        %v5561 = vld [vmem:[%s2 + $0x8] sm:$0xff]
        %v5562 = vld [vmem:[%s2 + $0x10] sm:$0xff]
        %v5563 = vld [vmem:[%s2 + $0x18] sm:$0xff]
        %v5564 = vld [vmem:[%s2 + $0x20] sm:$0xff]
        %v5565 = vld [vmem:[%s2 + $0x28] sm:$0xff]
        %v5566 = vld [vmem:[%s2 + $0x30] sm:$0xff]
        %v5567 = vld [vmem:[%s2 + $0x38] sm:$0xff]
        %v5568 = vld [vmem:[%s2 + $0x40] sm:$0xff]
        %v5569 = vld [vmem:[%s2 + $0x48] sm:$0xff]
        %v5570 = vld [vmem:[%s2 + $0x50] sm:$0xff]
        %v5571 = vld [vmem:[%s2 + $0x58] sm:$0xff]
        %v5572 = vld [vmem:[%s2 + $0x60] sm:$0xff]
        %v5573 = vld [vmem:[%s2 + $0x68] sm:$0xff]
        %v5574 = vld [vmem:[%s2 + $0x70] sm:$0xff]
        %v5575 = vld [vmem:[%s2 + $0x78] sm:$0xff]
        %5577 = vset.pattern.permute.xlu0 0
        %5578 = vperm.xlu0 %5577, %v5560
        %v5579 = vpop.permute.xlu0 %5578
        %5582 = vset.pattern.permute.xlu0 0
        %5583 = vperm.xlu0 %5582, %v5561
        %v5584 = vpop.permute.xlu0 %5583
        %5587 = vset.pattern.permute.xlu0 0
        %5588 = vperm.xlu0 %5587, %v5562
        %v5589 = vpop.permute.xlu0 %5588
        %5592 = vset.pattern.permute.xlu0 0
        %5593 = vperm.xlu0 %5592, %v5563
        %v5594 = vpop.permute.xlu0 %5593
        %5597 = vset.pattern.permute.xlu0 0
        %5598 = vperm.xlu0 %5597, %v5564
        %v5599 = vpop.permute.xlu0 %5598
        %5602 = vset.pattern.permute.xlu0 0
        %5603 = vperm.xlu0 %5602, %v5565
        %v5604 = vpop.permute.xlu0 %5603
        %5607 = vset.pattern.permute.xlu0 0
        %5608 = vperm.xlu0 %5607, %v5566
        %v5609 = vpop.permute.xlu0 %5608
        %5612 = vset.pattern.permute.xlu0 0
        %5613 = vperm.xlu0 %5612, %v5567
        %v5614 = vpop.permute.xlu0 %5613
        %5617 = vset.pattern.permute.xlu0 0
        %5618 = vperm.xlu0 %5617, %v5568
        %v5619 = vpop.permute.xlu0 %5618
        %5622 = vset.pattern.permute.xlu0 0
        %5623 = vperm.xlu0 %5622, %v5569
        %v5624 = vpop.permute.xlu0 %5623
        %5627 = vset.pattern.permute.xlu0 0
        %5628 = vperm.xlu0 %5627, %v5570
        %v5629 = vpop.permute.xlu0 %5628
        %5632 = vset.pattern.permute.xlu0 0
        %5633 = vperm.xlu0 %5632, %v5571
        %v5634 = vpop.permute.xlu0 %5633
        %5637 = vset.pattern.permute.xlu0 0
        %5638 = vperm.xlu0 %5637, %v5572
        %v5639 = vpop.permute.xlu0 %5638
        %5642 = vset.pattern.permute.xlu0 0
        %5643 = vperm.xlu0 %5642, %v5573
        %v5644 = vpop.permute.xlu0 %5643
        %5647 = vset.pattern.permute.xlu0 0
        %5648 = vperm.xlu0 %5647, %v5574
        %v5649 = vpop.permute.xlu0 %5648
        %5652 = vset.pattern.permute.xlu0 0
        %5653 = vperm.xlu0 %5652, %v5575
        %v5654 = vpop.permute.xlu0 %5653
        %v5656 = vmul.f32 %v5544, %v5579
        %v5657 = vmul.f32 %v5545, %v5584
        %v5658 = vmul.f32 %v5546, %v5589
        %v5659 = vmul.f32 %v5547, %v5594
        %v5660 = vmul.f32 %v5548, %v5599
        %v5661 = vmul.f32 %v5549, %v5604
        %v5662 = vmul.f32 %v5550, %v5609
        %v5663 = vmul.f32 %v5551, %v5614
        %v5664 = vmul.f32 %v5552, %v5619
        %v5665 = vmul.f32 %v5553, %v5624
        %v5666 = vmul.f32 %v5554, %v5629
        %v5667 = vmul.f32 %v5555, %v5634
        %v5668 = vmul.f32 %v5556, %v5639
        %v5669 = vmul.f32 %v5557, %v5644
        %v5670 = vmul.f32 %v5558, %v5649
        %v5671 = vmul.f32 %v5559, %v5654
        %v5672 = vmul.f32 %v5656, %v5656
        %v5673 = vmul.f32 %v5657, %v5657
        %v5674 = vmul.f32 %v5658, %v5658
        %v5675 = vmul.f32 %v5659, %v5659
        %v5676 = vmul.f32 %v5660, %v5660
        %v5677 = vmul.f32 %v5661, %v5661
        %v5678 = vmul.f32 %v5662, %v5662
        %v5679 = vmul.f32 %v5663, %v5663
        %v5680 = vmul.f32 %v5664, %v5664
        %v5681 = vmul.f32 %v5665, %v5665
        %v5682 = vmul.f32 %v5666, %v5666
        %v5683 = vmul.f32 %v5667, %v5667
        %v5684 = vmul.f32 %v5668, %v5668
        %v5685 = vmul.f32 %v5669, %v5669
        %v5686 = vmul.f32 %v5670, %v5670
        %v5687 = vmul.f32 %v5671, %v5671
        %5688 = vmatpush.msra.mxu0 %v5687
        %5689 = vmatpush.msra.mxu0 %v5686
        %5690 = vmatpush.msra.mxu0 %v5685
        %5691 = vmatpush.msra.mxu0 %v5684
        %5692 = vmatpush.msra.mxu0 %v5683
        %5693 = vmatpush.msra.mxu0 %v5682
        %5694 = vmatpush.msra.mxu0 %v5681
        %5695 = vmatpush.msra.mxu0 %v5680
        %5696 = vmatpush.msra.mxu0 %v5679
        %5697 = vmatpush.msra.mxu0 %v5678
        %5698 = vmatpush.msra.mxu0 %v5677
        %5699 = vmatpush.msra.mxu0 %v5676
        %5700 = vmatpush.msra.mxu0 %v5675
        %5701 = vmatpush.msra.mxu0 %v5674
        %5702 = vmatpush.msra.mxu0 %v5673
        %5703 = vmatpush.msra.mxu0 %v5672
        %5704 = vmatmul.f32.gmra.mxu0 %v5463
        %v5705 = vpop.f32.mrf.mxu0
        %v5706 = vadd.f32 1e-05, %v5705
        %5707 = vmatmul.f32.gmra.mxu0 %v5464
        %v5708 = vpop.f32.mrf.mxu0
        %v5709 = vadd.f32 1e-05, %v5708
        %5710 = vmatmul.f32.gmra.mxu0 %v5465
        %v5711 = vpop.f32.mrf.mxu0
        %v5712 = vadd.f32 1e-05, %v5711
        %5713 = vmatmul.f32.gmra.mxu0 %v5466
        %v5714 = vpop.f32.mrf.mxu0
        %v5715 = vadd.f32 1e-05, %v5714
        %5716 = vmatmul.f32.gmra.mxu0 %v5467
        %v5717 = vpop.f32.mrf.mxu0
        %v5718 = vadd.f32 1e-05, %v5717
        %5719 = vmatmul.f32.gmra.mxu0 %v5468
        %v5720 = vpop.f32.mrf.mxu0
        %v5721 = vadd.f32 1e-05, %v5720
        %5722 = vmatmul.f32.gmra.mxu0 %v5469
        %v5723 = vpop.f32.mrf.mxu0
        %v5724 = vadd.f32 1e-05, %v5723
        %5725 = vmatmul.f32.gmra.mxu0 %v5470
        %v5726 = vpop.f32.mrf.mxu0
        %v5727 = vadd.f32 1e-05, %v5726
        %5728 = vmatmul.f32.gmra.mxu0 %v5471
        %v5729 = vpop.f32.mrf.mxu0
        %v5730 = vadd.f32 1e-05, %v5729
        %5731 = vmatmul.f32.gmra.mxu0 %v5472
        %v5732 = vpop.f32.mrf.mxu0
        %v5733 = vadd.f32 1e-05, %v5732
        %5734 = vmatmul.f32.gmra.mxu0 %v5473
        %v5735 = vpop.f32.mrf.mxu0
        %v5736 = vadd.f32 1e-05, %v5735
        %5737 = vmatmul.f32.gmra.mxu0 %v5474
        %v5738 = vpop.f32.mrf.mxu0
        %v5739 = vadd.f32 1e-05, %v5738
        %5740 = vmatmul.f32.gmra.mxu0 %v5475
        %v5741 = vpop.f32.mrf.mxu0
        %v5742 = vadd.f32 1e-05, %v5741
        %5743 = vmatmul.f32.gmra.mxu0 %v5476
        %v5744 = vpop.f32.mrf.mxu0
        %v5745 = vadd.f32 1e-05, %v5744
        %5746 = vmatmul.f32.gmra.mxu0 %v5477
        %v5747 = vpop.f32.mrf.mxu0
        %v5748 = vadd.f32 1e-05, %v5747
        %5749 = vmatmul.f32.gmra.mxu0 %v5478
        %v5750 = vpop.f32.mrf.mxu0
        %v5751 = vadd.f32 1e-05, %v5750
        %5752 = vdwg.mxu0
        %v5753 = vrsqrt.pop %v5706
        %v5754 = vmul.f32 %v5753, %v5706
        %v5755 = vmul.f32 %v5754, %v5753
        %v5756 = vmul.f32 0.5, %v5755
        %v5757 = vsub.f32 1.5, %v5756
        %v5758 = vmul.f32 %v5753, %v5757
        %vm5759 = vweird.f32 %v5706
        %vm5760 = vweird.f32 %v5753
        %vm5761 = vmor %vm5759, %vm5760
        %v5762 = vsel %vm5761, %v5753, %v5758
        %v5763 = vrsqrt.pop %v5709
        %v5764 = vmul.f32 %v5763, %v5709
        %v5765 = vmul.f32 %v5764, %v5763
        %v5766 = vmul.f32 0.5, %v5765
        %v5767 = vsub.f32 1.5, %v5766
        %v5768 = vmul.f32 %v5763, %v5767
        %vm5769 = vweird.f32 %v5709
        %vm5770 = vweird.f32 %v5763
        %vm5771 = vmor %vm5769, %vm5770
        %v5772 = vsel %vm5771, %v5763, %v5768
        %v5773 = vrsqrt.pop %v5712
        %v5774 = vmul.f32 %v5773, %v5712
        %v5775 = vmul.f32 %v5774, %v5773
        %v5776 = vmul.f32 0.5, %v5775
        %v5777 = vsub.f32 1.5, %v5776
        %v5778 = vmul.f32 %v5773, %v5777
        %vm5779 = vweird.f32 %v5712
        %vm5780 = vweird.f32 %v5773
        %vm5781 = vmor %vm5779, %vm5780
        %v5782 = vsel %vm5781, %v5773, %v5778
        %v5783 = vrsqrt.pop %v5715
        %v5784 = vmul.f32 %v5783, %v5715
        %v5785 = vmul.f32 %v5784, %v5783
        %v5786 = vmul.f32 0.5, %v5785
        %v5787 = vsub.f32 1.5, %v5786
        %v5788 = vmul.f32 %v5783, %v5787
        %vm5789 = vweird.f32 %v5715
        %vm5790 = vweird.f32 %v5783
        %vm5791 = vmor %vm5789, %vm5790
        %v5792 = vsel %vm5791, %v5783, %v5788
        %v5793 = vrsqrt.pop %v5718
        %v5794 = vmul.f32 %v5793, %v5718
        %v5795 = vmul.f32 %v5794, %v5793
        %v5796 = vmul.f32 0.5, %v5795
        %v5797 = vsub.f32 1.5, %v5796
        %v5798 = vmul.f32 %v5793, %v5797
        %vm5799 = vweird.f32 %v5718
        %vm5800 = vweird.f32 %v5793
        %vm5801 = vmor %vm5799, %vm5800
        %v5802 = vsel %vm5801, %v5793, %v5798
        %v5803 = vrsqrt.pop %v5721
        %v5804 = vmul.f32 %v5803, %v5721
        %v5805 = vmul.f32 %v5804, %v5803
        %v5806 = vmul.f32 0.5, %v5805
        %v5807 = vsub.f32 1.5, %v5806
        %v5808 = vmul.f32 %v5803, %v5807
        %vm5809 = vweird.f32 %v5721
        %vm5810 = vweird.f32 %v5803
        %vm5811 = vmor %vm5809, %vm5810
        %v5812 = vsel %vm5811, %v5803, %v5808
        %v5813 = vrsqrt.pop %v5724
        %v5814 = vmul.f32 %v5813, %v5724
        %v5815 = vmul.f32 %v5814, %v5813
        %v5816 = vmul.f32 0.5, %v5815
        %v5817 = vsub.f32 1.5, %v5816
        %v5818 = vmul.f32 %v5813, %v5817
        %vm5819 = vweird.f32 %v5724
        %vm5820 = vweird.f32 %v5813
        %vm5821 = vmor %vm5819, %vm5820
        %v5822 = vsel %vm5821, %v5813, %v5818
        %v5823 = vrsqrt.pop %v5727
        %v5824 = vmul.f32 %v5823, %v5727
        %v5825 = vmul.f32 %v5824, %v5823
        %v5826 = vmul.f32 0.5, %v5825
        %v5827 = vsub.f32 1.5, %v5826
        %v5828 = vmul.f32 %v5823, %v5827
        %vm5829 = vweird.f32 %v5727
        %vm5830 = vweird.f32 %v5823
        %vm5831 = vmor %vm5829, %vm5830
        %v5832 = vsel %vm5831, %v5823, %v5828
        %v5833 = vrsqrt.pop %v5730
        %v5834 = vmul.f32 %v5833, %v5730
        %v5835 = vmul.f32 %v5834, %v5833
        %v5836 = vmul.f32 0.5, %v5835
        %v5837 = vsub.f32 1.5, %v5836
        %v5838 = vmul.f32 %v5833, %v5837
        %vm5839 = vweird.f32 %v5730
        %vm5840 = vweird.f32 %v5833
        %vm5841 = vmor %vm5839, %vm5840
        %v5842 = vsel %vm5841, %v5833, %v5838
        %v5843 = vrsqrt.pop %v5733
        %v5844 = vmul.f32 %v5843, %v5733
        %v5845 = vmul.f32 %v5844, %v5843
        %v5846 = vmul.f32 0.5, %v5845
        %v5847 = vsub.f32 1.5, %v5846
        %v5848 = vmul.f32 %v5843, %v5847
        %vm5849 = vweird.f32 %v5733
        %vm5850 = vweird.f32 %v5843
        %vm5851 = vmor %vm5849, %vm5850
        %v5852 = vsel %vm5851, %v5843, %v5848
        %v5853 = vrsqrt.pop %v5736
        %v5854 = vmul.f32 %v5853, %v5736
        %v5855 = vmul.f32 %v5854, %v5853
        %v5856 = vmul.f32 0.5, %v5855
        %v5857 = vsub.f32 1.5, %v5856
        %v5858 = vmul.f32 %v5853, %v5857
        %vm5859 = vweird.f32 %v5736
        %vm5860 = vweird.f32 %v5853
        %vm5861 = vmor %vm5859, %vm5860
        %v5862 = vsel %vm5861, %v5853, %v5858
        %v5863 = vrsqrt.pop %v5739
        %v5864 = vmul.f32 %v5863, %v5739
        %v5865 = vmul.f32 %v5864, %v5863
        %v5866 = vmul.f32 0.5, %v5865
        %v5867 = vsub.f32 1.5, %v5866
        %v5868 = vmul.f32 %v5863, %v5867
        %vm5869 = vweird.f32 %v5739
        %vm5870 = vweird.f32 %v5863
        %vm5871 = vmor %vm5869, %vm5870
        %v5872 = vsel %vm5871, %v5863, %v5868
        %v5873 = vrsqrt.pop %v5742
        %v5874 = vmul.f32 %v5873, %v5742
        %v5875 = vmul.f32 %v5874, %v5873
        %v5876 = vmul.f32 0.5, %v5875
        %v5877 = vsub.f32 1.5, %v5876
        %v5878 = vmul.f32 %v5873, %v5877
        %vm5879 = vweird.f32 %v5742
        %vm5880 = vweird.f32 %v5873
        %vm5881 = vmor %vm5879, %vm5880
        %v5882 = vsel %vm5881, %v5873, %v5878
        %v5883 = vrsqrt.pop %v5745
        %v5884 = vmul.f32 %v5883, %v5745
        %v5885 = vmul.f32 %v5884, %v5883
        %v5886 = vmul.f32 0.5, %v5885
        %v5887 = vsub.f32 1.5, %v5886
        %v5888 = vmul.f32 %v5883, %v5887
        %vm5889 = vweird.f32 %v5745
        %vm5890 = vweird.f32 %v5883
        %vm5891 = vmor %vm5889, %vm5890
        %v5892 = vsel %vm5891, %v5883, %v5888
        %v5893 = vrsqrt.pop %v5748
        %v5894 = vmul.f32 %v5893, %v5748
        %v5895 = vmul.f32 %v5894, %v5893
        %v5896 = vmul.f32 0.5, %v5895
        %v5897 = vsub.f32 1.5, %v5896
        %v5898 = vmul.f32 %v5893, %v5897
        %vm5899 = vweird.f32 %v5748
        %vm5900 = vweird.f32 %v5893
        %vm5901 = vmor %vm5899, %vm5900
        %v5902 = vsel %vm5901, %v5893, %v5898
        %v5903 = vrsqrt.pop %v5751
        %v5904 = vmul.f32 %v5903, %v5751
        %v5905 = vmul.f32 %v5904, %v5903
        %v5906 = vmul.f32 0.5, %v5905
        %v5907 = vsub.f32 1.5, %v5906
        %v5908 = vmul.f32 %v5903, %v5907
        %vm5909 = vweird.f32 %v5751
        %vm5910 = vweird.f32 %v5903
        %vm5911 = vmor %vm5909, %vm5910
        %v5912 = vsel %vm5911, %v5903, %v5908
        %v5913 = vmul.f32 %v5656, %v5762
        %v5914 = vmul.f32 %v5657, %v5772
        %v5915 = vmul.f32 %v5658, %v5782
        %v5916 = vmul.f32 %v5659, %v5792
        %v5917 = vmul.f32 %v5660, %v5802
        %v5918 = vmul.f32 %v5661, %v5812
        %v5919 = vmul.f32 %v5662, %v5822
        %v5920 = vmul.f32 %v5663, %v5832
        %v5921 = vmul.f32 %v5664, %v5842
        %v5922 = vmul.f32 %v5665, %v5852
        %v5923 = vmul.f32 %v5666, %v5862
        %v5924 = vmul.f32 %v5667, %v5872
        %v5925 = vmul.f32 %v5668, %v5882
        %v5926 = vmul.f32 %v5669, %v5892
        %v5927 = vmul.f32 %v5670, %v5902
        %v5928 = vmul.f32 %v5671, %v5912
        %5929 = vst [vmem:[#allocation2] sm:$0xff] %v5913
        %5930 = vst [vmem:[#allocation2 + $0x8] sm:$0xff] %v5914
        %5931 = vst [vmem:[#allocation2 + $0x10] sm:$0xff] %v5915
        %5932 = vst [vmem:[#allocation2 + $0x18] sm:$0xff] %v5916
        %5933 = vst [vmem:[#allocation2 + $0x20] sm:$0xff] %v5917
        %5934 = vst [vmem:[#allocation2 + $0x28] sm:$0xff] %v5918
        %5935 = vst [vmem:[#allocation2 + $0x30] sm:$0xff] %v5919
        %5936 = vst [vmem:[#allocation2 + $0x38] sm:$0xff] %v5920
        %5937 = vst [vmem:[#allocation2 + $0x40] sm:$0xff] %v5921
        %5938 = vst [vmem:[#allocation2 + $0x48] sm:$0xff] %v5922
        %5939 = vst [vmem:[#allocation2 + $0x50] sm:$0xff] %v5923
        %5940 = vst [vmem:[#allocation2 + $0x58] sm:$0xff] %v5924
        %5941 = vst [vmem:[#allocation2 + $0x60] sm:$0xff] %v5925
        %5942 = vst [vmem:[#allocation2 + $0x68] sm:$0xff] %v5926
        %5943 = vst [vmem:[#allocation2 + $0x70] sm:$0xff] %v5927
        %5944 = vst [vmem:[#allocation2 + $0x78] sm:$0xff] %v5928
        %p5945 = scmp.eq.s32.totalorder %s42, 5
        // Predicated region
        $region197: #{mpnn_forward.1} parent=127 // pred_check
          %p5946 = pneg %p5945
        $region198: #{mpnn_forward.1} parent=127 // pred_check_branch
          %5948 = sbr.rel (%p5946) target = $region200
        $region199: #{mpnn_forward.1} parent=127 // pred_region
          %v5949 = vpack.c.bf16 %v5914, %v5913
          %v5950 = vpack.c.bf16 %v5916, %v5915
          %v5951 = vpack.c.bf16 %v5918, %v5917
          %v5952 = vpack.c.bf16 %v5920, %v5919
          %v5953 = vpack.c.bf16 %v5922, %v5921
          %v5954 = vpack.c.bf16 %v5924, %v5923
          %v5955 = vpack.c.bf16 %v5926, %v5925
          %v5956 = vpack.c.bf16 %v5928, %v5927
          %v5957 = vld [vmem:[%s23] sm:$0xff]
          %v5958 = vld [vmem:[%s23 + $0x8] sm:$0xf]
          %v5959 = vld [vmem:[%s23 + $0xc] sm:$0xff]
          %v5960 = vld [vmem:[%s23 + $0x14] sm:$0xf]
          %v5961 = vld [vmem:[%s23 + $0x18] sm:$0xff]
          %v5962 = vld [vmem:[%s23 + $0x20] sm:$0xf]
          %v5963 = vld [vmem:[%s23 + $0x24] sm:$0xff]
          %v5964 = vld [vmem:[%s23 + $0x2c] sm:$0xf]
          %v5965 = vld [vmem:[%s23 + $0x30] sm:$0xff]
          %v5966 = vld [vmem:[%s23 + $0x38] sm:$0xf]
          %v5967 = vld [vmem:[%s23 + $0x3c] sm:$0xff]
          %v5968 = vld [vmem:[%s23 + $0x44] sm:$0xf]
          %v5969 = vld [vmem:[%s23 + $0x48] sm:$0xff]
          %v5970 = vld [vmem:[%s23 + $0x50] sm:$0xf]
          %v5971 = vld [vmem:[%s23 + $0x54] sm:$0xff]
          %v5972 = vld [vmem:[%s23 + $0x5c] sm:$0xf]
          %v5973 = vld [vmem:[%s23 + $0x60] sm:$0xff]
          %v5974 = vld [vmem:[%s23 + $0x68] sm:$0xf]
          %v5975 = vld [vmem:[%s23 + $0x6c] sm:$0xff]
          %v5976 = vld [vmem:[%s23 + $0x74] sm:$0xf]
          %v5977 = vld [vmem:[%s23 + $0x78] sm:$0xff]
          %v5978 = vld [vmem:[%s23 + $0x80] sm:$0xf]
          %v5979 = vld [vmem:[%s23 + $0x84] sm:$0xff]
          %v5980 = vld [vmem:[%s23 + $0x8c] sm:$0xf]
          %v5981 = vld [vmem:[%s23 + $0x90] sm:$0xff]
          %v5982 = vld [vmem:[%s23 + $0x98] sm:$0xf]
          %v5983 = vld [vmem:[%s23 + $0x9c] sm:$0xff]
          %v5984 = vld [vmem:[%s23 + $0xa4] sm:$0xf]
          %v5985 = vld [vmem:[%s23 + $0xa8] sm:$0xff]
          %v5986 = vld [vmem:[%s23 + $0xb0] sm:$0xf]
          %v5987 = vld [vmem:[%s23 + $0xb4] sm:$0xff]
          %v5988 = vld [vmem:[%s23 + $0xbc] sm:$0xf]
          %v5989 = vld [vmem:[#allocation20] sm:$0x7]
          %v5991 = vperm.slane %v5989, 0
          %v5992 = vperm.slane %v5989, 1
          %v5993 = vperm.slane %v5989, 2
          %v6029 = vunpack.c.l.b16 %v5957
          %v6030 = vunpack.c.h.b16 %v5957
          %v6031 = vunpack.c.l.b16 %v5958
          %v6032 = vunpack.c.l.b16 %v5959
          %v6033 = vunpack.c.h.b16 %v5959
          %v6034 = vunpack.c.l.b16 %v5960
          %v6035 = vunpack.c.l.b16 %v5961
          %v6036 = vunpack.c.h.b16 %v5961
          %v6037 = vunpack.c.l.b16 %v5962
          %v6038 = vunpack.c.l.b16 %v5963
          %v6039 = vunpack.c.h.b16 %v5963
          %v6040 = vunpack.c.l.b16 %v5964
          %v6041 = vunpack.c.l.b16 %v5965
          %v6042 = vunpack.c.h.b16 %v5965
          %v6043 = vunpack.c.l.b16 %v5966
          %v6044 = vunpack.c.l.b16 %v5967
          %v6045 = vunpack.c.h.b16 %v5967
          %v6046 = vunpack.c.l.b16 %v5968
          %v6047 = vunpack.c.l.b16 %v5969
          %v6048 = vunpack.c.h.b16 %v5969
          %v6049 = vunpack.c.l.b16 %v5970
          %v6050 = vunpack.c.l.b16 %v5971
          %v6051 = vunpack.c.h.b16 %v5971
          %v6052 = vunpack.c.l.b16 %v5972
          %v6053 = vunpack.c.l.b16 %v5973
          %v6054 = vunpack.c.h.b16 %v5973
          %v6055 = vunpack.c.l.b16 %v5974
          %v6056 = vunpack.c.l.b16 %v5975
          %v6057 = vunpack.c.h.b16 %v5975
          %v6058 = vunpack.c.l.b16 %v5976
          %v6059 = vunpack.c.l.b16 %v5977
          %v6060 = vunpack.c.h.b16 %v5977
          %v6061 = vunpack.c.l.b16 %v5978
          %v6062 = vunpack.c.l.b16 %v5979
          %v6063 = vunpack.c.h.b16 %v5979
          %v6064 = vunpack.c.l.b16 %v5980
          %v6065 = vunpack.c.l.b16 %v5981
          %v6066 = vunpack.c.h.b16 %v5981
          %v6067 = vunpack.c.l.b16 %v5982
          %v6068 = vunpack.c.l.b16 %v5983
          %v6069 = vunpack.c.h.b16 %v5983
          %v6070 = vunpack.c.l.b16 %v5984
          %v6071 = vunpack.c.l.b16 %v5985
          %v6072 = vunpack.c.h.b16 %v5985
          %v6073 = vunpack.c.l.b16 %v5986
          %v6074 = vunpack.c.l.b16 %v5987
          %v6075 = vunpack.c.h.b16 %v5987
          %v6076 = vunpack.c.l.b16 %v5988
          %v6077 = vpack.c.b16 %v6032, %v6029
          %v6078 = vpack.c.b16 %v6033, %v6030
          %v6079 = vpack.c.b16 %v6034, %v6031
          %v6080 = vpack.c.b16 %v6038, %v6035
          %v6081 = vpack.c.b16 %v6039, %v6036
          %v6082 = vpack.c.b16 %v6040, %v6037
          %v6083 = vpack.c.b16 %v6044, %v6041
          %v6084 = vpack.c.b16 %v6045, %v6042
          %v6085 = vpack.c.b16 %v6046, %v6043
          %v6086 = vpack.c.b16 %v6050, %v6047
          %v6087 = vpack.c.b16 %v6051, %v6048
          %v6088 = vpack.c.b16 %v6052, %v6049
          %v6089 = vpack.c.b16 %v6056, %v6053
          %v6090 = vpack.c.b16 %v6057, %v6054
          %v6091 = vpack.c.b16 %v6058, %v6055
          %v6092 = vpack.c.b16 %v6062, %v6059
          %v6093 = vpack.c.b16 %v6063, %v6060
          %v6094 = vpack.c.b16 %v6064, %v6061
          %v6095 = vpack.c.b16 %v6068, %v6065
          %v6096 = vpack.c.b16 %v6069, %v6066
          %v6097 = vpack.c.b16 %v6070, %v6067
          %v6098 = vpack.c.b16 %v6074, %v6071
          %v6099 = vpack.c.b16 %v6075, %v6072
          %v6100 = vpack.c.b16 %v6076, %v6073
          %6125 = vmatpush.bf16.msra.mxu0 %v6098
          %6126 = vmatpush.bf16.msra.mxu0 %v6095
          %6127 = vmatpush.bf16.msra.mxu0 %v6092
          %6128 = vmatpush.bf16.msra.mxu0 %v6089
          %6129 = vmatpush.bf16.msra.mxu0 %v6086
          %6130 = vmatpush.bf16.msra.mxu0 %v6083
          %6131 = vmatpush.bf16.msra.mxu0 %v6080
          %6132 = vmatpush.bf16.msra.mxu0 %v6077
          %6133 = vmatmul.bf16.gmra.mxu0 %v5949
          %v6134 = vpop.f32.mrf.mxu0
          %v6135 = vadd.f32 %v5991, %v6134
          %v6136 = vpop.f32.mrf.mxu0
          %v6137 = vadd.f32 %v5991, %v6136
          %6138 = vmatmul.bf16.gmra.mxu0 %v5950
          %v6139 = vpop.f32.mrf.mxu0
          %v6140 = vadd.f32 %v5991, %v6139
          %v6141 = vpop.f32.mrf.mxu0
          %v6142 = vadd.f32 %v5991, %v6141
          %6143 = vmatmul.bf16.gmra.mxu0 %v5951
          %v6144 = vpop.f32.mrf.mxu0
          %v6145 = vadd.f32 %v5991, %v6144
          %v6146 = vpop.f32.mrf.mxu0
          %v6147 = vadd.f32 %v5991, %v6146
          %6148 = vmatmul.bf16.gmra.mxu0 %v5952
          %v6149 = vpop.f32.mrf.mxu0
          %v6150 = vadd.f32 %v5991, %v6149
          %v6151 = vpop.f32.mrf.mxu0
          %v6152 = vadd.f32 %v5991, %v6151
          %6153 = vmatmul.bf16.gmra.mxu0 %v5953
          %v6154 = vpop.f32.mrf.mxu0
          %v6155 = vadd.f32 %v5991, %v6154
          %v6156 = vpop.f32.mrf.mxu0
          %v6157 = vadd.f32 %v5991, %v6156
          %6158 = vmatmul.bf16.gmra.mxu0 %v5954
          %v6159 = vpop.f32.mrf.mxu0
          %v6160 = vadd.f32 %v5991, %v6159
          %v6161 = vpop.f32.mrf.mxu0
          %v6162 = vadd.f32 %v5991, %v6161
          %6163 = vmatmul.bf16.gmra.mxu0 %v5955
          %v6164 = vpop.f32.mrf.mxu0
          %v6165 = vadd.f32 %v5991, %v6164
          %v6166 = vpop.f32.mrf.mxu0
          %v6167 = vadd.f32 %v5991, %v6166
          %6168 = vmatmul.bf16.gmra.mxu0 %v5956
          %v6169 = vpop.f32.mrf.mxu0
          %v6170 = vadd.f32 %v5991, %v6169
          %v6171 = vpop.f32.mrf.mxu0
          %v6172 = vadd.f32 %v5991, %v6171
          %6173 = vdwg.mxu0
          %6174 = vmatpush.bf16.msra.mxu0 %v6099
          %6175 = vmatpush.bf16.msra.mxu0 %v6096
          %6176 = vmatpush.bf16.msra.mxu0 %v6093
          %6177 = vmatpush.bf16.msra.mxu0 %v6090
          %6178 = vmatpush.bf16.msra.mxu0 %v6087
          %6179 = vmatpush.bf16.msra.mxu0 %v6084
          %6180 = vmatpush.bf16.msra.mxu0 %v6081
          %6181 = vmatpush.bf16.msra.mxu0 %v6078
          %6182 = vmatmul.bf16.gmra.mxu0 %v5949
          %v6183 = vpop.f32.mrf.mxu0
          %v6184 = vadd.f32 %v5992, %v6183
          %v6185 = vpop.f32.mrf.mxu0
          %v6186 = vadd.f32 %v5992, %v6185
          %6187 = vmatmul.bf16.gmra.mxu0 %v5950
          %v6188 = vpop.f32.mrf.mxu0
          %v6189 = vadd.f32 %v5992, %v6188
          %v6190 = vpop.f32.mrf.mxu0
          %v6191 = vadd.f32 %v5992, %v6190
          %6192 = vmatmul.bf16.gmra.mxu0 %v5951
          %v6193 = vpop.f32.mrf.mxu0
          %v6194 = vadd.f32 %v5992, %v6193
          %v6195 = vpop.f32.mrf.mxu0
          %v6196 = vadd.f32 %v5992, %v6195
          %6197 = vmatmul.bf16.gmra.mxu0 %v5952
          %v6198 = vpop.f32.mrf.mxu0
          %v6199 = vadd.f32 %v5992, %v6198
          %v6200 = vpop.f32.mrf.mxu0
          %v6201 = vadd.f32 %v5992, %v6200
          %6202 = vmatmul.bf16.gmra.mxu0 %v5953
          %v6203 = vpop.f32.mrf.mxu0
          %v6204 = vadd.f32 %v5992, %v6203
          %v6205 = vpop.f32.mrf.mxu0
          %v6206 = vadd.f32 %v5992, %v6205
          %6207 = vmatmul.bf16.gmra.mxu0 %v5954
          %v6208 = vpop.f32.mrf.mxu0
          %v6209 = vadd.f32 %v5992, %v6208
          %v6210 = vpop.f32.mrf.mxu0
          %v6211 = vadd.f32 %v5992, %v6210
          %6212 = vmatmul.bf16.gmra.mxu0 %v5955
          %v6213 = vpop.f32.mrf.mxu0
          %v6214 = vadd.f32 %v5992, %v6213
          %v6215 = vpop.f32.mrf.mxu0
          %v6216 = vadd.f32 %v5992, %v6215
          %6217 = vmatmul.bf16.gmra.mxu0 %v5956
          %v6218 = vpop.f32.mrf.mxu0
          %v6219 = vadd.f32 %v5992, %v6218
          %v6220 = vpop.f32.mrf.mxu0
          %v6221 = vadd.f32 %v5992, %v6220
          %6222 = vdwg.mxu0
          %6223 = vmatpush.bf16.msra.mxu0 %v6100
          %6224 = vmatpush.bf16.msra.mxu0 %v6097
          %6225 = vmatpush.bf16.msra.mxu0 %v6094
          %6226 = vmatpush.bf16.msra.mxu0 %v6091
          %6227 = vmatpush.bf16.msra.mxu0 %v6088
          %6228 = vmatpush.bf16.msra.mxu0 %v6085
          %6229 = vmatpush.bf16.msra.mxu0 %v6082
          %6230 = vmatpush.bf16.msra.mxu0 %v6079
          %6231 = vmatmul.bf16.gmra.mxu0 %v5949
          %v6232 = vpop.f32.mrf.mxu0
          %v6233 = vadd.f32 %v5993, %v6232
          %v6234 = vpop.f32.mrf.mxu0
          %v6235 = vadd.f32 %v5993, %v6234
          %6236 = vmatmul.bf16.gmra.mxu0 %v5950
          %v6237 = vpop.f32.mrf.mxu0
          %v6238 = vadd.f32 %v5993, %v6237
          %v6239 = vpop.f32.mrf.mxu0
          %v6240 = vadd.f32 %v5993, %v6239
          %6241 = vmatmul.bf16.gmra.mxu0 %v5951
          %v6242 = vpop.f32.mrf.mxu0
          %v6243 = vadd.f32 %v5993, %v6242
          %v6244 = vpop.f32.mrf.mxu0
          %v6245 = vadd.f32 %v5993, %v6244
          %6246 = vmatmul.bf16.gmra.mxu0 %v5952
          %v6247 = vpop.f32.mrf.mxu0
          %v6248 = vadd.f32 %v5993, %v6247
          %v6249 = vpop.f32.mrf.mxu0
          %v6250 = vadd.f32 %v5993, %v6249
          %6251 = vmatmul.bf16.gmra.mxu0 %v5953
          %v6252 = vpop.f32.mrf.mxu0
          %v6253 = vadd.f32 %v5993, %v6252
          %v6254 = vpop.f32.mrf.mxu0
          %v6255 = vadd.f32 %v5993, %v6254
          %6256 = vmatmul.bf16.gmra.mxu0 %v5954
          %v6257 = vpop.f32.mrf.mxu0
          %v6258 = vadd.f32 %v5993, %v6257
          %v6259 = vpop.f32.mrf.mxu0
          %v6260 = vadd.f32 %v5993, %v6259
          %6261 = vmatmul.bf16.gmra.mxu0 %v5955
          %v6262 = vpop.f32.mrf.mxu0
          %v6263 = vadd.f32 %v5993, %v6262
          %v6264 = vpop.f32.mrf.mxu0
          %v6265 = vadd.f32 %v5993, %v6264
          %6266 = vmatmul.bf16.gmra.mxu0 %v5956
          %v6267 = vpop.f32.mrf.mxu0
          %v6268 = vadd.f32 %v5993, %v6267
          %v6269 = vpop.f32.mrf.mxu0
          %v6270 = vadd.f32 %v5993, %v6269
          %6271 = vdwg.mxu0
          %v6272 = vsub.f32 0.0, %v6135
          %v6273 = vsub.f32 0.0, %v6184
          %v6274 = vsub.f32 0.0, %v6233
          %v6275 = vsub.f32 0.0, %v6137
          %v6276 = vsub.f32 0.0, %v6186
          %v6277 = vsub.f32 0.0, %v6235
          %v6278 = vsub.f32 0.0, %v6140
          %v6279 = vsub.f32 0.0, %v6189
          %v6280 = vsub.f32 0.0, %v6238
          %v6281 = vsub.f32 0.0, %v6142
          %v6282 = vsub.f32 0.0, %v6191
          %v6283 = vsub.f32 0.0, %v6240
          %v6284 = vsub.f32 0.0, %v6145
          %v6285 = vsub.f32 0.0, %v6194
          %v6286 = vsub.f32 0.0, %v6243
          %v6287 = vsub.f32 0.0, %v6147
          %v6288 = vsub.f32 0.0, %v6196
          %v6289 = vsub.f32 0.0, %v6245
          %v6290 = vsub.f32 0.0, %v6150
          %v6291 = vsub.f32 0.0, %v6199
          %v6292 = vsub.f32 0.0, %v6248
          %v6293 = vsub.f32 0.0, %v6152
          %v6294 = vsub.f32 0.0, %v6201
          %v6295 = vsub.f32 0.0, %v6250
          %v6296 = vsub.f32 0.0, %v6155
          %v6297 = vsub.f32 0.0, %v6204
          %v6298 = vsub.f32 0.0, %v6253
          %v6299 = vsub.f32 0.0, %v6157
          %v6300 = vsub.f32 0.0, %v6206
          %v6301 = vsub.f32 0.0, %v6255
          %v6302 = vsub.f32 0.0, %v6160
          %v6303 = vsub.f32 0.0, %v6209
          %v6304 = vsub.f32 0.0, %v6258
          %v6305 = vsub.f32 0.0, %v6162
          %v6306 = vsub.f32 0.0, %v6211
          %v6307 = vsub.f32 0.0, %v6260
          %v6308 = vsub.f32 0.0, %v6165
          %v6309 = vsub.f32 0.0, %v6214
          %v6310 = vsub.f32 0.0, %v6263
          %v6311 = vsub.f32 0.0, %v6167
          %v6312 = vsub.f32 0.0, %v6216
          %v6313 = vsub.f32 0.0, %v6265
          %v6314 = vsub.f32 0.0, %v6170
          %v6315 = vsub.f32 0.0, %v6219
          %v6316 = vsub.f32 0.0, %v6268
          %v6317 = vsub.f32 0.0, %v6172
          %v6318 = vsub.f32 0.0, %v6221
          %v6319 = vsub.f32 0.0, %v6270
          %v6320 = vmul.f32 %v6272, 1.442695
          %v6321 = vpow.pop %v6320
          %v6322 = vmul.f32 %v6273, 1.442695
          %v6323 = vpow.pop %v6322
          %v6324 = vmul.f32 %v6274, 1.442695
          %v6325 = vpow.pop %v6324
          %v6326 = vmul.f32 %v6275, 1.442695
          %v6327 = vpow.pop %v6326
          %v6328 = vmul.f32 %v6276, 1.442695
          %v6329 = vpow.pop %v6328
          %v6330 = vmul.f32 %v6277, 1.442695
          %v6331 = vpow.pop %v6330
          %v6332 = vmul.f32 %v6278, 1.442695
          %v6333 = vpow.pop %v6332
          %v6334 = vmul.f32 %v6279, 1.442695
          %v6335 = vpow.pop %v6334
          %v6336 = vmul.f32 %v6280, 1.442695
          %v6337 = vpow.pop %v6336
          %v6338 = vmul.f32 %v6281, 1.442695
          %v6339 = vpow.pop %v6338
          %v6340 = vmul.f32 %v6282, 1.442695
          %v6341 = vpow.pop %v6340
          %v6342 = vmul.f32 %v6283, 1.442695
          %v6343 = vpow.pop %v6342
          %v6344 = vmul.f32 %v6284, 1.442695
          %v6345 = vpow.pop %v6344
          %v6346 = vmul.f32 %v6285, 1.442695
          %v6347 = vpow.pop %v6346
          %v6348 = vmul.f32 %v6286, 1.442695
          %v6349 = vpow.pop %v6348
          %v6350 = vmul.f32 %v6287, 1.442695
          %v6351 = vpow.pop %v6350
          %v6352 = vmul.f32 %v6288, 1.442695
          %v6353 = vpow.pop %v6352
          %v6354 = vmul.f32 %v6289, 1.442695
          %v6355 = vpow.pop %v6354
          %v6356 = vmul.f32 %v6290, 1.442695
          %v6357 = vpow.pop %v6356
          %v6358 = vmul.f32 %v6291, 1.442695
          %v6359 = vpow.pop %v6358
          %v6360 = vmul.f32 %v6292, 1.442695
          %v6361 = vpow.pop %v6360
          %v6362 = vmul.f32 %v6293, 1.442695
          %v6363 = vpow.pop %v6362
          %v6364 = vmul.f32 %v6294, 1.442695
          %v6365 = vpow.pop %v6364
          %v6366 = vmul.f32 %v6295, 1.442695
          %v6367 = vpow.pop %v6366
          %v6368 = vmul.f32 %v6296, 1.442695
          %v6369 = vpow.pop %v6368
          %v6370 = vmul.f32 %v6297, 1.442695
          %v6371 = vpow.pop %v6370
          %v6372 = vmul.f32 %v6298, 1.442695
          %v6373 = vpow.pop %v6372
          %v6374 = vmul.f32 %v6299, 1.442695
          %v6375 = vpow.pop %v6374
          %v6376 = vmul.f32 %v6300, 1.442695
          %v6377 = vpow.pop %v6376
          %v6378 = vmul.f32 %v6301, 1.442695
          %v6379 = vpow.pop %v6378
          %v6380 = vmul.f32 %v6302, 1.442695
          %v6381 = vpow.pop %v6380
          %v6382 = vmul.f32 %v6303, 1.442695
          %v6383 = vpow.pop %v6382
          %v6384 = vmul.f32 %v6304, 1.442695
          %v6385 = vpow.pop %v6384
          %v6386 = vmul.f32 %v6305, 1.442695
          %v6387 = vpow.pop %v6386
          %v6388 = vmul.f32 %v6306, 1.442695
          %v6389 = vpow.pop %v6388
          %v6390 = vmul.f32 %v6307, 1.442695
          %v6391 = vpow.pop %v6390
          %v6392 = vmul.f32 %v6308, 1.442695
          %v6393 = vpow.pop %v6392
          %v6394 = vmul.f32 %v6309, 1.442695
          %v6395 = vpow.pop %v6394
          %v6396 = vmul.f32 %v6310, 1.442695
          %v6397 = vpow.pop %v6396
          %v6398 = vmul.f32 %v6311, 1.442695
          %v6399 = vpow.pop %v6398
          %v6400 = vmul.f32 %v6312, 1.442695
          %v6401 = vpow.pop %v6400
          %v6402 = vmul.f32 %v6313, 1.442695
          %v6403 = vpow.pop %v6402
          %v6404 = vmul.f32 %v6314, 1.442695
          %v6405 = vpow.pop %v6404
          %v6406 = vmul.f32 %v6315, 1.442695
          %v6407 = vpow.pop %v6406
          %v6408 = vmul.f32 %v6316, 1.442695
          %v6409 = vpow.pop %v6408
          %v6410 = vmul.f32 %v6317, 1.442695
          %v6411 = vpow.pop %v6410
          %v6412 = vmul.f32 %v6318, 1.442695
          %v6413 = vpow.pop %v6412
          %v6414 = vmul.f32 %v6319, 1.442695
          %v6415 = vpow.pop %v6414
          %v6416 = vadd.f32 %v6321, 1.0
          %v6417 = vadd.f32 %v6323, 1.0
          %v6418 = vadd.f32 %v6325, 1.0
          %v6419 = vadd.f32 %v6327, 1.0
          %v6420 = vadd.f32 %v6329, 1.0
          %v6421 = vadd.f32 %v6331, 1.0
          %v6422 = vadd.f32 %v6333, 1.0
          %v6423 = vadd.f32 %v6335, 1.0
          %v6424 = vadd.f32 %v6337, 1.0
          %v6425 = vadd.f32 %v6339, 1.0
          %v6426 = vadd.f32 %v6341, 1.0
          %v6427 = vadd.f32 %v6343, 1.0
          %v6428 = vadd.f32 %v6345, 1.0
          %v6429 = vadd.f32 %v6347, 1.0
          %v6430 = vadd.f32 %v6349, 1.0
          %v6431 = vadd.f32 %v6351, 1.0
          %v6432 = vadd.f32 %v6353, 1.0
          %v6433 = vadd.f32 %v6355, 1.0
          %v6434 = vadd.f32 %v6357, 1.0
          %v6435 = vadd.f32 %v6359, 1.0
          %v6436 = vadd.f32 %v6361, 1.0
          %v6437 = vadd.f32 %v6363, 1.0
          %v6438 = vadd.f32 %v6365, 1.0
          %v6439 = vadd.f32 %v6367, 1.0
          %v6440 = vadd.f32 %v6369, 1.0
          %v6441 = vadd.f32 %v6371, 1.0
          %v6442 = vadd.f32 %v6373, 1.0
          %v6443 = vadd.f32 %v6375, 1.0
          %v6444 = vadd.f32 %v6377, 1.0
          %v6445 = vadd.f32 %v6379, 1.0
          %v6446 = vadd.f32 %v6381, 1.0
          %v6447 = vadd.f32 %v6383, 1.0
          %v6448 = vadd.f32 %v6385, 1.0
          %v6449 = vadd.f32 %v6387, 1.0
          %v6450 = vadd.f32 %v6389, 1.0
          %v6451 = vadd.f32 %v6391, 1.0
          %v6452 = vadd.f32 %v6393, 1.0
          %v6453 = vadd.f32 %v6395, 1.0
          %v6454 = vadd.f32 %v6397, 1.0
          %v6455 = vadd.f32 %v6399, 1.0
          %v6456 = vadd.f32 %v6401, 1.0
          %v6457 = vadd.f32 %v6403, 1.0
          %v6458 = vadd.f32 %v6405, 1.0
          %v6459 = vadd.f32 %v6407, 1.0
          %v6460 = vadd.f32 %v6409, 1.0
          %v6461 = vadd.f32 %v6411, 1.0
          %v6462 = vadd.f32 %v6413, 1.0
          %v6463 = vadd.f32 %v6415, 1.0
          %v6464 = vrcp.pop %v6416
          %v6465 = vrcp.pop %v6417
          %v6466 = vrcp.pop %v6418
          %v6467 = vrcp.pop %v6419
          %v6468 = vrcp.pop %v6420
          %v6469 = vrcp.pop %v6421
          %v6470 = vrcp.pop %v6422
          %v6471 = vrcp.pop %v6423
          %v6472 = vrcp.pop %v6424
          %v6473 = vrcp.pop %v6425
          %v6474 = vrcp.pop %v6426
          %v6475 = vrcp.pop %v6427
          %v6476 = vrcp.pop %v6428
          %v6477 = vrcp.pop %v6429
          %v6478 = vrcp.pop %v6430
          %v6479 = vrcp.pop %v6431
          %v6480 = vrcp.pop %v6432
          %v6481 = vrcp.pop %v6433
          %v6482 = vrcp.pop %v6434
          %v6483 = vrcp.pop %v6435
          %v6484 = vrcp.pop %v6436
          %v6485 = vrcp.pop %v6437
          %v6486 = vrcp.pop %v6438
          %v6487 = vrcp.pop %v6439
          %v6488 = vrcp.pop %v6440
          %v6489 = vrcp.pop %v6441
          %v6490 = vrcp.pop %v6442
          %v6491 = vrcp.pop %v6443
          %v6492 = vrcp.pop %v6444
          %v6493 = vrcp.pop %v6445
          %v6494 = vrcp.pop %v6446
          %v6495 = vrcp.pop %v6447
          %v6496 = vrcp.pop %v6448
          %v6497 = vrcp.pop %v6449
          %v6498 = vrcp.pop %v6450
          %v6499 = vrcp.pop %v6451
          %v6500 = vrcp.pop %v6452
          %v6501 = vrcp.pop %v6453
          %v6502 = vrcp.pop %v6454
          %v6503 = vrcp.pop %v6455
          %v6504 = vrcp.pop %v6456
          %v6505 = vrcp.pop %v6457
          %v6506 = vrcp.pop %v6458
          %v6507 = vrcp.pop %v6459
          %v6508 = vrcp.pop %v6460
          %v6509 = vrcp.pop %v6461
          %v6510 = vrcp.pop %v6462
          %v6511 = vrcp.pop %v6463
          %v6512 = vmul.f32 %v6135, %v6464
          %v6513 = vmul.f32 %v6184, %v6465
          %v6514 = vmul.f32 %v6233, %v6466
          %v6515 = vmul.f32 %v6137, %v6467
          %v6516 = vmul.f32 %v6186, %v6468
          %v6517 = vmul.f32 %v6235, %v6469
          %v6518 = vmul.f32 %v6140, %v6470
          %v6519 = vmul.f32 %v6189, %v6471
          %v6520 = vmul.f32 %v6238, %v6472
          %v6521 = vmul.f32 %v6142, %v6473
          %v6522 = vmul.f32 %v6191, %v6474
          %v6523 = vmul.f32 %v6240, %v6475
          %v6524 = vmul.f32 %v6145, %v6476
          %v6525 = vmul.f32 %v6194, %v6477
          %v6526 = vmul.f32 %v6243, %v6478
          %v6527 = vmul.f32 %v6147, %v6479
          %v6528 = vmul.f32 %v6196, %v6480
          %v6529 = vmul.f32 %v6245, %v6481
          %v6530 = vmul.f32 %v6150, %v6482
          %v6531 = vmul.f32 %v6199, %v6483
          %v6532 = vmul.f32 %v6248, %v6484
          %v6533 = vmul.f32 %v6152, %v6485
          %v6534 = vmul.f32 %v6201, %v6486
          %v6535 = vmul.f32 %v6250, %v6487
          %v6536 = vmul.f32 %v6155, %v6488
          %v6537 = vmul.f32 %v6204, %v6489
          %v6538 = vmul.f32 %v6253, %v6490
          %v6539 = vmul.f32 %v6157, %v6491
          %v6540 = vmul.f32 %v6206, %v6492
          %v6541 = vmul.f32 %v6255, %v6493
          %v6542 = vmul.f32 %v6160, %v6494
          %v6543 = vmul.f32 %v6209, %v6495
          %v6544 = vmul.f32 %v6258, %v6496
          %v6545 = vmul.f32 %v6162, %v6497
          %v6546 = vmul.f32 %v6211, %v6498
          %v6547 = vmul.f32 %v6260, %v6499
          %v6548 = vmul.f32 %v6165, %v6500
          %v6549 = vmul.f32 %v6214, %v6501
          %v6550 = vmul.f32 %v6263, %v6502
          %v6551 = vmul.f32 %v6167, %v6503
          %v6552 = vmul.f32 %v6216, %v6504
          %v6553 = vmul.f32 %v6265, %v6505
          %v6554 = vmul.f32 %v6170, %v6506
          %v6555 = vmul.f32 %v6219, %v6507
          %v6556 = vmul.f32 %v6268, %v6508
          %v6557 = vmul.f32 %v6172, %v6509
          %v6558 = vmul.f32 %v6221, %v6510
          %v6559 = vmul.f32 %v6270, %v6511
          %v6560 = vpack.c.bf16 %v6515, %v6512
          %v6561 = vpack.c.bf16 %v6516, %v6513
          %v6562 = vpack.c.bf16 %v6517, %v6514
          %v6563 = vpack.c.bf16 %v6521, %v6518
          %v6564 = vpack.c.bf16 %v6522, %v6519
          %v6565 = vpack.c.bf16 %v6523, %v6520
          %v6566 = vpack.c.bf16 %v6527, %v6524
          %v6567 = vpack.c.bf16 %v6528, %v6525
          %v6568 = vpack.c.bf16 %v6529, %v6526
          %v6569 = vpack.c.bf16 %v6533, %v6530
          %v6570 = vpack.c.bf16 %v6534, %v6531
          %v6571 = vpack.c.bf16 %v6535, %v6532
          %v6572 = vpack.c.bf16 %v6539, %v6536
          %v6573 = vpack.c.bf16 %v6540, %v6537
          %v6574 = vpack.c.bf16 %v6541, %v6538
          %v6575 = vpack.c.bf16 %v6545, %v6542
          %v6576 = vpack.c.bf16 %v6546, %v6543
          %v6577 = vpack.c.bf16 %v6547, %v6544
          %v6578 = vpack.c.bf16 %v6551, %v6548
          %v6579 = vpack.c.bf16 %v6552, %v6549
          %v6580 = vpack.c.bf16 %v6553, %v6550
          %v6581 = vpack.c.bf16 %v6557, %v6554
          %v6582 = vpack.c.bf16 %v6558, %v6555
          %v6583 = vpack.c.bf16 %v6559, %v6556
          %v6584 = vld [vmem:[#allocation21] sm:$0xf]
          %v6585 = vld [vmem:[#allocation21 + $0x4] sm:$0xf]
          %v6586 = vld [vmem:[#allocation21 + $0x8] sm:$0xf]
          %v6587 = vld [vmem:[#allocation21 + $0xc] sm:$0xf]
          %v6588 = vld [vmem:[#allocation21 + $0x10] sm:$0xf]
          %v6589 = vld [vmem:[#allocation21 + $0x14] sm:$0xf]
          %v6590 = vld [vmem:[#allocation21 + $0x18] sm:$0xf]
          %v6591 = vld [vmem:[#allocation21 + $0x1c] sm:$0xf]
          %v6592 = vld [vmem:[#allocation21 + $0x20] sm:$0xf]
          %v6593 = vld [vmem:[#allocation21 + $0x24] sm:$0xf]
          %v6594 = vld [vmem:[#allocation21 + $0x28] sm:$0xf]
          %v6595 = vld [vmem:[#allocation21 + $0x2c] sm:$0xf]
          %v6596 = vld [vmem:[#allocation21 + $0x30] sm:$0xf]
          %v6597 = vld [vmem:[#allocation21 + $0x34] sm:$0xf]
          %v6598 = vld [vmem:[#allocation21 + $0x38] sm:$0xf]
          %v6599 = vld [vmem:[#allocation21 + $0x3c] sm:$0xf]
          %v6600 = vld [vmem:[#allocation21 + $0x40] sm:$0xf]
          %v6601 = vld [vmem:[#allocation21 + $0x44] sm:$0xf]
          %v6602 = vld [vmem:[#allocation21 + $0x48] sm:$0xf]
          %v6603 = vld [vmem:[#allocation21 + $0x4c] sm:$0xf]
          %v6604 = vld [vmem:[#allocation21 + $0x50] sm:$0xf]
          %v6605 = vld [vmem:[#allocation21 + $0x54] sm:$0xf]
          %v6606 = vld [vmem:[#allocation21 + $0x58] sm:$0xf]
          %v6607 = vld [vmem:[#allocation21 + $0x5c] sm:$0xf]
          %v6608 = vld [vmem:[#allocation21 + $0x60] sm:$0xf]
          %v6609 = vld [vmem:[#allocation21 + $0x64] sm:$0xf]
          %v6610 = vld [vmem:[#allocation21 + $0x68] sm:$0xf]
          %v6611 = vld [vmem:[#allocation21 + $0x6c] sm:$0xf]
          %v6612 = vld [vmem:[#allocation21 + $0x70] sm:$0xf]
          %v6613 = vld [vmem:[#allocation21 + $0x74] sm:$0xf]
          %v6614 = vld [vmem:[#allocation21 + $0x78] sm:$0xf]
          %v6615 = vld [vmem:[#allocation21 + $0x7c] sm:$0xf]
          %v6616 = vld [vmem:[#allocation21 + $0x80] sm:$0xf]
          %v6617 = vld [vmem:[#allocation21 + $0x84] sm:$0xf]
          %v6618 = vld [vmem:[#allocation21 + $0x88] sm:$0xf]
          %v6619 = vld [vmem:[#allocation21 + $0x8c] sm:$0xf]
          %v6620 = vld [vmem:[#allocation21 + $0x90] sm:$0xf]
          %v6621 = vld [vmem:[#allocation21 + $0x94] sm:$0xf]
          %v6622 = vld [vmem:[#allocation22] sm:$0x1]
          %v6624 = vperm.slane %v6622, 0
          %v6664 = vunpack.c.l.b16 %v6584
          %v6665 = vunpack.c.l.b16 %v6585
          %v6666 = vunpack.c.l.b16 %v6586
          %v6667 = vunpack.c.l.b16 %v6587
          %v6668 = vunpack.c.l.b16 %v6588
          %v6669 = vunpack.c.l.b16 %v6589
          %v6670 = vunpack.c.l.b16 %v6590
          %v6671 = vunpack.c.l.b16 %v6591
          %v6672 = vunpack.c.l.b16 %v6592
          %v6673 = vunpack.c.l.b16 %v6593
          %v6674 = vunpack.c.l.b16 %v6594
          %v6675 = vunpack.c.l.b16 %v6595
          %v6676 = vunpack.c.l.b16 %v6596
          %v6677 = vunpack.c.l.b16 %v6597
          %v6678 = vunpack.c.l.b16 %v6598
          %v6679 = vunpack.c.l.b16 %v6599
          %v6680 = vunpack.c.l.b16 %v6600
          %v6681 = vunpack.c.l.b16 %v6601
          %v6682 = vunpack.c.l.b16 %v6602
          %v6683 = vunpack.c.l.b16 %v6603
          %v6684 = vunpack.c.l.b16 %v6604
          %v6685 = vunpack.c.l.b16 %v6605
          %v6686 = vunpack.c.l.b16 %v6606
          %v6687 = vunpack.c.l.b16 %v6607
          %v6688 = vunpack.c.l.b16 %v6608
          %v6689 = vunpack.c.l.b16 %v6609
          %v6690 = vunpack.c.l.b16 %v6610
          %v6691 = vunpack.c.l.b16 %v6611
          %v6692 = vunpack.c.l.b16 %v6612
          %v6693 = vunpack.c.l.b16 %v6613
          %v6694 = vunpack.c.l.b16 %v6614
          %v6695 = vunpack.c.l.b16 %v6615
          %v6696 = vunpack.c.l.b16 %v6616
          %v6697 = vunpack.c.l.b16 %v6617
          %v6698 = vunpack.c.l.b16 %v6618
          %v6699 = vunpack.c.l.b16 %v6619
          %v6700 = vunpack.c.l.b16 %v6620
          %v6701 = vunpack.c.l.b16 %v6621
          %v6702 = vpack.c.b16 %v6665, %v6664
          %v6703 = vpack.c.b16 %v6667, %v6666
          %v6704 = vpack.c.b16 %v6669, %v6668
          %v6705 = vpack.c.b16 %v6671, %v6670
          %v6706 = vpack.c.b16 %v6673, %v6672
          %v6707 = vpack.c.b16 %v6675, %v6674
          %v6708 = vpack.c.b16 %v6677, %v6676
          %v6709 = vpack.c.b16 %v6679, %v6678
          %v6710 = vpack.c.b16 %v6681, %v6680
          %v6711 = vpack.c.b16 %v6683, %v6682
          %v6712 = vpack.c.b16 %v6685, %v6684
          %v6713 = vpack.c.b16 %v6687, %v6686
          %v6714 = vpack.c.b16 %v6689, %v6688
          %v6715 = vpack.c.b16 %v6691, %v6690
          %v6716 = vpack.c.b16 %v6693, %v6692
          %v6717 = vpack.c.b16 %v6695, %v6694
          %v6718 = vpack.c.b16 %v6697, %v6696
          %v6719 = vpack.c.b16 %v6699, %v6698
          %v6720 = vpack.c.b16 %v6701, %v6700
          %vm6740 = vcmask 392192
          %v6742 = vsel %vm6740, %v6562, 0
          %v6745 = vsel %vm6740, %v6565, 0
          %v6748 = vsel %vm6740, %v6568, 0
          %v6751 = vsel %vm6740, %v6571, 0
          %v6754 = vsel %vm6740, %v6574, 0
          %v6757 = vsel %vm6740, %v6577, 0
          %v6760 = vsel %vm6740, %v6580, 0
          %v6763 = vsel %vm6740, %v6583, 0
          %6765 = vmatpush.bf16.msra.mxu0 %v6709
          %6766 = vmatpush.bf16.msra.mxu0 %v6708
          %6767 = vmatpush.bf16.msra.mxu0 %v6707
          %6768 = vmatpush.bf16.msra.mxu0 %v6706
          %6769 = vmatpush.bf16.msra.mxu0 %v6705
          %6770 = vmatpush.bf16.msra.mxu0 %v6704
          %6771 = vmatpush.bf16.msra.mxu0 %v6703
          %6772 = vmatpush.bf16.msra.mxu0 %v6702
          %6773 = vmatmul.bf16.gmra.mxu0 %v6560
          %v6774 = vpop.f32.mrf.mxu0
          %v6775 = vadd.f32 %v6624, %v6774
          %v6776 = vpop.f32.mrf.mxu0
          %v6777 = vadd.f32 %v6624, %v6776
          %6778 = vmatmul.bf16.gmra.mxu0 %v6563
          %v6779 = vpop.f32.mrf.mxu0
          %v6780 = vadd.f32 %v6624, %v6779
          %v6781 = vpop.f32.mrf.mxu0
          %v6782 = vadd.f32 %v6624, %v6781
          %6783 = vmatmul.bf16.gmra.mxu0 %v6566
          %v6784 = vpop.f32.mrf.mxu0
          %v6785 = vadd.f32 %v6624, %v6784
          %v6786 = vpop.f32.mrf.mxu0
          %v6787 = vadd.f32 %v6624, %v6786
          %6788 = vmatmul.bf16.gmra.mxu0 %v6569
          %v6789 = vpop.f32.mrf.mxu0
          %v6790 = vadd.f32 %v6624, %v6789
          %v6791 = vpop.f32.mrf.mxu0
          %v6792 = vadd.f32 %v6624, %v6791
          %6793 = vmatmul.bf16.gmra.mxu0 %v6572
          %v6794 = vpop.f32.mrf.mxu0
          %v6795 = vadd.f32 %v6624, %v6794
          %v6796 = vpop.f32.mrf.mxu0
          %v6797 = vadd.f32 %v6624, %v6796
          %6798 = vmatmul.bf16.gmra.mxu0 %v6575
          %v6799 = vpop.f32.mrf.mxu0
          %v6800 = vadd.f32 %v6624, %v6799
          %v6801 = vpop.f32.mrf.mxu0
          %v6802 = vadd.f32 %v6624, %v6801
          %6803 = vmatmul.bf16.gmra.mxu0 %v6578
          %v6804 = vpop.f32.mrf.mxu0
          %v6805 = vadd.f32 %v6624, %v6804
          %v6806 = vpop.f32.mrf.mxu0
          %v6807 = vadd.f32 %v6624, %v6806
          %6808 = vmatmul.bf16.gmra.mxu0 %v6581
          %v6809 = vpop.f32.mrf.mxu0
          %v6810 = vadd.f32 %v6624, %v6809
          %v6811 = vpop.f32.mrf.mxu0
          %v6812 = vadd.f32 %v6624, %v6811
          %6813 = vdwg.mxu0
          %6814 = vmatpush.bf16.msra.mxu0 %v6717
          %6815 = vmatpush.bf16.msra.mxu0 %v6716
          %6816 = vmatpush.bf16.msra.mxu0 %v6715
          %6817 = vmatpush.bf16.msra.mxu0 %v6714
          %6818 = vmatpush.bf16.msra.mxu0 %v6713
          %6819 = vmatpush.bf16.msra.mxu0 %v6712
          %6820 = vmatpush.bf16.msra.mxu0 %v6711
          %6821 = vmatpush.bf16.msra.mxu0 %v6710
          %6822 = vmatmul.bf16.gmra.mxu0 %v6561
          %v6823 = vpop.f32.mrf.mxu0
          %v6824 = vadd.f32 %v6775, %v6823
          %v6825 = vpop.f32.mrf.mxu0
          %v6826 = vadd.f32 %v6777, %v6825
          %6827 = vmatmul.bf16.gmra.mxu0 %v6564
          %v6828 = vpop.f32.mrf.mxu0
          %v6829 = vadd.f32 %v6780, %v6828
          %v6830 = vpop.f32.mrf.mxu0
          %v6831 = vadd.f32 %v6782, %v6830
          %6832 = vmatmul.bf16.gmra.mxu0 %v6567
          %v6833 = vpop.f32.mrf.mxu0
          %v6834 = vadd.f32 %v6785, %v6833
          %v6835 = vpop.f32.mrf.mxu0
          %v6836 = vadd.f32 %v6787, %v6835
          %6837 = vmatmul.bf16.gmra.mxu0 %v6570
          %v6838 = vpop.f32.mrf.mxu0
          %v6839 = vadd.f32 %v6790, %v6838
          %v6840 = vpop.f32.mrf.mxu0
          %v6841 = vadd.f32 %v6792, %v6840
          %6842 = vmatmul.bf16.gmra.mxu0 %v6573
          %v6843 = vpop.f32.mrf.mxu0
          %v6844 = vadd.f32 %v6795, %v6843
          %v6845 = vpop.f32.mrf.mxu0
          %v6846 = vadd.f32 %v6797, %v6845
          %6847 = vmatmul.bf16.gmra.mxu0 %v6576
          %v6848 = vpop.f32.mrf.mxu0
          %v6849 = vadd.f32 %v6800, %v6848
          %v6850 = vpop.f32.mrf.mxu0
          %v6851 = vadd.f32 %v6802, %v6850
          %6852 = vmatmul.bf16.gmra.mxu0 %v6579
          %v6853 = vpop.f32.mrf.mxu0
          %v6854 = vadd.f32 %v6805, %v6853
          %v6855 = vpop.f32.mrf.mxu0
          %v6856 = vadd.f32 %v6807, %v6855
          %6857 = vmatmul.bf16.gmra.mxu0 %v6582
          %v6858 = vpop.f32.mrf.mxu0
          %v6859 = vadd.f32 %v6810, %v6858
          %v6860 = vpop.f32.mrf.mxu0
          %v6861 = vadd.f32 %v6812, %v6860
          %6862 = vdwg.mxu0
          %6863 = vmatpush.bf16.msra.mxu0 0
          %6864 = vmatpush.bf16.msra.mxu0 0
          %6865 = vmatpush.bf16.msra.mxu0 0
          %6866 = vmatpush.bf16.msra.mxu0 0
          %6867 = vmatpush.bf16.msra.mxu0 0
          %6868 = vmatpush.bf16.msra.mxu0 %v6720
          %6869 = vmatpush.bf16.msra.mxu0 %v6719
          %6870 = vmatpush.bf16.msra.mxu0 %v6718
          %6871 = vmatmul.bf16.gmra.mxu0 %v6742
          %v6872 = vpop.f32.mrf.mxu0
          %v6873 = vadd.f32 %v6824, %v6872
          %v6874 = vpop.f32.mrf.mxu0
          %v6875 = vadd.f32 %v6826, %v6874
          %6876 = vmatmul.bf16.gmra.mxu0 %v6745
          %v6877 = vpop.f32.mrf.mxu0
          %v6878 = vadd.f32 %v6829, %v6877
          %v6879 = vpop.f32.mrf.mxu0
          %v6880 = vadd.f32 %v6831, %v6879
          %6881 = vmatmul.bf16.gmra.mxu0 %v6748
          %v6882 = vpop.f32.mrf.mxu0
          %v6883 = vadd.f32 %v6834, %v6882
          %v6884 = vpop.f32.mrf.mxu0
          %v6885 = vadd.f32 %v6836, %v6884
          %6886 = vmatmul.bf16.gmra.mxu0 %v6751
          %v6887 = vpop.f32.mrf.mxu0
          %v6888 = vadd.f32 %v6839, %v6887
          %v6889 = vpop.f32.mrf.mxu0
          %v6890 = vadd.f32 %v6841, %v6889
          %6891 = vmatmul.bf16.gmra.mxu0 %v6754
          %v6892 = vpop.f32.mrf.mxu0
          %v6893 = vadd.f32 %v6844, %v6892
          %v6894 = vpop.f32.mrf.mxu0
          %v6895 = vadd.f32 %v6846, %v6894
          %6896 = vmatmul.bf16.gmra.mxu0 %v6757
          %v6897 = vpop.f32.mrf.mxu0
          %v6898 = vadd.f32 %v6849, %v6897
          %v6899 = vpop.f32.mrf.mxu0
          %v6900 = vadd.f32 %v6851, %v6899
          %6901 = vmatmul.bf16.gmra.mxu0 %v6760
          %v6902 = vpop.f32.mrf.mxu0
          %v6903 = vadd.f32 %v6854, %v6902
          %v6904 = vpop.f32.mrf.mxu0
          %v6905 = vadd.f32 %v6856, %v6904
          %6906 = vmatmul.bf16.gmra.mxu0 %v6763
          %v6907 = vpop.f32.mrf.mxu0
          %v6908 = vadd.f32 %v6859, %v6907
          %v6909 = vpop.f32.mrf.mxu0
          %v6910 = vadd.f32 %v6861, %v6909
          %6911 = vdwg.mxu0
          %v6912 = vld [vmem:[%s4] sm:$0xff]
          %v6913 = vld [vmem:[%s4 + $0x8] sm:$0xff]
          %v6914 = vld [vmem:[%s4 + $0x10] sm:$0xff]
          %v6915 = vld [vmem:[%s4 + $0x18] sm:$0xff]
          %v6916 = vld [vmem:[%s4 + $0x20] sm:$0xff]
          %v6917 = vld [vmem:[%s4 + $0x28] sm:$0xff]
          %v6918 = vld [vmem:[%s4 + $0x30] sm:$0xff]
          %v6919 = vld [vmem:[%s4 + $0x38] sm:$0xff]
          %v6920 = vld [vmem:[%s4 + $0x40] sm:$0xff]
          %v6921 = vld [vmem:[%s4 + $0x48] sm:$0xff]
          %v6922 = vld [vmem:[%s4 + $0x50] sm:$0xff]
          %v6923 = vld [vmem:[%s4 + $0x58] sm:$0xff]
          %v6924 = vld [vmem:[%s4 + $0x60] sm:$0xff]
          %v6925 = vld [vmem:[%s4 + $0x68] sm:$0xff]
          %v6926 = vld [vmem:[%s4 + $0x70] sm:$0xff]
          %v6927 = vld [vmem:[%s4 + $0x78] sm:$0xff]
          %6929 = vset.pattern.permute.xlu0 0
          %6930 = vperm.xlu0 %6929, %v6912
          %v6931 = vpop.permute.xlu0 %6930
          %6934 = vset.pattern.permute.xlu0 0
          %6935 = vperm.xlu0 %6934, %v6913
          %v6936 = vpop.permute.xlu0 %6935
          %6939 = vset.pattern.permute.xlu0 0
          %6940 = vperm.xlu0 %6939, %v6914
          %v6941 = vpop.permute.xlu0 %6940
          %6944 = vset.pattern.permute.xlu0 0
          %6945 = vperm.xlu0 %6944, %v6915
          %v6946 = vpop.permute.xlu0 %6945
          %6949 = vset.pattern.permute.xlu0 0
          %6950 = vperm.xlu0 %6949, %v6916
          %v6951 = vpop.permute.xlu0 %6950
          %6954 = vset.pattern.permute.xlu0 0
          %6955 = vperm.xlu0 %6954, %v6917
          %v6956 = vpop.permute.xlu0 %6955
          %6959 = vset.pattern.permute.xlu0 0
          %6960 = vperm.xlu0 %6959, %v6918
          %v6961 = vpop.permute.xlu0 %6960
          %6964 = vset.pattern.permute.xlu0 0
          %6965 = vperm.xlu0 %6964, %v6919
          %v6966 = vpop.permute.xlu0 %6965
          %6969 = vset.pattern.permute.xlu0 0
          %6970 = vperm.xlu0 %6969, %v6920
          %v6971 = vpop.permute.xlu0 %6970
          %6974 = vset.pattern.permute.xlu0 0
          %6975 = vperm.xlu0 %6974, %v6921
          %v6976 = vpop.permute.xlu0 %6975
          %6979 = vset.pattern.permute.xlu0 0
          %6980 = vperm.xlu0 %6979, %v6922
          %v6981 = vpop.permute.xlu0 %6980
          %6984 = vset.pattern.permute.xlu0 0
          %6985 = vperm.xlu0 %6984, %v6923
          %v6986 = vpop.permute.xlu0 %6985
          %6989 = vset.pattern.permute.xlu0 0
          %6990 = vperm.xlu0 %6989, %v6924
          %v6991 = vpop.permute.xlu0 %6990
          %6994 = vset.pattern.permute.xlu0 0
          %6995 = vperm.xlu0 %6994, %v6925
          %v6996 = vpop.permute.xlu0 %6995
          %6999 = vset.pattern.permute.xlu0 0
          %7000 = vperm.xlu0 %6999, %v6926
          %v7001 = vpop.permute.xlu0 %7000
          %7004 = vset.pattern.permute.xlu0 0
          %7005 = vperm.xlu0 %7004, %v6927
          %v7006 = vpop.permute.xlu0 %7005
          %v7008 = vadd.f32 %v6931, %v6873
          %v7009 = vadd.f32 %v6936, %v6875
          %v7010 = vadd.f32 %v6941, %v6878
          %v7011 = vadd.f32 %v6946, %v6880
          %v7012 = vadd.f32 %v6951, %v6883
          %v7013 = vadd.f32 %v6956, %v6885
          %v7014 = vadd.f32 %v6961, %v6888
          %v7015 = vadd.f32 %v6966, %v6890
          %v7016 = vadd.f32 %v6971, %v6893
          %v7017 = vadd.f32 %v6976, %v6895
          %v7018 = vadd.f32 %v6981, %v6898
          %v7019 = vadd.f32 %v6986, %v6900
          %v7020 = vadd.f32 %v6991, %v6903
          %v7021 = vadd.f32 %v6996, %v6905
          %v7022 = vadd.f32 %v7001, %v6908
          %v7023 = vadd.f32 %v7006, %v6910
          %7024 = vst [vmem:[%s27] sm:$0xff] %v7008
          %7025 = vst [vmem:[%s27 + $0x8] sm:$0xff] %v7009
          %7026 = vst [vmem:[%s27 + $0x10] sm:$0xff] %v7010
          %7027 = vst [vmem:[%s27 + $0x18] sm:$0xff] %v7011
          %7028 = vst [vmem:[%s27 + $0x20] sm:$0xff] %v7012
          %7029 = vst [vmem:[%s27 + $0x28] sm:$0xff] %v7013
          %7030 = vst [vmem:[%s27 + $0x30] sm:$0xff] %v7014
          %7031 = vst [vmem:[%s27 + $0x38] sm:$0xff] %v7015
          %7032 = vst [vmem:[%s27 + $0x40] sm:$0xff] %v7016
          %7033 = vst [vmem:[%s27 + $0x48] sm:$0xff] %v7017
          %7034 = vst [vmem:[%s27 + $0x50] sm:$0xff] %v7018
          %7035 = vst [vmem:[%s27 + $0x58] sm:$0xff] %v7019
          %7036 = vst [vmem:[%s27 + $0x60] sm:$0xff] %v7020
          %7037 = vst [vmem:[%s27 + $0x68] sm:$0xff] %v7021
          %7038 = vst [vmem:[%s27 + $0x70] sm:$0xff] %v7022
          %7039 = vst [vmem:[%s27 + $0x78] sm:$0xff] %v7023
        $region200: #{mpnn_forward.1} parent=127 // pred_fallthru
          _
        // Predicated region
        $region201: #{mpnn_forward.1} parent=127 // pred_check
          %p7040 = pneg %p672
        $region202: #{mpnn_forward.1} parent=127 // pred_check_branch
          %7042 = sbr.rel (%p7040) target = $region204
        $region203: #{mpnn_forward.1} parent=127 // pred_region
          _
        $region204: #{mpnn_forward.1} parent=127 // pred_fallthru
          _
        // Predicated region
        $region205: #{mpnn_forward.1} parent=127 // pred_check
          %p7043 = pneg %p672
        $region206: #{mpnn_forward.1} parent=127 // pred_check_branch
          %7045 = sbr.rel (%p7043) target = $region208
        $region207: #{mpnn_forward.1} parent=127 // pred_region
          _
        $region208: #{mpnn_forward.1} parent=127 // pred_fallthru
          _
      $region128: #{mpnn_forward.1} parent=5 // pred_fallthru
        _
      %p7046 = scmp.le.s32.totalorder 2, %s37
      // Predicated region
      $region209: #{mpnn_forward.1} parent=5 // pred_check
        %p7047 = pneg %p7046
      $region210: #{mpnn_forward.1} parent=5 // pred_check_branch
        %7049 = sbr.rel (%p7047) target = $region212
      $region211: #{mpnn_forward.1} parent=5 // pred_region
        %s7050 = ssub.s32 %s37, 2
      $region212: #{mpnn_forward.1} parent=5 // pred_fallthru
        _
    $region6: #{mpnn_forward.1} parent=1 // loop_footer
      %s41 = sadd.s32 1, %s37
    $region7: #{mpnn_forward.1} parent=1 // loop_footer_branch
      %36 = sbr.rel target = $region3
    $region8: #{mpnn_forward.1} parent=1 // loop_exit
      _
    %7051 = vsyncpa [#allocation4], 1
    %s7052 = scalar_lea.sflag [#allocation4], 1
    %7053 = vsyncpa %s7052, 1
    %7054 = vsyncpa [#allocation6], 1
    %7055 = vsyncpa [#allocation9], 1
    %7056 = vsyncpa [#allocation12], 1

</llo_original>
